<compile_context>
chip_gen: v6e
topology: v6e:2x2x1
jax: 0.10.0
libtpu: 0.0.40
codegen_flags: <defaults>
</compile_context>

<pallas_src>
import functools

import jax
import jax.numpy as jnp
from jax.experimental import pallas as pl
from jax.experimental.pallas import tpu as pltpu


def _lrelu(v):
    # LeakyReLU(negative_slope=0.2), as in the fgsim module
    return jnp.where(v >= 0, v, 0.2 * v)


def _pointnet_kernel(k, n_pts, bt,  # static python ints, closed over
                     x_ref,
                     s_w1, s_b1, s_w2, s_b2, s_w3, s_b3,
                     s_l1, s_lb1, s_l2, s_lb2, s_l3, s_lb3,
                     m_w1, m_b1, m_w2, m_b2, m_w3, m_b3,
                     out_g_ref, out_t_ref):
    f32 = jnp.float32
    bf16 = jnp.bfloat16
    btn = bt * n_pts

    def dot(a, b):
        return jnp.dot(a, b, preferred_element_type=f32)

    x = x_ref[...]                                    # (Bt*N, K) f32, channels-last

    # 0/1 per-sample sum-pooling matrices (built on the VPU; MXU does the sums).
    row = jax.lax.broadcasted_iota(jnp.int32, (bt, btn), 0)
    col = jax.lax.broadcasted_iota(jnp.int32, (bt, btn), 1)
    pool = jnp.logical_and(col >= row * n_pts,
                           col < (row + 1) * n_pts).astype(f32)        # (Bt, Bt*N)
    row_t = jax.lax.broadcasted_iota(jnp.int32, (btn, bt), 0)
    col_t = jax.lax.broadcasted_iota(jnp.int32, (btn, bt), 1)
    pool_t = jnp.logical_and(row_t >= col_t * n_pts,
                             row_t < (col_t + 1) * n_pts).astype(f32)  # (Bt*N, Bt)

    # ---------------- STNkd(k) ----------------
    h = _lrelu(dot(x, s_w1[...]) + s_b1[...])                          # (BtN, 64)
    h = _lrelu(dot(h.astype(bf16), s_w2[...]) + s_b2[...])             # (BtN, 128)
    h = _lrelu(dot(h.astype(bf16), s_w3[...]) + s_b3[...])             # (BtN, 1024)
    g = dot(pool, h)                                                   # (Bt, 1024): per-sample sum over points
    f = _lrelu(dot(g.astype(bf16), s_l1[...]) + s_lb1[...])            # (Bt, 512)
    f = _lrelu(dot(f.astype(bf16), s_l2[...]) + s_lb2[...])            # (Bt, 256)
    # final Linear(256, k*k) as one flat dot; identity matrix is folded into the bias
    trans = dot(f, s_l3[...]) + s_lb3[...]                             # (Bt, K*K), lane-dense
    out_t_ref[...] = trans

    # ---------------- input transform (torch.bmm), vectorized over the tile ----
    trans_rep = dot(pool_t, trans)                                     # (BtN, K*K): each point gets its sample's transform
    xt = x[:, 0:1] * trans_rep[:, 0:k]
    for i in range(1, k):                                              # static, K is tiny
        xt = xt + x[:, i:i + 1] * trans_rep[:, i * k:(i + 1) * k]      # (BtN, K)

    # ---------------- PointNetfeat seq1 + seq2 ----------------
    y = _lrelu(dot(xt, m_w1[...]) + m_b1[...])                         # (BtN, 64)
    y = _lrelu(dot(y.astype(bf16), m_w2[...]) + m_b2[...])             # (BtN, 128)
    # Last layer (Conv1d(128,1024)+BN, no activation) commutes with the point
    # sum: sum_n(y @ W + b) = (sum_n y) @ W + N*b  ->  pool first (N x fewer FLOPs).
    y_sum = dot(pool, y)                                               # (Bt, 128)
    out_g_ref[...] = dot(y_sum, m_w3[...]) + float(n_pts) * m_b3[...]  # (Bt, 1024)


def init_params(key, k):
    """Deterministic synthetic parameters with BatchNorm (eval mode) folded in.

    Wide matmul weights are stored in bfloat16 (fed to the MXU with f32
    accumulation); tiny weights, all biases and the final transform weight stay
    in f32 for fidelity."""
    keys = iter(jax.random.split(key, 64))
    nk = lambda: next(keys)
    bf16 = jnp.bfloat16

    def conv_bn(cin, cout, dtype=jnp.float32):
        # conv/linear weight in "used" layout (Cin, Cout), BN folded (eps=1e-5)
        w = 0.1 * jax.random.normal(nk(), (cin, cout), jnp.float32)
        b = 0.1 * jax.random.normal(nk(), (cout,), jnp.float32)
        gamma = 1.0 + 0.1 * jax.random.normal(nk(), (cout,), jnp.float32)
        beta = 0.1 * jax.random.normal(nk(), (cout,), jnp.float32)
        mean = 0.1 * jax.random.normal(nk(), (cout,), jnp.float32)
        var = 1.0 + 0.1 * jax.random.uniform(nk(), (cout,), jnp.float32)
        scale = gamma / jnp.sqrt(var + 1e-5)
        w_folded = (w * scale[None, :]).astype(dtype)
        b_folded = ((b - mean) * scale + beta)[None, :].astype(jnp.float32)
        return w_folded, b_folded

    # STNkd(k).seq1
    s_w1, s_b1 = conv_bn(k, 64)                    # tiny contraction -> keep f32
    s_w2, s_b2 = conv_bn(64, 128, bf16)
    s_w3, s_b3 = conv_bn(128, 1024, bf16)
    # STNkd(k).seq2: Linear+BN, Linear+BN
    s_l1, s_lb1 = conv_bn(1024, 512, bf16)
    s_l2, s_lb2 = conv_bn(512, 256, bf16)
    # final Linear(256, k*k), no BN; torch weight layout (out, in) -> used layout
    # (in, out); the identity matrix is folded into the flat bias.
    w3_t = 0.1 * jax.random.normal(nk(), (k * k, 256), jnp.float32)
    b3 = 0.1 * jax.random.normal(nk(), (k * k,), jnp.float32)
    s_l3 = jnp.transpose(w3_t)                                          # (256, k*k)
    s_lb3 = (b3 + jnp.eye(k, dtype=jnp.float32).reshape(-1))[None, :]   # (1, k*k)
    # PointNetfeat.seq1 (k->64) and seq2 (64->128->1024)
    m_w1, m_b1 = conv_bn(k, 64)
    m_w2, m_b2 = conv_bn(64, 128, bf16)
    m_w3, m_b3 = conv_bn(128, 1024)                # post-fold matmul is tiny -> keep f32

    return [s_w1, s_b1, s_w2, s_b2, s_w3, s_b3,
            s_l1, s_lb1, s_l2, s_lb2, s_l3, s_lb3,
            m_w1, m_b1, m_w2, m_b2, m_w3, m_b3]


def _pick_batch_tile(batch):
    # Prefer a sublane-aligned (multiple of 8) batch tile so output blocks are
    # (8k, lanes); otherwise process the whole batch in one grid step.
    for cand in (8, 16, 32):
        if batch % cand == 0:
            return cand
    return batch


def pointnetfeat_forward(x_bcn, params):
    """x_bcn: (B, C, N) float32 in PyTorch NCW layout.

    Returns (global_feat (B,1024), trans (B,K,K), None) -- the
    global_feat=True / feature_transform=False path of PointNetfeat."""
    B, K, N = x_bcn.shape
    # channels-last, flattened over (batch, points); small layout change done by
    # XLA at the boundary (input is tiny relative to the kernel's work).
    x2 = jnp.transpose(x_bcn, (0, 2, 1)).astype(jnp.float32).reshape(B * N, K)

    Bt = _pick_batch_tile(B)
    grid = (B // Bt,)

    def full_spec(shape):
        nd = len(shape)
        return pl.BlockSpec(tuple(shape), lambda b, _nd=nd: (0,) * _nd)

    in_specs = [pl.BlockSpec((Bt * N, K), lambda b: (b, 0))] + \
               [full_spec(tuple(w.shape)) for w in params]
    out_specs = (pl.BlockSpec((Bt, 1024), lambda b: (b, 0)),
                 pl.BlockSpec((Bt, K * K), lambda b: (b, 0)))
    out_shape = (jax.ShapeDtypeStruct((B, 1024), jnp.float32),
                 jax.ShapeDtypeStruct((B, K * K), jnp.float32))

    out_g, trans_flat = pl.pallas_call(
        functools.partial(_pointnet_kernel, K, N, Bt),
        out_shape=out_shape,
        grid_spec=pltpu.PrefetchScalarGridSpec(
            num_scalar_prefetch=0,
            grid=grid,
            in_specs=in_specs,
            out_specs=out_specs),
        compiler_params=pltpu.CompilerParams(
            # batch tiles are independent -> shard across v7x's 2 TensorCores
            dimension_semantics=("parallel",)),
    )(x2, *params)

    # torch: x = x.view(-1, 1024); trans = x.view(-1, k, k)
    return out_g, trans_flat.reshape(B, K, K), None


def pointnetfeat_reference(x_bcn, params):
    """Pure-JAX f32 reference (same, bf16-rounded, weights upcast to f32)."""
    (s_w1, s_b1, s_w2, s_b2, s_w3, s_b3,
     s_l1, s_lb1, s_l2, s_lb2, s_l3, s_lb3,
     m_w1, m_b1, m_w2, m_b2, m_w3, m_b3) = [jnp.asarray(w, jnp.float32) for w in params]
    B, K, N = x_bcn.shape
    x = jnp.transpose(x_bcn, (0, 2, 1)).astype(jnp.float32)        # (B, N, K)
    h = _lrelu(x @ s_w1 + s_b1)
    h = _lrelu(h @ s_w2 + s_b2)
    h = _lrelu(h @ s_w3 + s_b3)
    g = jnp.sum(h, axis=1)                                         # (B, 1024)
    f = _lrelu(g @ s_l1 + s_lb1)
    f = _lrelu(f @ s_l2 + s_lb2)
    trans = (f @ s_l3 + s_lb3).reshape(B, K, K)
    xt = jnp.einsum('bnk,bkj->bnj', x, trans)
    y = _lrelu(xt @ m_w1 + m_b1)
    y = _lrelu(y @ m_w2 + m_b2)
    y = y @ m_w3 + m_b3
    return jnp.sum(y, axis=1), trans


if __name__ == "__main__":
    B, K, N = 16, 4, 16          # batch, input_features, n_pts (small demo shapes)
    key = jax.random.PRNGKey(0)
    kx, kp = jax.random.split(key)
    x = jax.random.normal(kx, (B, K, N), jnp.float32)   # PyTorch (B, C, N) input
    params = init_params(kp, K)

    glob, trans, trans_feat = pointnetfeat_forward(x, params)
    glob = jax.block_until_ready(glob)
    trans = jax.block_until_ready(trans)

    assert glob.shape == (B, 1024)
    assert trans.shape == (B, K, K)
    assert trans_feat is None
    assert bool(jnp.all(jnp.isfinite(glob))) and bool(jnp.all(jnp.isfinite(trans)))

    # loose numerical check vs pure-JAX f32 reference (kernel uses bf16 MXU inputs)
    ref_g, ref_t = pointnetfeat_reference(x, params)
    err_g = float(jnp.linalg.norm(glob - ref_g) / (jnp.linalg.norm(ref_g) + 1e-6))
    err_t = float(jnp.linalg.norm(trans - ref_t) / (jnp.linalg.norm(ref_t) + 1e-6))
    assert err_g < 0.1, err_g
    assert err_t < 0.1, err_t

    print("KERNEL_OK")
</pallas_src>

<mosaic_0001>
module attributes {stable_mosaic.version = 11 : i64} {
  func.func @_pointnet_kernel(%arg0: i32, %arg1: memref<128x4xf32, #tpu.memory_space<vmem>>, %arg2: memref<4x64xf32, #tpu.memory_space<vmem>>, %arg3: memref<1x64xf32, #tpu.memory_space<vmem>>, %arg4: memref<64x128xbf16, #tpu.memory_space<vmem>>, %arg5: memref<1x128xf32, #tpu.memory_space<vmem>>, %arg6: memref<128x1024xbf16, #tpu.memory_space<vmem>>, %arg7: memref<1x1024xf32, #tpu.memory_space<vmem>>, %arg8: memref<1024x512xbf16, #tpu.memory_space<vmem>>, %arg9: memref<1x512xf32, #tpu.memory_space<vmem>>, %arg10: memref<512x256xbf16, #tpu.memory_space<vmem>>, %arg11: memref<1x256xf32, #tpu.memory_space<vmem>>, %arg12: memref<256x16xf32, #tpu.memory_space<vmem>>, %arg13: memref<1x16xf32, #tpu.memory_space<vmem>>, %arg14: memref<4x64xf32, #tpu.memory_space<vmem>>, %arg15: memref<1x64xf32, #tpu.memory_space<vmem>>, %arg16: memref<64x128xbf16, #tpu.memory_space<vmem>>, %arg17: memref<1x128xf32, #tpu.memory_space<vmem>>, %arg18: memref<128x1024xf32, #tpu.memory_space<vmem>>, %arg19: memref<1x1024xf32, #tpu.memory_space<vmem>>, %arg20: memref<8x1024xf32, #tpu.memory_space<vmem>>, %arg21: memref<8x16xf32, #tpu.memory_space<vmem>>) attributes {dimension_semantics = [#tpu.dimension_semantics<parallel>], iteration_bounds = array<i64: 2>, scalar_prefetch = 0 : i64, scratch_operands = 0 : i64, tpu.core_type = #tpu.core_type<tc>, window_params = [{transform_indices = @transform_0, window_bounds = array<i64: 128, 4>}, {pipeline_mode = #tpu.pipeline_mode<synchronous>, transform_indices = @transform_1, window_bounds = array<i64: 4, 64>}, {pipeline_mode = #tpu.pipeline_mode<synchronous>, transform_indices = @transform_2, window_bounds = array<i64: 1, 64>}, {pipeline_mode = #tpu.pipeline_mode<synchronous>, transform_indices = @transform_3, window_bounds = array<i64: 64, 128>}, {pipeline_mode = #tpu.pipeline_mode<synchronous>, transform_indices = @transform_4, window_bounds = array<i64: 1, 128>}, {pipeline_mode = #tpu.pipeline_mode<synchronous>, transform_indices = @transform_5, window_bounds = array<i64: 128, 1024>}, {pipeline_mode = #tpu.pipeline_mode<synchronous>, transform_indices = @transform_6, window_bounds = array<i64: 1, 1024>}, {pipeline_mode = #tpu.pipeline_mode<synchronous>, transform_indices = @transform_7, window_bounds = array<i64: 1024, 512>}, {pipeline_mode = #tpu.pipeline_mode<synchronous>, transform_indices = @transform_8, window_bounds = array<i64: 1, 512>}, {pipeline_mode = #tpu.pipeline_mode<synchronous>, transform_indices = @transform_9, window_bounds = array<i64: 512, 256>}, {pipeline_mode = #tpu.pipeline_mode<synchronous>, transform_indices = @transform_10, window_bounds = array<i64: 1, 256>}, {pipeline_mode = #tpu.pipeline_mode<synchronous>, transform_indices = @transform_11, window_bounds = array<i64: 256, 16>}, {pipeline_mode = #tpu.pipeline_mode<synchronous>, transform_indices = @transform_12, window_bounds = array<i64: 1, 16>}, {pipeline_mode = #tpu.pipeline_mode<synchronous>, transform_indices = @transform_13, window_bounds = array<i64: 4, 64>}, {pipeline_mode = #tpu.pipeline_mode<synchronous>, transform_indices = @transform_14, window_bounds = array<i64: 1, 64>}, {pipeline_mode = #tpu.pipeline_mode<synchronous>, transform_indices = @transform_15, window_bounds = array<i64: 64, 128>}, {pipeline_mode = #tpu.pipeline_mode<synchronous>, transform_indices = @transform_16, window_bounds = array<i64: 1, 128>}, {pipeline_mode = #tpu.pipeline_mode<synchronous>, transform_indices = @transform_17, window_bounds = array<i64: 128, 1024>}, {pipeline_mode = #tpu.pipeline_mode<synchronous>, transform_indices = @transform_18, window_bounds = array<i64: 1, 1024>}, {transform_indices = @transform_19, window_bounds = array<i64: 8, 1024>}, {transform_indices = @transform_20, window_bounds = array<i64: 8, 16>}]} {
    %c0 = arith.constant 0 : index
    %c0_0 = arith.constant 0 : index
    %0 = vector.load %arg1[%c0, %c0_0] : memref<128x4xf32, #tpu.memory_space<vmem>>, vector<128x4xf32>
    %1 = tpu.iota {dimensions = array<i32: 0>} : vector<8x128xi32>
    %2 = tpu.iota {dimensions = array<i32: 1>} : vector<8x128xi32>
    %c16_i32 = arith.constant 16 : i32
    %3 = vector.broadcast %c16_i32 : i32 to vector<8x128xi32>
    %4 = arith.muli %1, %3 : vector<8x128xi32>
    %5 = arith.cmpi sge, %2, %4 : vector<8x128xi32>
    %c1_i32 = arith.constant 1 : i32
    %6 = vector.broadcast %c1_i32 : i32 to vector<8x128xi32>
    %7 = arith.addi %1, %6 : vector<8x128xi32>
    %c16_i32_1 = arith.constant 16 : i32
    %8 = vector.broadcast %c16_i32_1 : i32 to vector<8x128xi32>
    %9 = arith.muli %7, %8 : vector<8x128xi32>
    %10 = arith.cmpi slt, %2, %9 : vector<8x128xi32>
    %11 = arith.andi %5, %10 : vector<8x128xi1>
    %12 = arith.extui %11 : vector<8x128xi1> to vector<8x128xi32>
    %13 = arith.sitofp %12 : vector<8x128xi32> to vector<8x128xf32>
    %14 = tpu.iota {dimensions = array<i32: 0>} : vector<128x8xi32>
    %15 = tpu.iota {dimensions = array<i32: 1>} : vector<128x8xi32>
    %c16_i32_2 = arith.constant 16 : i32
    %16 = vector.broadcast %c16_i32_2 : i32 to vector<128x8xi32>
    %17 = arith.muli %15, %16 : vector<128x8xi32>
    %18 = arith.cmpi sge, %14, %17 : vector<128x8xi32>
    %c1_i32_3 = arith.constant 1 : i32
    %19 = vector.broadcast %c1_i32_3 : i32 to vector<128x8xi32>
    %20 = arith.addi %15, %19 : vector<128x8xi32>
    %c16_i32_4 = arith.constant 16 : i32
    %21 = vector.broadcast %c16_i32_4 : i32 to vector<128x8xi32>
    %22 = arith.muli %20, %21 : vector<128x8xi32>
    %23 = arith.cmpi slt, %14, %22 : vector<128x8xi32>
    %24 = arith.andi %18, %23 : vector<128x8xi1>
    %25 = arith.extui %24 : vector<128x8xi1> to vector<128x8xi32>
    %26 = arith.sitofp %25 : vector<128x8xi32> to vector<128x8xf32>
    %c0_5 = arith.constant 0 : index
    %c0_6 = arith.constant 0 : index
    %27 = vector.load %arg2[%c0_5, %c0_6] : memref<4x64xf32, #tpu.memory_space<vmem>>, vector<4x64xf32>
    %cst = arith.constant dense<0.000000e+00> : vector<128x64xf32>
    %28 = tpu.matmul %0, %27, %cst {dimension_numbers = #tpu.dot_dimension_numbers<[1], [0], [0], [1], [0, 0, 1, 1], [], []>} : vector<128x4xf32>, vector<4x64xf32>, vector<128x64xf32> -> vector<128x64xf32>
    %c0_7 = arith.constant 0 : index
    %c0_8 = arith.constant 0 : index
    %29 = vector.load %arg3[%c0_7, %c0_8] : memref<1x64xf32, #tpu.memory_space<vmem>>, vector<1x64xf32>
    %30 = vector.broadcast %29 : vector<1x64xf32> to vector<128x64xf32>
    %31 = arith.addf %28, %30 : vector<128x64xf32>
    %cst_9 = arith.constant 0.000000e+00 : f32
    %32 = vector.broadcast %cst_9 : f32 to vector<128x64xf32>
    %33 = arith.cmpf oge, %31, %32 : vector<128x64xf32>
    %cst_10 = arith.constant 2.000000e-01 : f32
    %34 = vector.broadcast %cst_10 : f32 to vector<128x64xf32>
    %35 = arith.mulf %34, %31 : vector<128x64xf32>
    %36 = arith.select %33, %31, %35 : vector<128x64xi1>, vector<128x64xf32>
    %37 = arith.truncf %36 : vector<128x64xf32> to vector<128x64xbf16>
    %c0_11 = arith.constant 0 : index
    %c0_12 = arith.constant 0 : index
    %38 = vector.load %arg4[%c0_11, %c0_12] : memref<64x128xbf16, #tpu.memory_space<vmem>>, vector<64x128xbf16>
    %cst_13 = arith.constant dense<0.000000e+00> : vector<128x128xf32>
    %39 = tpu.matmul %37, %38, %cst_13 {dimension_numbers = #tpu.dot_dimension_numbers<[1], [0], [0], [1], [0, 0, 1, 1], [], []>} : vector<128x64xbf16>, vector<64x128xbf16>, vector<128x128xf32> -> vector<128x128xf32>
    %c0_14 = arith.constant 0 : index
    %c0_15 = arith.constant 0 : index
    %40 = vector.load %arg5[%c0_14, %c0_15] : memref<1x128xf32, #tpu.memory_space<vmem>>, vector<1x128xf32>
    %41 = vector.broadcast %40 : vector<1x128xf32> to vector<128x128xf32>
    %42 = arith.addf %39, %41 : vector<128x128xf32>
    %cst_16 = arith.constant 0.000000e+00 : f32
    %43 = vector.broadcast %cst_16 : f32 to vector<128x128xf32>
    %44 = arith.cmpf oge, %42, %43 : vector<128x128xf32>
    %cst_17 = arith.constant 2.000000e-01 : f32
    %45 = vector.broadcast %cst_17 : f32 to vector<128x128xf32>
    %46 = arith.mulf %45, %42 : vector<128x128xf32>
    %47 = arith.select %44, %42, %46 : vector<128x128xi1>, vector<128x128xf32>
    %48 = arith.truncf %47 : vector<128x128xf32> to vector<128x128xbf16>
    %c0_18 = arith.constant 0 : index
    %c0_19 = arith.constant 0 : index
    %49 = vector.load %arg6[%c0_18, %c0_19] : memref<128x1024xbf16, #tpu.memory_space<vmem>>, vector<128x1024xbf16>
    %cst_20 = arith.constant dense<0.000000e+00> : vector<128x1024xf32>
    %50 = tpu.matmul %48, %49, %cst_20 {dimension_numbers = #tpu.dot_dimension_numbers<[1], [0], [0], [1], [0, 0, 1, 1], [], []>} : vector<128x128xbf16>, vector<128x1024xbf16>, vector<128x1024xf32> -> vector<128x1024xf32>
    %c0_21 = arith.constant 0 : index
    %c0_22 = arith.constant 0 : index
    %51 = vector.load %arg7[%c0_21, %c0_22] : memref<1x1024xf32, #tpu.memory_space<vmem>>, vector<1x1024xf32>
    %52 = vector.broadcast %51 : vector<1x1024xf32> to vector<128x1024xf32>
    %53 = arith.addf %50, %52 : vector<128x1024xf32>
    %cst_23 = arith.constant 0.000000e+00 : f32
    %54 = vector.broadcast %cst_23 : f32 to vector<128x1024xf32>
    %55 = arith.cmpf oge, %53, %54 : vector<128x1024xf32>
    %cst_24 = arith.constant 2.000000e-01 : f32
    %56 = vector.broadcast %cst_24 : f32 to vector<128x1024xf32>
    %57 = arith.mulf %56, %53 : vector<128x1024xf32>
    %58 = arith.select %55, %53, %57 : vector<128x1024xi1>, vector<128x1024xf32>
    %cst_25 = arith.constant dense<0.000000e+00> : vector<8x1024xf32>
    %59 = tpu.matmul %13, %58, %cst_25 {dimension_numbers = #tpu.dot_dimension_numbers<[1], [0], [0], [1], [0, 0, 1, 1], [], []>} : vector<8x128xf32>, vector<128x1024xf32>, vector<8x1024xf32> -> vector<8x1024xf32>
    %60 = arith.truncf %59 : vector<8x1024xf32> to vector<8x1024xbf16>
    %c0_26 = arith.constant 0 : index
    %c0_27 = arith.constant 0 : index
    %61 = vector.load %arg8[%c0_26, %c0_27] : memref<1024x512xbf16, #tpu.memory_space<vmem>>, vector<1024x512xbf16>
    %cst_28 = arith.constant dense<0.000000e+00> : vector<8x512xf32>
    %62 = tpu.matmul %60, %61, %cst_28 {dimension_numbers = #tpu.dot_dimension_numbers<[1], [0], [0], [1], [0, 0, 1, 1], [], []>} : vector<8x1024xbf16>, vector<1024x512xbf16>, vector<8x512xf32> -> vector<8x512xf32>
    %c0_29 = arith.constant 0 : index
    %c0_30 = arith.constant 0 : index
    %63 = vector.load %arg9[%c0_29, %c0_30] : memref<1x512xf32, #tpu.memory_space<vmem>>, vector<1x512xf32>
    %64 = vector.broadcast %63 : vector<1x512xf32> to vector<8x512xf32>
    %65 = arith.addf %62, %64 : vector<8x512xf32>
    %cst_31 = arith.constant 0.000000e+00 : f32
    %66 = vector.broadcast %cst_31 : f32 to vector<8x512xf32>
    %67 = arith.cmpf oge, %65, %66 : vector<8x512xf32>
    %cst_32 = arith.constant 2.000000e-01 : f32
    %68 = vector.broadcast %cst_32 : f32 to vector<8x512xf32>
    %69 = arith.mulf %68, %65 : vector<8x512xf32>
    %70 = arith.select %67, %65, %69 : vector<8x512xi1>, vector<8x512xf32>
    %71 = arith.truncf %70 : vector<8x512xf32> to vector<8x512xbf16>
    %c0_33 = arith.constant 0 : index
    %c0_34 = arith.constant 0 : index
    %72 = vector.load %arg10[%c0_33, %c0_34] : memref<512x256xbf16, #tpu.memory_space<vmem>>, vector<512x256xbf16>
    %cst_35 = arith.constant dense<0.000000e+00> : vector<8x256xf32>
    %73 = tpu.matmul %71, %72, %cst_35 {dimension_numbers = #tpu.dot_dimension_numbers<[1], [0], [0], [1], [0, 0, 1, 1], [], []>} : vector<8x512xbf16>, vector<512x256xbf16>, vector<8x256xf32> -> vector<8x256xf32>
    %c0_36 = arith.constant 0 : index
    %c0_37 = arith.constant 0 : index
    %74 = vector.load %arg11[%c0_36, %c0_37] : memref<1x256xf32, #tpu.memory_space<vmem>>, vector<1x256xf32>
    %75 = vector.broadcast %74 : vector<1x256xf32> to vector<8x256xf32>
    %76 = arith.addf %73, %75 : vector<8x256xf32>
    %cst_38 = arith.constant 0.000000e+00 : f32
    %77 = vector.broadcast %cst_38 : f32 to vector<8x256xf32>
    %78 = arith.cmpf oge, %76, %77 : vector<8x256xf32>
    %cst_39 = arith.constant 2.000000e-01 : f32
    %79 = vector.broadcast %cst_39 : f32 to vector<8x256xf32>
    %80 = arith.mulf %79, %76 : vector<8x256xf32>
    %81 = arith.select %78, %76, %80 : vector<8x256xi1>, vector<8x256xf32>
    %c0_40 = arith.constant 0 : index
    %c0_41 = arith.constant 0 : index
    %82 = vector.load %arg12[%c0_40, %c0_41] : memref<256x16xf32, #tpu.memory_space<vmem>>, vector<256x16xf32>
    %cst_42 = arith.constant dense<0.000000e+00> : vector<8x16xf32>
    %83 = tpu.matmul %81, %82, %cst_42 {dimension_numbers = #tpu.dot_dimension_numbers<[1], [0], [0], [1], [0, 0, 1, 1], [], []>} : vector<8x256xf32>, vector<256x16xf32>, vector<8x16xf32> -> vector<8x16xf32>
    %c0_43 = arith.constant 0 : index
    %c0_44 = arith.constant 0 : index
    %84 = vector.load %arg13[%c0_43, %c0_44] : memref<1x16xf32, #tpu.memory_space<vmem>>, vector<1x16xf32>
    %85 = vector.broadcast %84 : vector<1x16xf32> to vector<8x16xf32>
    %86 = arith.addf %83, %85 : vector<8x16xf32>
    %c0_45 = arith.constant 0 : index
    %c0_46 = arith.constant 0 : index
    %87 = vector.load %arg21[%c0_45, %c0_46] : memref<8x16xf32, #tpu.memory_space<vmem>>, vector<8x16xf32>
    tpu.vector_store %arg21[%c0_45, %c0_46], %86 {strides = array<i32>} : memref<8x16xf32, #tpu.memory_space<vmem>>, vector<8x16xf32>,
    %cst_47 = arith.constant dense<0.000000e+00> : vector<128x16xf32>
    %88 = tpu.matmul %26, %86, %cst_47 {dimension_numbers = #tpu.dot_dimension_numbers<[1], [0], [0], [1], [0, 0, 1, 1], [], []>} : vector<128x8xf32>, vector<8x16xf32>, vector<128x16xf32> -> vector<128x16xf32>
    %89 = vector.extract_strided_slice %0 {offsets = [0, 0], sizes = [128, 1], strides = [1, 1]} : vector<128x4xf32> to vector<128x1xf32>
    %90 = vector.extract_strided_slice %88 {offsets = [0, 0], sizes = [128, 4], strides = [1, 1]} : vector<128x16xf32> to vector<128x4xf32>
    %91 = vector.broadcast %89 : vector<128x1xf32> to vector<128x4xf32>
    %92 = arith.mulf %91, %90 : vector<128x4xf32>
    %93 = vector.extract_strided_slice %0 {offsets = [0, 1], sizes = [128, 1], strides = [1, 1]} : vector<128x4xf32> to vector<128x1xf32>
    %94 = vector.extract_strided_slice %88 {offsets = [0, 4], sizes = [128, 4], strides = [1, 1]} : vector<128x16xf32> to vector<128x4xf32>
    %95 = vector.broadcast %93 : vector<128x1xf32> to vector<128x4xf32>
    %96 = arith.mulf %95, %94 : vector<128x4xf32>
    %97 = arith.addf %92, %96 : vector<128x4xf32>
    %98 = vector.extract_strided_slice %0 {offsets = [0, 2], sizes = [128, 1], strides = [1, 1]} : vector<128x4xf32> to vector<128x1xf32>
    %99 = vector.extract_strided_slice %88 {offsets = [0, 8], sizes = [128, 4], strides = [1, 1]} : vector<128x16xf32> to vector<128x4xf32>
    %100 = vector.broadcast %98 : vector<128x1xf32> to vector<128x4xf32>
    %101 = arith.mulf %100, %99 : vector<128x4xf32>
    %102 = arith.addf %97, %101 : vector<128x4xf32>
    %103 = vector.extract_strided_slice %0 {offsets = [0, 3], sizes = [128, 1], strides = [1, 1]} : vector<128x4xf32> to vector<128x1xf32>
    %104 = vector.extract_strided_slice %88 {offsets = [0, 12], sizes = [128, 4], strides = [1, 1]} : vector<128x16xf32> to vector<128x4xf32>
    %105 = vector.broadcast %103 : vector<128x1xf32> to vector<128x4xf32>
    %106 = arith.mulf %105, %104 : vector<128x4xf32>
    %107 = arith.addf %102, %106 : vector<128x4xf32>
    %c0_48 = arith.constant 0 : index
    %c0_49 = arith.constant 0 : index
    %108 = vector.load %arg14[%c0_48, %c0_49] : memref<4x64xf32, #tpu.memory_space<vmem>>, vector<4x64xf32>
    %cst_50 = arith.constant dense<0.000000e+00> : vector<128x64xf32>
    %109 = tpu.matmul %107, %108, %cst_50 {dimension_numbers = #tpu.dot_dimension_numbers<[1], [0], [0], [1], [0, 0, 1, 1], [], []>} : vector<128x4xf32>, vector<4x64xf32>, vector<128x64xf32> -> vector<128x64xf32>
    %c0_51 = arith.constant 0 : index
    %c0_52 = arith.constant 0 : index
    %110 = vector.load %arg15[%c0_51, %c0_52] : memref<1x64xf32, #tpu.memory_space<vmem>>, vector<1x64xf32>
    %111 = vector.broadcast %110 : vector<1x64xf32> to vector<128x64xf32>
    %112 = arith.addf %109, %111 : vector<128x64xf32>
    %cst_53 = arith.constant 0.000000e+00 : f32
    %113 = vector.broadcast %cst_53 : f32 to vector<128x64xf32>
    %114 = arith.cmpf oge, %112, %113 : vector<128x64xf32>
    %cst_54 = arith.constant 2.000000e-01 : f32
    %115 = vector.broadcast %cst_54 : f32 to vector<128x64xf32>
    %116 = arith.mulf %115, %112 : vector<128x64xf32>
    %117 = arith.select %114, %112, %116 : vector<128x64xi1>, vector<128x64xf32>
    %118 = arith.truncf %117 : vector<128x64xf32> to vector<128x64xbf16>
    %c0_55 = arith.constant 0 : index
    %c0_56 = arith.constant 0 : index
    %119 = vector.load %arg16[%c0_55, %c0_56] : memref<64x128xbf16, #tpu.memory_space<vmem>>, vector<64x128xbf16>
    %cst_57 = arith.constant dense<0.000000e+00> : vector<128x128xf32>
    %120 = tpu.matmul %118, %119, %cst_57 {dimension_numbers = #tpu.dot_dimension_numbers<[1], [0], [0], [1], [0, 0, 1, 1], [], []>} : vector<128x64xbf16>, vector<64x128xbf16>, vector<128x128xf32> -> vector<128x128xf32>
    %c0_58 = arith.constant 0 : index
    %c0_59 = arith.constant 0 : index
    %121 = vector.load %arg17[%c0_58, %c0_59] : memref<1x128xf32, #tpu.memory_space<vmem>>, vector<1x128xf32>
    %122 = vector.broadcast %121 : vector<1x128xf32> to vector<128x128xf32>
    %123 = arith.addf %120, %122 : vector<128x128xf32>
    %cst_60 = arith.constant 0.000000e+00 : f32
    %124 = vector.broadcast %cst_60 : f32 to vector<128x128xf32>
    %125 = arith.cmpf oge, %123, %124 : vector<128x128xf32>
    %cst_61 = arith.constant 2.000000e-01 : f32
    %126 = vector.broadcast %cst_61 : f32 to vector<128x128xf32>
    %127 = arith.mulf %126, %123 : vector<128x128xf32>
    %128 = arith.select %125, %123, %127 : vector<128x128xi1>, vector<128x128xf32>
    %cst_62 = arith.constant dense<0.000000e+00> : vector<8x128xf32>
    %129 = tpu.matmul %13, %128, %cst_62 {dimension_numbers = #tpu.dot_dimension_numbers<[1], [0], [0], [1], [0, 0, 1, 1], [], []>} : vector<8x128xf32>, vector<128x128xf32>, vector<8x128xf32> -> vector<8x128xf32>
    %c0_63 = arith.constant 0 : index
    %c0_64 = arith.constant 0 : index
    %130 = vector.load %arg18[%c0_63, %c0_64] : memref<128x1024xf32, #tpu.memory_space<vmem>>, vector<128x1024xf32>
    %cst_65 = arith.constant dense<0.000000e+00> : vector<8x1024xf32>
    %131 = tpu.matmul %129, %130, %cst_65 {dimension_numbers = #tpu.dot_dimension_numbers<[1], [0], [0], [1], [0, 0, 1, 1], [], []>} : vector<8x128xf32>, vector<128x1024xf32>, vector<8x1024xf32> -> vector<8x1024xf32>
    %c0_66 = arith.constant 0 : index
    %c0_67 = arith.constant 0 : index
    %132 = vector.load %arg19[%c0_66, %c0_67] : memref<1x1024xf32, #tpu.memory_space<vmem>>, vector<1x1024xf32>
    %cst_68 = arith.constant 1.600000e+01 : f32
    %133 = vector.broadcast %cst_68 : f32 to vector<1x1024xf32>
    %134 = arith.mulf %133, %132 : vector<1x1024xf32>
    %135 = vector.broadcast %134 : vector<1x1024xf32> to vector<8x1024xf32>
    %136 = arith.addf %131, %135 : vector<8x1024xf32>
    %c0_69 = arith.constant 0 : index
    %c0_70 = arith.constant 0 : index
    %137 = vector.load %arg20[%c0_69, %c0_70] : memref<8x1024xf32, #tpu.memory_space<vmem>>, vector<8x1024xf32>
    tpu.vector_store %arg20[%c0_69, %c0_70], %136 {strides = array<i32>} : memref<8x1024xf32, #tpu.memory_space<vmem>>, vector<8x1024xf32>,
    return
  }
  func.func @transform_0(%arg0: i32) -> (i32, i32) {
    %c0_i32 = arith.constant 0 : i32
    %c0_i32_0 = arith.constant 0 : i32
    return %arg0, %c0_i32 : i32, i32
  }
  func.func @transform_1(%arg0: i32) -> (i32, i32) {
    %c0_i32 = arith.constant 0 : i32
    %c0_i32_0 = arith.constant 0 : i32
    %c0_i32_1 = arith.constant 0 : i32
    return %c0_i32, %c0_i32_0 : i32, i32
  }
  func.func @transform_2(%arg0: i32) -> (i32, i32) {
    %c0_i32 = arith.constant 0 : i32
    %c0_i32_0 = arith.constant 0 : i32
    %c0_i32_1 = arith.constant 0 : i32
    return %c0_i32, %c0_i32_0 : i32, i32
  }
  func.func @transform_3(%arg0: i32) -> (i32, i32) {
    %c0_i32 = arith.constant 0 : i32
    %c0_i32_0 = arith.constant 0 : i32
    %c0_i32_1 = arith.constant 0 : i32
    return %c0_i32, %c0_i32_0 : i32, i32
  }
  func.func @transform_4(%arg0: i32) -> (i32, i32) {
    %c0_i32 = arith.constant 0 : i32
    %c0_i32_0 = arith.constant 0 : i32
    %c0_i32_1 = arith.constant 0 : i32
    return %c0_i32, %c0_i32_0 : i32, i32
  }
  func.func @transform_5(%arg0: i32) -> (i32, i32) {
    %c0_i32 = arith.constant 0 : i32
    %c0_i32_0 = arith.constant 0 : i32
    %c0_i32_1 = arith.constant 0 : i32
    return %c0_i32, %c0_i32_0 : i32, i32
  }
  func.func @transform_6(%arg0: i32) -> (i32, i32) {
    %c0_i32 = arith.constant 0 : i32
    %c0_i32_0 = arith.constant 0 : i32
    %c0_i32_1 = arith.constant 0 : i32
    return %c0_i32, %c0_i32_0 : i32, i32
  }
  func.func @transform_7(%arg0: i32) -> (i32, i32) {
    %c0_i32 = arith.constant 0 : i32
    %c0_i32_0 = arith.constant 0 : i32
    %c0_i32_1 = arith.constant 0 : i32
    return %c0_i32, %c0_i32_0 : i32, i32
  }
  func.func @transform_8(%arg0: i32) -> (i32, i32) {
    %c0_i32 = arith.constant 0 : i32
    %c0_i32_0 = arith.constant 0 : i32
    %c0_i32_1 = arith.constant 0 : i32
    return %c0_i32, %c0_i32_0 : i32, i32
  }
  func.func @transform_9(%arg0: i32) -> (i32, i32) {
    %c0_i32 = arith.constant 0 : i32
    %c0_i32_0 = arith.constant 0 : i32
    %c0_i32_1 = arith.constant 0 : i32
    return %c0_i32, %c0_i32_0 : i32, i32
  }
  func.func @transform_10(%arg0: i32) -> (i32, i32) {
    %c0_i32 = arith.constant 0 : i32
    %c0_i32_0 = arith.constant 0 : i32
    %c0_i32_1 = arith.constant 0 : i32
    return %c0_i32, %c0_i32_0 : i32, i32
  }
  func.func @transform_11(%arg0: i32) -> (i32, i32) {
    %c0_i32 = arith.constant 0 : i32
    %c0_i32_0 = arith.constant 0 : i32
    %c0_i32_1 = arith.constant 0 : i32
    return %c0_i32, %c0_i32_0 : i32, i32
  }
  func.func @transform_12(%arg0: i32) -> (i32, i32) {
    %c0_i32 = arith.constant 0 : i32
    %c0_i32_0 = arith.constant 0 : i32
    %c0_i32_1 = arith.constant 0 : i32
    return %c0_i32, %c0_i32_0 : i32, i32
  }
  func.func @transform_13(%arg0: i32) -> (i32, i32) {
    %c0_i32 = arith.constant 0 : i32
    %c0_i32_0 = arith.constant 0 : i32
    %c0_i32_1 = arith.constant 0 : i32
    return %c0_i32, %c0_i32_0 : i32, i32
  }
  func.func @transform_14(%arg0: i32) -> (i32, i32) {
    %c0_i32 = arith.constant 0 : i32
    %c0_i32_0 = arith.constant 0 : i32
    %c0_i32_1 = arith.constant 0 : i32
    return %c0_i32, %c0_i32_0 : i32, i32
  }
  func.func @transform_15(%arg0: i32) -> (i32, i32) {
    %c0_i32 = arith.constant 0 : i32
    %c0_i32_0 = arith.constant 0 : i32
    %c0_i32_1 = arith.constant 0 : i32
    return %c0_i32, %c0_i32_0 : i32, i32
  }
  func.func @transform_16(%arg0: i32) -> (i32, i32) {
    %c0_i32 = arith.constant 0 : i32
    %c0_i32_0 = arith.constant 0 : i32
    %c0_i32_1 = arith.constant 0 : i32
    return %c0_i32, %c0_i32_0 : i32, i32
  }
  func.func @transform_17(%arg0: i32) -> (i32, i32) {
    %c0_i32 = arith.constant 0 : i32
    %c0_i32_0 = arith.constant 0 : i32
    %c0_i32_1 = arith.constant 0 : i32
    return %c0_i32, %c0_i32_0 : i32, i32
  }
  func.func @transform_18(%arg0: i32) -> (i32, i32) {
    %c0_i32 = arith.constant 0 : i32
    %c0_i32_0 = arith.constant 0 : i32
    %c0_i32_1 = arith.constant 0 : i32
    return %c0_i32, %c0_i32_0 : i32, i32
  }
  func.func @transform_19(%arg0: i32) -> (i32, i32) {
    %c0_i32 = arith.constant 0 : i32
    %c0_i32_0 = arith.constant 0 : i32
    return %arg0, %c0_i32 : i32, i32
  }
  func.func @transform_20(%arg0: i32) -> (i32, i32) {
    %c0_i32 = arith.constant 0 : i32
    %c0_i32_0 = arith.constant 0 : i32
    return %arg0, %c0_i32 : i32, i32
  }
}

</mosaic_0001>

<llo_original>
// kernel: tpu_custom_call.1
$region0: #{tpu_custom_call.1}
  #allocation0 [shape = 'u32[]', space=smem, size = 0x4, offset = 0x4, fixed_abs, tag = 'smem constant byte address 0x4 - core index']
  #allocation1 [shape = 'u32[144,128]{1,0:T(1,128)}', space=vmem, size = 0x12000, scoped, tag = 'internal scratch']
  %s0 = inlined_call_operand.vmem [shape: f32[256,4], index: 0, kind: input, shape index: {}]
  %s1 = inlined_call_operand.hbm [shape: f32[4,64], index: 1, kind: input, shape index: {}]
  %s2 = inlined_call_operand.hbm [shape: f32[1,64], index: 2, kind: input, shape index: {}]
  %s3 = inlined_call_operand.vmem [shape: bf16[64,128], index: 3, kind: input, shape index: {}]
  %s4 = inlined_call_operand.hbm [shape: f32[1,128], index: 4, kind: input, shape index: {}]
  %s5 = inlined_call_operand.vmem [shape: bf16[128,1024], index: 5, kind: input, shape index: {}]
  %s6 = inlined_call_operand.vmem [shape: f32[1,1024], index: 6, kind: input, shape index: {}]
  %s7 = inlined_call_operand.hbm [shape: bf16[1024,512], index: 7, kind: input, shape index: {}]
  %s8 = inlined_call_operand.vmem [shape: f32[1,512], index: 8, kind: input, shape index: {}]
  %s9 = inlined_call_operand.hbm [shape: bf16[512,256], index: 9, kind: input, shape index: {}]
  %s10 = inlined_call_operand.vmem [shape: f32[1,256], index: 10, kind: input, shape index: {}]
  %s11 = inlined_call_operand.vmem [shape: f32[256,16], index: 11, kind: input, shape index: {}]
  %s12 = inlined_call_operand.vmem [shape: f32[1,16], index: 12, kind: input, shape index: {}]
  %s13 = inlined_call_operand.vmem [shape: f32[4,64], index: 13, kind: input, shape index: {}]
  %s14 = inlined_call_operand.vmem [shape: f32[1,64], index: 14, kind: input, shape index: {}]
  %s15 = inlined_call_operand.hbm [shape: bf16[64,128], index: 15, kind: input, shape index: {}]
  %s16 = inlined_call_operand.vmem [shape: f32[1,128], index: 16, kind: input, shape index: {}]
  %s17 = inlined_call_operand.hbm [shape: f32[128,1024], index: 17, kind: input, shape index: {}]
  %s18 = inlined_call_operand.vmem [shape: f32[1,1024], index: 18, kind: input, shape index: {}]
  %s19 = inlined_call_operand.hbm [shape: f32[16,1024], index: 19, kind: output, shape index: {0}]
  %s20 = inlined_call_operand.hbm [shape: f32[16,16], index: 20, kind: output, shape index: {1}]
  %21 = xla_tuple %s19, %s20
  %s22 = sld [smem:[#allocation0]]
  $region145: #{tpu_custom_call.1} parent=0
    _
  %s24 = ssub.s32 1, %s22
  %s25 = scalar_select 0, %s24, %s22
  $region1: #{tpu_custom_call.1} parent=0
    #allocation2 [shape = 'u8[2048]{0}', space=vmem, size = 0x800, scoped, tag = 'input window, operand 1, single buffered']
    #allocation3 [shape = 's32[2]{0}', space=sflag, size = 0x8, scoped, tag = 'scoped memory for tpu_custom_call.1']
    #allocation4 [shape = 's32[2]{0}', space=sflag, size = 0x8, scoped, tag = 'scoped memory for tpu_custom_call.1']
    #allocation5 [shape = 'u8[512]{0}', space=vmem, size = 0x400, scoped, tag = 'input window, operand 2, single buffered']
    #allocation6 [shape = 's32[1]{0}', space=sflag, size = 0x4, scoped, tag = 'scoped memory for tpu_custom_call.1']
    #allocation7 [shape = 'u8[512]{0}', space=vmem, size = 0x400, scoped, tag = 'input window, operand 4, single buffered']
    #allocation8 [shape = 'u8[1048576]{0}', space=vmem, size = 0x100000, scoped, tag = 'input window, operand 7, single buffered']
    #allocation9 [shape = 's32[1]{0}', space=sflag, size = 0x4, scoped, tag = 'scoped memory for tpu_custom_call.1']
    #allocation10 [shape = 'u8[262144]{0}', space=vmem, size = 0x40000, scoped, tag = 'input window, operand 9, single buffered']
    #allocation11 [shape = 'u8[16384]{0}', space=vmem, size = 0x4000, scoped, tag = 'input window, operand 15, single buffered']
    #allocation12 [shape = 's32[1]{0}', space=sflag, size = 0x4, scoped, tag = 'scoped memory for tpu_custom_call.1']
    #allocation13 [shape = 'u8[524288]{0}', space=vmem, size = 0x80000, scoped, tag = 'input window, operand 17, single buffered']
    #allocation14 [shape = 'u8[65536]{0}', space=vmem, size = 0x10000, scoped, tag = 'output window, operand 0']
    #allocation15 [shape = 'u8[8192]{0}', space=vmem, size = 0x2000, scoped, tag = 'output window, operand 1']
    #allocation16 [shape = 's32[2]{0}', space=sflag, size = 0x8, scoped, tag = 'scoped memory for tpu_custom_call.1']
    %26 = vsyncpa [#allocation3], 0
    %27 = vsyncpa [#allocation6], 0
    %28 = vsyncpa [#allocation9], 0
    %29 = vsyncpa [#allocation12], 0
    %30 = vsyncpa [#allocation4], 0
    %s31 = scalar_lea.sflag [#allocation4], 1
    %32 = vsyncpa %s31, 0
    %33 = vsyncpa [#allocation16], 0
    %s34 = scalar_lea.sflag [#allocation16], 1
    %35 = vsyncpa %s34, 0
    loop: start=0, step=1, limit=4
    $region2: #{tpu_custom_call.1} parent=1 // loop_pre_header
      _
    $region3: #{tpu_custom_call.1} parent=1 // loop_header
      %s37 = sphi 0, %s41
      %p38 = scmp.ge.s32.totalorder %s37, 4
      %s47 = sphi 0, %s49
      %s50 = sphi 0, %s47
      %s51 = sphi 0, %s50
      %s67 = sphi 0, %s51
      %s71 = sphi 0, %s71
      %s73 = sphi 0, %s71
      %s74 = sphi 0, %s73
      %s88 = sphi 0, %s74
      %s92 = sphi 0, %s92
      %s94 = sphi 0, %s92
      %s95 = sphi 0, %s94
      %s109 = sphi 0, %s95
      %s113 = sphi 0, %s113
      %s115 = sphi 0, %s113
      %s116 = sphi 0, %s115
      %s130 = sphi 0, %s116
      %s134 = sphi 0, %s134
      %s136 = sphi 0, %s134
      %s137 = sphi 0, %s136
      %s151 = sphi 0, %s137
      %s155 = sphi 0, %s155
      %s157 = sphi 0, %s155
      %s158 = sphi 0, %s157
      %s172 = sphi 0, %s158
      %s176 = sphi 0, %s176
      %s178 = sphi 0, %s176
      %s179 = sphi 0, %s178
      %s193 = sphi 0, %s179
      %s197 = sphi 0, %s197
      %s199 = sphi 0, %s197
      %s200 = sphi 0, %s199
      %s214 = sphi 0, %s200
      %s218 = sphi 0, %s218
      %s220 = sphi 0, %s218
      %s221 = sphi 0, %s220
      %s235 = sphi 0, %s221
      %s239 = sphi 0, %s239
      %s241 = sphi 0, %s239
      %s242 = sphi 0, %s241
      %s256 = sphi 0, %s242
      %s260 = sphi 0, %s260
      %s262 = sphi 0, %s260
      %s263 = sphi 0, %s262
      %s277 = sphi 0, %s263
      %s281 = sphi 0, %s281
      %s283 = sphi 0, %s281
      %s284 = sphi 0, %s283
      %s298 = sphi 0, %s284
      %s302 = sphi 0, %s302
      %s304 = sphi 0, %s302
      %s305 = sphi 0, %s304
      %s319 = sphi 0, %s305
      %s323 = sphi 0, %s323
      %s325 = sphi 0, %s323
      %s326 = sphi 0, %s325
      %s340 = sphi 0, %s326
      %s344 = sphi 0, %s344
      %s346 = sphi 0, %s344
      %s347 = sphi 0, %s346
      %s361 = sphi 0, %s347
      %s365 = sphi 0, %s365
      %s367 = sphi 0, %s365
      %s368 = sphi 0, %s367
      %s382 = sphi 0, %s368
      %s386 = sphi 0, %s386
      %s388 = sphi 0, %s386
      %s389 = sphi 0, %s388
      %s403 = sphi 0, %s389
      %s407 = sphi 0, %s407
      %s409 = sphi 0, %s407
      %s410 = sphi 0, %s409
      %s424 = sphi 0, %s410
      %s428 = sphi 0, %s428
      %s430 = sphi 0, %s428
      %s431 = sphi 0, %s430
      %s445 = sphi 0, %s431
      %s451 = sphi 0, %s453
      %s454 = sphi 0, %s451
      %s455 = sphi 0, %s454
      %s471 = sphi 0, %s455
      %s477 = sphi 0, %s479
      %s480 = sphi 0, %s477
      %s481 = sphi 0, %s480
      %s497 = sphi 0, %s481
    $region4: #{tpu_custom_call.1} parent=1 // loop_header_branch
      %40 = sbr.rel (%p38) target = $region8
    $region5: #{tpu_custom_call.1} parent=1 // loop_body
      %s42 = ssub.s32 %s37, 1
      %s43 = ssub.s32 %s37, 2
      %s44 = sadd.s32 %s37, 1
      %s45 = ssub.s32 %s37, %s44
      %p46 = scmp.eq.s32.totalorder %s45, 0
      %s48 = sadd.s32 %s47, 1
      %s49 = scalar_select %p46, %s47, %s48
      %p52 = pneg %p46
      %p53 = scmp.eq.s32.totalorder %s37, 1
      %p54 = por %p52, %p53
      %p55 = scmp.ne.s32.totalorder %s47, %s50
      %p56 = scmp.eq.s32.totalorder %s37, 0
      %p57 = por %p55, %p56
      %p58 = scmp.ne.s32.totalorder %s47, %s50
      %p59 = scmp.eq.s32.totalorder %s42, 1
      %p60 = por %p58, %p59
      %p61 = scmp.ne.s32.totalorder %s50, %s51
      %p62 = scmp.eq.s32.totalorder %s42, 0
      %p63 = por %p61, %p62
      %p64 = scmp.ne.s32.totalorder %s50, %s51
      %p65 = scmp.eq.s32.totalorder %s43, 1
      %p66 = por %p64, %p65
      %p68 = scmp.ne.s32.totalorder %s51, %s67
      %p69 = scmp.eq.s32.totalorder %s43, 0
      %p70 = por %p68, %p69
      %s72 = sadd.s32 %s71, 1
      %p75 = scmp.eq.s32.totalorder %s37, 1
      %p76 = scmp.ne.s32.totalorder %s71, %s73
      %p77 = scmp.eq.s32.totalorder %s37, 0
      %p78 = por %p76, %p77
      %p79 = scmp.ne.s32.totalorder %s71, %s73
      %p80 = scmp.eq.s32.totalorder %s42, 1
      %p81 = por %p79, %p80
      %p82 = scmp.ne.s32.totalorder %s73, %s74
      %p83 = scmp.eq.s32.totalorder %s42, 0
      %p84 = por %p82, %p83
      %p85 = scmp.ne.s32.totalorder %s73, %s74
      %p86 = scmp.eq.s32.totalorder %s43, 1
      %p87 = por %p85, %p86
      %p89 = scmp.ne.s32.totalorder %s74, %s88
      %p90 = scmp.eq.s32.totalorder %s43, 0
      %p91 = por %p89, %p90
      %s93 = sadd.s32 %s92, 1
      %p96 = scmp.eq.s32.totalorder %s37, 1
      %p97 = scmp.ne.s32.totalorder %s92, %s94
      %p98 = scmp.eq.s32.totalorder %s37, 0
      %p99 = por %p97, %p98
      %p100 = scmp.ne.s32.totalorder %s92, %s94
      %p101 = scmp.eq.s32.totalorder %s42, 1
      %p102 = por %p100, %p101
      %p103 = scmp.ne.s32.totalorder %s94, %s95
      %p104 = scmp.eq.s32.totalorder %s42, 0
      %p105 = por %p103, %p104
      %p106 = scmp.ne.s32.totalorder %s94, %s95
      %p107 = scmp.eq.s32.totalorder %s43, 1
      %p108 = por %p106, %p107
      %p110 = scmp.ne.s32.totalorder %s95, %s109
      %p111 = scmp.eq.s32.totalorder %s43, 0
      %p112 = por %p110, %p111
      %s114 = sadd.s32 %s113, 1
      %p117 = scmp.eq.s32.totalorder %s37, 1
      %p118 = scmp.ne.s32.totalorder %s113, %s115
      %p119 = scmp.eq.s32.totalorder %s37, 0
      %p120 = por %p118, %p119
      %p121 = scmp.ne.s32.totalorder %s113, %s115
      %p122 = scmp.eq.s32.totalorder %s42, 1
      %p123 = por %p121, %p122
      %p124 = scmp.ne.s32.totalorder %s115, %s116
      %p125 = scmp.eq.s32.totalorder %s42, 0
      %p126 = por %p124, %p125
      %p127 = scmp.ne.s32.totalorder %s115, %s116
      %p128 = scmp.eq.s32.totalorder %s43, 1
      %p129 = por %p127, %p128
      %p131 = scmp.ne.s32.totalorder %s116, %s130
      %p132 = scmp.eq.s32.totalorder %s43, 0
      %p133 = por %p131, %p132
      %s135 = sadd.s32 %s134, 1
      %p138 = scmp.eq.s32.totalorder %s37, 1
      %p139 = scmp.ne.s32.totalorder %s134, %s136
      %p140 = scmp.eq.s32.totalorder %s37, 0
      %p141 = por %p139, %p140
      %p142 = scmp.ne.s32.totalorder %s134, %s136
      %p143 = scmp.eq.s32.totalorder %s42, 1
      %p144 = por %p142, %p143
      %p145 = scmp.ne.s32.totalorder %s136, %s137
      %p146 = scmp.eq.s32.totalorder %s42, 0
      %p147 = por %p145, %p146
      %p148 = scmp.ne.s32.totalorder %s136, %s137
      %p149 = scmp.eq.s32.totalorder %s43, 1
      %p150 = por %p148, %p149
      %p152 = scmp.ne.s32.totalorder %s137, %s151
      %p153 = scmp.eq.s32.totalorder %s43, 0
      %p154 = por %p152, %p153
      %s156 = sadd.s32 %s155, 1
      %p159 = scmp.eq.s32.totalorder %s37, 1
      %p160 = scmp.ne.s32.totalorder %s155, %s157
      %p161 = scmp.eq.s32.totalorder %s37, 0
      %p162 = por %p160, %p161
      %p163 = scmp.ne.s32.totalorder %s155, %s157
      %p164 = scmp.eq.s32.totalorder %s42, 1
      %p165 = por %p163, %p164
      %p166 = scmp.ne.s32.totalorder %s157, %s158
      %p167 = scmp.eq.s32.totalorder %s42, 0
      %p168 = por %p166, %p167
      %p169 = scmp.ne.s32.totalorder %s157, %s158
      %p170 = scmp.eq.s32.totalorder %s43, 1
      %p171 = por %p169, %p170
      %p173 = scmp.ne.s32.totalorder %s158, %s172
      %p174 = scmp.eq.s32.totalorder %s43, 0
      %p175 = por %p173, %p174
      %s177 = sadd.s32 %s176, 1
      %p180 = scmp.eq.s32.totalorder %s37, 1
      %p181 = scmp.ne.s32.totalorder %s176, %s178
      %p182 = scmp.eq.s32.totalorder %s37, 0
      %p183 = por %p181, %p182
      %p184 = scmp.ne.s32.totalorder %s176, %s178
      %p185 = scmp.eq.s32.totalorder %s42, 1
      %p186 = por %p184, %p185
      %p187 = scmp.ne.s32.totalorder %s178, %s179
      %p188 = scmp.eq.s32.totalorder %s42, 0
      %p189 = por %p187, %p188
      %p190 = scmp.ne.s32.totalorder %s178, %s179
      %p191 = scmp.eq.s32.totalorder %s43, 1
      %p192 = por %p190, %p191
      %p194 = scmp.ne.s32.totalorder %s179, %s193
      %p195 = scmp.eq.s32.totalorder %s43, 0
      %p196 = por %p194, %p195
      %s198 = sadd.s32 %s197, 1
      %p201 = scmp.eq.s32.totalorder %s37, 1
      %p202 = scmp.ne.s32.totalorder %s197, %s199
      %p203 = scmp.eq.s32.totalorder %s37, 0
      %p204 = por %p202, %p203
      %p205 = scmp.ne.s32.totalorder %s197, %s199
      %p206 = scmp.eq.s32.totalorder %s42, 1
      %p207 = por %p205, %p206
      %p208 = scmp.ne.s32.totalorder %s199, %s200
      %p209 = scmp.eq.s32.totalorder %s42, 0
      %p210 = por %p208, %p209
      %p211 = scmp.ne.s32.totalorder %s199, %s200
      %p212 = scmp.eq.s32.totalorder %s43, 1
      %p213 = por %p211, %p212
      %p215 = scmp.ne.s32.totalorder %s200, %s214
      %p216 = scmp.eq.s32.totalorder %s43, 0
      %p217 = por %p215, %p216
      %s219 = sadd.s32 %s218, 1
      %p222 = scmp.eq.s32.totalorder %s37, 1
      %p223 = scmp.ne.s32.totalorder %s218, %s220
      %p224 = scmp.eq.s32.totalorder %s37, 0
      %p225 = por %p223, %p224
      %p226 = scmp.ne.s32.totalorder %s218, %s220
      %p227 = scmp.eq.s32.totalorder %s42, 1
      %p228 = por %p226, %p227
      %p229 = scmp.ne.s32.totalorder %s220, %s221
      %p230 = scmp.eq.s32.totalorder %s42, 0
      %p231 = por %p229, %p230
      %p232 = scmp.ne.s32.totalorder %s220, %s221
      %p233 = scmp.eq.s32.totalorder %s43, 1
      %p234 = por %p232, %p233
      %p236 = scmp.ne.s32.totalorder %s221, %s235
      %p237 = scmp.eq.s32.totalorder %s43, 0
      %p238 = por %p236, %p237
      %s240 = sadd.s32 %s239, 1
      %p243 = scmp.eq.s32.totalorder %s37, 1
      %p244 = scmp.ne.s32.totalorder %s239, %s241
      %p245 = scmp.eq.s32.totalorder %s37, 0
      %p246 = por %p244, %p245
      %p247 = scmp.ne.s32.totalorder %s239, %s241
      %p248 = scmp.eq.s32.totalorder %s42, 1
      %p249 = por %p247, %p248
      %p250 = scmp.ne.s32.totalorder %s241, %s242
      %p251 = scmp.eq.s32.totalorder %s42, 0
      %p252 = por %p250, %p251
      %p253 = scmp.ne.s32.totalorder %s241, %s242
      %p254 = scmp.eq.s32.totalorder %s43, 1
      %p255 = por %p253, %p254
      %p257 = scmp.ne.s32.totalorder %s242, %s256
      %p258 = scmp.eq.s32.totalorder %s43, 0
      %p259 = por %p257, %p258
      %s261 = sadd.s32 %s260, 1
      %p264 = scmp.eq.s32.totalorder %s37, 1
      %p265 = scmp.ne.s32.totalorder %s260, %s262
      %p266 = scmp.eq.s32.totalorder %s37, 0
      %p267 = por %p265, %p266
      %p268 = scmp.ne.s32.totalorder %s260, %s262
      %p269 = scmp.eq.s32.totalorder %s42, 1
      %p270 = por %p268, %p269
      %p271 = scmp.ne.s32.totalorder %s262, %s263
      %p272 = scmp.eq.s32.totalorder %s42, 0
      %p273 = por %p271, %p272
      %p274 = scmp.ne.s32.totalorder %s262, %s263
      %p275 = scmp.eq.s32.totalorder %s43, 1
      %p276 = por %p274, %p275
      %p278 = scmp.ne.s32.totalorder %s263, %s277
      %p279 = scmp.eq.s32.totalorder %s43, 0
      %p280 = por %p278, %p279
      %s282 = sadd.s32 %s281, 1
      %p285 = scmp.eq.s32.totalorder %s37, 1
      %p286 = scmp.ne.s32.totalorder %s281, %s283
      %p287 = scmp.eq.s32.totalorder %s37, 0
      %p288 = por %p286, %p287
      %p289 = scmp.ne.s32.totalorder %s281, %s283
      %p290 = scmp.eq.s32.totalorder %s42, 1
      %p291 = por %p289, %p290
      %p292 = scmp.ne.s32.totalorder %s283, %s284
      %p293 = scmp.eq.s32.totalorder %s42, 0
      %p294 = por %p292, %p293
      %p295 = scmp.ne.s32.totalorder %s283, %s284
      %p296 = scmp.eq.s32.totalorder %s43, 1
      %p297 = por %p295, %p296
      %p299 = scmp.ne.s32.totalorder %s284, %s298
      %p300 = scmp.eq.s32.totalorder %s43, 0
      %p301 = por %p299, %p300
      %s303 = sadd.s32 %s302, 1
      %p306 = scmp.eq.s32.totalorder %s37, 1
      %p307 = scmp.ne.s32.totalorder %s302, %s304
      %p308 = scmp.eq.s32.totalorder %s37, 0
      %p309 = por %p307, %p308
      %p310 = scmp.ne.s32.totalorder %s302, %s304
      %p311 = scmp.eq.s32.totalorder %s42, 1
      %p312 = por %p310, %p311
      %p313 = scmp.ne.s32.totalorder %s304, %s305
      %p314 = scmp.eq.s32.totalorder %s42, 0
      %p315 = por %p313, %p314
      %p316 = scmp.ne.s32.totalorder %s304, %s305
      %p317 = scmp.eq.s32.totalorder %s43, 1
      %p318 = por %p316, %p317
      %p320 = scmp.ne.s32.totalorder %s305, %s319
      %p321 = scmp.eq.s32.totalorder %s43, 0
      %p322 = por %p320, %p321
      %s324 = sadd.s32 %s323, 1
      %p327 = scmp.eq.s32.totalorder %s37, 1
      %p328 = scmp.ne.s32.totalorder %s323, %s325
      %p329 = scmp.eq.s32.totalorder %s37, 0
      %p330 = por %p328, %p329
      %p331 = scmp.ne.s32.totalorder %s323, %s325
      %p332 = scmp.eq.s32.totalorder %s42, 1
      %p333 = por %p331, %p332
      %p334 = scmp.ne.s32.totalorder %s325, %s326
      %p335 = scmp.eq.s32.totalorder %s42, 0
      %p336 = por %p334, %p335
      %p337 = scmp.ne.s32.totalorder %s325, %s326
      %p338 = scmp.eq.s32.totalorder %s43, 1
      %p339 = por %p337, %p338
      %p341 = scmp.ne.s32.totalorder %s326, %s340
      %p342 = scmp.eq.s32.totalorder %s43, 0
      %p343 = por %p341, %p342
      %s345 = sadd.s32 %s344, 1
      %p348 = scmp.eq.s32.totalorder %s37, 1
      %p349 = scmp.ne.s32.totalorder %s344, %s346
      %p350 = scmp.eq.s32.totalorder %s37, 0
      %p351 = por %p349, %p350
      %p352 = scmp.ne.s32.totalorder %s344, %s346
      %p353 = scmp.eq.s32.totalorder %s42, 1
      %p354 = por %p352, %p353
      %p355 = scmp.ne.s32.totalorder %s346, %s347
      %p356 = scmp.eq.s32.totalorder %s42, 0
      %p357 = por %p355, %p356
      %p358 = scmp.ne.s32.totalorder %s346, %s347
      %p359 = scmp.eq.s32.totalorder %s43, 1
      %p360 = por %p358, %p359
      %p362 = scmp.ne.s32.totalorder %s347, %s361
      %p363 = scmp.eq.s32.totalorder %s43, 0
      %p364 = por %p362, %p363
      %s366 = sadd.s32 %s365, 1
      %p369 = scmp.eq.s32.totalorder %s37, 1
      %p370 = scmp.ne.s32.totalorder %s365, %s367
      %p371 = scmp.eq.s32.totalorder %s37, 0
      %p372 = por %p370, %p371
      %p373 = scmp.ne.s32.totalorder %s365, %s367
      %p374 = scmp.eq.s32.totalorder %s42, 1
      %p375 = por %p373, %p374
      %p376 = scmp.ne.s32.totalorder %s367, %s368
      %p377 = scmp.eq.s32.totalorder %s42, 0
      %p378 = por %p376, %p377
      %p379 = scmp.ne.s32.totalorder %s367, %s368
      %p380 = scmp.eq.s32.totalorder %s43, 1
      %p381 = por %p379, %p380
      %p383 = scmp.ne.s32.totalorder %s368, %s382
      %p384 = scmp.eq.s32.totalorder %s43, 0
      %p385 = por %p383, %p384
      %s387 = sadd.s32 %s386, 1
      %p390 = scmp.eq.s32.totalorder %s37, 1
      %p391 = scmp.ne.s32.totalorder %s386, %s388
      %p392 = scmp.eq.s32.totalorder %s37, 0
      %p393 = por %p391, %p392
      %p394 = scmp.ne.s32.totalorder %s386, %s388
      %p395 = scmp.eq.s32.totalorder %s42, 1
      %p396 = por %p394, %p395
      %p397 = scmp.ne.s32.totalorder %s388, %s389
      %p398 = scmp.eq.s32.totalorder %s42, 0
      %p399 = por %p397, %p398
      %p400 = scmp.ne.s32.totalorder %s388, %s389
      %p401 = scmp.eq.s32.totalorder %s43, 1
      %p402 = por %p400, %p401
      %p404 = scmp.ne.s32.totalorder %s389, %s403
      %p405 = scmp.eq.s32.totalorder %s43, 0
      %p406 = por %p404, %p405
      %s408 = sadd.s32 %s407, 1
      %p411 = scmp.eq.s32.totalorder %s37, 1
      %p412 = scmp.ne.s32.totalorder %s407, %s409
      %p413 = scmp.eq.s32.totalorder %s37, 0
      %p414 = por %p412, %p413
      %p415 = scmp.ne.s32.totalorder %s407, %s409
      %p416 = scmp.eq.s32.totalorder %s42, 1
      %p417 = por %p415, %p416
      %p418 = scmp.ne.s32.totalorder %s409, %s410
      %p419 = scmp.eq.s32.totalorder %s42, 0
      %p420 = por %p418, %p419
      %p421 = scmp.ne.s32.totalorder %s409, %s410
      %p422 = scmp.eq.s32.totalorder %s43, 1
      %p423 = por %p421, %p422
      %p425 = scmp.ne.s32.totalorder %s410, %s424
      %p426 = scmp.eq.s32.totalorder %s43, 0
      %p427 = por %p425, %p426
      %s429 = sadd.s32 %s428, 1
      %p432 = scmp.eq.s32.totalorder %s37, 1
      %p433 = scmp.ne.s32.totalorder %s428, %s430
      %p434 = scmp.eq.s32.totalorder %s37, 0
      %p435 = por %p433, %p434
      %p436 = scmp.ne.s32.totalorder %s428, %s430
      %p437 = scmp.eq.s32.totalorder %s42, 1
      %p438 = por %p436, %p437
      %p439 = scmp.ne.s32.totalorder %s430, %s431
      %p440 = scmp.eq.s32.totalorder %s42, 0
      %p441 = por %p439, %p440
      %p442 = scmp.ne.s32.totalorder %s430, %s431
      %p443 = scmp.eq.s32.totalorder %s43, 1
      %p444 = por %p442, %p443
      %p446 = scmp.ne.s32.totalorder %s431, %s445
      %p447 = scmp.eq.s32.totalorder %s43, 0
      %p448 = por %p446, %p447
      %s449 = ssub.s32 %s37, %s44
      %p450 = scmp.eq.s32.totalorder %s449, 0
      %s452 = sadd.s32 %s451, 1
      %s453 = scalar_select %p450, %s451, %s452
      %p456 = pneg %p450
      %p457 = scmp.eq.s32.totalorder %s37, 1
      %p458 = por %p456, %p457
      %p459 = scmp.ne.s32.totalorder %s451, %s454
      %p460 = scmp.eq.s32.totalorder %s37, 0
      %p461 = por %p459, %p460
      %p462 = scmp.ne.s32.totalorder %s451, %s454
      %p463 = scmp.eq.s32.totalorder %s42, 1
      %p464 = por %p462, %p463
      %p465 = scmp.ne.s32.totalorder %s454, %s455
      %p466 = scmp.eq.s32.totalorder %s42, 0
      %p467 = por %p465, %p466
      %p468 = scmp.ne.s32.totalorder %s454, %s455
      %p469 = scmp.eq.s32.totalorder %s43, 1
      %p470 = por %p468, %p469
      %p472 = scmp.ne.s32.totalorder %s455, %s471
      %p473 = scmp.eq.s32.totalorder %s43, 0
      %p474 = por %p472, %p473
      %s475 = ssub.s32 %s37, %s44
      %p476 = scmp.eq.s32.totalorder %s475, 0
      %s478 = sadd.s32 %s477, 1
      %s479 = scalar_select %p476, %s477, %s478
      %p482 = pneg %p476
      %p483 = scmp.eq.s32.totalorder %s37, 1
      %p484 = por %p482, %p483
      %p485 = scmp.ne.s32.totalorder %s477, %s480
      %p486 = scmp.eq.s32.totalorder %s37, 0
      %p487 = por %p485, %p486
      %p488 = scmp.ne.s32.totalorder %s477, %s480
      %p489 = scmp.eq.s32.totalorder %s42, 1
      %p490 = por %p488, %p489
      %p491 = scmp.ne.s32.totalorder %s480, %s481
      %p492 = scmp.eq.s32.totalorder %s42, 0
      %p493 = por %p491, %p492
      %p494 = scmp.ne.s32.totalorder %s480, %s481
      %p495 = scmp.eq.s32.totalorder %s43, 1
      %p496 = por %p494, %p495
      %p498 = scmp.ne.s32.totalorder %s481, %s497
      %p499 = scmp.eq.s32.totalorder %s43, 0
      %p500 = por %p498, %p499
      %p501 = scmp.le.s32.totalorder 1, %s37
      %p502 = scmp.lt.s32.totalorder %s37, 3
      %p503 = pnand %p501, %p502
      %p504 = pneg %p503
      // Predicated region
      $region9: #{tpu_custom_call.1} parent=5 // pred_check
        _
      $region10: #{tpu_custom_call.1} parent=5 // pred_check_branch
        %506 = sbr.rel (%p503) target = $region12
      $region11: #{tpu_custom_call.1} parent=5 // pred_region
        %s507 = ssub.s32 %s37, 1
        // Predicated region
        $region13: #{tpu_custom_call.1} parent=11 // pred_check
          %p508 = pneg %p84
        $region14: #{tpu_custom_call.1} parent=11 // pred_check_branch
          %510 = sbr.rel (%p508) target = $region16
        $region15: #{tpu_custom_call.1} parent=11 // pred_region
          %s512 = ssub.s32 64, 64
          %513 = vsyncadd [#allocation3], %s512
          %s515 = sshll.u32 [#allocation2], 4
          %s516 = int_to_ptr.vmem [resolvable:$true] %s515
          %518 = dma.hbm_to_vmem [thread:$0]  %s1, 64, %s516, [#allocation3]
        $region16: #{tpu_custom_call.1} parent=11 // pred_fallthru
          _
        // Predicated region
        $region17: #{tpu_custom_call.1} parent=11 // pred_check
          %p519 = pneg %p105
        $region18: #{tpu_custom_call.1} parent=11 // pred_check_branch
          %521 = sbr.rel (%p519) target = $region20
        $region19: #{tpu_custom_call.1} parent=11 // pred_region
          %s523 = ssub.s32 16, 16
          %524 = vsyncadd [#allocation6], %s523
          %s526 = sshll.u32 [#allocation5], 4
          %s527 = int_to_ptr.vmem [resolvable:$true] %s526
          %529 = dma.hbm_to_vmem [thread:$0]  %s2, 16, %s527, [#allocation6]
        $region20: #{tpu_custom_call.1} parent=11 // pred_fallthru
          _
        // Predicated region
        $region21: #{tpu_custom_call.1} parent=11 // pred_check
          %p530 = pneg %p126
        $region22: #{tpu_custom_call.1} parent=11 // pred_check_branch
          %532 = sbr.rel (%p530) target = $region24
        $region23: #{tpu_custom_call.1} parent=11 // pred_region
          _
        $region24: #{tpu_custom_call.1} parent=11 // pred_fallthru
          _
        // Predicated region
        $region25: #{tpu_custom_call.1} parent=11 // pred_check
          %p533 = pneg %p147
        $region26: #{tpu_custom_call.1} parent=11 // pred_check_branch
          %535 = sbr.rel (%p533) target = $region28
        $region27: #{tpu_custom_call.1} parent=11 // pred_region
          %s537 = ssub.s32 16, 16
          %538 = vsyncadd [#allocation6], %s537
          %s540 = sshll.u32 [#allocation7], 4
          %s541 = int_to_ptr.vmem [resolvable:$true] %s540
          %543 = dma.hbm_to_vmem [thread:$0]  %s4, 16, %s541, [#allocation6]
        $region28: #{tpu_custom_call.1} parent=11 // pred_fallthru
          _
        // Predicated region
        $region29: #{tpu_custom_call.1} parent=11 // pred_check
          %p544 = pneg %p168
        $region30: #{tpu_custom_call.1} parent=11 // pred_check_branch
          %546 = sbr.rel (%p544) target = $region32
        $region31: #{tpu_custom_call.1} parent=11 // pred_region
          _
        $region32: #{tpu_custom_call.1} parent=11 // pred_fallthru
          _
        // Predicated region
        $region33: #{tpu_custom_call.1} parent=11 // pred_check
          %p547 = pneg %p189
        $region34: #{tpu_custom_call.1} parent=11 // pred_check_branch
          %549 = sbr.rel (%p547) target = $region36
        $region35: #{tpu_custom_call.1} parent=11 // pred_region
          _
        $region36: #{tpu_custom_call.1} parent=11 // pred_fallthru
          _
        // Predicated region
        $region37: #{tpu_custom_call.1} parent=11 // pred_check
          %p550 = pneg %p210
        $region38: #{tpu_custom_call.1} parent=11 // pred_check_branch
          %552 = sbr.rel (%p550) target = $region40
        $region39: #{tpu_custom_call.1} parent=11 // pred_region
          %s554 = ssub.s32 32768, 32768
          %555 = vsyncadd [#allocation9], %s554
          %s556 = sshll.u32 [#allocation8], 4
          %s557 = int_to_ptr.vmem [resolvable:$true] %s556
          %562 = dma.hbm_to_vmem [thread:$0]  %s7, 32768, %s557, [#allocation9], 256, 256, 16
        $region40: #{tpu_custom_call.1} parent=11 // pred_fallthru
          _
        // Predicated region
        $region41: #{tpu_custom_call.1} parent=11 // pred_check
          %p563 = pneg %p231
        $region42: #{tpu_custom_call.1} parent=11 // pred_check_branch
          %565 = sbr.rel (%p563) target = $region44
        $region43: #{tpu_custom_call.1} parent=11 // pred_region
          _
        $region44: #{tpu_custom_call.1} parent=11 // pred_fallthru
          _
        // Predicated region
        $region45: #{tpu_custom_call.1} parent=11 // pred_check
          %p566 = pneg %p252
        $region46: #{tpu_custom_call.1} parent=11 // pred_check_branch
          %568 = sbr.rel (%p566) target = $region48
        $region47: #{tpu_custom_call.1} parent=11 // pred_region
          %s570 = ssub.s32 8192, 8192
          %571 = vsyncadd [#allocation9], %s570
          %s572 = sshll.u32 [#allocation10], 4
          %s573 = int_to_ptr.vmem [resolvable:$true] %s572
          %578 = dma.hbm_to_vmem [thread:$0]  %s9, 8192, %s573, [#allocation9], 128, 128, 8
        $region48: #{tpu_custom_call.1} parent=11 // pred_fallthru
          _
        // Predicated region
        $region49: #{tpu_custom_call.1} parent=11 // pred_check
          %p579 = pneg %p273
        $region50: #{tpu_custom_call.1} parent=11 // pred_check_branch
          %581 = sbr.rel (%p579) target = $region52
        $region51: #{tpu_custom_call.1} parent=11 // pred_region
          _
        $region52: #{tpu_custom_call.1} parent=11 // pred_fallthru
          _
        // Predicated region
        $region53: #{tpu_custom_call.1} parent=11 // pred_check
          %p582 = pneg %p294
        $region54: #{tpu_custom_call.1} parent=11 // pred_check_branch
          %584 = sbr.rel (%p582) target = $region56
        $region55: #{tpu_custom_call.1} parent=11 // pred_region
          _
        $region56: #{tpu_custom_call.1} parent=11 // pred_fallthru
          _
        // Predicated region
        $region57: #{tpu_custom_call.1} parent=11 // pred_check
          %p585 = pneg %p315
        $region58: #{tpu_custom_call.1} parent=11 // pred_check_branch
          %587 = sbr.rel (%p585) target = $region60
        $region59: #{tpu_custom_call.1} parent=11 // pred_region
          _
        $region60: #{tpu_custom_call.1} parent=11 // pred_fallthru
          _
        // Predicated region
        $region61: #{tpu_custom_call.1} parent=11 // pred_check
          %p588 = pneg %p336
        $region62: #{tpu_custom_call.1} parent=11 // pred_check_branch
          %590 = sbr.rel (%p588) target = $region64
        $region63: #{tpu_custom_call.1} parent=11 // pred_region
          _
        $region64: #{tpu_custom_call.1} parent=11 // pred_fallthru
          _
        // Predicated region
        $region65: #{tpu_custom_call.1} parent=11 // pred_check
          %p591 = pneg %p357
        $region66: #{tpu_custom_call.1} parent=11 // pred_check_branch
          %593 = sbr.rel (%p591) target = $region68
        $region67: #{tpu_custom_call.1} parent=11 // pred_region
          _
        $region68: #{tpu_custom_call.1} parent=11 // pred_fallthru
          _
        // Predicated region
        $region69: #{tpu_custom_call.1} parent=11 // pred_check
          %p594 = pneg %p378
        $region70: #{tpu_custom_call.1} parent=11 // pred_check_branch
          %596 = sbr.rel (%p594) target = $region72
        $region71: #{tpu_custom_call.1} parent=11 // pred_region
          %s598 = ssub.s32 512, 512
          %599 = vsyncadd [#allocation12], %s598
          %s600 = sshll.u32 [#allocation11], 4
          %s601 = int_to_ptr.vmem [resolvable:$true] %s600
          %606 = dma.hbm_to_vmem [thread:$0]  %s15, 512, %s601, [#allocation12], 64, 64, 4
        $region72: #{tpu_custom_call.1} parent=11 // pred_fallthru
          _
        // Predicated region
        $region73: #{tpu_custom_call.1} parent=11 // pred_check
          %p607 = pneg %p399
        $region74: #{tpu_custom_call.1} parent=11 // pred_check_branch
          %609 = sbr.rel (%p607) target = $region76
        $region75: #{tpu_custom_call.1} parent=11 // pred_region
          _
        $region76: #{tpu_custom_call.1} parent=11 // pred_fallthru
          _
        // Predicated region
        $region77: #{tpu_custom_call.1} parent=11 // pred_check
          %p610 = pneg %p420
        $region78: #{tpu_custom_call.1} parent=11 // pred_check_branch
          %612 = sbr.rel (%p610) target = $region80
        $region79: #{tpu_custom_call.1} parent=11 // pred_region
          %s614 = ssub.s32 16384, 16384
          %615 = vsyncadd [#allocation12], %s614
          %s616 = sshll.u32 [#allocation13], 4
          %s617 = int_to_ptr.vmem [resolvable:$true] %s616
          %622 = dma.hbm_to_vmem [thread:$0]  %s17, 16384, %s617, [#allocation12], 1024, 1024, 64
        $region80: #{tpu_custom_call.1} parent=11 // pred_fallthru
          _
        // Predicated region
        $region81: #{tpu_custom_call.1} parent=11 // pred_check
          %p623 = pneg %p441
        $region82: #{tpu_custom_call.1} parent=11 // pred_check_branch
          %625 = sbr.rel (%p623) target = $region84
        $region83: #{tpu_custom_call.1} parent=11 // pred_region
          _
        $region84: #{tpu_custom_call.1} parent=11 // pred_fallthru
          _
      $region12: #{tpu_custom_call.1} parent=5 // pred_fallthru
        _
      %p626 = scmp.lt.s32.totalorder %s37, 2
      // Predicated region
      $region85: #{tpu_custom_call.1} parent=5 // pred_check
        %p627 = pneg %p626
      $region86: #{tpu_custom_call.1} parent=5 // pred_check_branch
        %629 = sbr.rel (%p627) target = $region88
      $region87: #{tpu_custom_call.1} parent=5 // pred_region
        // Predicated region
        $region89: #{tpu_custom_call.1} parent=87 // pred_check
          %p630 = pneg %p57
        $region90: #{tpu_custom_call.1} parent=87 // pred_check_branch
          %632 = sbr.rel (%p630) target = $region92
        $region91: #{tpu_custom_call.1} parent=87 // pred_region
          %s633 = smul.u32 16, %s37
          %p634 = scmp.lt.s32.totalorder %s633, 31
          %s635 = scalar_select %p634, %s633, 31
          %s636 = smul.addr %s635, 8
          %s637 = scalar_lea.vmem %s0, %s636
          %s638 = smul.u32 16, %s37
        $region92: #{tpu_custom_call.1} parent=87 // pred_fallthru
          _
      $region88: #{tpu_custom_call.1} parent=5 // pred_fallthru
        _
      %p639 = scmp.le.s32.totalorder 1, %s37
      %p640 = scmp.lt.s32.totalorder %s37, 3
      %p641 = pnand %p639, %p640
      %p642 = pneg %p641
      // Predicated region
      $region93: #{tpu_custom_call.1} parent=5 // pred_check
        _
      $region94: #{tpu_custom_call.1} parent=5 // pred_check_branch
        %644 = sbr.rel (%p641) target = $region96
      $region95: #{tpu_custom_call.1} parent=5 // pred_region
        %s645 = ssub.s32 %s37, 1
        // Predicated region
        $region97: #{tpu_custom_call.1} parent=95 // pred_check
          %p646 = pneg %p84
        $region98: #{tpu_custom_call.1} parent=95 // pred_check_branch
          %648 = sbr.rel (%p646) target = $region100
        $region99: #{tpu_custom_call.1} parent=95 // pred_region
          %649 = dma.done [#allocation3], 64
        $region100: #{tpu_custom_call.1} parent=95 // pred_fallthru
          _
        // Predicated region
        $region101: #{tpu_custom_call.1} parent=95 // pred_check
          %p650 = pneg %p105
        $region102: #{tpu_custom_call.1} parent=95 // pred_check_branch
          %652 = sbr.rel (%p650) target = $region104
        $region103: #{tpu_custom_call.1} parent=95 // pred_region
          %653 = dma.done [#allocation6], 16
        $region104: #{tpu_custom_call.1} parent=95 // pred_fallthru
          _
        // Predicated region
        $region105: #{tpu_custom_call.1} parent=95 // pred_check
          %p654 = pneg %p147
        $region106: #{tpu_custom_call.1} parent=95 // pred_check_branch
          %656 = sbr.rel (%p654) target = $region108
        $region107: #{tpu_custom_call.1} parent=95 // pred_region
          %657 = dma.done [#allocation6], 16
        $region108: #{tpu_custom_call.1} parent=95 // pred_fallthru
          _
        // Predicated region
        $region109: #{tpu_custom_call.1} parent=95 // pred_check
          %p658 = pneg %p210
        $region110: #{tpu_custom_call.1} parent=95 // pred_check_branch
          %660 = sbr.rel (%p658) target = $region112
        $region111: #{tpu_custom_call.1} parent=95 // pred_region
          %661 = dma.done [#allocation9], 32768
        $region112: #{tpu_custom_call.1} parent=95 // pred_fallthru
          _
        // Predicated region
        $region113: #{tpu_custom_call.1} parent=95 // pred_check
          %p662 = pneg %p252
        $region114: #{tpu_custom_call.1} parent=95 // pred_check_branch
          %664 = sbr.rel (%p662) target = $region116
        $region115: #{tpu_custom_call.1} parent=95 // pred_region
          %665 = dma.done [#allocation9], 8192
        $region116: #{tpu_custom_call.1} parent=95 // pred_fallthru
          _
        // Predicated region
        $region117: #{tpu_custom_call.1} parent=95 // pred_check
          %p666 = pneg %p378
        $region118: #{tpu_custom_call.1} parent=95 // pred_check_branch
          %668 = sbr.rel (%p666) target = $region120
        $region119: #{tpu_custom_call.1} parent=95 // pred_region
          %669 = dma.done [#allocation12], 512
        $region120: #{tpu_custom_call.1} parent=95 // pred_fallthru
          _
        // Predicated region
        $region121: #{tpu_custom_call.1} parent=95 // pred_check
          %p670 = pneg %p420
        $region122: #{tpu_custom_call.1} parent=95 // pred_check_branch
          %672 = sbr.rel (%p670) target = $region124
        $region123: #{tpu_custom_call.1} parent=95 // pred_region
          %673 = dma.done [#allocation12], 16384
        $region124: #{tpu_custom_call.1} parent=95 // pred_fallthru
          _
        %s674 = smul.u32 16, %s42
        %p675 = scmp.lt.s32.totalorder %s674, 31
        %s676 = scalar_select %p675, %s674, 31
        %s677 = smul.addr %s676, 8
        %s678 = scalar_lea.vmem %s0, %s677
        %p679 = pneg %p63
        %p680 = pneg %p60
        %p681 = pneg %p84
        %p682 = pneg %p81
        %p683 = pneg %p105
        %p684 = pneg %p102
        %p685 = pneg %p126
        %p686 = pneg %p123
        %p687 = pneg %p147
        %p688 = pneg %p144
        %p689 = pneg %p168
        %p690 = pneg %p165
        %p691 = pneg %p189
        %p692 = pneg %p186
        %p693 = pneg %p210
        %p694 = pneg %p207
        %p695 = pneg %p231
        %p696 = pneg %p228
        %p697 = pneg %p252
        %p698 = pneg %p249
        %p699 = pneg %p273
        %p700 = pneg %p270
        %p701 = pneg %p294
        %p702 = pneg %p291
        %p703 = pneg %p315
        %p704 = pneg %p312
        %p705 = pneg %p336
        %p706 = pneg %p333
        %p707 = pneg %p357
        %p708 = pneg %p354
        %p709 = pneg %p378
        %p710 = pneg %p375
        %p711 = pneg %p399
        %p712 = pneg %p396
        %p713 = pneg %p420
        %p714 = pneg %p417
        %p715 = pneg %p441
        %p716 = pneg %p438
        %p717 = pneg %p467
        %p718 = pneg %p464
        %s719 = sand.u32 %s454, 1
        %s720 = scalar_lea.sflag [#allocation4], %s719
        %s721 = sand.u32 %s454, 1
        %s722 = smul.addr %s721, 64
        %s723 = scalar_lea.vmem [#allocation14], %s722
        %p724 = pneg %p493
        %p725 = pneg %p490
        %s726 = sand.u32 %s480, 1
        %s727 = scalar_lea.sflag [#allocation16], %s726
        %s728 = sand.u32 %s480, 1
        %s729 = smul.addr %s728, 8
        %s730 = scalar_lea.vmem [#allocation15], %s729
        %s731 = smul.u32 16, %s42
        %p732 = scmp.lt.s32.totalorder %s731, 31
        %s733 = scalar_select %p732, %s731, 31
        %s734 = smul.addr %s733, 8
        %s735 = scalar_lea.vmem %s0, %s734
        %s736 = smul.u32 16, %s42
        %v738 = vld [vmem:[%s735] sm:$0xff]
        %v739 = vld [vmem:[%s735 + $0x8] sm:$0xff]
        %v740 = vld [vmem:[%s735 + $0x10] sm:$0xff]
        %v741 = vld [vmem:[%s735 + $0x18] sm:$0xff]
        %v742 = vld [vmem:[%s735 + $0x20] sm:$0xff]
        %v743 = vld [vmem:[%s735 + $0x28] sm:$0xff]
        %v744 = vld [vmem:[%s735 + $0x30] sm:$0xff]
        %v745 = vld [vmem:[%s735 + $0x38] sm:$0xff]
        %v746 = vld [vmem:[%s735 + $0x40] sm:$0xff]
        %v747 = vld [vmem:[%s735 + $0x48] sm:$0xff]
        %v748 = vld [vmem:[%s735 + $0x50] sm:$0xff]
        %v749 = vld [vmem:[%s735 + $0x58] sm:$0xff]
        %v750 = vld [vmem:[%s735 + $0x60] sm:$0xff]
        %v751 = vld [vmem:[%s735 + $0x68] sm:$0xff]
        %v752 = vld [vmem:[%s735 + $0x70] sm:$0xff]
        %v753 = vld [vmem:[%s735 + $0x78] sm:$0xff]
        %v754 = vlaneseq
        %v755 = vshrl.u32 %v754, 7
        %v756 = vlaneseq
        %v757 = vand.u32 %v756, 127
        %v758 = vmul.u32 %v755, 16
        %vm759 = vcmp.ge.s32.totalorder %v757, %v758
        %v760 = vadd.s32 %v755, 1
        %v761 = vmul.u32 %v760, 16
        %vm762 = vcmp.lt.s32.totalorder %v757, %v761
        %vm763 = vmand %vm759, %vm762
        %v764 = vsel %vm763, 1, 0
        %v765 = vcvt.s32.f32 %v764
        %v766 = vadd.s32 %v755, 8
        %v767 = vadd.s32 %v755, 16
        %v768 = vadd.s32 %v755, 24
        %v769 = vadd.s32 %v755, 32
        %v770 = vadd.s32 %v755, 40
        %v771 = vadd.s32 %v755, 48
        %v772 = vadd.s32 %v755, 56
        %v773 = vadd.s32 %v755, 64
        %v774 = vadd.s32 %v755, 72
        %v775 = vadd.s32 %v755, 80
        %v776 = vadd.s32 %v755, 88
        %v777 = vadd.s32 %v755, 96
        %v778 = vadd.s32 %v755, 104
        %v779 = vadd.s32 %v755, 112
        %v780 = vadd.s32 %v755, 120
        %v781 = vmul.u32 %v757, 16
        %vm782 = vcmp.ge.s32.totalorder %v755, %v781
        %vm783 = vcmp.ge.s32.totalorder %v766, %v781
        %vm784 = vcmp.ge.s32.totalorder %v767, %v781
        %vm785 = vcmp.ge.s32.totalorder %v768, %v781
        %vm786 = vcmp.ge.s32.totalorder %v769, %v781
        %vm787 = vcmp.ge.s32.totalorder %v770, %v781
        %vm788 = vcmp.ge.s32.totalorder %v771, %v781
        %vm789 = vcmp.ge.s32.totalorder %v772, %v781
        %vm790 = vcmp.ge.s32.totalorder %v773, %v781
        %vm791 = vcmp.ge.s32.totalorder %v774, %v781
        %vm792 = vcmp.ge.s32.totalorder %v775, %v781
        %vm793 = vcmp.ge.s32.totalorder %v776, %v781
        %vm794 = vcmp.ge.s32.totalorder %v777, %v781
        %vm795 = vcmp.ge.s32.totalorder %v778, %v781
        %vm796 = vcmp.ge.s32.totalorder %v779, %v781
        %vm797 = vcmp.ge.s32.totalorder %v780, %v781
        %v798 = vadd.s32 %v757, 1
        %v799 = vmul.u32 %v798, 16
        %vm800 = vcmp.lt.s32.totalorder %v755, %v799
        %vm801 = vcmp.lt.s32.totalorder %v766, %v799
        %vm802 = vcmp.lt.s32.totalorder %v767, %v799
        %vm803 = vcmp.lt.s32.totalorder %v768, %v799
        %vm804 = vcmp.lt.s32.totalorder %v769, %v799
        %vm805 = vcmp.lt.s32.totalorder %v770, %v799
        %vm806 = vcmp.lt.s32.totalorder %v771, %v799
        %vm807 = vcmp.lt.s32.totalorder %v772, %v799
        %vm808 = vcmp.lt.s32.totalorder %v773, %v799
        %vm809 = vcmp.lt.s32.totalorder %v774, %v799
        %vm810 = vcmp.lt.s32.totalorder %v775, %v799
        %vm811 = vcmp.lt.s32.totalorder %v776, %v799
        %vm812 = vcmp.lt.s32.totalorder %v777, %v799
        %vm813 = vcmp.lt.s32.totalorder %v778, %v799
        %vm814 = vcmp.lt.s32.totalorder %v779, %v799
        %vm815 = vcmp.lt.s32.totalorder %v780, %v799
        %vm816 = vmand %vm782, %vm800
        %vm817 = vmand %vm783, %vm801
        %vm818 = vmand %vm784, %vm802
        %vm819 = vmand %vm785, %vm803
        %vm820 = vmand %vm786, %vm804
        %vm821 = vmand %vm787, %vm805
        %vm822 = vmand %vm788, %vm806
        %vm823 = vmand %vm789, %vm807
        %vm824 = vmand %vm790, %vm808
        %vm825 = vmand %vm791, %vm809
        %vm826 = vmand %vm792, %vm810
        %vm827 = vmand %vm793, %vm811
        %vm828 = vmand %vm794, %vm812
        %vm829 = vmand %vm795, %vm813
        %vm830 = vmand %vm796, %vm814
        %vm831 = vmand %vm797, %vm815
        %v832 = vsel %vm816, 1, 0
        %v833 = vsel %vm817, 1, 0
        %v834 = vsel %vm818, 1, 0
        %v835 = vsel %vm819, 1, 0
        %v836 = vsel %vm820, 1, 0
        %v837 = vsel %vm821, 1, 0
        %v838 = vsel %vm822, 1, 0
        %v839 = vsel %vm823, 1, 0
        %v840 = vsel %vm824, 1, 0
        %v841 = vsel %vm825, 1, 0
        %v842 = vsel %vm826, 1, 0
        %v843 = vsel %vm827, 1, 0
        %v844 = vsel %vm828, 1, 0
        %v845 = vsel %vm829, 1, 0
        %v846 = vsel %vm830, 1, 0
        %v847 = vsel %vm831, 1, 0
        %v848 = vcvt.s32.f32 %v832
        %v849 = vcvt.s32.f32 %v833
        %v850 = vcvt.s32.f32 %v834
        %v851 = vcvt.s32.f32 %v835
        %v852 = vcvt.s32.f32 %v836
        %v853 = vcvt.s32.f32 %v837
        %v854 = vcvt.s32.f32 %v838
        %v855 = vcvt.s32.f32 %v839
        %v856 = vcvt.s32.f32 %v840
        %v857 = vcvt.s32.f32 %v841
        %v858 = vcvt.s32.f32 %v842
        %v859 = vcvt.s32.f32 %v843
        %v860 = vcvt.s32.f32 %v844
        %v861 = vcvt.s32.f32 %v845
        %v862 = vcvt.s32.f32 %v846
        %v863 = vcvt.s32.f32 %v847
        %v864 = vld [vmem:[#allocation2] sm:$0xf]
        %v865 = vld [vmem:[#allocation5] sm:$0x1]
        %v867 = vlaneseq
        %v868 = vshrl.u32 %v867, 7
        %v869 = vsub.s32 0, %v868
        %v870 = vrot.slane %v865, %v869
        %vm872 = vcmask 31744
        %v874 = vsel %vm872, %v738, 0
        %v877 = vsel %vm872, %v739, 0
        %v880 = vsel %vm872, %v740, 0
        %v883 = vsel %vm872, %v741, 0
        %v886 = vsel %vm872, %v742, 0
        %v889 = vsel %vm872, %v743, 0
        %v892 = vsel %vm872, %v744, 0
        %v895 = vsel %vm872, %v745, 0
        %v898 = vsel %vm872, %v746, 0
        %v901 = vsel %vm872, %v747, 0
        %v904 = vsel %vm872, %v748, 0
        %v907 = vsel %vm872, %v749, 0
        %v910 = vsel %vm872, %v750, 0
        %v913 = vsel %vm872, %v751, 0
        %v916 = vsel %vm872, %v752, 0
        %v919 = vsel %vm872, %v753, 0
        %vm921 = vcmask 1043456
        %v923 = vsel %vm921, %v864, 0
        %925 = vmatprep.subr.mxu0 0.0
        %926 = vmatpush1.msra.mxu0 0.0
        %927 = vmatprep.subr.mxu0 0.0
        %928 = vmatpush1.msra.mxu0 0.0
        %929 = vmatprep.subr.mxu0 0.0
        %930 = vmatpush1.msra.mxu0 0.0
        %931 = vmatprep.subr.mxu0 0.0
        %932 = vmatpush1.msra.mxu0 0.0
        %933 = vmatprep.subr.mxu0 0.0
        %934 = vmatpush1.msra.mxu0 0.0
        %935 = vmatprep.subr.mxu0 0.0
        %936 = vmatpush1.msra.mxu0 0.0
        %937 = vmatprep.subr.mxu0 0.0
        %938 = vmatpush1.msra.mxu0 0.0
        %939 = vmatprep.subr.mxu0 0.0
        %940 = vmatpush1.msra.mxu0 0.0
        %941 = vmatprep.subr.mxu0 0.0
        %942 = vmatpush1.msra.mxu0 0.0
        %943 = vmatprep.subr.mxu0 0.0
        %944 = vmatpush1.msra.mxu0 0.0
        %945 = vmatprep.subr.mxu0 0.0
        %946 = vmatpush1.msra.mxu0 0.0
        %947 = vmatprep.subr.mxu0 0.0
        %948 = vmatpush1.msra.mxu0 0.0
        %949 = vmatprep.subr.mxu0 0.0
        %950 = vmatpush1.msra.mxu0 0.0
        %951 = vmatprep.subr.mxu0 0.0
        %952 = vmatpush1.msra.mxu0 0.0
        %953 = vmatprep.subr.mxu0 0.0
        %954 = vmatpush1.msra.mxu0 0.0
        %955 = vmatprep.subr.mxu0 0.0
        %956 = vmatpush1.msra.mxu0 %v923
        %957 = vmatprep.subr.mxu0 0.0
        %958 = vmatpush2.msra.mxu0 0.0
        %959 = vmatprep.subr.mxu0 0.0
        %960 = vmatpush2.msra.mxu0 0.0
        %961 = vmatprep.subr.mxu0 0.0
        %962 = vmatpush2.msra.mxu0 0.0
        %963 = vmatprep.subr.mxu0 0.0
        %964 = vmatpush2.msra.mxu0 0.0
        %965 = vmatprep.subr.mxu0 0.0
        %966 = vmatpush2.msra.mxu0 0.0
        %967 = vmatprep.subr.mxu0 0.0
        %968 = vmatpush2.msra.mxu0 0.0
        %969 = vmatprep.subr.mxu0 0.0
        %970 = vmatpush2.msra.mxu0 0.0
        %971 = vmatprep.subr.mxu0 0.0
        %972 = vmatpush2.msra.mxu0 0.0
        %973 = vmatprep.subr.mxu0 0.0
        %974 = vmatpush2.msra.mxu0 0.0
        %975 = vmatprep.subr.mxu0 0.0
        %976 = vmatpush2.msra.mxu0 0.0
        %977 = vmatprep.subr.mxu0 0.0
        %978 = vmatpush2.msra.mxu0 0.0
        %979 = vmatprep.subr.mxu0 0.0
        %980 = vmatpush2.msra.mxu0 0.0
        %981 = vmatprep.subr.mxu0 0.0
        %982 = vmatpush2.msra.mxu0 0.0
        %983 = vmatprep.subr.mxu0 0.0
        %984 = vmatpush2.msra.mxu0 0.0
        %985 = vmatprep.subr.mxu0 0.0
        %986 = vmatpush2.msra.mxu0 0.0
        %987 = vmatprep.subr.mxu0 0.0
        %988 = vmatpush2.msra.mxu0 0.0
        %989 = vmatprep.mubr.f32.mxu0 0.0
        %990 = vmatmul.mubr.f32.gmra.mxu0 %v874
        %v991 = vpop.f32.mrf.mxu0
        %v992 = vadd.f32 %v870, %v991
        %v993 = vpop.f32.mrf.mxu0
        %994 = vmatprep.mubr.f32.mxu0 0.0
        %995 = vmatmul.mubr.f32.gmra.mxu0 %v877
        %v996 = vpop.f32.mrf.mxu0
        %v997 = vadd.f32 %v870, %v996
        %v998 = vpop.f32.mrf.mxu0
        %999 = vmatprep.mubr.f32.mxu0 0.0
        %1000 = vmatmul.mubr.f32.gmra.mxu0 %v880
        %v1001 = vpop.f32.mrf.mxu0
        %v1002 = vadd.f32 %v870, %v1001
        %v1003 = vpop.f32.mrf.mxu0
        %1004 = vmatprep.mubr.f32.mxu0 0.0
        %1005 = vmatmul.mubr.f32.gmra.mxu0 %v883
        %v1006 = vpop.f32.mrf.mxu0
        %v1007 = vadd.f32 %v870, %v1006
        %v1008 = vpop.f32.mrf.mxu0
        %1009 = vmatprep.mubr.f32.mxu0 0.0
        %1010 = vmatmul.mubr.f32.gmra.mxu0 %v886
        %v1011 = vpop.f32.mrf.mxu0
        %v1012 = vadd.f32 %v870, %v1011
        %v1013 = vpop.f32.mrf.mxu0
        %1014 = vmatprep.mubr.f32.mxu0 0.0
        %1015 = vmatmul.mubr.f32.gmra.mxu0 %v889
        %v1016 = vpop.f32.mrf.mxu0
        %v1017 = vadd.f32 %v870, %v1016
        %v1018 = vpop.f32.mrf.mxu0
        %1019 = vmatprep.mubr.f32.mxu0 0.0
        %1020 = vmatmul.mubr.f32.gmra.mxu0 %v892
        %v1021 = vpop.f32.mrf.mxu0
        %v1022 = vadd.f32 %v870, %v1021
        %v1023 = vpop.f32.mrf.mxu0
        %1024 = vmatprep.mubr.f32.mxu0 0.0
        %1025 = vmatmul.mubr.f32.gmra.mxu0 %v895
        %v1026 = vpop.f32.mrf.mxu0
        %v1027 = vadd.f32 %v870, %v1026
        %v1028 = vpop.f32.mrf.mxu0
        %1029 = vmatprep.mubr.f32.mxu0 0.0
        %1030 = vmatmul.mubr.f32.gmra.mxu0 %v898
        %v1031 = vpop.f32.mrf.mxu0
        %v1032 = vadd.f32 %v870, %v1031
        %v1033 = vpop.f32.mrf.mxu0
        %1034 = vmatprep.mubr.f32.mxu0 0.0
        %1035 = vmatmul.mubr.f32.gmra.mxu0 %v901
        %v1036 = vpop.f32.mrf.mxu0
        %v1037 = vadd.f32 %v870, %v1036
        %v1038 = vpop.f32.mrf.mxu0
        %1039 = vmatprep.mubr.f32.mxu0 0.0
        %1040 = vmatmul.mubr.f32.gmra.mxu0 %v904
        %v1041 = vpop.f32.mrf.mxu0
        %v1042 = vadd.f32 %v870, %v1041
        %v1043 = vpop.f32.mrf.mxu0
        %1044 = vmatprep.mubr.f32.mxu0 0.0
        %1045 = vmatmul.mubr.f32.gmra.mxu0 %v907
        %v1046 = vpop.f32.mrf.mxu0
        %v1047 = vadd.f32 %v870, %v1046
        %v1048 = vpop.f32.mrf.mxu0
        %1049 = vmatprep.mubr.f32.mxu0 0.0
        %1050 = vmatmul.mubr.f32.gmra.mxu0 %v910
        %v1051 = vpop.f32.mrf.mxu0
        %v1052 = vadd.f32 %v870, %v1051
        %v1053 = vpop.f32.mrf.mxu0
        %1054 = vmatprep.mubr.f32.mxu0 0.0
        %1055 = vmatmul.mubr.f32.gmra.mxu0 %v913
        %v1056 = vpop.f32.mrf.mxu0
        %v1057 = vadd.f32 %v870, %v1056
        %v1058 = vpop.f32.mrf.mxu0
        %1059 = vmatprep.mubr.f32.mxu0 0.0
        %1060 = vmatmul.mubr.f32.gmra.mxu0 %v916
        %v1061 = vpop.f32.mrf.mxu0
        %v1062 = vadd.f32 %v870, %v1061
        %v1063 = vpop.f32.mrf.mxu0
        %1064 = vmatprep.mubr.f32.mxu0 0.0
        %1065 = vmatmul.mubr.f32.gmra.mxu0 %v919
        %v1066 = vpop.f32.mrf.mxu0
        %v1067 = vadd.f32 %v870, %v1066
        %v1068 = vpop.f32.mrf.mxu0
        %1069 = vdwg.mxu0
        %vm1070 = vcmp.ge.f32.partialorder %v992, 0.0
        %vm1071 = vcmp.ge.f32.partialorder %v997, 0.0
        %vm1072 = vcmp.ge.f32.partialorder %v1002, 0.0
        %vm1073 = vcmp.ge.f32.partialorder %v1007, 0.0
        %vm1074 = vcmp.ge.f32.partialorder %v1012, 0.0
        %vm1075 = vcmp.ge.f32.partialorder %v1017, 0.0
        %vm1076 = vcmp.ge.f32.partialorder %v1022, 0.0
        %vm1077 = vcmp.ge.f32.partialorder %v1027, 0.0
        %vm1078 = vcmp.ge.f32.partialorder %v1032, 0.0
        %vm1079 = vcmp.ge.f32.partialorder %v1037, 0.0
        %vm1080 = vcmp.ge.f32.partialorder %v1042, 0.0
        %vm1081 = vcmp.ge.f32.partialorder %v1047, 0.0
        %vm1082 = vcmp.ge.f32.partialorder %v1052, 0.0
        %vm1083 = vcmp.ge.f32.partialorder %v1057, 0.0
        %vm1084 = vcmp.ge.f32.partialorder %v1062, 0.0
        %vm1085 = vcmp.ge.f32.partialorder %v1067, 0.0
        %v1086 = vmul.f32 %v992, 0.2
        %v1087 = vmul.f32 %v997, 0.2
        %v1088 = vmul.f32 %v1002, 0.2
        %v1089 = vmul.f32 %v1007, 0.2
        %v1090 = vmul.f32 %v1012, 0.2
        %v1091 = vmul.f32 %v1017, 0.2
        %v1092 = vmul.f32 %v1022, 0.2
        %v1093 = vmul.f32 %v1027, 0.2
        %v1094 = vmul.f32 %v1032, 0.2
        %v1095 = vmul.f32 %v1037, 0.2
        %v1096 = vmul.f32 %v1042, 0.2
        %v1097 = vmul.f32 %v1047, 0.2
        %v1098 = vmul.f32 %v1052, 0.2
        %v1099 = vmul.f32 %v1057, 0.2
        %v1100 = vmul.f32 %v1062, 0.2
        %v1101 = vmul.f32 %v1067, 0.2
        %v1102 = vsel %vm1070, %v992, %v1086
        %v1103 = vsel %vm1071, %v997, %v1087
        %v1104 = vsel %vm1072, %v1002, %v1088
        %v1105 = vsel %vm1073, %v1007, %v1089
        %v1106 = vsel %vm1074, %v1012, %v1090
        %v1107 = vsel %vm1075, %v1017, %v1091
        %v1108 = vsel %vm1076, %v1022, %v1092
        %v1109 = vsel %vm1077, %v1027, %v1093
        %v1110 = vsel %vm1078, %v1032, %v1094
        %v1111 = vsel %vm1079, %v1037, %v1095
        %v1112 = vsel %vm1080, %v1042, %v1096
        %v1113 = vsel %vm1081, %v1047, %v1097
        %v1114 = vsel %vm1082, %v1052, %v1098
        %v1115 = vsel %vm1083, %v1057, %v1099
        %v1116 = vsel %vm1084, %v1062, %v1100
        %v1117 = vsel %vm1085, %v1067, %v1101
        %v1118 = vpack.c.bf16 %v1103, %v1102
        %v1119 = vpack.c.bf16 %v1105, %v1104
        %v1120 = vpack.c.bf16 %v1107, %v1106
        %v1121 = vpack.c.bf16 %v1109, %v1108
        %v1122 = vpack.c.bf16 %v1111, %v1110
        %v1123 = vpack.c.bf16 %v1113, %v1112
        %v1124 = vpack.c.bf16 %v1115, %v1114
        %v1125 = vpack.c.bf16 %v1117, %v1116
        %v1126 = vld [vmem:[%s3] sm:$0xf]
        %v1127 = vld [vmem:[%s3 + $0x4] sm:$0xf]
        %v1128 = vld [vmem:[%s3 + $0x8] sm:$0xf]
        %v1129 = vld [vmem:[%s3 + $0xc] sm:$0xf]
        %v1130 = vld [vmem:[%s3 + $0x10] sm:$0xf]
        %v1131 = vld [vmem:[%s3 + $0x14] sm:$0xf]
        %v1132 = vld [vmem:[%s3 + $0x18] sm:$0xf]
        %v1133 = vld [vmem:[%s3 + $0x1c] sm:$0xf]
        %v1134 = vld [vmem:[#allocation7] sm:$0x1]
        %v1136 = vlaneseq
        %v1137 = vshrl.u32 %v1136, 7
        %v1138 = vsub.s32 0, %v1137
        %v1139 = vrot.slane %v1134, %v1138
        %v1149 = vunpack.c.l.b16 %v1126
        %v1150 = vunpack.c.l.b16 %v1127
        %v1151 = vunpack.c.l.b16 %v1128
        %v1152 = vunpack.c.l.b16 %v1129
        %v1153 = vunpack.c.l.b16 %v1130
        %v1154 = vunpack.c.l.b16 %v1131
        %v1155 = vunpack.c.l.b16 %v1132
        %v1156 = vunpack.c.l.b16 %v1133
        %v1157 = vpack.c.b16 %v1150, %v1149
        %v1158 = vpack.c.b16 %v1152, %v1151
        %v1159 = vpack.c.b16 %v1154, %v1153
        %v1160 = vpack.c.b16 %v1156, %v1155
        %vm1165 = vcmask 523264
        %v1167 = vsel %vm1165, %v1118, 0
        %v1170 = vsel %vm1165, %v1119, 0
        %v1173 = vsel %vm1165, %v1120, 0
        %v1176 = vsel %vm1165, %v1121, 0
        %v1179 = vsel %vm1165, %v1122, 0
        %v1182 = vsel %vm1165, %v1123, 0
        %v1185 = vsel %vm1165, %v1124, 0
        %v1188 = vsel %vm1165, %v1125, 0
        %1190 = vmatprep.subr.bf16.mxu0 0
        %1191 = vmatpush1.bf16.msra.mxu0 0
        %1192 = vmatprep.subr.bf16.mxu0 0
        %1193 = vmatpush1.bf16.msra.mxu0 0
        %1194 = vmatprep.subr.bf16.mxu0 0
        %1195 = vmatpush1.bf16.msra.mxu0 0
        %1196 = vmatprep.subr.bf16.mxu0 0
        %1197 = vmatpush1.bf16.msra.mxu0 0
        %1198 = vmatprep.subr.bf16.mxu0 0
        %1199 = vmatpush1.bf16.msra.mxu0 %v1160
        %1200 = vmatprep.subr.bf16.mxu0 0
        %1201 = vmatpush1.bf16.msra.mxu0 %v1159
        %1202 = vmatprep.subr.bf16.mxu0 0
        %1203 = vmatpush1.bf16.msra.mxu0 %v1158
        %1204 = vmatprep.subr.bf16.mxu0 0
        %1205 = vmatpush1.bf16.msra.mxu0 %v1157
        %1206 = vmatprep.subr.bf16.mxu0 0
        %1207 = vmatpush2.bf16.msra.mxu0 0
        %1208 = vmatprep.subr.bf16.mxu0 0
        %1209 = vmatpush2.bf16.msra.mxu0 0
        %1210 = vmatprep.subr.bf16.mxu0 0
        %1211 = vmatpush2.bf16.msra.mxu0 0
        %1212 = vmatprep.subr.bf16.mxu0 0
        %1213 = vmatpush2.bf16.msra.mxu0 0
        %1214 = vmatprep.subr.bf16.mxu0 0
        %1215 = vmatpush2.bf16.msra.mxu0 0
        %1216 = vmatprep.subr.bf16.mxu0 0
        %1217 = vmatpush2.bf16.msra.mxu0 0
        %1218 = vmatprep.subr.bf16.mxu0 0
        %1219 = vmatpush2.bf16.msra.mxu0 0
        %1220 = vmatprep.subr.bf16.mxu0 0
        %1221 = vmatpush2.bf16.msra.mxu0 0
        %1222 = vmatprep.mubr.bf16.mxu0 0
        %1223 = vmatmul.mubr.bf16.gmra.mxu0 %v1167
        %v1224 = vpop.f32.mrf.mxu0
        %v1225 = vadd.f32 %v1139, %v1224
        %v1226 = vpop.f32.mrf.mxu0
        %v1227 = vpop.f32.mrf.mxu0
        %v1228 = vadd.f32 %v1139, %v1227
        %v1229 = vpop.f32.mrf.mxu0
        %1230 = vmatprep.mubr.bf16.mxu0 0
        %1231 = vmatmul.mubr.bf16.gmra.mxu0 %v1170
        %v1232 = vpop.f32.mrf.mxu0
        %v1233 = vadd.f32 %v1139, %v1232
        %v1234 = vpop.f32.mrf.mxu0
        %v1235 = vpop.f32.mrf.mxu0
        %v1236 = vadd.f32 %v1139, %v1235
        %v1237 = vpop.f32.mrf.mxu0
        %1238 = vmatprep.mubr.bf16.mxu0 0
        %1239 = vmatmul.mubr.bf16.gmra.mxu0 %v1173
        %v1240 = vpop.f32.mrf.mxu0
        %v1241 = vadd.f32 %v1139, %v1240
        %v1242 = vpop.f32.mrf.mxu0
        %v1243 = vpop.f32.mrf.mxu0
        %v1244 = vadd.f32 %v1139, %v1243
        %v1245 = vpop.f32.mrf.mxu0
        %1246 = vmatprep.mubr.bf16.mxu0 0
        %1247 = vmatmul.mubr.bf16.gmra.mxu0 %v1176
        %v1248 = vpop.f32.mrf.mxu0
        %v1249 = vadd.f32 %v1139, %v1248
        %v1250 = vpop.f32.mrf.mxu0
        %v1251 = vpop.f32.mrf.mxu0
        %v1252 = vadd.f32 %v1139, %v1251
        %v1253 = vpop.f32.mrf.mxu0
        %1254 = vmatprep.mubr.bf16.mxu0 0
        %1255 = vmatmul.mubr.bf16.gmra.mxu0 %v1179
        %v1256 = vpop.f32.mrf.mxu0
        %v1257 = vadd.f32 %v1139, %v1256
        %v1258 = vpop.f32.mrf.mxu0
        %v1259 = vpop.f32.mrf.mxu0
        %v1260 = vadd.f32 %v1139, %v1259
        %v1261 = vpop.f32.mrf.mxu0
        %1262 = vmatprep.mubr.bf16.mxu0 0
        %1263 = vmatmul.mubr.bf16.gmra.mxu0 %v1182
        %v1264 = vpop.f32.mrf.mxu0
        %v1265 = vadd.f32 %v1139, %v1264
        %v1266 = vpop.f32.mrf.mxu0
        %v1267 = vpop.f32.mrf.mxu0
        %v1268 = vadd.f32 %v1139, %v1267
        %v1269 = vpop.f32.mrf.mxu0
        %1270 = vmatprep.mubr.bf16.mxu0 0
        %1271 = vmatmul.mubr.bf16.gmra.mxu0 %v1185
        %v1272 = vpop.f32.mrf.mxu0
        %v1273 = vadd.f32 %v1139, %v1272
        %v1274 = vpop.f32.mrf.mxu0
        %v1275 = vpop.f32.mrf.mxu0
        %v1276 = vadd.f32 %v1139, %v1275
        %v1277 = vpop.f32.mrf.mxu0
        %1278 = vmatprep.mubr.bf16.mxu0 0
        %1279 = vmatmul.mubr.bf16.gmra.mxu0 %v1188
        %v1280 = vpop.f32.mrf.mxu0
        %v1281 = vadd.f32 %v1139, %v1280
        %v1282 = vpop.f32.mrf.mxu0
        %v1283 = vpop.f32.mrf.mxu0
        %v1284 = vadd.f32 %v1139, %v1283
        %v1285 = vpop.f32.mrf.mxu0
        %1286 = vdwg.mxu0
        %vm1287 = vcmp.ge.f32.partialorder %v1225, 0.0
        %vm1288 = vcmp.ge.f32.partialorder %v1228, 0.0
        %vm1289 = vcmp.ge.f32.partialorder %v1233, 0.0
        %vm1290 = vcmp.ge.f32.partialorder %v1236, 0.0
        %vm1291 = vcmp.ge.f32.partialorder %v1241, 0.0
        %vm1292 = vcmp.ge.f32.partialorder %v1244, 0.0
        %vm1293 = vcmp.ge.f32.partialorder %v1249, 0.0
        %vm1294 = vcmp.ge.f32.partialorder %v1252, 0.0
        %vm1295 = vcmp.ge.f32.partialorder %v1257, 0.0
        %vm1296 = vcmp.ge.f32.partialorder %v1260, 0.0
        %vm1297 = vcmp.ge.f32.partialorder %v1265, 0.0
        %vm1298 = vcmp.ge.f32.partialorder %v1268, 0.0
        %vm1299 = vcmp.ge.f32.partialorder %v1273, 0.0
        %vm1300 = vcmp.ge.f32.partialorder %v1276, 0.0
        %vm1301 = vcmp.ge.f32.partialorder %v1281, 0.0
        %vm1302 = vcmp.ge.f32.partialorder %v1284, 0.0
        %v1303 = vmul.f32 %v1225, 0.2
        %v1304 = vmul.f32 %v1228, 0.2
        %v1305 = vmul.f32 %v1233, 0.2
        %v1306 = vmul.f32 %v1236, 0.2
        %v1307 = vmul.f32 %v1241, 0.2
        %v1308 = vmul.f32 %v1244, 0.2
        %v1309 = vmul.f32 %v1249, 0.2
        %v1310 = vmul.f32 %v1252, 0.2
        %v1311 = vmul.f32 %v1257, 0.2
        %v1312 = vmul.f32 %v1260, 0.2
        %v1313 = vmul.f32 %v1265, 0.2
        %v1314 = vmul.f32 %v1268, 0.2
        %v1315 = vmul.f32 %v1273, 0.2
        %v1316 = vmul.f32 %v1276, 0.2
        %v1317 = vmul.f32 %v1281, 0.2
        %v1318 = vmul.f32 %v1284, 0.2
        %v1319 = vsel %vm1287, %v1225, %v1303
        %v1320 = vsel %vm1288, %v1228, %v1304
        %v1321 = vsel %vm1289, %v1233, %v1305
        %v1322 = vsel %vm1290, %v1236, %v1306
        %v1323 = vsel %vm1291, %v1241, %v1307
        %v1324 = vsel %vm1292, %v1244, %v1308
        %v1325 = vsel %vm1293, %v1249, %v1309
        %v1326 = vsel %vm1294, %v1252, %v1310
        %v1327 = vsel %vm1295, %v1257, %v1311
        %v1328 = vsel %vm1296, %v1260, %v1312
        %v1329 = vsel %vm1297, %v1265, %v1313
        %v1330 = vsel %vm1298, %v1268, %v1314
        %v1331 = vsel %vm1299, %v1273, %v1315
        %v1332 = vsel %vm1300, %v1276, %v1316
        %v1333 = vsel %vm1301, %v1281, %v1317
        %v1334 = vsel %vm1302, %v1284, %v1318
        %v1335 = vpack.c.bf16 %v1320, %v1319
        %v1336 = vpack.c.bf16 %v1322, %v1321
        %v1337 = vpack.c.bf16 %v1324, %v1323
        %v1338 = vpack.c.bf16 %v1326, %v1325
        %v1339 = vpack.c.bf16 %v1328, %v1327
        %v1340 = vpack.c.bf16 %v1330, %v1329
        %v1341 = vpack.c.bf16 %v1332, %v1331
        %v1342 = vpack.c.bf16 %v1334, %v1333
        %v1343 = vld [vmem:[%s5] sm:$0xff]
        %v1344 = vld [vmem:[%s5 + $0x8] sm:$0xff]
        %v1345 = vld [vmem:[%s5 + $0x10] sm:$0xff]
        %v1346 = vld [vmem:[%s5 + $0x18] sm:$0xff]
        %v1347 = vld [vmem:[%s5 + $0x20] sm:$0xff]
        %v1348 = vld [vmem:[%s5 + $0x28] sm:$0xff]
        %v1349 = vld [vmem:[%s5 + $0x30] sm:$0xff]
        %v1350 = vld [vmem:[%s5 + $0x38] sm:$0xff]
        %v1351 = vld [vmem:[%s5 + $0x40] sm:$0xff]
        %v1352 = vld [vmem:[%s5 + $0x48] sm:$0xff]
        %v1353 = vld [vmem:[%s5 + $0x50] sm:$0xff]
        %v1354 = vld [vmem:[%s5 + $0x58] sm:$0xff]
        %v1355 = vld [vmem:[%s5 + $0x60] sm:$0xff]
        %v1356 = vld [vmem:[%s5 + $0x68] sm:$0xff]
        %v1357 = vld [vmem:[%s5 + $0x70] sm:$0xff]
        %v1358 = vld [vmem:[%s5 + $0x78] sm:$0xff]
        %v1359 = vld [vmem:[%s5 + $0x80] sm:$0xff]
        %v1360 = vld [vmem:[%s5 + $0x88] sm:$0xff]
        %v1361 = vld [vmem:[%s5 + $0x90] sm:$0xff]
        %v1362 = vld [vmem:[%s5 + $0x98] sm:$0xff]
        %v1363 = vld [vmem:[%s5 + $0xa0] sm:$0xff]
        %v1364 = vld [vmem:[%s5 + $0xa8] sm:$0xff]
        %v1365 = vld [vmem:[%s5 + $0xb0] sm:$0xff]
        %v1366 = vld [vmem:[%s5 + $0xb8] sm:$0xff]
        %v1367 = vld [vmem:[%s5 + $0xc0] sm:$0xff]
        %v1368 = vld [vmem:[%s5 + $0xc8] sm:$0xff]
        %v1369 = vld [vmem:[%s5 + $0xd0] sm:$0xff]
        %v1370 = vld [vmem:[%s5 + $0xd8] sm:$0xff]
        %v1371 = vld [vmem:[%s5 + $0xe0] sm:$0xff]
        %v1372 = vld [vmem:[%s5 + $0xe8] sm:$0xff]
        %v1373 = vld [vmem:[%s5 + $0xf0] sm:$0xff]
        %v1374 = vld [vmem:[%s5 + $0xf8] sm:$0xff]
        %v1375 = vld [vmem:[%s5 + $0x100] sm:$0xff]
        %v1376 = vld [vmem:[%s5 + $0x108] sm:$0xff]
        %v1377 = vld [vmem:[%s5 + $0x110] sm:$0xff]
        %v1378 = vld [vmem:[%s5 + $0x118] sm:$0xff]
        %v1379 = vld [vmem:[%s5 + $0x120] sm:$0xff]
        %v1380 = vld [vmem:[%s5 + $0x128] sm:$0xff]
        %v1381 = vld [vmem:[%s5 + $0x130] sm:$0xff]
        %v1382 = vld [vmem:[%s5 + $0x138] sm:$0xff]
        %v1383 = vld [vmem:[%s5 + $0x140] sm:$0xff]
        %v1384 = vld [vmem:[%s5 + $0x148] sm:$0xff]
        %v1385 = vld [vmem:[%s5 + $0x150] sm:$0xff]
        %v1386 = vld [vmem:[%s5 + $0x158] sm:$0xff]
        %v1387 = vld [vmem:[%s5 + $0x160] sm:$0xff]
        %v1388 = vld [vmem:[%s5 + $0x168] sm:$0xff]
        %v1389 = vld [vmem:[%s5 + $0x170] sm:$0xff]
        %v1390 = vld [vmem:[%s5 + $0x178] sm:$0xff]
        %v1391 = vld [vmem:[%s5 + $0x180] sm:$0xff]
        %v1392 = vld [vmem:[%s5 + $0x188] sm:$0xff]
        %v1393 = vld [vmem:[%s5 + $0x190] sm:$0xff]
        %v1394 = vld [vmem:[%s5 + $0x198] sm:$0xff]
        %v1395 = vld [vmem:[%s5 + $0x1a0] sm:$0xff]
        %v1396 = vld [vmem:[%s5 + $0x1a8] sm:$0xff]
        %v1397 = vld [vmem:[%s5 + $0x1b0] sm:$0xff]
        %v1398 = vld [vmem:[%s5 + $0x1b8] sm:$0xff]
        %v1399 = vld [vmem:[%s5 + $0x1c0] sm:$0xff]
        %v1400 = vld [vmem:[%s5 + $0x1c8] sm:$0xff]
        %v1401 = vld [vmem:[%s5 + $0x1d0] sm:$0xff]
        %v1402 = vld [vmem:[%s5 + $0x1d8] sm:$0xff]
        %v1403 = vld [vmem:[%s5 + $0x1e0] sm:$0xff]
        %v1404 = vld [vmem:[%s5 + $0x1e8] sm:$0xff]
        %v1405 = vld [vmem:[%s5 + $0x1f0] sm:$0xff]
        %v1406 = vld [vmem:[%s5 + $0x1f8] sm:$0xff]
        %v1407 = vld [vmem:[%s6] sm:$0xff]
        %v1409 = vlaneseq
        %v1410 = vshrl.u32 %v1409, 7
        %v1411 = vsub.s32 0, %v1410
        %v1412 = vrot.slane %v1407, %v1411
        %v1413 = vlaneseq
        %v1414 = vshrl.u32 %v1413, 7
        %v1415 = vsub.s32 1, %v1414
        %v1416 = vrot.slane %v1407, %v1415
        %v1417 = vlaneseq
        %v1418 = vshrl.u32 %v1417, 7
        %v1419 = vsub.s32 2, %v1418
        %v1420 = vrot.slane %v1407, %v1419
        %v1421 = vlaneseq
        %v1422 = vshrl.u32 %v1421, 7
        %v1423 = vsub.s32 3, %v1422
        %v1424 = vrot.slane %v1407, %v1423
        %v1425 = vlaneseq
        %v1426 = vshrl.u32 %v1425, 7
        %v1427 = vsub.s32 4, %v1426
        %v1428 = vrot.slane %v1407, %v1427
        %v1429 = vlaneseq
        %v1430 = vshrl.u32 %v1429, 7
        %v1431 = vsub.s32 5, %v1430
        %v1432 = vrot.slane %v1407, %v1431
        %v1433 = vlaneseq
        %v1434 = vshrl.u32 %v1433, 7
        %v1435 = vsub.s32 6, %v1434
        %v1436 = vrot.slane %v1407, %v1435
        %v1437 = vlaneseq
        %v1438 = vshrl.u32 %v1437, 7
        %v1439 = vsub.s32 7, %v1438
        %v1440 = vrot.slane %v1407, %v1439
        %v1513 = vunpack.c.l.b16 %v1343
        %v1514 = vunpack.c.h.b16 %v1343
        %v1515 = vunpack.c.l.b16 %v1344
        %v1516 = vunpack.c.h.b16 %v1344
        %v1517 = vunpack.c.l.b16 %v1345
        %v1518 = vunpack.c.h.b16 %v1345
        %v1519 = vunpack.c.l.b16 %v1346
        %v1520 = vunpack.c.h.b16 %v1346
        %v1521 = vunpack.c.l.b16 %v1347
        %v1522 = vunpack.c.h.b16 %v1347
        %v1523 = vunpack.c.l.b16 %v1348
        %v1524 = vunpack.c.h.b16 %v1348
        %v1525 = vunpack.c.l.b16 %v1349
        %v1526 = vunpack.c.h.b16 %v1349
        %v1527 = vunpack.c.l.b16 %v1350
        %v1528 = vunpack.c.h.b16 %v1350
        %v1529 = vunpack.c.l.b16 %v1351
        %v1530 = vunpack.c.h.b16 %v1351
        %v1531 = vunpack.c.l.b16 %v1352
        %v1532 = vunpack.c.h.b16 %v1352
        %v1533 = vunpack.c.l.b16 %v1353
        %v1534 = vunpack.c.h.b16 %v1353
        %v1535 = vunpack.c.l.b16 %v1354
        %v1536 = vunpack.c.h.b16 %v1354
        %v1537 = vunpack.c.l.b16 %v1355
        %v1538 = vunpack.c.h.b16 %v1355
        %v1539 = vunpack.c.l.b16 %v1356
        %v1540 = vunpack.c.h.b16 %v1356
        %v1541 = vunpack.c.l.b16 %v1357
        %v1542 = vunpack.c.h.b16 %v1357
        %v1543 = vunpack.c.l.b16 %v1358
        %v1544 = vunpack.c.h.b16 %v1358
        %v1545 = vunpack.c.l.b16 %v1359
        %v1546 = vunpack.c.h.b16 %v1359
        %v1547 = vunpack.c.l.b16 %v1360
        %v1548 = vunpack.c.h.b16 %v1360
        %v1549 = vunpack.c.l.b16 %v1361
        %v1550 = vunpack.c.h.b16 %v1361
        %v1551 = vunpack.c.l.b16 %v1362
        %v1552 = vunpack.c.h.b16 %v1362
        %v1553 = vunpack.c.l.b16 %v1363
        %v1554 = vunpack.c.h.b16 %v1363
        %v1555 = vunpack.c.l.b16 %v1364
        %v1556 = vunpack.c.h.b16 %v1364
        %v1557 = vunpack.c.l.b16 %v1365
        %v1558 = vunpack.c.h.b16 %v1365
        %v1559 = vunpack.c.l.b16 %v1366
        %v1560 = vunpack.c.h.b16 %v1366
        %v1561 = vunpack.c.l.b16 %v1367
        %v1562 = vunpack.c.h.b16 %v1367
        %v1563 = vunpack.c.l.b16 %v1368
        %v1564 = vunpack.c.h.b16 %v1368
        %v1565 = vunpack.c.l.b16 %v1369
        %v1566 = vunpack.c.h.b16 %v1369
        %v1567 = vunpack.c.l.b16 %v1370
        %v1568 = vunpack.c.h.b16 %v1370
        %v1569 = vunpack.c.l.b16 %v1371
        %v1570 = vunpack.c.h.b16 %v1371
        %v1571 = vunpack.c.l.b16 %v1372
        %v1572 = vunpack.c.h.b16 %v1372
        %v1573 = vunpack.c.l.b16 %v1373
        %v1574 = vunpack.c.h.b16 %v1373
        %v1575 = vunpack.c.l.b16 %v1374
        %v1576 = vunpack.c.h.b16 %v1374
        %v1577 = vunpack.c.l.b16 %v1375
        %v1578 = vunpack.c.h.b16 %v1375
        %v1579 = vunpack.c.l.b16 %v1376
        %v1580 = vunpack.c.h.b16 %v1376
        %v1581 = vunpack.c.l.b16 %v1377
        %v1582 = vunpack.c.h.b16 %v1377
        %v1583 = vunpack.c.l.b16 %v1378
        %v1584 = vunpack.c.h.b16 %v1378
        %v1585 = vunpack.c.l.b16 %v1379
        %v1586 = vunpack.c.h.b16 %v1379
        %v1587 = vunpack.c.l.b16 %v1380
        %v1588 = vunpack.c.h.b16 %v1380
        %v1589 = vunpack.c.l.b16 %v1381
        %v1590 = vunpack.c.h.b16 %v1381
        %v1591 = vunpack.c.l.b16 %v1382
        %v1592 = vunpack.c.h.b16 %v1382
        %v1593 = vunpack.c.l.b16 %v1383
        %v1594 = vunpack.c.h.b16 %v1383
        %v1595 = vunpack.c.l.b16 %v1384
        %v1596 = vunpack.c.h.b16 %v1384
        %v1597 = vunpack.c.l.b16 %v1385
        %v1598 = vunpack.c.h.b16 %v1385
        %v1599 = vunpack.c.l.b16 %v1386
        %v1600 = vunpack.c.h.b16 %v1386
        %v1601 = vunpack.c.l.b16 %v1387
        %v1602 = vunpack.c.h.b16 %v1387
        %v1603 = vunpack.c.l.b16 %v1388
        %v1604 = vunpack.c.h.b16 %v1388
        %v1605 = vunpack.c.l.b16 %v1389
        %v1606 = vunpack.c.h.b16 %v1389
        %v1607 = vunpack.c.l.b16 %v1390
        %v1608 = vunpack.c.h.b16 %v1390
        %v1609 = vunpack.c.l.b16 %v1391
        %v1610 = vunpack.c.h.b16 %v1391
        %v1611 = vunpack.c.l.b16 %v1392
        %v1612 = vunpack.c.h.b16 %v1392
        %v1613 = vunpack.c.l.b16 %v1393
        %v1614 = vunpack.c.h.b16 %v1393
        %v1615 = vunpack.c.l.b16 %v1394
        %v1616 = vunpack.c.h.b16 %v1394
        %v1617 = vunpack.c.l.b16 %v1395
        %v1618 = vunpack.c.h.b16 %v1395
        %v1619 = vunpack.c.l.b16 %v1396
        %v1620 = vunpack.c.h.b16 %v1396
        %v1621 = vunpack.c.l.b16 %v1397
        %v1622 = vunpack.c.h.b16 %v1397
        %v1623 = vunpack.c.l.b16 %v1398
        %v1624 = vunpack.c.h.b16 %v1398
        %v1625 = vunpack.c.l.b16 %v1399
        %v1626 = vunpack.c.h.b16 %v1399
        %v1627 = vunpack.c.l.b16 %v1400
        %v1628 = vunpack.c.h.b16 %v1400
        %v1629 = vunpack.c.l.b16 %v1401
        %v1630 = vunpack.c.h.b16 %v1401
        %v1631 = vunpack.c.l.b16 %v1402
        %v1632 = vunpack.c.h.b16 %v1402
        %v1633 = vunpack.c.l.b16 %v1403
        %v1634 = vunpack.c.h.b16 %v1403
        %v1635 = vunpack.c.l.b16 %v1404
        %v1636 = vunpack.c.h.b16 %v1404
        %v1637 = vunpack.c.l.b16 %v1405
        %v1638 = vunpack.c.h.b16 %v1405
        %v1639 = vunpack.c.l.b16 %v1406
        %v1640 = vunpack.c.h.b16 %v1406
        %v1641 = vpack.c.b16 %v1521, %v1513
        %v1642 = vpack.c.b16 %v1522, %v1514
        %v1643 = vpack.c.b16 %v1523, %v1515
        %v1644 = vpack.c.b16 %v1524, %v1516
        %v1645 = vpack.c.b16 %v1525, %v1517
        %v1646 = vpack.c.b16 %v1526, %v1518
        %v1647 = vpack.c.b16 %v1527, %v1519
        %v1648 = vpack.c.b16 %v1528, %v1520
        %v1649 = vpack.c.b16 %v1537, %v1529
        %v1650 = vpack.c.b16 %v1538, %v1530
        %v1651 = vpack.c.b16 %v1539, %v1531
        %v1652 = vpack.c.b16 %v1540, %v1532
        %v1653 = vpack.c.b16 %v1541, %v1533
        %v1654 = vpack.c.b16 %v1542, %v1534
        %v1655 = vpack.c.b16 %v1543, %v1535
        %v1656 = vpack.c.b16 %v1544, %v1536
        %v1657 = vpack.c.b16 %v1553, %v1545
        %v1658 = vpack.c.b16 %v1554, %v1546
        %v1659 = vpack.c.b16 %v1555, %v1547
        %v1660 = vpack.c.b16 %v1556, %v1548
        %v1661 = vpack.c.b16 %v1557, %v1549
        %v1662 = vpack.c.b16 %v1558, %v1550
        %v1663 = vpack.c.b16 %v1559, %v1551
        %v1664 = vpack.c.b16 %v1560, %v1552
        %v1665 = vpack.c.b16 %v1569, %v1561
        %v1666 = vpack.c.b16 %v1570, %v1562
        %v1667 = vpack.c.b16 %v1571, %v1563
        %v1668 = vpack.c.b16 %v1572, %v1564
        %v1669 = vpack.c.b16 %v1573, %v1565
        %v1670 = vpack.c.b16 %v1574, %v1566
        %v1671 = vpack.c.b16 %v1575, %v1567
        %v1672 = vpack.c.b16 %v1576, %v1568
        %v1673 = vpack.c.b16 %v1585, %v1577
        %v1674 = vpack.c.b16 %v1586, %v1578
        %v1675 = vpack.c.b16 %v1587, %v1579
        %v1676 = vpack.c.b16 %v1588, %v1580
        %v1677 = vpack.c.b16 %v1589, %v1581
        %v1678 = vpack.c.b16 %v1590, %v1582
        %v1679 = vpack.c.b16 %v1591, %v1583
        %v1680 = vpack.c.b16 %v1592, %v1584
        %v1681 = vpack.c.b16 %v1601, %v1593
        %v1682 = vpack.c.b16 %v1602, %v1594
        %v1683 = vpack.c.b16 %v1603, %v1595
        %v1684 = vpack.c.b16 %v1604, %v1596
        %v1685 = vpack.c.b16 %v1605, %v1597
        %v1686 = vpack.c.b16 %v1606, %v1598
        %v1687 = vpack.c.b16 %v1607, %v1599
        %v1688 = vpack.c.b16 %v1608, %v1600
        %v1689 = vpack.c.b16 %v1617, %v1609
        %v1690 = vpack.c.b16 %v1618, %v1610
        %v1691 = vpack.c.b16 %v1619, %v1611
        %v1692 = vpack.c.b16 %v1620, %v1612
        %v1693 = vpack.c.b16 %v1621, %v1613
        %v1694 = vpack.c.b16 %v1622, %v1614
        %v1695 = vpack.c.b16 %v1623, %v1615
        %v1696 = vpack.c.b16 %v1624, %v1616
        %v1697 = vpack.c.b16 %v1633, %v1625
        %v1698 = vpack.c.b16 %v1634, %v1626
        %v1699 = vpack.c.b16 %v1635, %v1627
        %v1700 = vpack.c.b16 %v1636, %v1628
        %v1701 = vpack.c.b16 %v1637, %v1629
        %v1702 = vpack.c.b16 %v1638, %v1630
        %v1703 = vpack.c.b16 %v1639, %v1631
        %v1704 = vpack.c.b16 %v1640, %v1632
        %1769 = vmatprep.subr.bf16.mxu0 %v1698
        %1770 = vmatpush1.bf16.msra.mxu0 %v1697
        %1771 = vmatprep.subr.bf16.mxu0 %v1690
        %1772 = vmatpush1.bf16.msra.mxu0 %v1689
        %1773 = vmatprep.subr.bf16.mxu0 %v1682
        %1774 = vmatpush1.bf16.msra.mxu0 %v1681
        %1775 = vmatprep.subr.bf16.mxu0 %v1674
        %1776 = vmatpush1.bf16.msra.mxu0 %v1673
        %1777 = vmatprep.subr.bf16.mxu0 %v1666
        %1778 = vmatpush1.bf16.msra.mxu0 %v1665
        %1779 = vmatprep.subr.bf16.mxu0 %v1658
        %1780 = vmatpush1.bf16.msra.mxu0 %v1657
        %1781 = vmatprep.subr.bf16.mxu0 %v1650
        %1782 = vmatpush1.bf16.msra.mxu0 %v1649
        %1783 = vmatprep.subr.bf16.mxu0 %v1642
        %1784 = vmatpush1.bf16.msra.mxu0 %v1641
        %1785 = vmatprep.subr.bf16.mxu0 0
        %1786 = vmatpush2.bf16.msra.mxu0 0
        %1787 = vmatprep.subr.bf16.mxu0 0
        %1788 = vmatpush2.bf16.msra.mxu0 0
        %1789 = vmatprep.subr.bf16.mxu0 0
        %1790 = vmatpush2.bf16.msra.mxu0 0
        %1791 = vmatprep.subr.bf16.mxu0 0
        %1792 = vmatpush2.bf16.msra.mxu0 0
        %1793 = vmatprep.subr.bf16.mxu0 0
        %1794 = vmatpush2.bf16.msra.mxu0 0
        %1795 = vmatprep.subr.bf16.mxu0 0
        %1796 = vmatpush2.bf16.msra.mxu0 0
        %1797 = vmatprep.subr.bf16.mxu0 0
        %1798 = vmatpush2.bf16.msra.mxu0 0
        %1799 = vmatprep.subr.bf16.mxu0 0
        %1800 = vmatpush2.bf16.msra.mxu0 0
        %1801 = vmatprep.mubr.bf16.mxu0 0
        %1802 = vmatmul.mubr.bf16.gmra.mxu0 %v1335
        %v1803 = vpop.f32.mrf.mxu0
        %v1804 = vadd.f32 %v1412, %v1803
        %v1805 = vpop.f32.mrf.mxu0
        %v1806 = vadd.f32 %v1416, %v1805
        %v1807 = vpop.f32.mrf.mxu0
        %v1808 = vadd.f32 %v1412, %v1807
        %v1809 = vpop.f32.mrf.mxu0
        %v1810 = vadd.f32 %v1416, %v1809
        %1811 = vmatprep.mubr.bf16.mxu0 0
        %1812 = vmatmul.mubr.bf16.gmra.mxu0 %v1336
        %v1813 = vpop.f32.mrf.mxu0
        %v1814 = vadd.f32 %v1412, %v1813
        %v1815 = vpop.f32.mrf.mxu0
        %v1816 = vadd.f32 %v1416, %v1815
        %v1817 = vpop.f32.mrf.mxu0
        %v1818 = vadd.f32 %v1412, %v1817
        %v1819 = vpop.f32.mrf.mxu0
        %v1820 = vadd.f32 %v1416, %v1819
        %1821 = vmatprep.mubr.bf16.mxu0 0
        %1822 = vmatmul.mubr.bf16.gmra.mxu0 %v1337
        %v1823 = vpop.f32.mrf.mxu0
        %v1824 = vadd.f32 %v1412, %v1823
        %v1825 = vpop.f32.mrf.mxu0
        %v1826 = vadd.f32 %v1416, %v1825
        %v1827 = vpop.f32.mrf.mxu0
        %v1828 = vadd.f32 %v1412, %v1827
        %v1829 = vpop.f32.mrf.mxu0
        %v1830 = vadd.f32 %v1416, %v1829
        %1831 = vmatprep.mubr.bf16.mxu0 0
        %1832 = vmatmul.mubr.bf16.gmra.mxu0 %v1338
        %v1833 = vpop.f32.mrf.mxu0
        %v1834 = vadd.f32 %v1412, %v1833
        %v1835 = vpop.f32.mrf.mxu0
        %v1836 = vadd.f32 %v1416, %v1835
        %v1837 = vpop.f32.mrf.mxu0
        %v1838 = vadd.f32 %v1412, %v1837
        %v1839 = vpop.f32.mrf.mxu0
        %v1840 = vadd.f32 %v1416, %v1839
        %1841 = vmatprep.mubr.bf16.mxu0 0
        %1842 = vmatmul.mubr.bf16.gmra.mxu0 %v1339
        %v1843 = vpop.f32.mrf.mxu0
        %v1844 = vadd.f32 %v1412, %v1843
        %v1845 = vpop.f32.mrf.mxu0
        %v1846 = vadd.f32 %v1416, %v1845
        %v1847 = vpop.f32.mrf.mxu0
        %v1848 = vadd.f32 %v1412, %v1847
        %v1849 = vpop.f32.mrf.mxu0
        %v1850 = vadd.f32 %v1416, %v1849
        %1851 = vmatprep.mubr.bf16.mxu0 0
        %1852 = vmatmul.mubr.bf16.gmra.mxu0 %v1340
        %v1853 = vpop.f32.mrf.mxu0
        %v1854 = vadd.f32 %v1412, %v1853
        %v1855 = vpop.f32.mrf.mxu0
        %v1856 = vadd.f32 %v1416, %v1855
        %v1857 = vpop.f32.mrf.mxu0
        %v1858 = vadd.f32 %v1412, %v1857
        %v1859 = vpop.f32.mrf.mxu0
        %v1860 = vadd.f32 %v1416, %v1859
        %1861 = vmatprep.mubr.bf16.mxu0 0
        %1862 = vmatmul.mubr.bf16.gmra.mxu0 %v1341
        %v1863 = vpop.f32.mrf.mxu0
        %v1864 = vadd.f32 %v1412, %v1863
        %v1865 = vpop.f32.mrf.mxu0
        %v1866 = vadd.f32 %v1416, %v1865
        %v1867 = vpop.f32.mrf.mxu0
        %v1868 = vadd.f32 %v1412, %v1867
        %v1869 = vpop.f32.mrf.mxu0
        %v1870 = vadd.f32 %v1416, %v1869
        %1871 = vmatprep.mubr.bf16.mxu0 0
        %1872 = vmatmul.mubr.bf16.gmra.mxu0 %v1342
        %v1873 = vpop.f32.mrf.mxu0
        %v1874 = vadd.f32 %v1412, %v1873
        %v1875 = vpop.f32.mrf.mxu0
        %v1876 = vadd.f32 %v1416, %v1875
        %v1877 = vpop.f32.mrf.mxu0
        %v1878 = vadd.f32 %v1412, %v1877
        %v1879 = vpop.f32.mrf.mxu0
        %v1880 = vadd.f32 %v1416, %v1879
        %1881 = vdwg.mxu0
        %1882 = vmatprep.subr.bf16.mxu0 %v1700
        %1883 = vmatpush1.bf16.msra.mxu0 %v1699
        %1884 = vmatprep.subr.bf16.mxu0 %v1692
        %1885 = vmatpush1.bf16.msra.mxu0 %v1691
        %1886 = vmatprep.subr.bf16.mxu0 %v1684
        %1887 = vmatpush1.bf16.msra.mxu0 %v1683
        %1888 = vmatprep.subr.bf16.mxu0 %v1676
        %1889 = vmatpush1.bf16.msra.mxu0 %v1675
        %1890 = vmatprep.subr.bf16.mxu0 %v1668
        %1891 = vmatpush1.bf16.msra.mxu0 %v1667
        %1892 = vmatprep.subr.bf16.mxu0 %v1660
        %1893 = vmatpush1.bf16.msra.mxu0 %v1659
        %1894 = vmatprep.subr.bf16.mxu0 %v1652
        %1895 = vmatpush1.bf16.msra.mxu0 %v1651
        %1896 = vmatprep.subr.bf16.mxu0 %v1644
        %1897 = vmatpush1.bf16.msra.mxu0 %v1643
        %1898 = vmatprep.subr.bf16.mxu0 0
        %1899 = vmatpush2.bf16.msra.mxu0 0
        %1900 = vmatprep.subr.bf16.mxu0 0
        %1901 = vmatpush2.bf16.msra.mxu0 0
        %1902 = vmatprep.subr.bf16.mxu0 0
        %1903 = vmatpush2.bf16.msra.mxu0 0
        %1904 = vmatprep.subr.bf16.mxu0 0
        %1905 = vmatpush2.bf16.msra.mxu0 0
        %1906 = vmatprep.subr.bf16.mxu0 0
        %1907 = vmatpush2.bf16.msra.mxu0 0
        %1908 = vmatprep.subr.bf16.mxu0 0
        %1909 = vmatpush2.bf16.msra.mxu0 0
        %1910 = vmatprep.subr.bf16.mxu0 0
        %1911 = vmatpush2.bf16.msra.mxu0 0
        %1912 = vmatprep.subr.bf16.mxu0 0
        %1913 = vmatpush2.bf16.msra.mxu0 0
        %1914 = vmatprep.mubr.bf16.mxu0 0
        %1915 = vmatmul.mubr.bf16.gmra.mxu0 %v1335
        %v1916 = vpop.f32.mrf.mxu0
        %v1917 = vadd.f32 %v1420, %v1916
        %v1918 = vpop.f32.mrf.mxu0
        %v1919 = vadd.f32 %v1424, %v1918
        %v1920 = vpop.f32.mrf.mxu0
        %v1921 = vadd.f32 %v1420, %v1920
        %v1922 = vpop.f32.mrf.mxu0
        %v1923 = vadd.f32 %v1424, %v1922
        %1924 = vmatprep.mubr.bf16.mxu0 0
        %1925 = vmatmul.mubr.bf16.gmra.mxu0 %v1336
        %v1926 = vpop.f32.mrf.mxu0
        %v1927 = vadd.f32 %v1420, %v1926
        %v1928 = vpop.f32.mrf.mxu0
        %v1929 = vadd.f32 %v1424, %v1928
        %v1930 = vpop.f32.mrf.mxu0
        %v1931 = vadd.f32 %v1420, %v1930
        %v1932 = vpop.f32.mrf.mxu0
        %v1933 = vadd.f32 %v1424, %v1932
        %1934 = vmatprep.mubr.bf16.mxu0 0
        %1935 = vmatmul.mubr.bf16.gmra.mxu0 %v1337
        %v1936 = vpop.f32.mrf.mxu0
        %v1937 = vadd.f32 %v1420, %v1936
        %v1938 = vpop.f32.mrf.mxu0
        %v1939 = vadd.f32 %v1424, %v1938
        %v1940 = vpop.f32.mrf.mxu0
        %v1941 = vadd.f32 %v1420, %v1940
        %v1942 = vpop.f32.mrf.mxu0
        %v1943 = vadd.f32 %v1424, %v1942
        %1944 = vmatprep.mubr.bf16.mxu0 0
        %1945 = vmatmul.mubr.bf16.gmra.mxu0 %v1338
        %v1946 = vpop.f32.mrf.mxu0
        %v1947 = vadd.f32 %v1420, %v1946
        %v1948 = vpop.f32.mrf.mxu0
        %v1949 = vadd.f32 %v1424, %v1948
        %v1950 = vpop.f32.mrf.mxu0
        %v1951 = vadd.f32 %v1420, %v1950
        %v1952 = vpop.f32.mrf.mxu0
        %v1953 = vadd.f32 %v1424, %v1952
        %1954 = vmatprep.mubr.bf16.mxu0 0
        %1955 = vmatmul.mubr.bf16.gmra.mxu0 %v1339
        %v1956 = vpop.f32.mrf.mxu0
        %v1957 = vadd.f32 %v1420, %v1956
        %v1958 = vpop.f32.mrf.mxu0
        %v1959 = vadd.f32 %v1424, %v1958
        %v1960 = vpop.f32.mrf.mxu0
        %v1961 = vadd.f32 %v1420, %v1960
        %v1962 = vpop.f32.mrf.mxu0
        %v1963 = vadd.f32 %v1424, %v1962
        %1964 = vmatprep.mubr.bf16.mxu0 0
        %1965 = vmatmul.mubr.bf16.gmra.mxu0 %v1340
        %v1966 = vpop.f32.mrf.mxu0
        %v1967 = vadd.f32 %v1420, %v1966
        %v1968 = vpop.f32.mrf.mxu0
        %v1969 = vadd.f32 %v1424, %v1968
        %v1970 = vpop.f32.mrf.mxu0
        %v1971 = vadd.f32 %v1420, %v1970
        %v1972 = vpop.f32.mrf.mxu0
        %v1973 = vadd.f32 %v1424, %v1972
        %1974 = vmatprep.mubr.bf16.mxu0 0
        %1975 = vmatmul.mubr.bf16.gmra.mxu0 %v1341
        %v1976 = vpop.f32.mrf.mxu0
        %v1977 = vadd.f32 %v1420, %v1976
        %v1978 = vpop.f32.mrf.mxu0
        %v1979 = vadd.f32 %v1424, %v1978
        %v1980 = vpop.f32.mrf.mxu0
        %v1981 = vadd.f32 %v1420, %v1980
        %v1982 = vpop.f32.mrf.mxu0
        %v1983 = vadd.f32 %v1424, %v1982
        %1984 = vmatprep.mubr.bf16.mxu0 0
        %1985 = vmatmul.mubr.bf16.gmra.mxu0 %v1342
        %v1986 = vpop.f32.mrf.mxu0
        %v1987 = vadd.f32 %v1420, %v1986
        %v1988 = vpop.f32.mrf.mxu0
        %v1989 = vadd.f32 %v1424, %v1988
        %v1990 = vpop.f32.mrf.mxu0
        %v1991 = vadd.f32 %v1420, %v1990
        %v1992 = vpop.f32.mrf.mxu0
        %v1993 = vadd.f32 %v1424, %v1992
        %1994 = vdwg.mxu0
        %1995 = vmatprep.subr.bf16.mxu0 %v1702
        %1996 = vmatpush1.bf16.msra.mxu0 %v1701
        %1997 = vmatprep.subr.bf16.mxu0 %v1694
        %1998 = vmatpush1.bf16.msra.mxu0 %v1693
        %1999 = vmatprep.subr.bf16.mxu0 %v1686
        %2000 = vmatpush1.bf16.msra.mxu0 %v1685
        %2001 = vmatprep.subr.bf16.mxu0 %v1678
        %2002 = vmatpush1.bf16.msra.mxu0 %v1677
        %2003 = vmatprep.subr.bf16.mxu0 %v1670
        %2004 = vmatpush1.bf16.msra.mxu0 %v1669
        %2005 = vmatprep.subr.bf16.mxu0 %v1662
        %2006 = vmatpush1.bf16.msra.mxu0 %v1661
        %2007 = vmatprep.subr.bf16.mxu0 %v1654
        %2008 = vmatpush1.bf16.msra.mxu0 %v1653
        %2009 = vmatprep.subr.bf16.mxu0 %v1646
        %2010 = vmatpush1.bf16.msra.mxu0 %v1645
        %2011 = vmatprep.subr.bf16.mxu0 0
        %2012 = vmatpush2.bf16.msra.mxu0 0
        %2013 = vmatprep.subr.bf16.mxu0 0
        %2014 = vmatpush2.bf16.msra.mxu0 0
        %2015 = vmatprep.subr.bf16.mxu0 0
        %2016 = vmatpush2.bf16.msra.mxu0 0
        %2017 = vmatprep.subr.bf16.mxu0 0
        %2018 = vmatpush2.bf16.msra.mxu0 0
        %2019 = vmatprep.subr.bf16.mxu0 0
        %2020 = vmatpush2.bf16.msra.mxu0 0
        %2021 = vmatprep.subr.bf16.mxu0 0
        %2022 = vmatpush2.bf16.msra.mxu0 0
        %2023 = vmatprep.subr.bf16.mxu0 0
        %2024 = vmatpush2.bf16.msra.mxu0 0
        %2025 = vmatprep.subr.bf16.mxu0 0
        %2026 = vmatpush2.bf16.msra.mxu0 0
        %2027 = vmatprep.mubr.bf16.mxu0 0
        %2028 = vmatmul.mubr.bf16.gmra.mxu0 %v1335
        %v2029 = vpop.f32.mrf.mxu0
        %v2030 = vadd.f32 %v1428, %v2029
        %v2031 = vpop.f32.mrf.mxu0
        %v2032 = vadd.f32 %v1432, %v2031
        %v2033 = vpop.f32.mrf.mxu0
        %v2034 = vadd.f32 %v1428, %v2033
        %v2035 = vpop.f32.mrf.mxu0
        %v2036 = vadd.f32 %v1432, %v2035
        %2037 = vmatprep.mubr.bf16.mxu0 0
        %2038 = vmatmul.mubr.bf16.gmra.mxu0 %v1336
        %v2039 = vpop.f32.mrf.mxu0
        %v2040 = vadd.f32 %v1428, %v2039
        %v2041 = vpop.f32.mrf.mxu0
        %v2042 = vadd.f32 %v1432, %v2041
        %v2043 = vpop.f32.mrf.mxu0
        %v2044 = vadd.f32 %v1428, %v2043
        %v2045 = vpop.f32.mrf.mxu0
        %v2046 = vadd.f32 %v1432, %v2045
        %2047 = vmatprep.mubr.bf16.mxu0 0
        %2048 = vmatmul.mubr.bf16.gmra.mxu0 %v1337
        %v2049 = vpop.f32.mrf.mxu0
        %v2050 = vadd.f32 %v1428, %v2049
        %v2051 = vpop.f32.mrf.mxu0
        %v2052 = vadd.f32 %v1432, %v2051
        %v2053 = vpop.f32.mrf.mxu0
        %v2054 = vadd.f32 %v1428, %v2053
        %v2055 = vpop.f32.mrf.mxu0
        %v2056 = vadd.f32 %v1432, %v2055
        %2057 = vmatprep.mubr.bf16.mxu0 0
        %2058 = vmatmul.mubr.bf16.gmra.mxu0 %v1338
        %v2059 = vpop.f32.mrf.mxu0
        %v2060 = vadd.f32 %v1428, %v2059
        %v2061 = vpop.f32.mrf.mxu0
        %v2062 = vadd.f32 %v1432, %v2061
        %v2063 = vpop.f32.mrf.mxu0
        %v2064 = vadd.f32 %v1428, %v2063
        %v2065 = vpop.f32.mrf.mxu0
        %v2066 = vadd.f32 %v1432, %v2065
        %2067 = vmatprep.mubr.bf16.mxu0 0
        %2068 = vmatmul.mubr.bf16.gmra.mxu0 %v1339
        %v2069 = vpop.f32.mrf.mxu0
        %v2070 = vadd.f32 %v1428, %v2069
        %v2071 = vpop.f32.mrf.mxu0
        %v2072 = vadd.f32 %v1432, %v2071
        %v2073 = vpop.f32.mrf.mxu0
        %v2074 = vadd.f32 %v1428, %v2073
        %v2075 = vpop.f32.mrf.mxu0
        %v2076 = vadd.f32 %v1432, %v2075
        %2077 = vmatprep.mubr.bf16.mxu0 0
        %2078 = vmatmul.mubr.bf16.gmra.mxu0 %v1340
        %v2079 = vpop.f32.mrf.mxu0
        %v2080 = vadd.f32 %v1428, %v2079
        %v2081 = vpop.f32.mrf.mxu0
        %v2082 = vadd.f32 %v1432, %v2081
        %v2083 = vpop.f32.mrf.mxu0
        %v2084 = vadd.f32 %v1428, %v2083
        %v2085 = vpop.f32.mrf.mxu0
        %v2086 = vadd.f32 %v1432, %v2085
        %2087 = vmatprep.mubr.bf16.mxu0 0
        %2088 = vmatmul.mubr.bf16.gmra.mxu0 %v1341
        %v2089 = vpop.f32.mrf.mxu0
        %v2090 = vadd.f32 %v1428, %v2089
        %v2091 = vpop.f32.mrf.mxu0
        %v2092 = vadd.f32 %v1432, %v2091
        %v2093 = vpop.f32.mrf.mxu0
        %v2094 = vadd.f32 %v1428, %v2093
        %v2095 = vpop.f32.mrf.mxu0
        %v2096 = vadd.f32 %v1432, %v2095
        %2097 = vmatprep.mubr.bf16.mxu0 0
        %2098 = vmatmul.mubr.bf16.gmra.mxu0 %v1342
        %v2099 = vpop.f32.mrf.mxu0
        %v2100 = vadd.f32 %v1428, %v2099
        %v2101 = vpop.f32.mrf.mxu0
        %v2102 = vadd.f32 %v1432, %v2101
        %v2103 = vpop.f32.mrf.mxu0
        %v2104 = vadd.f32 %v1428, %v2103
        %v2105 = vpop.f32.mrf.mxu0
        %v2106 = vadd.f32 %v1432, %v2105
        %2107 = vdwg.mxu0
        %2108 = vmatprep.subr.bf16.mxu0 %v1704
        %2109 = vmatpush1.bf16.msra.mxu0 %v1703
        %2110 = vmatprep.subr.bf16.mxu0 %v1696
        %2111 = vmatpush1.bf16.msra.mxu0 %v1695
        %2112 = vmatprep.subr.bf16.mxu0 %v1688
        %2113 = vmatpush1.bf16.msra.mxu0 %v1687
        %2114 = vmatprep.subr.bf16.mxu0 %v1680
        %2115 = vmatpush1.bf16.msra.mxu0 %v1679
        %2116 = vmatprep.subr.bf16.mxu0 %v1672
        %2117 = vmatpush1.bf16.msra.mxu0 %v1671
        %2118 = vmatprep.subr.bf16.mxu0 %v1664
        %2119 = vmatpush1.bf16.msra.mxu0 %v1663
        %2120 = vmatprep.subr.bf16.mxu0 %v1656
        %2121 = vmatpush1.bf16.msra.mxu0 %v1655
        %2122 = vmatprep.subr.bf16.mxu0 %v1648
        %2123 = vmatpush1.bf16.msra.mxu0 %v1647
        %2124 = vmatprep.subr.bf16.mxu0 0
        %2125 = vmatpush2.bf16.msra.mxu0 0
        %2126 = vmatprep.subr.bf16.mxu0 0
        %2127 = vmatpush2.bf16.msra.mxu0 0
        %2128 = vmatprep.subr.bf16.mxu0 0
        %2129 = vmatpush2.bf16.msra.mxu0 0
        %2130 = vmatprep.subr.bf16.mxu0 0
        %2131 = vmatpush2.bf16.msra.mxu0 0
        %2132 = vmatprep.subr.bf16.mxu0 0
        %2133 = vmatpush2.bf16.msra.mxu0 0
        %2134 = vmatprep.subr.bf16.mxu0 0
        %2135 = vmatpush2.bf16.msra.mxu0 0
        %2136 = vmatprep.subr.bf16.mxu0 0
        %2137 = vmatpush2.bf16.msra.mxu0 0
        %2138 = vmatprep.subr.bf16.mxu0 0
        %2139 = vmatpush2.bf16.msra.mxu0 0
        %2140 = vmatprep.mubr.bf16.mxu0 0
        %2141 = vmatmul.mubr.bf16.gmra.mxu0 %v1335
        %v2142 = vpop.f32.mrf.mxu0
        %v2143 = vadd.f32 %v1436, %v2142
        %v2144 = vpop.f32.mrf.mxu0
        %v2145 = vadd.f32 %v1440, %v2144
        %v2146 = vpop.f32.mrf.mxu0
        %v2147 = vadd.f32 %v1436, %v2146
        %v2148 = vpop.f32.mrf.mxu0
        %v2149 = vadd.f32 %v1440, %v2148
        %2150 = vmatprep.mubr.bf16.mxu0 0
        %2151 = vmatmul.mubr.bf16.gmra.mxu0 %v1336
        %v2152 = vpop.f32.mrf.mxu0
        %v2153 = vadd.f32 %v1436, %v2152
        %v2154 = vpop.f32.mrf.mxu0
        %v2155 = vadd.f32 %v1440, %v2154
        %v2156 = vpop.f32.mrf.mxu0
        %v2157 = vadd.f32 %v1436, %v2156
        %v2158 = vpop.f32.mrf.mxu0
        %v2159 = vadd.f32 %v1440, %v2158
        %2160 = vmatprep.mubr.bf16.mxu0 0
        %2161 = vmatmul.mubr.bf16.gmra.mxu0 %v1337
        %v2162 = vpop.f32.mrf.mxu0
        %v2163 = vadd.f32 %v1436, %v2162
        %v2164 = vpop.f32.mrf.mxu0
        %v2165 = vadd.f32 %v1440, %v2164
        %v2166 = vpop.f32.mrf.mxu0
        %v2167 = vadd.f32 %v1436, %v2166
        %v2168 = vpop.f32.mrf.mxu0
        %v2169 = vadd.f32 %v1440, %v2168
        %2170 = vmatprep.mubr.bf16.mxu0 0
        %2171 = vmatmul.mubr.bf16.gmra.mxu0 %v1338
        %v2172 = vpop.f32.mrf.mxu0
        %v2173 = vadd.f32 %v1436, %v2172
        %v2174 = vpop.f32.mrf.mxu0
        %v2175 = vadd.f32 %v1440, %v2174
        %v2176 = vpop.f32.mrf.mxu0
        %v2177 = vadd.f32 %v1436, %v2176
        %v2178 = vpop.f32.mrf.mxu0
        %v2179 = vadd.f32 %v1440, %v2178
        %2180 = vmatprep.mubr.bf16.mxu0 0
        %2181 = vmatmul.mubr.bf16.gmra.mxu0 %v1339
        %v2182 = vpop.f32.mrf.mxu0
        %v2183 = vadd.f32 %v1436, %v2182
        %v2184 = vpop.f32.mrf.mxu0
        %v2185 = vadd.f32 %v1440, %v2184
        %v2186 = vpop.f32.mrf.mxu0
        %v2187 = vadd.f32 %v1436, %v2186
        %v2188 = vpop.f32.mrf.mxu0
        %v2189 = vadd.f32 %v1440, %v2188
        %2190 = vmatprep.mubr.bf16.mxu0 0
        %2191 = vmatmul.mubr.bf16.gmra.mxu0 %v1340
        %v2192 = vpop.f32.mrf.mxu0
        %v2193 = vadd.f32 %v1436, %v2192
        %v2194 = vpop.f32.mrf.mxu0
        %v2195 = vadd.f32 %v1440, %v2194
        %v2196 = vpop.f32.mrf.mxu0
        %v2197 = vadd.f32 %v1436, %v2196
        %v2198 = vpop.f32.mrf.mxu0
        %v2199 = vadd.f32 %v1440, %v2198
        %2200 = vmatprep.mubr.bf16.mxu0 0
        %2201 = vmatmul.mubr.bf16.gmra.mxu0 %v1341
        %v2202 = vpop.f32.mrf.mxu0
        %v2203 = vadd.f32 %v1436, %v2202
        %v2204 = vpop.f32.mrf.mxu0
        %v2205 = vadd.f32 %v1440, %v2204
        %v2206 = vpop.f32.mrf.mxu0
        %v2207 = vadd.f32 %v1436, %v2206
        %v2208 = vpop.f32.mrf.mxu0
        %v2209 = vadd.f32 %v1440, %v2208
        %2210 = vmatprep.mubr.bf16.mxu0 0
        %2211 = vmatmul.mubr.bf16.gmra.mxu0 %v1342
        %v2212 = vpop.f32.mrf.mxu0
        %v2213 = vadd.f32 %v1436, %v2212
        %v2214 = vpop.f32.mrf.mxu0
        %v2215 = vadd.f32 %v1440, %v2214
        %v2216 = vpop.f32.mrf.mxu0
        %v2217 = vadd.f32 %v1436, %v2216
        %v2218 = vpop.f32.mrf.mxu0
        %v2219 = vadd.f32 %v1440, %v2218
        %2220 = vdwg.mxu0
        %vm2221 = vcmp.ge.f32.partialorder %v1804, 0.0
        %vm2222 = vcmp.ge.f32.partialorder %v1806, 0.0
        %vm2223 = vcmp.ge.f32.partialorder %v1917, 0.0
        %vm2224 = vcmp.ge.f32.partialorder %v1919, 0.0
        %vm2225 = vcmp.ge.f32.partialorder %v2030, 0.0
        %vm2226 = vcmp.ge.f32.partialorder %v2032, 0.0
        %vm2227 = vcmp.ge.f32.partialorder %v2143, 0.0
        %vm2228 = vcmp.ge.f32.partialorder %v2145, 0.0
        %vm2229 = vcmp.ge.f32.partialorder %v1808, 0.0
        %vm2230 = vcmp.ge.f32.partialorder %v1810, 0.0
        %vm2231 = vcmp.ge.f32.partialorder %v1921, 0.0
        %vm2232 = vcmp.ge.f32.partialorder %v1923, 0.0
        %vm2233 = vcmp.ge.f32.partialorder %v2034, 0.0
        %vm2234 = vcmp.ge.f32.partialorder %v2036, 0.0
        %vm2235 = vcmp.ge.f32.partialorder %v2147, 0.0
        %vm2236 = vcmp.ge.f32.partialorder %v2149, 0.0
        %vm2237 = vcmp.ge.f32.partialorder %v1814, 0.0
        %vm2238 = vcmp.ge.f32.partialorder %v1816, 0.0
        %vm2239 = vcmp.ge.f32.partialorder %v1927, 0.0
        %vm2240 = vcmp.ge.f32.partialorder %v1929, 0.0
        %vm2241 = vcmp.ge.f32.partialorder %v2040, 0.0
        %vm2242 = vcmp.ge.f32.partialorder %v2042, 0.0
        %vm2243 = vcmp.ge.f32.partialorder %v2153, 0.0
        %vm2244 = vcmp.ge.f32.partialorder %v2155, 0.0
        %vm2245 = vcmp.ge.f32.partialorder %v1818, 0.0
        %vm2246 = vcmp.ge.f32.partialorder %v1820, 0.0
        %vm2247 = vcmp.ge.f32.partialorder %v1931, 0.0
        %vm2248 = vcmp.ge.f32.partialorder %v1933, 0.0
        %vm2249 = vcmp.ge.f32.partialorder %v2044, 0.0
        %vm2250 = vcmp.ge.f32.partialorder %v2046, 0.0
        %vm2251 = vcmp.ge.f32.partialorder %v2157, 0.0
        %vm2252 = vcmp.ge.f32.partialorder %v2159, 0.0
        %vm2253 = vcmp.ge.f32.partialorder %v1824, 0.0
        %vm2254 = vcmp.ge.f32.partialorder %v1826, 0.0
        %vm2255 = vcmp.ge.f32.partialorder %v1937, 0.0
        %vm2256 = vcmp.ge.f32.partialorder %v1939, 0.0
        %vm2257 = vcmp.ge.f32.partialorder %v2050, 0.0
        %vm2258 = vcmp.ge.f32.partialorder %v2052, 0.0
        %vm2259 = vcmp.ge.f32.partialorder %v2163, 0.0
        %vm2260 = vcmp.ge.f32.partialorder %v2165, 0.0
        %vm2261 = vcmp.ge.f32.partialorder %v1828, 0.0
        %vm2262 = vcmp.ge.f32.partialorder %v1830, 0.0
        %vm2263 = vcmp.ge.f32.partialorder %v1941, 0.0
        %vm2264 = vcmp.ge.f32.partialorder %v1943, 0.0
        %vm2265 = vcmp.ge.f32.partialorder %v2054, 0.0
        %vm2266 = vcmp.ge.f32.partialorder %v2056, 0.0
        %vm2267 = vcmp.ge.f32.partialorder %v2167, 0.0
        %vm2268 = vcmp.ge.f32.partialorder %v2169, 0.0
        %vm2269 = vcmp.ge.f32.partialorder %v1834, 0.0
        %vm2270 = vcmp.ge.f32.partialorder %v1836, 0.0
        %vm2271 = vcmp.ge.f32.partialorder %v1947, 0.0
        %vm2272 = vcmp.ge.f32.partialorder %v1949, 0.0
        %vm2273 = vcmp.ge.f32.partialorder %v2060, 0.0
        %vm2274 = vcmp.ge.f32.partialorder %v2062, 0.0
        %vm2275 = vcmp.ge.f32.partialorder %v2173, 0.0
        %vm2276 = vcmp.ge.f32.partialorder %v2175, 0.0
        %vm2277 = vcmp.ge.f32.partialorder %v1838, 0.0
        %vm2278 = vcmp.ge.f32.partialorder %v1840, 0.0
        %vm2279 = vcmp.ge.f32.partialorder %v1951, 0.0
        %vm2280 = vcmp.ge.f32.partialorder %v1953, 0.0
        %vm2281 = vcmp.ge.f32.partialorder %v2064, 0.0
        %vm2282 = vcmp.ge.f32.partialorder %v2066, 0.0
        %vm2283 = vcmp.ge.f32.partialorder %v2177, 0.0
        %vm2284 = vcmp.ge.f32.partialorder %v2179, 0.0
        %vm2285 = vcmp.ge.f32.partialorder %v1844, 0.0
        %vm2286 = vcmp.ge.f32.partialorder %v1846, 0.0
        %vm2287 = vcmp.ge.f32.partialorder %v1957, 0.0
        %vm2288 = vcmp.ge.f32.partialorder %v1959, 0.0
        %vm2289 = vcmp.ge.f32.partialorder %v2070, 0.0
        %vm2290 = vcmp.ge.f32.partialorder %v2072, 0.0
        %vm2291 = vcmp.ge.f32.partialorder %v2183, 0.0
        %vm2292 = vcmp.ge.f32.partialorder %v2185, 0.0
        %vm2293 = vcmp.ge.f32.partialorder %v1848, 0.0
        %vm2294 = vcmp.ge.f32.partialorder %v1850, 0.0
        %vm2295 = vcmp.ge.f32.partialorder %v1961, 0.0
        %vm2296 = vcmp.ge.f32.partialorder %v1963, 0.0
        %vm2297 = vcmp.ge.f32.partialorder %v2074, 0.0
        %vm2298 = vcmp.ge.f32.partialorder %v2076, 0.0
        %vm2299 = vcmp.ge.f32.partialorder %v2187, 0.0
        %vm2300 = vcmp.ge.f32.partialorder %v2189, 0.0
        %vm2301 = vcmp.ge.f32.partialorder %v1854, 0.0
        %vm2302 = vcmp.ge.f32.partialorder %v1856, 0.0
        %vm2303 = vcmp.ge.f32.partialorder %v1967, 0.0
        %vm2304 = vcmp.ge.f32.partialorder %v1969, 0.0
        %vm2305 = vcmp.ge.f32.partialorder %v2080, 0.0
        %vm2306 = vcmp.ge.f32.partialorder %v2082, 0.0
        %vm2307 = vcmp.ge.f32.partialorder %v2193, 0.0
        %vm2308 = vcmp.ge.f32.partialorder %v2195, 0.0
        %vm2309 = vcmp.ge.f32.partialorder %v1858, 0.0
        %vm2310 = vcmp.ge.f32.partialorder %v1860, 0.0
        %vm2311 = vcmp.ge.f32.partialorder %v1971, 0.0
        %vm2312 = vcmp.ge.f32.partialorder %v1973, 0.0
        %vm2313 = vcmp.ge.f32.partialorder %v2084, 0.0
        %vm2314 = vcmp.ge.f32.partialorder %v2086, 0.0
        %vm2315 = vcmp.ge.f32.partialorder %v2197, 0.0
        %vm2316 = vcmp.ge.f32.partialorder %v2199, 0.0
        %vm2317 = vcmp.ge.f32.partialorder %v1864, 0.0
        %vm2318 = vcmp.ge.f32.partialorder %v1866, 0.0
        %vm2319 = vcmp.ge.f32.partialorder %v1977, 0.0
        %vm2320 = vcmp.ge.f32.partialorder %v1979, 0.0
        %vm2321 = vcmp.ge.f32.partialorder %v2090, 0.0
        %vm2322 = vcmp.ge.f32.partialorder %v2092, 0.0
        %vm2323 = vcmp.ge.f32.partialorder %v2203, 0.0
        %vm2324 = vcmp.ge.f32.partialorder %v2205, 0.0
        %vm2325 = vcmp.ge.f32.partialorder %v1868, 0.0
        %vm2326 = vcmp.ge.f32.partialorder %v1870, 0.0
        %vm2327 = vcmp.ge.f32.partialorder %v1981, 0.0
        %vm2328 = vcmp.ge.f32.partialorder %v1983, 0.0
        %vm2329 = vcmp.ge.f32.partialorder %v2094, 0.0
        %vm2330 = vcmp.ge.f32.partialorder %v2096, 0.0
        %vm2331 = vcmp.ge.f32.partialorder %v2207, 0.0
        %vm2332 = vcmp.ge.f32.partialorder %v2209, 0.0
        %vm2333 = vcmp.ge.f32.partialorder %v1874, 0.0
        %vm2334 = vcmp.ge.f32.partialorder %v1876, 0.0
        %vm2335 = vcmp.ge.f32.partialorder %v1987, 0.0
        %vm2336 = vcmp.ge.f32.partialorder %v1989, 0.0
        %vm2337 = vcmp.ge.f32.partialorder %v2100, 0.0
        %vm2338 = vcmp.ge.f32.partialorder %v2102, 0.0
        %vm2339 = vcmp.ge.f32.partialorder %v2213, 0.0
        %vm2340 = vcmp.ge.f32.partialorder %v2215, 0.0
        %vm2341 = vcmp.ge.f32.partialorder %v1878, 0.0
        %vm2342 = vcmp.ge.f32.partialorder %v1880, 0.0
        %vm2343 = vcmp.ge.f32.partialorder %v1991, 0.0
        %vm2344 = vcmp.ge.f32.partialorder %v1993, 0.0
        %vm2345 = vcmp.ge.f32.partialorder %v2104, 0.0
        %vm2346 = vcmp.ge.f32.partialorder %v2106, 0.0
        %vm2347 = vcmp.ge.f32.partialorder %v2217, 0.0
        %vm2348 = vcmp.ge.f32.partialorder %v2219, 0.0
        %v2349 = vmul.f32 %v1804, 0.2
        %v2350 = vmul.f32 %v1806, 0.2
        %v2351 = vmul.f32 %v1917, 0.2
        %v2352 = vmul.f32 %v1919, 0.2
        %v2353 = vmul.f32 %v2030, 0.2
        %v2354 = vmul.f32 %v2032, 0.2
        %v2355 = vmul.f32 %v2143, 0.2
        %v2356 = vmul.f32 %v2145, 0.2
        %v2357 = vmul.f32 %v1808, 0.2
        %v2358 = vmul.f32 %v1810, 0.2
        %v2359 = vmul.f32 %v1921, 0.2
        %v2360 = vmul.f32 %v1923, 0.2
        %v2361 = vmul.f32 %v2034, 0.2
        %v2362 = vmul.f32 %v2036, 0.2
        %v2363 = vmul.f32 %v2147, 0.2
        %v2364 = vmul.f32 %v2149, 0.2
        %v2365 = vmul.f32 %v1814, 0.2
        %v2366 = vmul.f32 %v1816, 0.2
        %v2367 = vmul.f32 %v1927, 0.2
        %v2368 = vmul.f32 %v1929, 0.2
        %v2369 = vmul.f32 %v2040, 0.2
        %v2370 = vmul.f32 %v2042, 0.2
        %v2371 = vmul.f32 %v2153, 0.2
        %v2372 = vmul.f32 %v2155, 0.2
        %v2373 = vmul.f32 %v1818, 0.2
        %v2374 = vmul.f32 %v1820, 0.2
        %v2375 = vmul.f32 %v1931, 0.2
        %v2376 = vmul.f32 %v1933, 0.2
        %v2377 = vmul.f32 %v2044, 0.2
        %v2378 = vmul.f32 %v2046, 0.2
        %v2379 = vmul.f32 %v2157, 0.2
        %v2380 = vmul.f32 %v2159, 0.2
        %v2381 = vmul.f32 %v1824, 0.2
        %v2382 = vmul.f32 %v1826, 0.2
        %v2383 = vmul.f32 %v1937, 0.2
        %v2384 = vmul.f32 %v1939, 0.2
        %v2385 = vmul.f32 %v2050, 0.2
        %v2386 = vmul.f32 %v2052, 0.2
        %v2387 = vmul.f32 %v2163, 0.2
        %v2388 = vmul.f32 %v2165, 0.2
        %v2389 = vmul.f32 %v1828, 0.2
        %v2390 = vmul.f32 %v1830, 0.2
        %v2391 = vmul.f32 %v1941, 0.2
        %v2392 = vmul.f32 %v1943, 0.2
        %v2393 = vmul.f32 %v2054, 0.2
        %v2394 = vmul.f32 %v2056, 0.2
        %v2395 = vmul.f32 %v2167, 0.2
        %v2396 = vmul.f32 %v2169, 0.2
        %v2397 = vmul.f32 %v1834, 0.2
        %v2398 = vmul.f32 %v1836, 0.2
        %v2399 = vmul.f32 %v1947, 0.2
        %v2400 = vmul.f32 %v1949, 0.2
        %v2401 = vmul.f32 %v2060, 0.2
        %v2402 = vmul.f32 %v2062, 0.2
        %v2403 = vmul.f32 %v2173, 0.2
        %v2404 = vmul.f32 %v2175, 0.2
        %v2405 = vmul.f32 %v1838, 0.2
        %v2406 = vmul.f32 %v1840, 0.2
        %v2407 = vmul.f32 %v1951, 0.2
        %v2408 = vmul.f32 %v1953, 0.2
        %v2409 = vmul.f32 %v2064, 0.2
        %v2410 = vmul.f32 %v2066, 0.2
        %v2411 = vmul.f32 %v2177, 0.2
        %v2412 = vmul.f32 %v2179, 0.2
        %v2413 = vmul.f32 %v1844, 0.2
        %v2414 = vmul.f32 %v1846, 0.2
        %v2415 = vmul.f32 %v1957, 0.2
        %v2416 = vmul.f32 %v1959, 0.2
        %v2417 = vmul.f32 %v2070, 0.2
        %v2418 = vmul.f32 %v2072, 0.2
        %v2419 = vmul.f32 %v2183, 0.2
        %v2420 = vmul.f32 %v2185, 0.2
        %v2421 = vmul.f32 %v1848, 0.2
        %v2422 = vmul.f32 %v1850, 0.2
        %v2423 = vmul.f32 %v1961, 0.2
        %v2424 = vmul.f32 %v1963, 0.2
        %v2425 = vmul.f32 %v2074, 0.2
        %v2426 = vmul.f32 %v2076, 0.2
        %v2427 = vmul.f32 %v2187, 0.2
        %v2428 = vmul.f32 %v2189, 0.2
        %v2429 = vmul.f32 %v1854, 0.2
        %v2430 = vmul.f32 %v1856, 0.2
        %v2431 = vmul.f32 %v1967, 0.2
        %v2432 = vmul.f32 %v1969, 0.2
        %v2433 = vmul.f32 %v2080, 0.2
        %v2434 = vmul.f32 %v2082, 0.2
        %v2435 = vmul.f32 %v2193, 0.2
        %v2436 = vmul.f32 %v2195, 0.2
        %v2437 = vmul.f32 %v1858, 0.2
        %v2438 = vmul.f32 %v1860, 0.2
        %v2439 = vmul.f32 %v1971, 0.2
        %v2440 = vmul.f32 %v1973, 0.2
        %v2441 = vmul.f32 %v2084, 0.2
        %v2442 = vmul.f32 %v2086, 0.2
        %v2443 = vmul.f32 %v2197, 0.2
        %v2444 = vmul.f32 %v2199, 0.2
        %v2445 = vmul.f32 %v1864, 0.2
        %v2446 = vmul.f32 %v1866, 0.2
        %v2447 = vmul.f32 %v1977, 0.2
        %v2448 = vmul.f32 %v1979, 0.2
        %v2449 = vmul.f32 %v2090, 0.2
        %v2450 = vmul.f32 %v2092, 0.2
        %v2451 = vmul.f32 %v2203, 0.2
        %v2452 = vmul.f32 %v2205, 0.2
        %v2453 = vmul.f32 %v1868, 0.2
        %v2454 = vmul.f32 %v1870, 0.2
        %v2455 = vmul.f32 %v1981, 0.2
        %v2456 = vmul.f32 %v1983, 0.2
        %v2457 = vmul.f32 %v2094, 0.2
        %v2458 = vmul.f32 %v2096, 0.2
        %v2459 = vmul.f32 %v2207, 0.2
        %v2460 = vmul.f32 %v2209, 0.2
        %v2461 = vmul.f32 %v1874, 0.2
        %v2462 = vmul.f32 %v1876, 0.2
        %v2463 = vmul.f32 %v1987, 0.2
        %v2464 = vmul.f32 %v1989, 0.2
        %v2465 = vmul.f32 %v2100, 0.2
        %v2466 = vmul.f32 %v2102, 0.2
        %v2467 = vmul.f32 %v2213, 0.2
        %v2468 = vmul.f32 %v2215, 0.2
        %v2469 = vmul.f32 %v1878, 0.2
        %v2470 = vmul.f32 %v1880, 0.2
        %v2471 = vmul.f32 %v1991, 0.2
        %v2472 = vmul.f32 %v1993, 0.2
        %v2473 = vmul.f32 %v2104, 0.2
        %v2474 = vmul.f32 %v2106, 0.2
        %v2475 = vmul.f32 %v2217, 0.2
        %v2476 = vmul.f32 %v2219, 0.2
        %v2477 = vsel %vm2221, %v1804, %v2349
        %v2478 = vsel %vm2222, %v1806, %v2350
        %v2479 = vsel %vm2223, %v1917, %v2351
        %v2480 = vsel %vm2224, %v1919, %v2352
        %v2481 = vsel %vm2225, %v2030, %v2353
        %v2482 = vsel %vm2226, %v2032, %v2354
        %v2483 = vsel %vm2227, %v2143, %v2355
        %v2484 = vsel %vm2228, %v2145, %v2356
        %v2485 = vsel %vm2229, %v1808, %v2357
        %v2486 = vsel %vm2230, %v1810, %v2358
        %v2487 = vsel %vm2231, %v1921, %v2359
        %v2488 = vsel %vm2232, %v1923, %v2360
        %v2489 = vsel %vm2233, %v2034, %v2361
        %v2490 = vsel %vm2234, %v2036, %v2362
        %v2491 = vsel %vm2235, %v2147, %v2363
        %v2492 = vsel %vm2236, %v2149, %v2364
        %v2493 = vsel %vm2237, %v1814, %v2365
        %v2494 = vsel %vm2238, %v1816, %v2366
        %v2495 = vsel %vm2239, %v1927, %v2367
        %v2496 = vsel %vm2240, %v1929, %v2368
        %v2497 = vsel %vm2241, %v2040, %v2369
        %v2498 = vsel %vm2242, %v2042, %v2370
        %v2499 = vsel %vm2243, %v2153, %v2371
        %v2500 = vsel %vm2244, %v2155, %v2372
        %v2501 = vsel %vm2245, %v1818, %v2373
        %v2502 = vsel %vm2246, %v1820, %v2374
        %v2503 = vsel %vm2247, %v1931, %v2375
        %v2504 = vsel %vm2248, %v1933, %v2376
        %v2505 = vsel %vm2249, %v2044, %v2377
        %v2506 = vsel %vm2250, %v2046, %v2378
        %v2507 = vsel %vm2251, %v2157, %v2379
        %v2508 = vsel %vm2252, %v2159, %v2380
        %v2509 = vsel %vm2253, %v1824, %v2381
        %v2510 = vsel %vm2254, %v1826, %v2382
        %v2511 = vsel %vm2255, %v1937, %v2383
        %v2512 = vsel %vm2256, %v1939, %v2384
        %v2513 = vsel %vm2257, %v2050, %v2385
        %v2514 = vsel %vm2258, %v2052, %v2386
        %v2515 = vsel %vm2259, %v2163, %v2387
        %v2516 = vsel %vm2260, %v2165, %v2388
        %v2517 = vsel %vm2261, %v1828, %v2389
        %v2518 = vsel %vm2262, %v1830, %v2390
        %v2519 = vsel %vm2263, %v1941, %v2391
        %v2520 = vsel %vm2264, %v1943, %v2392
        %v2521 = vsel %vm2265, %v2054, %v2393
        %v2522 = vsel %vm2266, %v2056, %v2394
        %v2523 = vsel %vm2267, %v2167, %v2395
        %v2524 = vsel %vm2268, %v2169, %v2396
        %v2525 = vsel %vm2269, %v1834, %v2397
        %v2526 = vsel %vm2270, %v1836, %v2398
        %v2527 = vsel %vm2271, %v1947, %v2399
        %v2528 = vsel %vm2272, %v1949, %v2400
        %v2529 = vsel %vm2273, %v2060, %v2401
        %v2530 = vsel %vm2274, %v2062, %v2402
        %v2531 = vsel %vm2275, %v2173, %v2403
        %v2532 = vsel %vm2276, %v2175, %v2404
        %v2533 = vsel %vm2277, %v1838, %v2405
        %v2534 = vsel %vm2278, %v1840, %v2406
        %v2535 = vsel %vm2279, %v1951, %v2407
        %v2536 = vsel %vm2280, %v1953, %v2408
        %v2537 = vsel %vm2281, %v2064, %v2409
        %v2538 = vsel %vm2282, %v2066, %v2410
        %v2539 = vsel %vm2283, %v2177, %v2411
        %v2540 = vsel %vm2284, %v2179, %v2412
        %v2541 = vsel %vm2285, %v1844, %v2413
        %v2542 = vsel %vm2286, %v1846, %v2414
        %v2543 = vsel %vm2287, %v1957, %v2415
        %v2544 = vsel %vm2288, %v1959, %v2416
        %v2545 = vsel %vm2289, %v2070, %v2417
        %v2546 = vsel %vm2290, %v2072, %v2418
        %v2547 = vsel %vm2291, %v2183, %v2419
        %v2548 = vsel %vm2292, %v2185, %v2420
        %v2549 = vsel %vm2293, %v1848, %v2421
        %v2550 = vsel %vm2294, %v1850, %v2422
        %v2551 = vsel %vm2295, %v1961, %v2423
        %v2552 = vsel %vm2296, %v1963, %v2424
        %v2553 = vsel %vm2297, %v2074, %v2425
        %v2554 = vsel %vm2298, %v2076, %v2426
        %v2555 = vsel %vm2299, %v2187, %v2427
        %v2556 = vsel %vm2300, %v2189, %v2428
        %v2557 = vsel %vm2301, %v1854, %v2429
        %v2558 = vsel %vm2302, %v1856, %v2430
        %v2559 = vsel %vm2303, %v1967, %v2431
        %v2560 = vsel %vm2304, %v1969, %v2432
        %v2561 = vsel %vm2305, %v2080, %v2433
        %v2562 = vsel %vm2306, %v2082, %v2434
        %v2563 = vsel %vm2307, %v2193, %v2435
        %v2564 = vsel %vm2308, %v2195, %v2436
        %v2565 = vsel %vm2309, %v1858, %v2437
        %v2566 = vsel %vm2310, %v1860, %v2438
        %v2567 = vsel %vm2311, %v1971, %v2439
        %v2568 = vsel %vm2312, %v1973, %v2440
        %v2569 = vsel %vm2313, %v2084, %v2441
        %v2570 = vsel %vm2314, %v2086, %v2442
        %v2571 = vsel %vm2315, %v2197, %v2443
        %v2572 = vsel %vm2316, %v2199, %v2444
        %v2573 = vsel %vm2317, %v1864, %v2445
        %v2574 = vsel %vm2318, %v1866, %v2446
        %v2575 = vsel %vm2319, %v1977, %v2447
        %v2576 = vsel %vm2320, %v1979, %v2448
        %v2577 = vsel %vm2321, %v2090, %v2449
        %v2578 = vsel %vm2322, %v2092, %v2450
        %v2579 = vsel %vm2323, %v2203, %v2451
        %v2580 = vsel %vm2324, %v2205, %v2452
        %v2581 = vsel %vm2325, %v1868, %v2453
        %v2582 = vsel %vm2326, %v1870, %v2454
        %v2583 = vsel %vm2327, %v1981, %v2455
        %v2584 = vsel %vm2328, %v1983, %v2456
        %v2585 = vsel %vm2329, %v2094, %v2457
        %v2586 = vsel %vm2330, %v2096, %v2458
        %v2587 = vsel %vm2331, %v2207, %v2459
        %v2588 = vsel %vm2332, %v2209, %v2460
        %v2589 = vsel %vm2333, %v1874, %v2461
        %v2590 = vsel %vm2334, %v1876, %v2462
        %v2591 = vsel %vm2335, %v1987, %v2463
        %v2592 = vsel %vm2336, %v1989, %v2464
        %v2593 = vsel %vm2337, %v2100, %v2465
        %v2594 = vsel %vm2338, %v2102, %v2466
        %v2595 = vsel %vm2339, %v2213, %v2467
        %v2596 = vsel %vm2340, %v2215, %v2468
        %v2597 = vsel %vm2341, %v1878, %v2469
        %v2598 = vsel %vm2342, %v1880, %v2470
        %v2599 = vsel %vm2343, %v1991, %v2471
        %v2600 = vsel %vm2344, %v1993, %v2472
        %v2601 = vsel %vm2345, %v2104, %v2473
        %v2602 = vsel %vm2346, %v2106, %v2474
        %v2603 = vsel %vm2347, %v2217, %v2475
        %v2604 = vsel %vm2348, %v2219, %v2476
        %2605 = vmatprep.subr.mxu0 %v2598
        %2606 = vmatpush1.msra.mxu0 %v2597
        %2607 = vmatprep.subr.mxu0 %v2590
        %2608 = vmatpush1.msra.mxu0 %v2589
        %2609 = vmatprep.subr.mxu0 %v2582
        %2610 = vmatpush1.msra.mxu0 %v2581
        %2611 = vmatprep.subr.mxu0 %v2574
        %2612 = vmatpush1.msra.mxu0 %v2573
        %2613 = vmatprep.subr.mxu0 %v2566
        %2614 = vmatpush1.msra.mxu0 %v2565
        %2615 = vmatprep.subr.mxu0 %v2558
        %2616 = vmatpush1.msra.mxu0 %v2557
        %2617 = vmatprep.subr.mxu0 %v2550
        %2618 = vmatpush1.msra.mxu0 %v2549
        %2619 = vmatprep.subr.mxu0 %v2542
        %2620 = vmatpush1.msra.mxu0 %v2541
        %2621 = vmatprep.subr.mxu0 %v2534
        %2622 = vmatpush1.msra.mxu0 %v2533
        %2623 = vmatprep.subr.mxu0 %v2526
        %2624 = vmatpush1.msra.mxu0 %v2525
        %2625 = vmatprep.subr.mxu0 %v2518
        %2626 = vmatpush1.msra.mxu0 %v2517
        %2627 = vmatprep.subr.mxu0 %v2510
        %2628 = vmatpush1.msra.mxu0 %v2509
        %2629 = vmatprep.subr.mxu0 %v2502
        %2630 = vmatpush1.msra.mxu0 %v2501
        %2631 = vmatprep.subr.mxu0 %v2494
        %2632 = vmatpush1.msra.mxu0 %v2493
        %2633 = vmatprep.subr.mxu0 %v2486
        %2634 = vmatpush1.msra.mxu0 %v2485
        %2635 = vmatprep.subr.mxu0 %v2478
        %2636 = vmatpush1.msra.mxu0 %v2477
        %2637 = vmatprep.subr.mxu0 0.0
        %2638 = vmatpush2.msra.mxu0 0.0
        %2639 = vmatprep.subr.mxu0 0.0
        %2640 = vmatpush2.msra.mxu0 0.0
        %2641 = vmatprep.subr.mxu0 0.0
        %2642 = vmatpush2.msra.mxu0 0.0
        %2643 = vmatprep.subr.mxu0 0.0
        %2644 = vmatpush2.msra.mxu0 0.0
        %2645 = vmatprep.subr.mxu0 0.0
        %2646 = vmatpush2.msra.mxu0 0.0
        %2647 = vmatprep.subr.mxu0 0.0
        %2648 = vmatpush2.msra.mxu0 0.0
        %2649 = vmatprep.subr.mxu0 0.0
        %2650 = vmatpush2.msra.mxu0 0.0
        %2651 = vmatprep.subr.mxu0 0.0
        %2652 = vmatpush2.msra.mxu0 0.0
        %2653 = vmatprep.subr.mxu0 0.0
        %2654 = vmatpush2.msra.mxu0 0.0
        %2655 = vmatprep.subr.mxu0 0.0
        %2656 = vmatpush2.msra.mxu0 0.0
        %2657 = vmatprep.subr.mxu0 0.0
        %2658 = vmatpush2.msra.mxu0 0.0
        %2659 = vmatprep.subr.mxu0 0.0
        %2660 = vmatpush2.msra.mxu0 0.0
        %2661 = vmatprep.subr.mxu0 0.0
        %2662 = vmatpush2.msra.mxu0 0.0
        %2663 = vmatprep.subr.mxu0 0.0
        %2664 = vmatpush2.msra.mxu0 0.0
        %2665 = vmatprep.subr.mxu0 0.0
        %2666 = vmatpush2.msra.mxu0 0.0
        %2667 = vmatprep.subr.mxu0 0.0
        %2668 = vmatpush2.msra.mxu0 0.0
        %2669 = vmatprep.mubr.f32.mxu0 0.0
        %2670 = vmatmul.mubr.f32.gmra.mxu0 %v765
        %v2671 = vpop.f32.mrf.mxu0
        %v2672 = vadd.f32 0.0, %v2671
        %v2673 = vpop.f32.mrf.mxu0
        %v2674 = vadd.f32 0.0, %v2673
        %2675 = vdwg.mxu0
        %2676 = vmatprep.subr.mxu0 %v2600
        %2677 = vmatpush1.msra.mxu0 %v2599
        %2678 = vmatprep.subr.mxu0 %v2592
        %2679 = vmatpush1.msra.mxu0 %v2591
        %2680 = vmatprep.subr.mxu0 %v2584
        %2681 = vmatpush1.msra.mxu0 %v2583
        %2682 = vmatprep.subr.mxu0 %v2576
        %2683 = vmatpush1.msra.mxu0 %v2575
        %2684 = vmatprep.subr.mxu0 %v2568
        %2685 = vmatpush1.msra.mxu0 %v2567
        %2686 = vmatprep.subr.mxu0 %v2560
        %2687 = vmatpush1.msra.mxu0 %v2559
        %2688 = vmatprep.subr.mxu0 %v2552
        %2689 = vmatpush1.msra.mxu0 %v2551
        %2690 = vmatprep.subr.mxu0 %v2544
        %2691 = vmatpush1.msra.mxu0 %v2543
        %2692 = vmatprep.subr.mxu0 %v2536
        %2693 = vmatpush1.msra.mxu0 %v2535
        %2694 = vmatprep.subr.mxu0 %v2528
        %2695 = vmatpush1.msra.mxu0 %v2527
        %2696 = vmatprep.subr.mxu0 %v2520
        %2697 = vmatpush1.msra.mxu0 %v2519
        %2698 = vmatprep.subr.mxu0 %v2512
        %2699 = vmatpush1.msra.mxu0 %v2511
        %2700 = vmatprep.subr.mxu0 %v2504
        %2701 = vmatpush1.msra.mxu0 %v2503
        %2702 = vmatprep.subr.mxu0 %v2496
        %2703 = vmatpush1.msra.mxu0 %v2495
        %2704 = vmatprep.subr.mxu0 %v2488
        %2705 = vmatpush1.msra.mxu0 %v2487
        %2706 = vmatprep.subr.mxu0 %v2480
        %2707 = vmatpush1.msra.mxu0 %v2479
        %2708 = vmatprep.subr.mxu0 0.0
        %2709 = vmatpush2.msra.mxu0 0.0
        %2710 = vmatprep.subr.mxu0 0.0
        %2711 = vmatpush2.msra.mxu0 0.0
        %2712 = vmatprep.subr.mxu0 0.0
        %2713 = vmatpush2.msra.mxu0 0.0
        %2714 = vmatprep.subr.mxu0 0.0
        %2715 = vmatpush2.msra.mxu0 0.0
        %2716 = vmatprep.subr.mxu0 0.0
        %2717 = vmatpush2.msra.mxu0 0.0
        %2718 = vmatprep.subr.mxu0 0.0
        %2719 = vmatpush2.msra.mxu0 0.0
        %2720 = vmatprep.subr.mxu0 0.0
        %2721 = vmatpush2.msra.mxu0 0.0
        %2722 = vmatprep.subr.mxu0 0.0
        %2723 = vmatpush2.msra.mxu0 0.0
        %2724 = vmatprep.subr.mxu0 0.0
        %2725 = vmatpush2.msra.mxu0 0.0
        %2726 = vmatprep.subr.mxu0 0.0
        %2727 = vmatpush2.msra.mxu0 0.0
        %2728 = vmatprep.subr.mxu0 0.0
        %2729 = vmatpush2.msra.mxu0 0.0
        %2730 = vmatprep.subr.mxu0 0.0
        %2731 = vmatpush2.msra.mxu0 0.0
        %2732 = vmatprep.subr.mxu0 0.0
        %2733 = vmatpush2.msra.mxu0 0.0
        %2734 = vmatprep.subr.mxu0 0.0
        %2735 = vmatpush2.msra.mxu0 0.0
        %2736 = vmatprep.subr.mxu0 0.0
        %2737 = vmatpush2.msra.mxu0 0.0
        %2738 = vmatprep.subr.mxu0 0.0
        %2739 = vmatpush2.msra.mxu0 0.0
        %2740 = vmatprep.mubr.f32.mxu0 0.0
        %2741 = vmatmul.mubr.f32.gmra.mxu0 %v765
        %v2742 = vpop.f32.mrf.mxu0
        %v2743 = vadd.f32 0.0, %v2742
        %v2744 = vpop.f32.mrf.mxu0
        %v2745 = vadd.f32 0.0, %v2744
        %2746 = vdwg.mxu0
        %2747 = vmatprep.subr.mxu0 %v2602
        %2748 = vmatpush1.msra.mxu0 %v2601
        %2749 = vmatprep.subr.mxu0 %v2594
        %2750 = vmatpush1.msra.mxu0 %v2593
        %2751 = vmatprep.subr.mxu0 %v2586
        %2752 = vmatpush1.msra.mxu0 %v2585
        %2753 = vmatprep.subr.mxu0 %v2578
        %2754 = vmatpush1.msra.mxu0 %v2577
        %2755 = vmatprep.subr.mxu0 %v2570
        %2756 = vmatpush1.msra.mxu0 %v2569
        %2757 = vmatprep.subr.mxu0 %v2562
        %2758 = vmatpush1.msra.mxu0 %v2561
        %2759 = vmatprep.subr.mxu0 %v2554
        %2760 = vmatpush1.msra.mxu0 %v2553
        %2761 = vmatprep.subr.mxu0 %v2546
        %2762 = vmatpush1.msra.mxu0 %v2545
        %2763 = vmatprep.subr.mxu0 %v2538
        %2764 = vmatpush1.msra.mxu0 %v2537
        %2765 = vmatprep.subr.mxu0 %v2530
        %2766 = vmatpush1.msra.mxu0 %v2529
        %2767 = vmatprep.subr.mxu0 %v2522
        %2768 = vmatpush1.msra.mxu0 %v2521
        %2769 = vmatprep.subr.mxu0 %v2514
        %2770 = vmatpush1.msra.mxu0 %v2513
        %2771 = vmatprep.subr.mxu0 %v2506
        %2772 = vmatpush1.msra.mxu0 %v2505
        %2773 = vmatprep.subr.mxu0 %v2498
        %2774 = vmatpush1.msra.mxu0 %v2497
        %2775 = vmatprep.subr.mxu0 %v2490
        %2776 = vmatpush1.msra.mxu0 %v2489
        %2777 = vmatprep.subr.mxu0 %v2482
        %2778 = vmatpush1.msra.mxu0 %v2481
        %2779 = vmatprep.subr.mxu0 0.0
        %2780 = vmatpush2.msra.mxu0 0.0
        %2781 = vmatprep.subr.mxu0 0.0
        %2782 = vmatpush2.msra.mxu0 0.0
        %2783 = vmatprep.subr.mxu0 0.0
        %2784 = vmatpush2.msra.mxu0 0.0
        %2785 = vmatprep.subr.mxu0 0.0
        %2786 = vmatpush2.msra.mxu0 0.0
        %2787 = vmatprep.subr.mxu0 0.0
        %2788 = vmatpush2.msra.mxu0 0.0
        %2789 = vmatprep.subr.mxu0 0.0
        %2790 = vmatpush2.msra.mxu0 0.0
        %2791 = vmatprep.subr.mxu0 0.0
        %2792 = vmatpush2.msra.mxu0 0.0
        %2793 = vmatprep.subr.mxu0 0.0
        %2794 = vmatpush2.msra.mxu0 0.0
        %2795 = vmatprep.subr.mxu0 0.0
        %2796 = vmatpush2.msra.mxu0 0.0
        %2797 = vmatprep.subr.mxu0 0.0
        %2798 = vmatpush2.msra.mxu0 0.0
        %2799 = vmatprep.subr.mxu0 0.0
        %2800 = vmatpush2.msra.mxu0 0.0
        %2801 = vmatprep.subr.mxu0 0.0
        %2802 = vmatpush2.msra.mxu0 0.0
        %2803 = vmatprep.subr.mxu0 0.0
        %2804 = vmatpush2.msra.mxu0 0.0
        %2805 = vmatprep.subr.mxu0 0.0
        %2806 = vmatpush2.msra.mxu0 0.0
        %2807 = vmatprep.subr.mxu0 0.0
        %2808 = vmatpush2.msra.mxu0 0.0
        %2809 = vmatprep.subr.mxu0 0.0
        %2810 = vmatpush2.msra.mxu0 0.0
        %2811 = vmatprep.mubr.f32.mxu0 0.0
        %2812 = vmatmul.mubr.f32.gmra.mxu0 %v765
        %v2813 = vpop.f32.mrf.mxu0
        %v2814 = vadd.f32 0.0, %v2813
        %v2815 = vpop.f32.mrf.mxu0
        %v2816 = vadd.f32 0.0, %v2815
        %2817 = vdwg.mxu0
        %2818 = vmatprep.subr.mxu0 %v2604
        %2819 = vmatpush1.msra.mxu0 %v2603
        %2820 = vmatprep.subr.mxu0 %v2596
        %2821 = vmatpush1.msra.mxu0 %v2595
        %2822 = vmatprep.subr.mxu0 %v2588
        %2823 = vmatpush1.msra.mxu0 %v2587
        %2824 = vmatprep.subr.mxu0 %v2580
        %2825 = vmatpush1.msra.mxu0 %v2579
        %2826 = vmatprep.subr.mxu0 %v2572
        %2827 = vmatpush1.msra.mxu0 %v2571
        %2828 = vmatprep.subr.mxu0 %v2564
        %2829 = vmatpush1.msra.mxu0 %v2563
        %2830 = vmatprep.subr.mxu0 %v2556
        %2831 = vmatpush1.msra.mxu0 %v2555
        %2832 = vmatprep.subr.mxu0 %v2548
        %2833 = vmatpush1.msra.mxu0 %v2547
        %2834 = vmatprep.subr.mxu0 %v2540
        %2835 = vmatpush1.msra.mxu0 %v2539
        %2836 = vmatprep.subr.mxu0 %v2532
        %2837 = vmatpush1.msra.mxu0 %v2531
        %2838 = vmatprep.subr.mxu0 %v2524
        %2839 = vmatpush1.msra.mxu0 %v2523
        %2840 = vmatprep.subr.mxu0 %v2516
        %2841 = vmatpush1.msra.mxu0 %v2515
        %2842 = vmatprep.subr.mxu0 %v2508
        %2843 = vmatpush1.msra.mxu0 %v2507
        %2844 = vmatprep.subr.mxu0 %v2500
        %2845 = vmatpush1.msra.mxu0 %v2499
        %2846 = vmatprep.subr.mxu0 %v2492
        %2847 = vmatpush1.msra.mxu0 %v2491
        %2848 = vmatprep.subr.mxu0 %v2484
        %2849 = vmatpush1.msra.mxu0 %v2483
        %2850 = vmatprep.subr.mxu0 0.0
        %2851 = vmatpush2.msra.mxu0 0.0
        %2852 = vmatprep.subr.mxu0 0.0
        %2853 = vmatpush2.msra.mxu0 0.0
        %2854 = vmatprep.subr.mxu0 0.0
        %2855 = vmatpush2.msra.mxu0 0.0
        %2856 = vmatprep.subr.mxu0 0.0
        %2857 = vmatpush2.msra.mxu0 0.0
        %2858 = vmatprep.subr.mxu0 0.0
        %2859 = vmatpush2.msra.mxu0 0.0
        %2860 = vmatprep.subr.mxu0 0.0
        %2861 = vmatpush2.msra.mxu0 0.0
        %2862 = vmatprep.subr.mxu0 0.0
        %2863 = vmatpush2.msra.mxu0 0.0
        %2864 = vmatprep.subr.mxu0 0.0
        %2865 = vmatpush2.msra.mxu0 0.0
        %2866 = vmatprep.subr.mxu0 0.0
        %2867 = vmatpush2.msra.mxu0 0.0
        %2868 = vmatprep.subr.mxu0 0.0
        %2869 = vmatpush2.msra.mxu0 0.0
        %2870 = vmatprep.subr.mxu0 0.0
        %2871 = vmatpush2.msra.mxu0 0.0
        %2872 = vmatprep.subr.mxu0 0.0
        %2873 = vmatpush2.msra.mxu0 0.0
        %2874 = vmatprep.subr.mxu0 0.0
        %2875 = vmatpush2.msra.mxu0 0.0
        %2876 = vmatprep.subr.mxu0 0.0
        %2877 = vmatpush2.msra.mxu0 0.0
        %2878 = vmatprep.subr.mxu0 0.0
        %2879 = vmatpush2.msra.mxu0 0.0
        %2880 = vmatprep.subr.mxu0 0.0
        %2881 = vmatpush2.msra.mxu0 0.0
        %2882 = vmatprep.mubr.f32.mxu0 0.0
        %2883 = vmatmul.mubr.f32.gmra.mxu0 %v765
        %v2884 = vpop.f32.mrf.mxu0
        %v2885 = vadd.f32 0.0, %v2884
        %v2886 = vpop.f32.mrf.mxu0
        %v2887 = vadd.f32 0.0, %v2886
        %2888 = vdwg.mxu0
        %v2889 = vpack.c.bf16 %v2672, %v2672
        %v2890 = vpack.c.bf16 %v2674, %v2674
        %v2891 = vpack.c.bf16 %v2743, %v2743
        %v2892 = vpack.c.bf16 %v2745, %v2745
        %v2893 = vpack.c.bf16 %v2814, %v2814
        %v2894 = vpack.c.bf16 %v2816, %v2816
        %v2895 = vpack.c.bf16 %v2885, %v2885
        %v2896 = vpack.c.bf16 %v2887, %v2887
        %v2897 = vld [vmem:[#allocation8] sm:$0xff]
        %v2898 = vld [vmem:[#allocation8 + $0x8] sm:$0xff]
        %v2899 = vld [vmem:[#allocation8 + $0x10] sm:$0xff]
        %v2900 = vld [vmem:[#allocation8 + $0x18] sm:$0xff]
        %v2901 = vld [vmem:[#allocation8 + $0x20] sm:$0xff]
        %v2902 = vld [vmem:[#allocation8 + $0x28] sm:$0xff]
        %v2903 = vld [vmem:[#allocation8 + $0x30] sm:$0xff]
        %v2904 = vld [vmem:[#allocation8 + $0x38] sm:$0xff]
        %v2905 = vld [vmem:[#allocation8 + $0x40] sm:$0xff]
        %v2906 = vld [vmem:[#allocation8 + $0x48] sm:$0xff]
        %v2907 = vld [vmem:[#allocation8 + $0x50] sm:$0xff]
        %v2908 = vld [vmem:[#allocation8 + $0x58] sm:$0xff]
        %v2909 = vld [vmem:[#allocation8 + $0x60] sm:$0xff]
        %v2910 = vld [vmem:[#allocation8 + $0x68] sm:$0xff]
        %v2911 = vld [vmem:[#allocation8 + $0x70] sm:$0xff]
        %v2912 = vld [vmem:[#allocation8 + $0x78] sm:$0xff]
        %v2913 = vld [vmem:[#allocation8 + $0x80] sm:$0xff]
        %v2914 = vld [vmem:[#allocation8 + $0x88] sm:$0xff]
        %v2915 = vld [vmem:[#allocation8 + $0x90] sm:$0xff]
        %v2916 = vld [vmem:[#allocation8 + $0x98] sm:$0xff]
        %v2917 = vld [vmem:[#allocation8 + $0xa0] sm:$0xff]
        %v2918 = vld [vmem:[#allocation8 + $0xa8] sm:$0xff]
        %v2919 = vld [vmem:[#allocation8 + $0xb0] sm:$0xff]
        %v2920 = vld [vmem:[#allocation8 + $0xb8] sm:$0xff]
        %v2921 = vld [vmem:[#allocation8 + $0xc0] sm:$0xff]
        %v2922 = vld [vmem:[#allocation8 + $0xc8] sm:$0xff]
        %v2923 = vld [vmem:[#allocation8 + $0xd0] sm:$0xff]
        %v2924 = vld [vmem:[#allocation8 + $0xd8] sm:$0xff]
        %v2925 = vld [vmem:[#allocation8 + $0xe0] sm:$0xff]
        %v2926 = vld [vmem:[#allocation8 + $0xe8] sm:$0xff]
        %v2927 = vld [vmem:[#allocation8 + $0xf0] sm:$0xff]
        %v2928 = vld [vmem:[#allocation8 + $0xf8] sm:$0xff]
        %v2929 = vld [vmem:[#allocation8 + $0x100] sm:$0xff]
        %v2930 = vld [vmem:[#allocation8 + $0x108] sm:$0xff]
        %v2931 = vld [vmem:[#allocation8 + $0x110] sm:$0xff]
        %v2932 = vld [vmem:[#allocation8 + $0x118] sm:$0xff]
        %v2933 = vld [vmem:[#allocation8 + $0x120] sm:$0xff]
        %v2934 = vld [vmem:[#allocation8 + $0x128] sm:$0xff]
        %v2935 = vld [vmem:[#allocation8 + $0x130] sm:$0xff]
        %v2936 = vld [vmem:[#allocation8 + $0x138] sm:$0xff]
        %v2937 = vld [vmem:[#allocation8 + $0x140] sm:$0xff]
        %v2938 = vld [vmem:[#allocation8 + $0x148] sm:$0xff]
        %v2939 = vld [vmem:[#allocation8 + $0x150] sm:$0xff]
        %v2940 = vld [vmem:[#allocation8 + $0x158] sm:$0xff]
        %v2941 = vld [vmem:[#allocation8 + $0x160] sm:$0xff]
        %v2942 = vld [vmem:[#allocation8 + $0x168] sm:$0xff]
        %v2943 = vld [vmem:[#allocation8 + $0x170] sm:$0xff]
        %v2944 = vld [vmem:[#allocation8 + $0x178] sm:$0xff]
        %v2945 = vld [vmem:[#allocation8 + $0x180] sm:$0xff]
        %v2946 = vld [vmem:[#allocation8 + $0x188] sm:$0xff]
        %v2947 = vld [vmem:[#allocation8 + $0x190] sm:$0xff]
        %v2948 = vld [vmem:[#allocation8 + $0x198] sm:$0xff]
        %v2949 = vld [vmem:[#allocation8 + $0x1a0] sm:$0xff]
        %v2950 = vld [vmem:[#allocation8 + $0x1a8] sm:$0xff]
        %v2951 = vld [vmem:[#allocation8 + $0x1b0] sm:$0xff]
        %v2952 = vld [vmem:[#allocation8 + $0x1b8] sm:$0xff]
        %v2953 = vld [vmem:[#allocation8 + $0x1c0] sm:$0xff]
        %v2954 = vld [vmem:[#allocation8 + $0x1c8] sm:$0xff]
        %v2955 = vld [vmem:[#allocation8 + $0x1d0] sm:$0xff]
        %v2956 = vld [vmem:[#allocation8 + $0x1d8] sm:$0xff]
        %v2957 = vld [vmem:[#allocation8 + $0x1e0] sm:$0xff]
        %v2958 = vld [vmem:[#allocation8 + $0x1e8] sm:$0xff]
        %v2959 = vld [vmem:[#allocation8 + $0x1f0] sm:$0xff]
        %v2960 = vld [vmem:[#allocation8 + $0x1f8] sm:$0xff]
        %v2961 = vld [vmem:[#allocation8 + $0x200] sm:$0xff]
        %v2962 = vld [vmem:[#allocation8 + $0x208] sm:$0xff]
        %v2963 = vld [vmem:[#allocation8 + $0x210] sm:$0xff]
        %v2964 = vld [vmem:[#allocation8 + $0x218] sm:$0xff]
        %v2965 = vld [vmem:[#allocation8 + $0x220] sm:$0xff]
        %v2966 = vld [vmem:[#allocation8 + $0x228] sm:$0xff]
        %v2967 = vld [vmem:[#allocation8 + $0x230] sm:$0xff]
        %v2968 = vld [vmem:[#allocation8 + $0x238] sm:$0xff]
        %v2969 = vld [vmem:[#allocation8 + $0x240] sm:$0xff]
        %v2970 = vld [vmem:[#allocation8 + $0x248] sm:$0xff]
        %v2971 = vld [vmem:[#allocation8 + $0x250] sm:$0xff]
        %v2972 = vld [vmem:[#allocation8 + $0x258] sm:$0xff]
        %v2973 = vld [vmem:[#allocation8 + $0x260] sm:$0xff]
        %v2974 = vld [vmem:[#allocation8 + $0x268] sm:$0xff]
        %v2975 = vld [vmem:[#allocation8 + $0x270] sm:$0xff]
        %v2976 = vld [vmem:[#allocation8 + $0x278] sm:$0xff]
        %v2977 = vld [vmem:[#allocation8 + $0x280] sm:$0xff]
        %v2978 = vld [vmem:[#allocation8 + $0x288] sm:$0xff]
        %v2979 = vld [vmem:[#allocation8 + $0x290] sm:$0xff]
        %v2980 = vld [vmem:[#allocation8 + $0x298] sm:$0xff]
        %v2981 = vld [vmem:[#allocation8 + $0x2a0] sm:$0xff]
        %v2982 = vld [vmem:[#allocation8 + $0x2a8] sm:$0xff]
        %v2983 = vld [vmem:[#allocation8 + $0x2b0] sm:$0xff]
        %v2984 = vld [vmem:[#allocation8 + $0x2b8] sm:$0xff]
        %v2985 = vld [vmem:[#allocation8 + $0x2c0] sm:$0xff]
        %v2986 = vld [vmem:[#allocation8 + $0x2c8] sm:$0xff]
        %v2987 = vld [vmem:[#allocation8 + $0x2d0] sm:$0xff]
        %v2988 = vld [vmem:[#allocation8 + $0x2d8] sm:$0xff]
        %v2989 = vld [vmem:[#allocation8 + $0x2e0] sm:$0xff]
        %v2990 = vld [vmem:[#allocation8 + $0x2e8] sm:$0xff]
        %v2991 = vld [vmem:[#allocation8 + $0x2f0] sm:$0xff]
        %v2992 = vld [vmem:[#allocation8 + $0x2f8] sm:$0xff]
        %v2993 = vld [vmem:[#allocation8 + $0x300] sm:$0xff]
        %v2994 = vld [vmem:[#allocation8 + $0x308] sm:$0xff]
        %v2995 = vld [vmem:[#allocation8 + $0x310] sm:$0xff]
        %v2996 = vld [vmem:[#allocation8 + $0x318] sm:$0xff]
        %v2997 = vld [vmem:[#allocation8 + $0x320] sm:$0xff]
        %v2998 = vld [vmem:[#allocation8 + $0x328] sm:$0xff]
        %v2999 = vld [vmem:[#allocation8 + $0x330] sm:$0xff]
        %v3000 = vld [vmem:[#allocation8 + $0x338] sm:$0xff]
        %v3001 = vld [vmem:[#allocation8 + $0x340] sm:$0xff]
        %v3002 = vld [vmem:[#allocation8 + $0x348] sm:$0xff]
        %v3003 = vld [vmem:[#allocation8 + $0x350] sm:$0xff]
        %v3004 = vld [vmem:[#allocation8 + $0x358] sm:$0xff]
        %v3005 = vld [vmem:[#allocation8 + $0x360] sm:$0xff]
        %v3006 = vld [vmem:[#allocation8 + $0x368] sm:$0xff]
        %v3007 = vld [vmem:[#allocation8 + $0x370] sm:$0xff]
        %v3008 = vld [vmem:[#allocation8 + $0x378] sm:$0xff]
        %v3009 = vld [vmem:[#allocation8 + $0x380] sm:$0xff]
        %v3010 = vld [vmem:[#allocation8 + $0x388] sm:$0xff]
        %v3011 = vld [vmem:[#allocation8 + $0x390] sm:$0xff]
        %v3012 = vld [vmem:[#allocation8 + $0x398] sm:$0xff]
        %v3013 = vld [vmem:[#allocation8 + $0x3a0] sm:$0xff]
        %v3014 = vld [vmem:[#allocation8 + $0x3a8] sm:$0xff]
        %v3015 = vld [vmem:[#allocation8 + $0x3b0] sm:$0xff]
        %v3016 = vld [vmem:[#allocation8 + $0x3b8] sm:$0xff]
        %v3017 = vld [vmem:[#allocation8 + $0x3c0] sm:$0xff]
        %v3018 = vld [vmem:[#allocation8 + $0x3c8] sm:$0xff]
        %v3019 = vld [vmem:[#allocation8 + $0x3d0] sm:$0xff]
        %v3020 = vld [vmem:[#allocation8 + $0x3d8] sm:$0xff]
        %v3021 = vld [vmem:[#allocation8 + $0x3e0] sm:$0xff]
        %v3022 = vld [vmem:[#allocation8 + $0x3e8] sm:$0xff]
        %v3023 = vld [vmem:[#allocation8 + $0x3f0] sm:$0xff]
        %v3024 = vld [vmem:[#allocation8 + $0x3f8] sm:$0xff]
        %v3025 = vld [vmem:[#allocation8 + $0x400] sm:$0xff]
        %v3026 = vld [vmem:[#allocation8 + $0x408] sm:$0xff]
        %v3027 = vld [vmem:[#allocation8 + $0x410] sm:$0xff]
        %v3028 = vld [vmem:[#allocation8 + $0x418] sm:$0xff]
        %v3029 = vld [vmem:[#allocation8 + $0x420] sm:$0xff]
        %v3030 = vld [vmem:[#allocation8 + $0x428] sm:$0xff]
        %v3031 = vld [vmem:[#allocation8 + $0x430] sm:$0xff]
        %v3032 = vld [vmem:[#allocation8 + $0x438] sm:$0xff]
        %v3033 = vld [vmem:[#allocation8 + $0x440] sm:$0xff]
        %v3034 = vld [vmem:[#allocation8 + $0x448] sm:$0xff]
        %v3035 = vld [vmem:[#allocation8 + $0x450] sm:$0xff]
        %v3036 = vld [vmem:[#allocation8 + $0x458] sm:$0xff]
        %v3037 = vld [vmem:[#allocation8 + $0x460] sm:$0xff]
        %v3038 = vld [vmem:[#allocation8 + $0x468] sm:$0xff]
        %v3039 = vld [vmem:[#allocation8 + $0x470] sm:$0xff]
        %v3040 = vld [vmem:[#allocation8 + $0x478] sm:$0xff]
        %v3041 = vld [vmem:[#allocation8 + $0x480] sm:$0xff]
        %v3042 = vld [vmem:[#allocation8 + $0x488] sm:$0xff]
        %v3043 = vld [vmem:[#allocation8 + $0x490] sm:$0xff]
        %v3044 = vld [vmem:[#allocation8 + $0x498] sm:$0xff]
        %v3045 = vld [vmem:[#allocation8 + $0x4a0] sm:$0xff]
        %v3046 = vld [vmem:[#allocation8 + $0x4a8] sm:$0xff]
        %v3047 = vld [vmem:[#allocation8 + $0x4b0] sm:$0xff]
        %v3048 = vld [vmem:[#allocation8 + $0x4b8] sm:$0xff]
        %v3049 = vld [vmem:[#allocation8 + $0x4c0] sm:$0xff]
        %v3050 = vld [vmem:[#allocation8 + $0x4c8] sm:$0xff]
        %v3051 = vld [vmem:[#allocation8 + $0x4d0] sm:$0xff]
        %v3052 = vld [vmem:[#allocation8 + $0x4d8] sm:$0xff]
        %v3053 = vld [vmem:[#allocation8 + $0x4e0] sm:$0xff]
        %v3054 = vld [vmem:[#allocation8 + $0x4e8] sm:$0xff]
        %v3055 = vld [vmem:[#allocation8 + $0x4f0] sm:$0xff]
        %v3056 = vld [vmem:[#allocation8 + $0x4f8] sm:$0xff]
        %v3057 = vld [vmem:[#allocation8 + $0x500] sm:$0xff]
        %v3058 = vld [vmem:[#allocation8 + $0x508] sm:$0xff]
        %v3059 = vld [vmem:[#allocation8 + $0x510] sm:$0xff]
        %v3060 = vld [vmem:[#allocation8 + $0x518] sm:$0xff]
        %v3061 = vld [vmem:[#allocation8 + $0x520] sm:$0xff]
        %v3062 = vld [vmem:[#allocation8 + $0x528] sm:$0xff]
        %v3063 = vld [vmem:[#allocation8 + $0x530] sm:$0xff]
        %v3064 = vld [vmem:[#allocation8 + $0x538] sm:$0xff]
        %v3065 = vld [vmem:[#allocation8 + $0x540] sm:$0xff]
        %v3066 = vld [vmem:[#allocation8 + $0x548] sm:$0xff]
        %v3067 = vld [vmem:[#allocation8 + $0x550] sm:$0xff]
        %v3068 = vld [vmem:[#allocation8 + $0x558] sm:$0xff]
        %v3069 = vld [vmem:[#allocation8 + $0x560] sm:$0xff]
        %v3070 = vld [vmem:[#allocation8 + $0x568] sm:$0xff]
        %v3071 = vld [vmem:[#allocation8 + $0x570] sm:$0xff]
        %v3072 = vld [vmem:[#allocation8 + $0x578] sm:$0xff]
        %v3073 = vld [vmem:[#allocation8 + $0x580] sm:$0xff]
        %v3074 = vld [vmem:[#allocation8 + $0x588] sm:$0xff]
        %v3075 = vld [vmem:[#allocation8 + $0x590] sm:$0xff]
        %v3076 = vld [vmem:[#allocation8 + $0x598] sm:$0xff]
        %v3077 = vld [vmem:[#allocation8 + $0x5a0] sm:$0xff]
        %v3078 = vld [vmem:[#allocation8 + $0x5a8] sm:$0xff]
        %v3079 = vld [vmem:[#allocation8 + $0x5b0] sm:$0xff]
        %v3080 = vld [vmem:[#allocation8 + $0x5b8] sm:$0xff]
        %v3081 = vld [vmem:[#allocation8 + $0x5c0] sm:$0xff]
        %v3082 = vld [vmem:[#allocation8 + $0x5c8] sm:$0xff]
        %v3083 = vld [vmem:[#allocation8 + $0x5d0] sm:$0xff]
        %v3084 = vld [vmem:[#allocation8 + $0x5d8] sm:$0xff]
        %v3085 = vld [vmem:[#allocation8 + $0x5e0] sm:$0xff]
        %v3086 = vld [vmem:[#allocation8 + $0x5e8] sm:$0xff]
        %v3087 = vld [vmem:[#allocation8 + $0x5f0] sm:$0xff]
        %v3088 = vld [vmem:[#allocation8 + $0x5f8] sm:$0xff]
        %v3089 = vld [vmem:[#allocation8 + $0x600] sm:$0xff]
        %v3090 = vld [vmem:[#allocation8 + $0x608] sm:$0xff]
        %v3091 = vld [vmem:[#allocation8 + $0x610] sm:$0xff]
        %v3092 = vld [vmem:[#allocation8 + $0x618] sm:$0xff]
        %v3093 = vld [vmem:[#allocation8 + $0x620] sm:$0xff]
        %v3094 = vld [vmem:[#allocation8 + $0x628] sm:$0xff]
        %v3095 = vld [vmem:[#allocation8 + $0x630] sm:$0xff]
        %v3096 = vld [vmem:[#allocation8 + $0x638] sm:$0xff]
        %v3097 = vld [vmem:[#allocation8 + $0x640] sm:$0xff]
        %v3098 = vld [vmem:[#allocation8 + $0x648] sm:$0xff]
        %v3099 = vld [vmem:[#allocation8 + $0x650] sm:$0xff]
        %v3100 = vld [vmem:[#allocation8 + $0x658] sm:$0xff]
        %v3101 = vld [vmem:[#allocation8 + $0x660] sm:$0xff]
        %v3102 = vld [vmem:[#allocation8 + $0x668] sm:$0xff]
        %v3103 = vld [vmem:[#allocation8 + $0x670] sm:$0xff]
        %v3104 = vld [vmem:[#allocation8 + $0x678] sm:$0xff]
        %v3105 = vld [vmem:[#allocation8 + $0x680] sm:$0xff]
        %v3106 = vld [vmem:[#allocation8 + $0x688] sm:$0xff]
        %v3107 = vld [vmem:[#allocation8 + $0x690] sm:$0xff]
        %v3108 = vld [vmem:[#allocation8 + $0x698] sm:$0xff]
        %v3109 = vld [vmem:[#allocation8 + $0x6a0] sm:$0xff]
        %v3110 = vld [vmem:[#allocation8 + $0x6a8] sm:$0xff]
        %v3111 = vld [vmem:[#allocation8 + $0x6b0] sm:$0xff]
        %v3112 = vld [vmem:[#allocation8 + $0x6b8] sm:$0xff]
        %v3113 = vld [vmem:[#allocation8 + $0x6c0] sm:$0xff]
        %v3114 = vld [vmem:[#allocation8 + $0x6c8] sm:$0xff]
        %v3115 = vld [vmem:[#allocation8 + $0x6d0] sm:$0xff]
        %v3116 = vld [vmem:[#allocation8 + $0x6d8] sm:$0xff]
        %v3117 = vld [vmem:[#allocation8 + $0x6e0] sm:$0xff]
        %v3118 = vld [vmem:[#allocation8 + $0x6e8] sm:$0xff]
        %v3119 = vld [vmem:[#allocation8 + $0x6f0] sm:$0xff]
        %v3120 = vld [vmem:[#allocation8 + $0x6f8] sm:$0xff]
        %v3121 = vld [vmem:[#allocation8 + $0x700] sm:$0xff]
        %v3122 = vld [vmem:[#allocation8 + $0x708] sm:$0xff]
        %v3123 = vld [vmem:[#allocation8 + $0x710] sm:$0xff]
        %v3124 = vld [vmem:[#allocation8 + $0x718] sm:$0xff]
        %v3125 = vld [vmem:[#allocation8 + $0x720] sm:$0xff]
        %v3126 = vld [vmem:[#allocation8 + $0x728] sm:$0xff]
        %v3127 = vld [vmem:[#allocation8 + $0x730] sm:$0xff]
        %v3128 = vld [vmem:[#allocation8 + $0x738] sm:$0xff]
        %v3129 = vld [vmem:[#allocation8 + $0x740] sm:$0xff]
        %v3130 = vld [vmem:[#allocation8 + $0x748] sm:$0xff]
        %v3131 = vld [vmem:[#allocation8 + $0x750] sm:$0xff]
        %v3132 = vld [vmem:[#allocation8 + $0x758] sm:$0xff]
        %v3133 = vld [vmem:[#allocation8 + $0x760] sm:$0xff]
        %v3134 = vld [vmem:[#allocation8 + $0x768] sm:$0xff]
        %v3135 = vld [vmem:[#allocation8 + $0x770] sm:$0xff]
        %v3136 = vld [vmem:[#allocation8 + $0x778] sm:$0xff]
        %v3137 = vld [vmem:[#allocation8 + $0x780] sm:$0xff]
        %v3138 = vld [vmem:[#allocation8 + $0x788] sm:$0xff]
        %v3139 = vld [vmem:[#allocation8 + $0x790] sm:$0xff]
        %v3140 = vld [vmem:[#allocation8 + $0x798] sm:$0xff]
        %v3141 = vld [vmem:[#allocation8 + $0x7a0] sm:$0xff]
        %v3142 = vld [vmem:[#allocation8 + $0x7a8] sm:$0xff]
        %v3143 = vld [vmem:[#allocation8 + $0x7b0] sm:$0xff]
        %v3144 = vld [vmem:[#allocation8 + $0x7b8] sm:$0xff]
        %v3145 = vld [vmem:[#allocation8 + $0x7c0] sm:$0xff]
        %v3146 = vld [vmem:[#allocation8 + $0x7c8] sm:$0xff]
        %v3147 = vld [vmem:[#allocation8 + $0x7d0] sm:$0xff]
        %v3148 = vld [vmem:[#allocation8 + $0x7d8] sm:$0xff]
        %v3149 = vld [vmem:[#allocation8 + $0x7e0] sm:$0xff]
        %v3150 = vld [vmem:[#allocation8 + $0x7e8] sm:$0xff]
        %v3151 = vld [vmem:[#allocation8 + $0x7f0] sm:$0xff]
        %v3152 = vld [vmem:[#allocation8 + $0x7f8] sm:$0xff]
        %v3153 = vld [vmem:[%s8] sm:$0xf]
        %v3155 = vlaneseq
        %v3156 = vshrl.u32 %v3155, 7
        %v3157 = vsub.s32 0, %v3156
        %v3158 = vrot.slane %v3153, %v3157
        %v3159 = vlaneseq
        %v3160 = vshrl.u32 %v3159, 7
        %v3161 = vsub.s32 1, %v3160
        %v3162 = vrot.slane %v3153, %v3161
        %v3163 = vlaneseq
        %v3164 = vshrl.u32 %v3163, 7
        %v3165 = vsub.s32 2, %v3164
        %v3166 = vrot.slane %v3153, %v3165
        %v3167 = vlaneseq
        %v3168 = vshrl.u32 %v3167, 7
        %v3169 = vsub.s32 3, %v3168
        %v3170 = vrot.slane %v3153, %v3169
        %v3431 = vunpack.c.l.b16 %v2897
        %v3432 = vunpack.c.h.b16 %v2897
        %v3433 = vunpack.c.l.b16 %v2898
        %v3434 = vunpack.c.h.b16 %v2898
        %v3435 = vunpack.c.l.b16 %v2899
        %v3436 = vunpack.c.h.b16 %v2899
        %v3437 = vunpack.c.l.b16 %v2900
        %v3438 = vunpack.c.h.b16 %v2900
        %v3439 = vunpack.c.l.b16 %v2901
        %v3440 = vunpack.c.h.b16 %v2901
        %v3441 = vunpack.c.l.b16 %v2902
        %v3442 = vunpack.c.h.b16 %v2902
        %v3443 = vunpack.c.l.b16 %v2903
        %v3444 = vunpack.c.h.b16 %v2903
        %v3445 = vunpack.c.l.b16 %v2904
        %v3446 = vunpack.c.h.b16 %v2904
        %v3447 = vunpack.c.l.b16 %v2905
        %v3448 = vunpack.c.h.b16 %v2905
        %v3449 = vunpack.c.l.b16 %v2906
        %v3450 = vunpack.c.h.b16 %v2906
        %v3451 = vunpack.c.l.b16 %v2907
        %v3452 = vunpack.c.h.b16 %v2907
        %v3453 = vunpack.c.l.b16 %v2908
        %v3454 = vunpack.c.h.b16 %v2908
        %v3455 = vunpack.c.l.b16 %v2909
        %v3456 = vunpack.c.h.b16 %v2909
        %v3457 = vunpack.c.l.b16 %v2910
        %v3458 = vunpack.c.h.b16 %v2910
        %v3459 = vunpack.c.l.b16 %v2911
        %v3460 = vunpack.c.h.b16 %v2911
        %v3461 = vunpack.c.l.b16 %v2912
        %v3462 = vunpack.c.h.b16 %v2912
        %v3463 = vunpack.c.l.b16 %v2913
        %v3464 = vunpack.c.h.b16 %v2913
        %v3465 = vunpack.c.l.b16 %v2914
        %v3466 = vunpack.c.h.b16 %v2914
        %v3467 = vunpack.c.l.b16 %v2915
        %v3468 = vunpack.c.h.b16 %v2915
        %v3469 = vunpack.c.l.b16 %v2916
        %v3470 = vunpack.c.h.b16 %v2916
        %v3471 = vunpack.c.l.b16 %v2917
        %v3472 = vunpack.c.h.b16 %v2917
        %v3473 = vunpack.c.l.b16 %v2918
        %v3474 = vunpack.c.h.b16 %v2918
        %v3475 = vunpack.c.l.b16 %v2919
        %v3476 = vunpack.c.h.b16 %v2919
        %v3477 = vunpack.c.l.b16 %v2920
        %v3478 = vunpack.c.h.b16 %v2920
        %v3479 = vunpack.c.l.b16 %v2921
        %v3480 = vunpack.c.h.b16 %v2921
        %v3481 = vunpack.c.l.b16 %v2922
        %v3482 = vunpack.c.h.b16 %v2922
        %v3483 = vunpack.c.l.b16 %v2923
        %v3484 = vunpack.c.h.b16 %v2923
        %v3485 = vunpack.c.l.b16 %v2924
        %v3486 = vunpack.c.h.b16 %v2924
        %v3487 = vunpack.c.l.b16 %v2925
        %v3488 = vunpack.c.h.b16 %v2925
        %v3489 = vunpack.c.l.b16 %v2926
        %v3490 = vunpack.c.h.b16 %v2926
        %v3491 = vunpack.c.l.b16 %v2927
        %v3492 = vunpack.c.h.b16 %v2927
        %v3493 = vunpack.c.l.b16 %v2928
        %v3494 = vunpack.c.h.b16 %v2928
        %v3495 = vunpack.c.l.b16 %v2929
        %v3496 = vunpack.c.h.b16 %v2929
        %v3497 = vunpack.c.l.b16 %v2930
        %v3498 = vunpack.c.h.b16 %v2930
        %v3499 = vunpack.c.l.b16 %v2931
        %v3500 = vunpack.c.h.b16 %v2931
        %v3501 = vunpack.c.l.b16 %v2932
        %v3502 = vunpack.c.h.b16 %v2932
        %v3503 = vunpack.c.l.b16 %v2933
        %v3504 = vunpack.c.h.b16 %v2933
        %v3505 = vunpack.c.l.b16 %v2934
        %v3506 = vunpack.c.h.b16 %v2934
        %v3507 = vunpack.c.l.b16 %v2935
        %v3508 = vunpack.c.h.b16 %v2935
        %v3509 = vunpack.c.l.b16 %v2936
        %v3510 = vunpack.c.h.b16 %v2936
        %v3511 = vunpack.c.l.b16 %v2937
        %v3512 = vunpack.c.h.b16 %v2937
        %v3513 = vunpack.c.l.b16 %v2938
        %v3514 = vunpack.c.h.b16 %v2938
        %v3515 = vunpack.c.l.b16 %v2939
        %v3516 = vunpack.c.h.b16 %v2939
        %v3517 = vunpack.c.l.b16 %v2940
        %v3518 = vunpack.c.h.b16 %v2940
        %v3519 = vunpack.c.l.b16 %v2941
        %v3520 = vunpack.c.h.b16 %v2941
        %v3521 = vunpack.c.l.b16 %v2942
        %v3522 = vunpack.c.h.b16 %v2942
        %v3523 = vunpack.c.l.b16 %v2943
        %v3524 = vunpack.c.h.b16 %v2943
        %v3525 = vunpack.c.l.b16 %v2944
        %v3526 = vunpack.c.h.b16 %v2944
        %v3527 = vunpack.c.l.b16 %v2945
        %v3528 = vunpack.c.h.b16 %v2945
        %v3529 = vunpack.c.l.b16 %v2946
        %v3530 = vunpack.c.h.b16 %v2946
        %v3531 = vunpack.c.l.b16 %v2947
        %v3532 = vunpack.c.h.b16 %v2947
        %v3533 = vunpack.c.l.b16 %v2948
        %v3534 = vunpack.c.h.b16 %v2948
        %v3535 = vunpack.c.l.b16 %v2949
        %v3536 = vunpack.c.h.b16 %v2949
        %v3537 = vunpack.c.l.b16 %v2950
        %v3538 = vunpack.c.h.b16 %v2950
        %v3539 = vunpack.c.l.b16 %v2951
        %v3540 = vunpack.c.h.b16 %v2951
        %v3541 = vunpack.c.l.b16 %v2952
        %v3542 = vunpack.c.h.b16 %v2952
        %v3543 = vunpack.c.l.b16 %v2953
        %v3544 = vunpack.c.h.b16 %v2953
        %v3545 = vunpack.c.l.b16 %v2954
        %v3546 = vunpack.c.h.b16 %v2954
        %v3547 = vunpack.c.l.b16 %v2955
        %v3548 = vunpack.c.h.b16 %v2955
        %v3549 = vunpack.c.l.b16 %v2956
        %v3550 = vunpack.c.h.b16 %v2956
        %v3551 = vunpack.c.l.b16 %v2957
        %v3552 = vunpack.c.h.b16 %v2957
        %v3553 = vunpack.c.l.b16 %v2958
        %v3554 = vunpack.c.h.b16 %v2958
        %v3555 = vunpack.c.l.b16 %v2959
        %v3556 = vunpack.c.h.b16 %v2959
        %v3557 = vunpack.c.l.b16 %v2960
        %v3558 = vunpack.c.h.b16 %v2960
        %v3559 = vunpack.c.l.b16 %v2961
        %v3560 = vunpack.c.h.b16 %v2961
        %v3561 = vunpack.c.l.b16 %v2962
        %v3562 = vunpack.c.h.b16 %v2962
        %v3563 = vunpack.c.l.b16 %v2963
        %v3564 = vunpack.c.h.b16 %v2963
        %v3565 = vunpack.c.l.b16 %v2964
        %v3566 = vunpack.c.h.b16 %v2964
        %v3567 = vunpack.c.l.b16 %v2965
        %v3568 = vunpack.c.h.b16 %v2965
        %v3569 = vunpack.c.l.b16 %v2966
        %v3570 = vunpack.c.h.b16 %v2966
        %v3571 = vunpack.c.l.b16 %v2967
        %v3572 = vunpack.c.h.b16 %v2967
        %v3573 = vunpack.c.l.b16 %v2968
        %v3574 = vunpack.c.h.b16 %v2968
        %v3575 = vunpack.c.l.b16 %v2969
        %v3576 = vunpack.c.h.b16 %v2969
        %v3577 = vunpack.c.l.b16 %v2970
        %v3578 = vunpack.c.h.b16 %v2970
        %v3579 = vunpack.c.l.b16 %v2971
        %v3580 = vunpack.c.h.b16 %v2971
        %v3581 = vunpack.c.l.b16 %v2972
        %v3582 = vunpack.c.h.b16 %v2972
        %v3583 = vunpack.c.l.b16 %v2973
        %v3584 = vunpack.c.h.b16 %v2973
        %v3585 = vunpack.c.l.b16 %v2974
        %v3586 = vunpack.c.h.b16 %v2974
        %v3587 = vunpack.c.l.b16 %v2975
        %v3588 = vunpack.c.h.b16 %v2975
        %v3589 = vunpack.c.l.b16 %v2976
        %v3590 = vunpack.c.h.b16 %v2976
        %v3591 = vunpack.c.l.b16 %v2977
        %v3592 = vunpack.c.h.b16 %v2977
        %v3593 = vunpack.c.l.b16 %v2978
        %v3594 = vunpack.c.h.b16 %v2978
        %v3595 = vunpack.c.l.b16 %v2979
        %v3596 = vunpack.c.h.b16 %v2979
        %v3597 = vunpack.c.l.b16 %v2980
        %v3598 = vunpack.c.h.b16 %v2980
        %v3599 = vunpack.c.l.b16 %v2981
        %v3600 = vunpack.c.h.b16 %v2981
        %v3601 = vunpack.c.l.b16 %v2982
        %v3602 = vunpack.c.h.b16 %v2982
        %v3603 = vunpack.c.l.b16 %v2983
        %v3604 = vunpack.c.h.b16 %v2983
        %v3605 = vunpack.c.l.b16 %v2984
        %v3606 = vunpack.c.h.b16 %v2984
        %v3607 = vunpack.c.l.b16 %v2985
        %v3608 = vunpack.c.h.b16 %v2985
        %v3609 = vunpack.c.l.b16 %v2986
        %v3610 = vunpack.c.h.b16 %v2986
        %v3611 = vunpack.c.l.b16 %v2987
        %v3612 = vunpack.c.h.b16 %v2987
        %v3613 = vunpack.c.l.b16 %v2988
        %v3614 = vunpack.c.h.b16 %v2988
        %v3615 = vunpack.c.l.b16 %v2989
        %v3616 = vunpack.c.h.b16 %v2989
        %v3617 = vunpack.c.l.b16 %v2990
        %v3618 = vunpack.c.h.b16 %v2990
        %v3619 = vunpack.c.l.b16 %v2991
        %v3620 = vunpack.c.h.b16 %v2991
        %v3621 = vunpack.c.l.b16 %v2992
        %v3622 = vunpack.c.h.b16 %v2992
        %v3623 = vunpack.c.l.b16 %v2993
        %v3624 = vunpack.c.h.b16 %v2993
        %v3625 = vunpack.c.l.b16 %v2994
        %v3626 = vunpack.c.h.b16 %v2994
        %v3627 = vunpack.c.l.b16 %v2995
        %v3628 = vunpack.c.h.b16 %v2995
        %v3629 = vunpack.c.l.b16 %v2996
        %v3630 = vunpack.c.h.b16 %v2996
        %v3631 = vunpack.c.l.b16 %v2997
        %v3632 = vunpack.c.h.b16 %v2997
        %v3633 = vunpack.c.l.b16 %v2998
        %v3634 = vunpack.c.h.b16 %v2998
        %v3635 = vunpack.c.l.b16 %v2999
        %v3636 = vunpack.c.h.b16 %v2999
        %v3637 = vunpack.c.l.b16 %v3000
        %v3638 = vunpack.c.h.b16 %v3000
        %v3639 = vunpack.c.l.b16 %v3001
        %v3640 = vunpack.c.h.b16 %v3001
        %v3641 = vunpack.c.l.b16 %v3002
        %v3642 = vunpack.c.h.b16 %v3002
        %v3643 = vunpack.c.l.b16 %v3003
        %v3644 = vunpack.c.h.b16 %v3003
        %v3645 = vunpack.c.l.b16 %v3004
        %v3646 = vunpack.c.h.b16 %v3004
        %v3647 = vunpack.c.l.b16 %v3005
        %v3648 = vunpack.c.h.b16 %v3005
        %v3649 = vunpack.c.l.b16 %v3006
        %v3650 = vunpack.c.h.b16 %v3006
        %v3651 = vunpack.c.l.b16 %v3007
        %v3652 = vunpack.c.h.b16 %v3007
        %v3653 = vunpack.c.l.b16 %v3008
        %v3654 = vunpack.c.h.b16 %v3008
        %v3655 = vunpack.c.l.b16 %v3009
        %v3656 = vunpack.c.h.b16 %v3009
        %v3657 = vunpack.c.l.b16 %v3010
        %v3658 = vunpack.c.h.b16 %v3010
        %v3659 = vunpack.c.l.b16 %v3011
        %v3660 = vunpack.c.h.b16 %v3011
        %v3661 = vunpack.c.l.b16 %v3012
        %v3662 = vunpack.c.h.b16 %v3012
        %v3663 = vunpack.c.l.b16 %v3013
        %v3664 = vunpack.c.h.b16 %v3013
        %v3665 = vunpack.c.l.b16 %v3014
        %v3666 = vunpack.c.h.b16 %v3014
        %v3667 = vunpack.c.l.b16 %v3015
        %v3668 = vunpack.c.h.b16 %v3015
        %v3669 = vunpack.c.l.b16 %v3016
        %v3670 = vunpack.c.h.b16 %v3016
        %v3671 = vunpack.c.l.b16 %v3017
        %v3672 = vunpack.c.h.b16 %v3017
        %v3673 = vunpack.c.l.b16 %v3018
        %v3674 = vunpack.c.h.b16 %v3018
        %v3675 = vunpack.c.l.b16 %v3019
        %v3676 = vunpack.c.h.b16 %v3019
        %v3677 = vunpack.c.l.b16 %v3020
        %v3678 = vunpack.c.h.b16 %v3020
        %v3679 = vunpack.c.l.b16 %v3021
        %v3680 = vunpack.c.h.b16 %v3021
        %v3681 = vunpack.c.l.b16 %v3022
        %v3682 = vunpack.c.h.b16 %v3022
        %v3683 = vunpack.c.l.b16 %v3023
        %v3684 = vunpack.c.h.b16 %v3023
        %v3685 = vunpack.c.l.b16 %v3024
        %v3686 = vunpack.c.h.b16 %v3024
        %v3687 = vunpack.c.l.b16 %v3025
        %v3688 = vunpack.c.h.b16 %v3025
        %v3689 = vunpack.c.l.b16 %v3026
        %v3690 = vunpack.c.h.b16 %v3026
        %v3691 = vunpack.c.l.b16 %v3027
        %v3692 = vunpack.c.h.b16 %v3027
        %v3693 = vunpack.c.l.b16 %v3028
        %v3694 = vunpack.c.h.b16 %v3028
        %v3695 = vunpack.c.l.b16 %v3029
        %v3696 = vunpack.c.h.b16 %v3029
        %v3697 = vunpack.c.l.b16 %v3030
        %v3698 = vunpack.c.h.b16 %v3030
        %v3699 = vunpack.c.l.b16 %v3031
        %v3700 = vunpack.c.h.b16 %v3031
        %v3701 = vunpack.c.l.b16 %v3032
        %v3702 = vunpack.c.h.b16 %v3032
        %v3703 = vunpack.c.l.b16 %v3033
        %v3704 = vunpack.c.h.b16 %v3033
        %v3705 = vunpack.c.l.b16 %v3034
        %v3706 = vunpack.c.h.b16 %v3034
        %v3707 = vunpack.c.l.b16 %v3035
        %v3708 = vunpack.c.h.b16 %v3035
        %v3709 = vunpack.c.l.b16 %v3036
        %v3710 = vunpack.c.h.b16 %v3036
        %v3711 = vunpack.c.l.b16 %v3037
        %v3712 = vunpack.c.h.b16 %v3037
        %v3713 = vunpack.c.l.b16 %v3038
        %v3714 = vunpack.c.h.b16 %v3038
        %v3715 = vunpack.c.l.b16 %v3039
        %v3716 = vunpack.c.h.b16 %v3039
        %v3717 = vunpack.c.l.b16 %v3040
        %v3718 = vunpack.c.h.b16 %v3040
        %v3719 = vunpack.c.l.b16 %v3041
        %v3720 = vunpack.c.h.b16 %v3041
        %v3721 = vunpack.c.l.b16 %v3042
        %v3722 = vunpack.c.h.b16 %v3042
        %v3723 = vunpack.c.l.b16 %v3043
        %v3724 = vunpack.c.h.b16 %v3043
        %v3725 = vunpack.c.l.b16 %v3044
        %v3726 = vunpack.c.h.b16 %v3044
        %v3727 = vunpack.c.l.b16 %v3045
        %v3728 = vunpack.c.h.b16 %v3045
        %v3729 = vunpack.c.l.b16 %v3046
        %v3730 = vunpack.c.h.b16 %v3046
        %v3731 = vunpack.c.l.b16 %v3047
        %v3732 = vunpack.c.h.b16 %v3047
        %v3733 = vunpack.c.l.b16 %v3048
        %v3734 = vunpack.c.h.b16 %v3048
        %v3735 = vunpack.c.l.b16 %v3049
        %v3736 = vunpack.c.h.b16 %v3049
        %v3737 = vunpack.c.l.b16 %v3050
        %v3738 = vunpack.c.h.b16 %v3050
        %v3739 = vunpack.c.l.b16 %v3051
        %v3740 = vunpack.c.h.b16 %v3051
        %v3741 = vunpack.c.l.b16 %v3052
        %v3742 = vunpack.c.h.b16 %v3052
        %v3743 = vunpack.c.l.b16 %v3053
        %v3744 = vunpack.c.h.b16 %v3053
        %v3745 = vunpack.c.l.b16 %v3054
        %v3746 = vunpack.c.h.b16 %v3054
        %v3747 = vunpack.c.l.b16 %v3055
        %v3748 = vunpack.c.h.b16 %v3055
        %v3749 = vunpack.c.l.b16 %v3056
        %v3750 = vunpack.c.h.b16 %v3056
        %v3751 = vunpack.c.l.b16 %v3057
        %v3752 = vunpack.c.h.b16 %v3057
        %v3753 = vunpack.c.l.b16 %v3058
        %v3754 = vunpack.c.h.b16 %v3058
        %v3755 = vunpack.c.l.b16 %v3059
        %v3756 = vunpack.c.h.b16 %v3059
        %v3757 = vunpack.c.l.b16 %v3060
        %v3758 = vunpack.c.h.b16 %v3060
        %v3759 = vunpack.c.l.b16 %v3061
        %v3760 = vunpack.c.h.b16 %v3061
        %v3761 = vunpack.c.l.b16 %v3062
        %v3762 = vunpack.c.h.b16 %v3062
        %v3763 = vunpack.c.l.b16 %v3063
        %v3764 = vunpack.c.h.b16 %v3063
        %v3765 = vunpack.c.l.b16 %v3064
        %v3766 = vunpack.c.h.b16 %v3064
        %v3767 = vunpack.c.l.b16 %v3065
        %v3768 = vunpack.c.h.b16 %v3065
        %v3769 = vunpack.c.l.b16 %v3066
        %v3770 = vunpack.c.h.b16 %v3066
        %v3771 = vunpack.c.l.b16 %v3067
        %v3772 = vunpack.c.h.b16 %v3067
        %v3773 = vunpack.c.l.b16 %v3068
        %v3774 = vunpack.c.h.b16 %v3068
        %v3775 = vunpack.c.l.b16 %v3069
        %v3776 = vunpack.c.h.b16 %v3069
        %v3777 = vunpack.c.l.b16 %v3070
        %v3778 = vunpack.c.h.b16 %v3070
        %v3779 = vunpack.c.l.b16 %v3071
        %v3780 = vunpack.c.h.b16 %v3071
        %v3781 = vunpack.c.l.b16 %v3072
        %v3782 = vunpack.c.h.b16 %v3072
        %v3783 = vunpack.c.l.b16 %v3073
        %v3784 = vunpack.c.h.b16 %v3073
        %v3785 = vunpack.c.l.b16 %v3074
        %v3786 = vunpack.c.h.b16 %v3074
        %v3787 = vunpack.c.l.b16 %v3075
        %v3788 = vunpack.c.h.b16 %v3075
        %v3789 = vunpack.c.l.b16 %v3076
        %v3790 = vunpack.c.h.b16 %v3076
        %v3791 = vunpack.c.l.b16 %v3077
        %v3792 = vunpack.c.h.b16 %v3077
        %v3793 = vunpack.c.l.b16 %v3078
        %v3794 = vunpack.c.h.b16 %v3078
        %v3795 = vunpack.c.l.b16 %v3079
        %v3796 = vunpack.c.h.b16 %v3079
        %v3797 = vunpack.c.l.b16 %v3080
        %v3798 = vunpack.c.h.b16 %v3080
        %v3799 = vunpack.c.l.b16 %v3081
        %v3800 = vunpack.c.h.b16 %v3081
        %v3801 = vunpack.c.l.b16 %v3082
        %v3802 = vunpack.c.h.b16 %v3082
        %v3803 = vunpack.c.l.b16 %v3083
        %v3804 = vunpack.c.h.b16 %v3083
        %v3805 = vunpack.c.l.b16 %v3084
        %v3806 = vunpack.c.h.b16 %v3084
        %v3807 = vunpack.c.l.b16 %v3085
        %v3808 = vunpack.c.h.b16 %v3085
        %v3809 = vunpack.c.l.b16 %v3086
        %v3810 = vunpack.c.h.b16 %v3086
        %v3811 = vunpack.c.l.b16 %v3087
        %v3812 = vunpack.c.h.b16 %v3087
        %v3813 = vunpack.c.l.b16 %v3088
        %v3814 = vunpack.c.h.b16 %v3088
        %v3815 = vunpack.c.l.b16 %v3089
        %v3816 = vunpack.c.h.b16 %v3089
        %v3817 = vunpack.c.l.b16 %v3090
        %v3818 = vunpack.c.h.b16 %v3090
        %v3819 = vunpack.c.l.b16 %v3091
        %v3820 = vunpack.c.h.b16 %v3091
        %v3821 = vunpack.c.l.b16 %v3092
        %v3822 = vunpack.c.h.b16 %v3092
        %v3823 = vunpack.c.l.b16 %v3093
        %v3824 = vunpack.c.h.b16 %v3093
        %v3825 = vunpack.c.l.b16 %v3094
        %v3826 = vunpack.c.h.b16 %v3094
        %v3827 = vunpack.c.l.b16 %v3095
        %v3828 = vunpack.c.h.b16 %v3095
        %v3829 = vunpack.c.l.b16 %v3096
        %v3830 = vunpack.c.h.b16 %v3096
        %v3831 = vunpack.c.l.b16 %v3097
        %v3832 = vunpack.c.h.b16 %v3097
        %v3833 = vunpack.c.l.b16 %v3098
        %v3834 = vunpack.c.h.b16 %v3098
        %v3835 = vunpack.c.l.b16 %v3099
        %v3836 = vunpack.c.h.b16 %v3099
        %v3837 = vunpack.c.l.b16 %v3100
        %v3838 = vunpack.c.h.b16 %v3100
        %v3839 = vunpack.c.l.b16 %v3101
        %v3840 = vunpack.c.h.b16 %v3101
        %v3841 = vunpack.c.l.b16 %v3102
        %v3842 = vunpack.c.h.b16 %v3102
        %v3843 = vunpack.c.l.b16 %v3103
        %v3844 = vunpack.c.h.b16 %v3103
        %v3845 = vunpack.c.l.b16 %v3104
        %v3846 = vunpack.c.h.b16 %v3104
        %v3847 = vunpack.c.l.b16 %v3105
        %v3848 = vunpack.c.h.b16 %v3105
        %v3849 = vunpack.c.l.b16 %v3106
        %v3850 = vunpack.c.h.b16 %v3106
        %v3851 = vunpack.c.l.b16 %v3107
        %v3852 = vunpack.c.h.b16 %v3107
        %v3853 = vunpack.c.l.b16 %v3108
        %v3854 = vunpack.c.h.b16 %v3108
        %v3855 = vunpack.c.l.b16 %v3109
        %v3856 = vunpack.c.h.b16 %v3109
        %v3857 = vunpack.c.l.b16 %v3110
        %v3858 = vunpack.c.h.b16 %v3110
        %v3859 = vunpack.c.l.b16 %v3111
        %v3860 = vunpack.c.h.b16 %v3111
        %v3861 = vunpack.c.l.b16 %v3112
        %v3862 = vunpack.c.h.b16 %v3112
        %v3863 = vunpack.c.l.b16 %v3113
        %v3864 = vunpack.c.h.b16 %v3113
        %v3865 = vunpack.c.l.b16 %v3114
        %v3866 = vunpack.c.h.b16 %v3114
        %v3867 = vunpack.c.l.b16 %v3115
        %v3868 = vunpack.c.h.b16 %v3115
        %v3869 = vunpack.c.l.b16 %v3116
        %v3870 = vunpack.c.h.b16 %v3116
        %v3871 = vunpack.c.l.b16 %v3117
        %v3872 = vunpack.c.h.b16 %v3117
        %v3873 = vunpack.c.l.b16 %v3118
        %v3874 = vunpack.c.h.b16 %v3118
        %v3875 = vunpack.c.l.b16 %v3119
        %v3876 = vunpack.c.h.b16 %v3119
        %v3877 = vunpack.c.l.b16 %v3120
        %v3878 = vunpack.c.h.b16 %v3120
        %v3879 = vunpack.c.l.b16 %v3121
        %v3880 = vunpack.c.h.b16 %v3121
        %v3881 = vunpack.c.l.b16 %v3122
        %v3882 = vunpack.c.h.b16 %v3122
        %v3883 = vunpack.c.l.b16 %v3123
        %v3884 = vunpack.c.h.b16 %v3123
        %v3885 = vunpack.c.l.b16 %v3124
        %v3886 = vunpack.c.h.b16 %v3124
        %v3887 = vunpack.c.l.b16 %v3125
        %v3888 = vunpack.c.h.b16 %v3125
        %v3889 = vunpack.c.l.b16 %v3126
        %v3890 = vunpack.c.h.b16 %v3126
        %v3891 = vunpack.c.l.b16 %v3127
        %v3892 = vunpack.c.h.b16 %v3127
        %v3893 = vunpack.c.l.b16 %v3128
        %v3894 = vunpack.c.h.b16 %v3128
        %v3895 = vunpack.c.l.b16 %v3129
        %v3896 = vunpack.c.h.b16 %v3129
        %v3897 = vunpack.c.l.b16 %v3130
        %v3898 = vunpack.c.h.b16 %v3130
        %v3899 = vunpack.c.l.b16 %v3131
        %v3900 = vunpack.c.h.b16 %v3131
        %v3901 = vunpack.c.l.b16 %v3132
        %v3902 = vunpack.c.h.b16 %v3132
        %v3903 = vunpack.c.l.b16 %v3133
        %v3904 = vunpack.c.h.b16 %v3133
        %v3905 = vunpack.c.l.b16 %v3134
        %v3906 = vunpack.c.h.b16 %v3134
        %v3907 = vunpack.c.l.b16 %v3135
        %v3908 = vunpack.c.h.b16 %v3135
        %v3909 = vunpack.c.l.b16 %v3136
        %v3910 = vunpack.c.h.b16 %v3136
        %v3911 = vunpack.c.l.b16 %v3137
        %v3912 = vunpack.c.h.b16 %v3137
        %v3913 = vunpack.c.l.b16 %v3138
        %v3914 = vunpack.c.h.b16 %v3138
        %v3915 = vunpack.c.l.b16 %v3139
        %v3916 = vunpack.c.h.b16 %v3139
        %v3917 = vunpack.c.l.b16 %v3140
        %v3918 = vunpack.c.h.b16 %v3140
        %v3919 = vunpack.c.l.b16 %v3141
        %v3920 = vunpack.c.h.b16 %v3141
        %v3921 = vunpack.c.l.b16 %v3142
        %v3922 = vunpack.c.h.b16 %v3142
        %v3923 = vunpack.c.l.b16 %v3143
        %v3924 = vunpack.c.h.b16 %v3143
        %v3925 = vunpack.c.l.b16 %v3144
        %v3926 = vunpack.c.h.b16 %v3144
        %v3927 = vunpack.c.l.b16 %v3145
        %v3928 = vunpack.c.h.b16 %v3145
        %v3929 = vunpack.c.l.b16 %v3146
        %v3930 = vunpack.c.h.b16 %v3146
        %v3931 = vunpack.c.l.b16 %v3147
        %v3932 = vunpack.c.h.b16 %v3147
        %v3933 = vunpack.c.l.b16 %v3148
        %v3934 = vunpack.c.h.b16 %v3148
        %v3935 = vunpack.c.l.b16 %v3149
        %v3936 = vunpack.c.h.b16 %v3149
        %v3937 = vunpack.c.l.b16 %v3150
        %v3938 = vunpack.c.h.b16 %v3150
        %v3939 = vunpack.c.l.b16 %v3151
        %v3940 = vunpack.c.h.b16 %v3151
        %v3941 = vunpack.c.l.b16 %v3152
        %v3942 = vunpack.c.h.b16 %v3152
        %v3943 = vpack.c.b16 %v3435, %v3431
        %v3944 = vpack.c.b16 %v3436, %v3432
        %v3945 = vpack.c.b16 %v3437, %v3433
        %v3946 = vpack.c.b16 %v3438, %v3434
        %v3947 = vpack.c.b16 %v3443, %v3439
        %v3948 = vpack.c.b16 %v3444, %v3440
        %v3949 = vpack.c.b16 %v3445, %v3441
        %v3950 = vpack.c.b16 %v3446, %v3442
        %v3951 = vpack.c.b16 %v3451, %v3447
        %v3952 = vpack.c.b16 %v3452, %v3448
        %v3953 = vpack.c.b16 %v3453, %v3449
        %v3954 = vpack.c.b16 %v3454, %v3450
        %v3955 = vpack.c.b16 %v3459, %v3455
        %v3956 = vpack.c.b16 %v3460, %v3456
        %v3957 = vpack.c.b16 %v3461, %v3457
        %v3958 = vpack.c.b16 %v3462, %v3458
        %v3959 = vpack.c.b16 %v3467, %v3463
        %v3960 = vpack.c.b16 %v3468, %v3464
        %v3961 = vpack.c.b16 %v3469, %v3465
        %v3962 = vpack.c.b16 %v3470, %v3466
        %v3963 = vpack.c.b16 %v3475, %v3471
        %v3964 = vpack.c.b16 %v3476, %v3472
        %v3965 = vpack.c.b16 %v3477, %v3473
        %v3966 = vpack.c.b16 %v3478, %v3474
        %v3967 = vpack.c.b16 %v3483, %v3479
        %v3968 = vpack.c.b16 %v3484, %v3480
        %v3969 = vpack.c.b16 %v3485, %v3481
        %v3970 = vpack.c.b16 %v3486, %v3482
        %v3971 = vpack.c.b16 %v3491, %v3487
        %v3972 = vpack.c.b16 %v3492, %v3488
        %v3973 = vpack.c.b16 %v3493, %v3489
        %v3974 = vpack.c.b16 %v3494, %v3490
        %v3975 = vpack.c.b16 %v3499, %v3495
        %v3976 = vpack.c.b16 %v3500, %v3496
        %v3977 = vpack.c.b16 %v3501, %v3497
        %v3978 = vpack.c.b16 %v3502, %v3498
        %v3979 = vpack.c.b16 %v3507, %v3503
        %v3980 = vpack.c.b16 %v3508, %v3504
        %v3981 = vpack.c.b16 %v3509, %v3505
        %v3982 = vpack.c.b16 %v3510, %v3506
        %v3983 = vpack.c.b16 %v3515, %v3511
        %v3984 = vpack.c.b16 %v3516, %v3512
        %v3985 = vpack.c.b16 %v3517, %v3513
        %v3986 = vpack.c.b16 %v3518, %v3514
        %v3987 = vpack.c.b16 %v3523, %v3519
        %v3988 = vpack.c.b16 %v3524, %v3520
        %v3989 = vpack.c.b16 %v3525, %v3521
        %v3990 = vpack.c.b16 %v3526, %v3522
        %v3991 = vpack.c.b16 %v3531, %v3527
        %v3992 = vpack.c.b16 %v3532, %v3528
        %v3993 = vpack.c.b16 %v3533, %v3529
        %v3994 = vpack.c.b16 %v3534, %v3530
        %v3995 = vpack.c.b16 %v3539, %v3535
        %v3996 = vpack.c.b16 %v3540, %v3536
        %v3997 = vpack.c.b16 %v3541, %v3537
        %v3998 = vpack.c.b16 %v3542, %v3538
        %v3999 = vpack.c.b16 %v3547, %v3543
        %v4000 = vpack.c.b16 %v3548, %v3544
        %v4001 = vpack.c.b16 %v3549, %v3545
        %v4002 = vpack.c.b16 %v3550, %v3546
        %v4003 = vpack.c.b16 %v3555, %v3551
        %v4004 = vpack.c.b16 %v3556, %v3552
        %v4005 = vpack.c.b16 %v3557, %v3553
        %v4006 = vpack.c.b16 %v3558, %v3554
        %v4007 = vpack.c.b16 %v3563, %v3559
        %v4008 = vpack.c.b16 %v3564, %v3560
        %v4009 = vpack.c.b16 %v3565, %v3561
        %v4010 = vpack.c.b16 %v3566, %v3562
        %v4011 = vpack.c.b16 %v3571, %v3567
        %v4012 = vpack.c.b16 %v3572, %v3568
        %v4013 = vpack.c.b16 %v3573, %v3569
        %v4014 = vpack.c.b16 %v3574, %v3570
        %v4015 = vpack.c.b16 %v3579, %v3575
        %v4016 = vpack.c.b16 %v3580, %v3576
        %v4017 = vpack.c.b16 %v3581, %v3577
        %v4018 = vpack.c.b16 %v3582, %v3578
        %v4019 = vpack.c.b16 %v3587, %v3583
        %v4020 = vpack.c.b16 %v3588, %v3584
        %v4021 = vpack.c.b16 %v3589, %v3585
        %v4022 = vpack.c.b16 %v3590, %v3586
        %v4023 = vpack.c.b16 %v3595, %v3591
        %v4024 = vpack.c.b16 %v3596, %v3592
        %v4025 = vpack.c.b16 %v3597, %v3593
        %v4026 = vpack.c.b16 %v3598, %v3594
        %v4027 = vpack.c.b16 %v3603, %v3599
        %v4028 = vpack.c.b16 %v3604, %v3600
        %v4029 = vpack.c.b16 %v3605, %v3601
        %v4030 = vpack.c.b16 %v3606, %v3602
        %v4031 = vpack.c.b16 %v3611, %v3607
        %v4032 = vpack.c.b16 %v3612, %v3608
        %v4033 = vpack.c.b16 %v3613, %v3609
        %v4034 = vpack.c.b16 %v3614, %v3610
        %v4035 = vpack.c.b16 %v3619, %v3615
        %v4036 = vpack.c.b16 %v3620, %v3616
        %v4037 = vpack.c.b16 %v3621, %v3617
        %v4038 = vpack.c.b16 %v3622, %v3618
        %v4039 = vpack.c.b16 %v3627, %v3623
        %v4040 = vpack.c.b16 %v3628, %v3624
        %v4041 = vpack.c.b16 %v3629, %v3625
        %v4042 = vpack.c.b16 %v3630, %v3626
        %v4043 = vpack.c.b16 %v3635, %v3631
        %v4044 = vpack.c.b16 %v3636, %v3632
        %v4045 = vpack.c.b16 %v3637, %v3633
        %v4046 = vpack.c.b16 %v3638, %v3634
        %v4047 = vpack.c.b16 %v3643, %v3639
        %v4048 = vpack.c.b16 %v3644, %v3640
        %v4049 = vpack.c.b16 %v3645, %v3641
        %v4050 = vpack.c.b16 %v3646, %v3642
        %v4051 = vpack.c.b16 %v3651, %v3647
        %v4052 = vpack.c.b16 %v3652, %v3648
        %v4053 = vpack.c.b16 %v3653, %v3649
        %v4054 = vpack.c.b16 %v3654, %v3650
        %v4055 = vpack.c.b16 %v3659, %v3655
        %v4056 = vpack.c.b16 %v3660, %v3656
        %v4057 = vpack.c.b16 %v3661, %v3657
        %v4058 = vpack.c.b16 %v3662, %v3658
        %v4059 = vpack.c.b16 %v3667, %v3663
        %v4060 = vpack.c.b16 %v3668, %v3664
        %v4061 = vpack.c.b16 %v3669, %v3665
        %v4062 = vpack.c.b16 %v3670, %v3666
        %v4063 = vpack.c.b16 %v3675, %v3671
        %v4064 = vpack.c.b16 %v3676, %v3672
        %v4065 = vpack.c.b16 %v3677, %v3673
        %v4066 = vpack.c.b16 %v3678, %v3674
        %v4067 = vpack.c.b16 %v3683, %v3679
        %v4068 = vpack.c.b16 %v3684, %v3680
        %v4069 = vpack.c.b16 %v3685, %v3681
        %v4070 = vpack.c.b16 %v3686, %v3682
        %v4071 = vpack.c.b16 %v3691, %v3687
        %v4072 = vpack.c.b16 %v3692, %v3688
        %v4073 = vpack.c.b16 %v3693, %v3689
        %v4074 = vpack.c.b16 %v3694, %v3690
        %v4075 = vpack.c.b16 %v3699, %v3695
        %v4076 = vpack.c.b16 %v3700, %v3696
        %v4077 = vpack.c.b16 %v3701, %v3697
        %v4078 = vpack.c.b16 %v3702, %v3698
        %v4079 = vpack.c.b16 %v3707, %v3703
        %v4080 = vpack.c.b16 %v3708, %v3704
        %v4081 = vpack.c.b16 %v3709, %v3705
        %v4082 = vpack.c.b16 %v3710, %v3706
        %v4083 = vpack.c.b16 %v3715, %v3711
        %v4084 = vpack.c.b16 %v3716, %v3712
        %v4085 = vpack.c.b16 %v3717, %v3713
        %v4086 = vpack.c.b16 %v3718, %v3714
        %v4087 = vpack.c.b16 %v3723, %v3719
        %v4088 = vpack.c.b16 %v3724, %v3720
        %v4089 = vpack.c.b16 %v3725, %v3721
        %v4090 = vpack.c.b16 %v3726, %v3722
        %v4091 = vpack.c.b16 %v3731, %v3727
        %v4092 = vpack.c.b16 %v3732, %v3728
        %v4093 = vpack.c.b16 %v3733, %v3729
        %v4094 = vpack.c.b16 %v3734, %v3730
        %v4095 = vpack.c.b16 %v3739, %v3735
        %v4096 = vpack.c.b16 %v3740, %v3736
        %v4097 = vpack.c.b16 %v3741, %v3737
        %v4098 = vpack.c.b16 %v3742, %v3738
        %v4099 = vpack.c.b16 %v3747, %v3743
        %v4100 = vpack.c.b16 %v3748, %v3744
        %v4101 = vpack.c.b16 %v3749, %v3745
        %v4102 = vpack.c.b16 %v3750, %v3746
        %v4103 = vpack.c.b16 %v3755, %v3751
        %v4104 = vpack.c.b16 %v3756, %v3752
        %v4105 = vpack.c.b16 %v3757, %v3753
        %v4106 = vpack.c.b16 %v3758, %v3754
        %v4107 = vpack.c.b16 %v3763, %v3759
        %v4108 = vpack.c.b16 %v3764, %v3760
        %v4109 = vpack.c.b16 %v3765, %v3761
        %v4110 = vpack.c.b16 %v3766, %v3762
        %v4111 = vpack.c.b16 %v3771, %v3767
        %v4112 = vpack.c.b16 %v3772, %v3768
        %v4113 = vpack.c.b16 %v3773, %v3769
        %v4114 = vpack.c.b16 %v3774, %v3770
        %v4115 = vpack.c.b16 %v3779, %v3775
        %v4116 = vpack.c.b16 %v3780, %v3776
        %v4117 = vpack.c.b16 %v3781, %v3777
        %v4118 = vpack.c.b16 %v3782, %v3778
        %v4119 = vpack.c.b16 %v3787, %v3783
        %v4120 = vpack.c.b16 %v3788, %v3784
        %v4121 = vpack.c.b16 %v3789, %v3785
        %v4122 = vpack.c.b16 %v3790, %v3786
        %v4123 = vpack.c.b16 %v3795, %v3791
        %v4124 = vpack.c.b16 %v3796, %v3792
        %v4125 = vpack.c.b16 %v3797, %v3793
        %v4126 = vpack.c.b16 %v3798, %v3794
        %v4127 = vpack.c.b16 %v3803, %v3799
        %v4128 = vpack.c.b16 %v3804, %v3800
        %v4129 = vpack.c.b16 %v3805, %v3801
        %v4130 = vpack.c.b16 %v3806, %v3802
        %v4131 = vpack.c.b16 %v3811, %v3807
        %v4132 = vpack.c.b16 %v3812, %v3808
        %v4133 = vpack.c.b16 %v3813, %v3809
        %v4134 = vpack.c.b16 %v3814, %v3810
        %v4135 = vpack.c.b16 %v3819, %v3815
        %v4136 = vpack.c.b16 %v3820, %v3816
        %v4137 = vpack.c.b16 %v3821, %v3817
        %v4138 = vpack.c.b16 %v3822, %v3818
        %v4139 = vpack.c.b16 %v3827, %v3823
        %v4140 = vpack.c.b16 %v3828, %v3824
        %v4141 = vpack.c.b16 %v3829, %v3825
        %v4142 = vpack.c.b16 %v3830, %v3826
        %v4143 = vpack.c.b16 %v3835, %v3831
        %v4144 = vpack.c.b16 %v3836, %v3832
        %v4145 = vpack.c.b16 %v3837, %v3833
        %v4146 = vpack.c.b16 %v3838, %v3834
        %v4147 = vpack.c.b16 %v3843, %v3839
        %v4148 = vpack.c.b16 %v3844, %v3840
        %v4149 = vpack.c.b16 %v3845, %v3841
        %v4150 = vpack.c.b16 %v3846, %v3842
        %v4151 = vpack.c.b16 %v3851, %v3847
        %v4152 = vpack.c.b16 %v3852, %v3848
        %v4153 = vpack.c.b16 %v3853, %v3849
        %v4154 = vpack.c.b16 %v3854, %v3850
        %v4155 = vpack.c.b16 %v3859, %v3855
        %v4156 = vpack.c.b16 %v3860, %v3856
        %v4157 = vpack.c.b16 %v3861, %v3857
        %v4158 = vpack.c.b16 %v3862, %v3858
        %v4159 = vpack.c.b16 %v3867, %v3863
        %v4160 = vpack.c.b16 %v3868, %v3864
        %v4161 = vpack.c.b16 %v3869, %v3865
        %v4162 = vpack.c.b16 %v3870, %v3866
        %v4163 = vpack.c.b16 %v3875, %v3871
        %v4164 = vpack.c.b16 %v3876, %v3872
        %v4165 = vpack.c.b16 %v3877, %v3873
        %v4166 = vpack.c.b16 %v3878, %v3874
        %v4167 = vpack.c.b16 %v3883, %v3879
        %v4168 = vpack.c.b16 %v3884, %v3880
        %v4169 = vpack.c.b16 %v3885, %v3881
        %v4170 = vpack.c.b16 %v3886, %v3882
        %v4171 = vpack.c.b16 %v3891, %v3887
        %v4172 = vpack.c.b16 %v3892, %v3888
        %v4173 = vpack.c.b16 %v3893, %v3889
        %v4174 = vpack.c.b16 %v3894, %v3890
        %v4175 = vpack.c.b16 %v3899, %v3895
        %v4176 = vpack.c.b16 %v3900, %v3896
        %v4177 = vpack.c.b16 %v3901, %v3897
        %v4178 = vpack.c.b16 %v3902, %v3898
        %v4179 = vpack.c.b16 %v3907, %v3903
        %v4180 = vpack.c.b16 %v3908, %v3904
        %v4181 = vpack.c.b16 %v3909, %v3905
        %v4182 = vpack.c.b16 %v3910, %v3906
        %v4183 = vpack.c.b16 %v3915, %v3911
        %v4184 = vpack.c.b16 %v3916, %v3912
        %v4185 = vpack.c.b16 %v3917, %v3913
        %v4186 = vpack.c.b16 %v3918, %v3914
        %v4187 = vpack.c.b16 %v3923, %v3919
        %v4188 = vpack.c.b16 %v3924, %v3920
        %v4189 = vpack.c.b16 %v3925, %v3921
        %v4190 = vpack.c.b16 %v3926, %v3922
        %v4191 = vpack.c.b16 %v3931, %v3927
        %v4192 = vpack.c.b16 %v3932, %v3928
        %v4193 = vpack.c.b16 %v3933, %v3929
        %v4194 = vpack.c.b16 %v3934, %v3930
        %v4195 = vpack.c.b16 %v3939, %v3935
        %v4196 = vpack.c.b16 %v3940, %v3936
        %v4197 = vpack.c.b16 %v3941, %v3937
        %v4198 = vpack.c.b16 %v3942, %v3938
        %4455 = vmatprep.subr.bf16.mxu0 %v3972
        %4456 = vmatpush1.bf16.msra.mxu0 %v3971
        %4457 = vmatprep.subr.bf16.mxu0 %v3968
        %4458 = vmatpush1.bf16.msra.mxu0 %v3967
        %4459 = vmatprep.subr.bf16.mxu0 %v3964
        %4460 = vmatpush1.bf16.msra.mxu0 %v3963
        %4461 = vmatprep.subr.bf16.mxu0 %v3960
        %4462 = vmatpush1.bf16.msra.mxu0 %v3959
        %4463 = vmatprep.subr.bf16.mxu0 %v3956
        %4464 = vmatpush1.bf16.msra.mxu0 %v3955
        %4465 = vmatprep.subr.bf16.mxu0 %v3952
        %4466 = vmatpush1.bf16.msra.mxu0 %v3951
        %4467 = vmatprep.subr.bf16.mxu0 %v3948
        %4468 = vmatpush1.bf16.msra.mxu0 %v3947
        %4469 = vmatprep.subr.bf16.mxu0 %v3944
        %4470 = vmatpush1.bf16.msra.mxu0 %v3943
        %4471 = vmatprep.subr.bf16.mxu0 %v4004
        %4472 = vmatpush2.bf16.msra.mxu0 %v4003
        %4473 = vmatprep.subr.bf16.mxu0 %v4000
        %4474 = vmatpush2.bf16.msra.mxu0 %v3999
        %4475 = vmatprep.subr.bf16.mxu0 %v3996
        %4476 = vmatpush2.bf16.msra.mxu0 %v3995
        %4477 = vmatprep.subr.bf16.mxu0 %v3992
        %4478 = vmatpush2.bf16.msra.mxu0 %v3991
        %4479 = vmatprep.subr.bf16.mxu0 %v3988
        %4480 = vmatpush2.bf16.msra.mxu0 %v3987
        %4481 = vmatprep.subr.bf16.mxu0 %v3984
        %4482 = vmatpush2.bf16.msra.mxu0 %v3983
        %4483 = vmatprep.subr.bf16.mxu0 %v3980
        %4484 = vmatpush2.bf16.msra.mxu0 %v3979
        %4485 = vmatprep.subr.bf16.mxu0 %v3976
        %4486 = vmatpush2.bf16.msra.mxu0 %v3975
        %4487 = vmatprep.mubr.bf16.mxu0 %v2890
        %4488 = vmatmul.mubr.bf16.gmra.mxu0 %v2889
        %v4489 = vpop.f32.mrf.mxu0
        %v4490 = vadd.f32 %v3158, %v4489
        %v4491 = vpop.f32.mrf.mxu0
        %v4492 = vadd.f32 %v3162, %v4491
        %v4493 = vpop.f32.mrf.mxu0
        %v4494 = vpop.f32.mrf.mxu0
        %4495 = vdwg.mxu0
        %4496 = vmatprep.subr.bf16.mxu0 %v4036
        %4497 = vmatpush1.bf16.msra.mxu0 %v4035
        %4498 = vmatprep.subr.bf16.mxu0 %v4032
        %4499 = vmatpush1.bf16.msra.mxu0 %v4031
        %4500 = vmatprep.subr.bf16.mxu0 %v4028
        %4501 = vmatpush1.bf16.msra.mxu0 %v4027
        %4502 = vmatprep.subr.bf16.mxu0 %v4024
        %4503 = vmatpush1.bf16.msra.mxu0 %v4023
        %4504 = vmatprep.subr.bf16.mxu0 %v4020
        %4505 = vmatpush1.bf16.msra.mxu0 %v4019
        %4506 = vmatprep.subr.bf16.mxu0 %v4016
        %4507 = vmatpush1.bf16.msra.mxu0 %v4015
        %4508 = vmatprep.subr.bf16.mxu0 %v4012
        %4509 = vmatpush1.bf16.msra.mxu0 %v4011
        %4510 = vmatprep.subr.bf16.mxu0 %v4008
        %4511 = vmatpush1.bf16.msra.mxu0 %v4007
        %4512 = vmatprep.subr.bf16.mxu0 %v4068
        %4513 = vmatpush2.bf16.msra.mxu0 %v4067
        %4514 = vmatprep.subr.bf16.mxu0 %v4064
        %4515 = vmatpush2.bf16.msra.mxu0 %v4063
        %4516 = vmatprep.subr.bf16.mxu0 %v4060
        %4517 = vmatpush2.bf16.msra.mxu0 %v4059
        %4518 = vmatprep.subr.bf16.mxu0 %v4056
        %4519 = vmatpush2.bf16.msra.mxu0 %v4055
        %4520 = vmatprep.subr.bf16.mxu0 %v4052
        %4521 = vmatpush2.bf16.msra.mxu0 %v4051
        %4522 = vmatprep.subr.bf16.mxu0 %v4048
        %4523 = vmatpush2.bf16.msra.mxu0 %v4047
        %4524 = vmatprep.subr.bf16.mxu0 %v4044
        %4525 = vmatpush2.bf16.msra.mxu0 %v4043
        %4526 = vmatprep.subr.bf16.mxu0 %v4040
        %4527 = vmatpush2.bf16.msra.mxu0 %v4039
        %4528 = vmatprep.mubr.bf16.mxu0 %v2892
        %4529 = vmatmul.mubr.bf16.gmra.mxu0 %v2891
        %v4530 = vpop.f32.mrf.mxu0
        %v4531 = vadd.f32 %v4490, %v4530
        %v4532 = vpop.f32.mrf.mxu0
        %v4533 = vadd.f32 %v4492, %v4532
        %v4534 = vpop.f32.mrf.mxu0
        %v4535 = vpop.f32.mrf.mxu0
        %4536 = vdwg.mxu0
        %4537 = vmatprep.subr.bf16.mxu0 %v4100
        %4538 = vmatpush1.bf16.msra.mxu0 %v4099
        %4539 = vmatprep.subr.bf16.mxu0 %v4096
        %4540 = vmatpush1.bf16.msra.mxu0 %v4095
        %4541 = vmatprep.subr.bf16.mxu0 %v4092
        %4542 = vmatpush1.bf16.msra.mxu0 %v4091
        %4543 = vmatprep.subr.bf16.mxu0 %v4088
        %4544 = vmatpush1.bf16.msra.mxu0 %v4087
        %4545 = vmatprep.subr.bf16.mxu0 %v4084
        %4546 = vmatpush1.bf16.msra.mxu0 %v4083
        %4547 = vmatprep.subr.bf16.mxu0 %v4080
        %4548 = vmatpush1.bf16.msra.mxu0 %v4079
        %4549 = vmatprep.subr.bf16.mxu0 %v4076
        %4550 = vmatpush1.bf16.msra.mxu0 %v4075
        %4551 = vmatprep.subr.bf16.mxu0 %v4072
        %4552 = vmatpush1.bf16.msra.mxu0 %v4071
        %4553 = vmatprep.subr.bf16.mxu0 %v4132
        %4554 = vmatpush2.bf16.msra.mxu0 %v4131
        %4555 = vmatprep.subr.bf16.mxu0 %v4128
        %4556 = vmatpush2.bf16.msra.mxu0 %v4127
        %4557 = vmatprep.subr.bf16.mxu0 %v4124
        %4558 = vmatpush2.bf16.msra.mxu0 %v4123
        %4559 = vmatprep.subr.bf16.mxu0 %v4120
        %4560 = vmatpush2.bf16.msra.mxu0 %v4119
        %4561 = vmatprep.subr.bf16.mxu0 %v4116
        %4562 = vmatpush2.bf16.msra.mxu0 %v4115
        %4563 = vmatprep.subr.bf16.mxu0 %v4112
        %4564 = vmatpush2.bf16.msra.mxu0 %v4111
        %4565 = vmatprep.subr.bf16.mxu0 %v4108
        %4566 = vmatpush2.bf16.msra.mxu0 %v4107
        %4567 = vmatprep.subr.bf16.mxu0 %v4104
        %4568 = vmatpush2.bf16.msra.mxu0 %v4103
        %4569 = vmatprep.mubr.bf16.mxu0 %v2894
        %4570 = vmatmul.mubr.bf16.gmra.mxu0 %v2893
        %v4571 = vpop.f32.mrf.mxu0
        %v4572 = vadd.f32 %v4531, %v4571
        %v4573 = vpop.f32.mrf.mxu0
        %v4574 = vadd.f32 %v4533, %v4573
        %v4575 = vpop.f32.mrf.mxu0
        %v4576 = vpop.f32.mrf.mxu0
        %4577 = vdwg.mxu0
        %4578 = vmatprep.subr.bf16.mxu0 %v4164
        %4579 = vmatpush1.bf16.msra.mxu0 %v4163
        %4580 = vmatprep.subr.bf16.mxu0 %v4160
        %4581 = vmatpush1.bf16.msra.mxu0 %v4159
        %4582 = vmatprep.subr.bf16.mxu0 %v4156
        %4583 = vmatpush1.bf16.msra.mxu0 %v4155
        %4584 = vmatprep.subr.bf16.mxu0 %v4152
        %4585 = vmatpush1.bf16.msra.mxu0 %v4151
        %4586 = vmatprep.subr.bf16.mxu0 %v4148
        %4587 = vmatpush1.bf16.msra.mxu0 %v4147
        %4588 = vmatprep.subr.bf16.mxu0 %v4144
        %4589 = vmatpush1.bf16.msra.mxu0 %v4143
        %4590 = vmatprep.subr.bf16.mxu0 %v4140
        %4591 = vmatpush1.bf16.msra.mxu0 %v4139
        %4592 = vmatprep.subr.bf16.mxu0 %v4136
        %4593 = vmatpush1.bf16.msra.mxu0 %v4135
        %4594 = vmatprep.subr.bf16.mxu0 %v4196
        %4595 = vmatpush2.bf16.msra.mxu0 %v4195
        %4596 = vmatprep.subr.bf16.mxu0 %v4192
        %4597 = vmatpush2.bf16.msra.mxu0 %v4191
        %4598 = vmatprep.subr.bf16.mxu0 %v4188
        %4599 = vmatpush2.bf16.msra.mxu0 %v4187
        %4600 = vmatprep.subr.bf16.mxu0 %v4184
        %4601 = vmatpush2.bf16.msra.mxu0 %v4183
        %4602 = vmatprep.subr.bf16.mxu0 %v4180
        %4603 = vmatpush2.bf16.msra.mxu0 %v4179
        %4604 = vmatprep.subr.bf16.mxu0 %v4176
        %4605 = vmatpush2.bf16.msra.mxu0 %v4175
        %4606 = vmatprep.subr.bf16.mxu0 %v4172
        %4607 = vmatpush2.bf16.msra.mxu0 %v4171
        %4608 = vmatprep.subr.bf16.mxu0 %v4168
        %4609 = vmatpush2.bf16.msra.mxu0 %v4167
        %4610 = vmatprep.mubr.bf16.mxu0 %v2896
        %4611 = vmatmul.mubr.bf16.gmra.mxu0 %v2895
        %v4612 = vpop.f32.mrf.mxu0
        %v4613 = vadd.f32 %v4572, %v4612
        %v4614 = vpop.f32.mrf.mxu0
        %v4615 = vadd.f32 %v4574, %v4614
        %v4616 = vpop.f32.mrf.mxu0
        %v4617 = vpop.f32.mrf.mxu0
        %4618 = vdwg.mxu0
        %4619 = vmatprep.subr.bf16.mxu0 %v3974
        %4620 = vmatpush1.bf16.msra.mxu0 %v3973
        %4621 = vmatprep.subr.bf16.mxu0 %v3970
        %4622 = vmatpush1.bf16.msra.mxu0 %v3969
        %4623 = vmatprep.subr.bf16.mxu0 %v3966
        %4624 = vmatpush1.bf16.msra.mxu0 %v3965
        %4625 = vmatprep.subr.bf16.mxu0 %v3962
        %4626 = vmatpush1.bf16.msra.mxu0 %v3961
        %4627 = vmatprep.subr.bf16.mxu0 %v3958
        %4628 = vmatpush1.bf16.msra.mxu0 %v3957
        %4629 = vmatprep.subr.bf16.mxu0 %v3954
        %4630 = vmatpush1.bf16.msra.mxu0 %v3953
        %4631 = vmatprep.subr.bf16.mxu0 %v3950
        %4632 = vmatpush1.bf16.msra.mxu0 %v3949
        %4633 = vmatprep.subr.bf16.mxu0 %v3946
        %4634 = vmatpush1.bf16.msra.mxu0 %v3945
        %4635 = vmatprep.subr.bf16.mxu0 %v4006
        %4636 = vmatpush2.bf16.msra.mxu0 %v4005
        %4637 = vmatprep.subr.bf16.mxu0 %v4002
        %4638 = vmatpush2.bf16.msra.mxu0 %v4001
        %4639 = vmatprep.subr.bf16.mxu0 %v3998
        %4640 = vmatpush2.bf16.msra.mxu0 %v3997
        %4641 = vmatprep.subr.bf16.mxu0 %v3994
        %4642 = vmatpush2.bf16.msra.mxu0 %v3993
        %4643 = vmatprep.subr.bf16.mxu0 %v3990
        %4644 = vmatpush2.bf16.msra.mxu0 %v3989
        %4645 = vmatprep.subr.bf16.mxu0 %v3986
        %4646 = vmatpush2.bf16.msra.mxu0 %v3985
        %4647 = vmatprep.subr.bf16.mxu0 %v3982
        %4648 = vmatpush2.bf16.msra.mxu0 %v3981
        %4649 = vmatprep.subr.bf16.mxu0 %v3978
        %4650 = vmatpush2.bf16.msra.mxu0 %v3977
        %4651 = vmatprep.mubr.bf16.mxu0 %v2890
        %4652 = vmatmul.mubr.bf16.gmra.mxu0 %v2889
        %v4653 = vpop.f32.mrf.mxu0
        %v4654 = vadd.f32 %v3166, %v4653
        %v4655 = vpop.f32.mrf.mxu0
        %v4656 = vadd.f32 %v3170, %v4655
        %v4657 = vpop.f32.mrf.mxu0
        %v4658 = vpop.f32.mrf.mxu0
        %4659 = vdwg.mxu0
        %4660 = vmatprep.subr.bf16.mxu0 %v4038
        %4661 = vmatpush1.bf16.msra.mxu0 %v4037
        %4662 = vmatprep.subr.bf16.mxu0 %v4034
        %4663 = vmatpush1.bf16.msra.mxu0 %v4033
        %4664 = vmatprep.subr.bf16.mxu0 %v4030
        %4665 = vmatpush1.bf16.msra.mxu0 %v4029
        %4666 = vmatprep.subr.bf16.mxu0 %v4026
        %4667 = vmatpush1.bf16.msra.mxu0 %v4025
        %4668 = vmatprep.subr.bf16.mxu0 %v4022
        %4669 = vmatpush1.bf16.msra.mxu0 %v4021
        %4670 = vmatprep.subr.bf16.mxu0 %v4018
        %4671 = vmatpush1.bf16.msra.mxu0 %v4017
        %4672 = vmatprep.subr.bf16.mxu0 %v4014
        %4673 = vmatpush1.bf16.msra.mxu0 %v4013
        %4674 = vmatprep.subr.bf16.mxu0 %v4010
        %4675 = vmatpush1.bf16.msra.mxu0 %v4009
        %4676 = vmatprep.subr.bf16.mxu0 %v4070
        %4677 = vmatpush2.bf16.msra.mxu0 %v4069
        %4678 = vmatprep.subr.bf16.mxu0 %v4066
        %4679 = vmatpush2.bf16.msra.mxu0 %v4065
        %4680 = vmatprep.subr.bf16.mxu0 %v4062
        %4681 = vmatpush2.bf16.msra.mxu0 %v4061
        %4682 = vmatprep.subr.bf16.mxu0 %v4058
        %4683 = vmatpush2.bf16.msra.mxu0 %v4057
        %4684 = vmatprep.subr.bf16.mxu0 %v4054
        %4685 = vmatpush2.bf16.msra.mxu0 %v4053
        %4686 = vmatprep.subr.bf16.mxu0 %v4050
        %4687 = vmatpush2.bf16.msra.mxu0 %v4049
        %4688 = vmatprep.subr.bf16.mxu0 %v4046
        %4689 = vmatpush2.bf16.msra.mxu0 %v4045
        %4690 = vmatprep.subr.bf16.mxu0 %v4042
        %4691 = vmatpush2.bf16.msra.mxu0 %v4041
        %4692 = vmatprep.mubr.bf16.mxu0 %v2892
        %4693 = vmatmul.mubr.bf16.gmra.mxu0 %v2891
        %v4694 = vpop.f32.mrf.mxu0
        %v4695 = vadd.f32 %v4654, %v4694
        %v4696 = vpop.f32.mrf.mxu0
        %v4697 = vadd.f32 %v4656, %v4696
        %v4698 = vpop.f32.mrf.mxu0
        %v4699 = vpop.f32.mrf.mxu0
        %4700 = vdwg.mxu0
        %4701 = vmatprep.subr.bf16.mxu0 %v4102
        %4702 = vmatpush1.bf16.msra.mxu0 %v4101
        %4703 = vmatprep.subr.bf16.mxu0 %v4098
        %4704 = vmatpush1.bf16.msra.mxu0 %v4097
        %4705 = vmatprep.subr.bf16.mxu0 %v4094
        %4706 = vmatpush1.bf16.msra.mxu0 %v4093
        %4707 = vmatprep.subr.bf16.mxu0 %v4090
        %4708 = vmatpush1.bf16.msra.mxu0 %v4089
        %4709 = vmatprep.subr.bf16.mxu0 %v4086
        %4710 = vmatpush1.bf16.msra.mxu0 %v4085
        %4711 = vmatprep.subr.bf16.mxu0 %v4082
        %4712 = vmatpush1.bf16.msra.mxu0 %v4081
        %4713 = vmatprep.subr.bf16.mxu0 %v4078
        %4714 = vmatpush1.bf16.msra.mxu0 %v4077
        %4715 = vmatprep.subr.bf16.mxu0 %v4074
        %4716 = vmatpush1.bf16.msra.mxu0 %v4073
        %4717 = vmatprep.subr.bf16.mxu0 %v4134
        %4718 = vmatpush2.bf16.msra.mxu0 %v4133
        %4719 = vmatprep.subr.bf16.mxu0 %v4130
        %4720 = vmatpush2.bf16.msra.mxu0 %v4129
        %4721 = vmatprep.subr.bf16.mxu0 %v4126
        %4722 = vmatpush2.bf16.msra.mxu0 %v4125
        %4723 = vmatprep.subr.bf16.mxu0 %v4122
        %4724 = vmatpush2.bf16.msra.mxu0 %v4121
        %4725 = vmatprep.subr.bf16.mxu0 %v4118
        %4726 = vmatpush2.bf16.msra.mxu0 %v4117
        %4727 = vmatprep.subr.bf16.mxu0 %v4114
        %4728 = vmatpush2.bf16.msra.mxu0 %v4113
        %4729 = vmatprep.subr.bf16.mxu0 %v4110
        %4730 = vmatpush2.bf16.msra.mxu0 %v4109
        %4731 = vmatprep.subr.bf16.mxu0 %v4106
        %4732 = vmatpush2.bf16.msra.mxu0 %v4105
        %4733 = vmatprep.mubr.bf16.mxu0 %v2894
        %4734 = vmatmul.mubr.bf16.gmra.mxu0 %v2893
        %v4735 = vpop.f32.mrf.mxu0
        %v4736 = vadd.f32 %v4695, %v4735
        %v4737 = vpop.f32.mrf.mxu0
        %v4738 = vadd.f32 %v4697, %v4737
        %v4739 = vpop.f32.mrf.mxu0
        %v4740 = vpop.f32.mrf.mxu0
        %4741 = vdwg.mxu0
        %4742 = vmatprep.subr.bf16.mxu0 %v4166
        %4743 = vmatpush1.bf16.msra.mxu0 %v4165
        %4744 = vmatprep.subr.bf16.mxu0 %v4162
        %4745 = vmatpush1.bf16.msra.mxu0 %v4161
        %4746 = vmatprep.subr.bf16.mxu0 %v4158
        %4747 = vmatpush1.bf16.msra.mxu0 %v4157
        %4748 = vmatprep.subr.bf16.mxu0 %v4154
        %4749 = vmatpush1.bf16.msra.mxu0 %v4153
        %4750 = vmatprep.subr.bf16.mxu0 %v4150
        %4751 = vmatpush1.bf16.msra.mxu0 %v4149
        %4752 = vmatprep.subr.bf16.mxu0 %v4146
        %4753 = vmatpush1.bf16.msra.mxu0 %v4145
        %4754 = vmatprep.subr.bf16.mxu0 %v4142
        %4755 = vmatpush1.bf16.msra.mxu0 %v4141
        %4756 = vmatprep.subr.bf16.mxu0 %v4138
        %4757 = vmatpush1.bf16.msra.mxu0 %v4137
        %4758 = vmatprep.subr.bf16.mxu0 %v4198
        %4759 = vmatpush2.bf16.msra.mxu0 %v4197
        %4760 = vmatprep.subr.bf16.mxu0 %v4194
        %4761 = vmatpush2.bf16.msra.mxu0 %v4193
        %4762 = vmatprep.subr.bf16.mxu0 %v4190
        %4763 = vmatpush2.bf16.msra.mxu0 %v4189
        %4764 = vmatprep.subr.bf16.mxu0 %v4186
        %4765 = vmatpush2.bf16.msra.mxu0 %v4185
        %4766 = vmatprep.subr.bf16.mxu0 %v4182
        %4767 = vmatpush2.bf16.msra.mxu0 %v4181
        %4768 = vmatprep.subr.bf16.mxu0 %v4178
        %4769 = vmatpush2.bf16.msra.mxu0 %v4177
        %4770 = vmatprep.subr.bf16.mxu0 %v4174
        %4771 = vmatpush2.bf16.msra.mxu0 %v4173
        %4772 = vmatprep.subr.bf16.mxu0 %v4170
        %4773 = vmatpush2.bf16.msra.mxu0 %v4169
        %4774 = vmatprep.mubr.bf16.mxu0 %v2896
        %4775 = vmatmul.mubr.bf16.gmra.mxu0 %v2895
        %v4776 = vpop.f32.mrf.mxu0
        %v4777 = vadd.f32 %v4736, %v4776
        %v4778 = vpop.f32.mrf.mxu0
        %v4779 = vadd.f32 %v4738, %v4778
        %v4780 = vpop.f32.mrf.mxu0
        %v4781 = vpop.f32.mrf.mxu0
        %4782 = vdwg.mxu0
        %vm4783 = vcmp.ge.f32.partialorder %v4613, 0.0
        %vm4784 = vcmp.ge.f32.partialorder %v4615, 0.0
        %vm4785 = vcmp.ge.f32.partialorder %v4777, 0.0
        %vm4786 = vcmp.ge.f32.partialorder %v4779, 0.0
        %v4787 = vmul.f32 %v4613, 0.2
        %v4788 = vmul.f32 %v4615, 0.2
        %v4789 = vmul.f32 %v4777, 0.2
        %v4790 = vmul.f32 %v4779, 0.2
        %v4791 = vsel %vm4783, %v4613, %v4787
        %v4792 = vsel %vm4784, %v4615, %v4788
        %v4793 = vsel %vm4785, %v4777, %v4789
        %v4794 = vsel %vm4786, %v4779, %v4790
        %v4795 = vpack.c.bf16 %v4791, %v4791
        %v4796 = vpack.c.bf16 %v4792, %v4792
        %v4797 = vpack.c.bf16 %v4793, %v4793
        %v4798 = vpack.c.bf16 %v4794, %v4794
        %v4799 = vld [vmem:[#allocation10] sm:$0xff]
        %v4800 = vld [vmem:[#allocation10 + $0x8] sm:$0xff]
        %v4801 = vld [vmem:[#allocation10 + $0x10] sm:$0xff]
        %v4802 = vld [vmem:[#allocation10 + $0x18] sm:$0xff]
        %v4803 = vld [vmem:[#allocation10 + $0x20] sm:$0xff]
        %v4804 = vld [vmem:[#allocation10 + $0x28] sm:$0xff]
        %v4805 = vld [vmem:[#allocation10 + $0x30] sm:$0xff]
        %v4806 = vld [vmem:[#allocation10 + $0x38] sm:$0xff]
        %v4807 = vld [vmem:[#allocation10 + $0x40] sm:$0xff]
        %v4808 = vld [vmem:[#allocation10 + $0x48] sm:$0xff]
        %v4809 = vld [vmem:[#allocation10 + $0x50] sm:$0xff]
        %v4810 = vld [vmem:[#allocation10 + $0x58] sm:$0xff]
        %v4811 = vld [vmem:[#allocation10 + $0x60] sm:$0xff]
        %v4812 = vld [vmem:[#allocation10 + $0x68] sm:$0xff]
        %v4813 = vld [vmem:[#allocation10 + $0x70] sm:$0xff]
        %v4814 = vld [vmem:[#allocation10 + $0x78] sm:$0xff]
        %v4815 = vld [vmem:[#allocation10 + $0x80] sm:$0xff]
        %v4816 = vld [vmem:[#allocation10 + $0x88] sm:$0xff]
        %v4817 = vld [vmem:[#allocation10 + $0x90] sm:$0xff]
        %v4818 = vld [vmem:[#allocation10 + $0x98] sm:$0xff]
        %v4819 = vld [vmem:[#allocation10 + $0xa0] sm:$0xff]
        %v4820 = vld [vmem:[#allocation10 + $0xa8] sm:$0xff]
        %v4821 = vld [vmem:[#allocation10 + $0xb0] sm:$0xff]
        %v4822 = vld [vmem:[#allocation10 + $0xb8] sm:$0xff]
        %v4823 = vld [vmem:[#allocation10 + $0xc0] sm:$0xff]
        %v4824 = vld [vmem:[#allocation10 + $0xc8] sm:$0xff]
        %v4825 = vld [vmem:[#allocation10 + $0xd0] sm:$0xff]
        %v4826 = vld [vmem:[#allocation10 + $0xd8] sm:$0xff]
        %v4827 = vld [vmem:[#allocation10 + $0xe0] sm:$0xff]
        %v4828 = vld [vmem:[#allocation10 + $0xe8] sm:$0xff]
        %v4829 = vld [vmem:[#allocation10 + $0xf0] sm:$0xff]
        %v4830 = vld [vmem:[#allocation10 + $0xf8] sm:$0xff]
        %v4831 = vld [vmem:[#allocation10 + $0x100] sm:$0xff]
        %v4832 = vld [vmem:[#allocation10 + $0x108] sm:$0xff]
        %v4833 = vld [vmem:[#allocation10 + $0x110] sm:$0xff]
        %v4834 = vld [vmem:[#allocation10 + $0x118] sm:$0xff]
        %v4835 = vld [vmem:[#allocation10 + $0x120] sm:$0xff]
        %v4836 = vld [vmem:[#allocation10 + $0x128] sm:$0xff]
        %v4837 = vld [vmem:[#allocation10 + $0x130] sm:$0xff]
        %v4838 = vld [vmem:[#allocation10 + $0x138] sm:$0xff]
        %v4839 = vld [vmem:[#allocation10 + $0x140] sm:$0xff]
        %v4840 = vld [vmem:[#allocation10 + $0x148] sm:$0xff]
        %v4841 = vld [vmem:[#allocation10 + $0x150] sm:$0xff]
        %v4842 = vld [vmem:[#allocation10 + $0x158] sm:$0xff]
        %v4843 = vld [vmem:[#allocation10 + $0x160] sm:$0xff]
        %v4844 = vld [vmem:[#allocation10 + $0x168] sm:$0xff]
        %v4845 = vld [vmem:[#allocation10 + $0x170] sm:$0xff]
        %v4846 = vld [vmem:[#allocation10 + $0x178] sm:$0xff]
        %v4847 = vld [vmem:[#allocation10 + $0x180] sm:$0xff]
        %v4848 = vld [vmem:[#allocation10 + $0x188] sm:$0xff]
        %v4849 = vld [vmem:[#allocation10 + $0x190] sm:$0xff]
        %v4850 = vld [vmem:[#allocation10 + $0x198] sm:$0xff]
        %v4851 = vld [vmem:[#allocation10 + $0x1a0] sm:$0xff]
        %v4852 = vld [vmem:[#allocation10 + $0x1a8] sm:$0xff]
        %v4853 = vld [vmem:[#allocation10 + $0x1b0] sm:$0xff]
        %v4854 = vld [vmem:[#allocation10 + $0x1b8] sm:$0xff]
        %v4855 = vld [vmem:[#allocation10 + $0x1c0] sm:$0xff]
        %v4856 = vld [vmem:[#allocation10 + $0x1c8] sm:$0xff]
        %v4857 = vld [vmem:[#allocation10 + $0x1d0] sm:$0xff]
        %v4858 = vld [vmem:[#allocation10 + $0x1d8] sm:$0xff]
        %v4859 = vld [vmem:[#allocation10 + $0x1e0] sm:$0xff]
        %v4860 = vld [vmem:[#allocation10 + $0x1e8] sm:$0xff]
        %v4861 = vld [vmem:[#allocation10 + $0x1f0] sm:$0xff]
        %v4862 = vld [vmem:[#allocation10 + $0x1f8] sm:$0xff]
        %v4863 = vld [vmem:[%s10] sm:$0x3]
        %v4865 = vlaneseq
        %v4866 = vshrl.u32 %v4865, 7
        %v4867 = vsub.s32 0, %v4866
        %v4868 = vrot.slane %v4863, %v4867
        %v4869 = vlaneseq
        %v4870 = vshrl.u32 %v4869, 7
        %v4871 = vsub.s32 1, %v4870
        %v4872 = vrot.slane %v4863, %v4871
        %v4939 = vunpack.c.l.b16 %v4799
        %v4940 = vunpack.c.h.b16 %v4799
        %v4941 = vunpack.c.l.b16 %v4800
        %v4942 = vunpack.c.h.b16 %v4800
        %v4943 = vunpack.c.l.b16 %v4801
        %v4944 = vunpack.c.h.b16 %v4801
        %v4945 = vunpack.c.l.b16 %v4802
        %v4946 = vunpack.c.h.b16 %v4802
        %v4947 = vunpack.c.l.b16 %v4803
        %v4948 = vunpack.c.h.b16 %v4803
        %v4949 = vunpack.c.l.b16 %v4804
        %v4950 = vunpack.c.h.b16 %v4804
        %v4951 = vunpack.c.l.b16 %v4805
        %v4952 = vunpack.c.h.b16 %v4805
        %v4953 = vunpack.c.l.b16 %v4806
        %v4954 = vunpack.c.h.b16 %v4806
        %v4955 = vunpack.c.l.b16 %v4807
        %v4956 = vunpack.c.h.b16 %v4807
        %v4957 = vunpack.c.l.b16 %v4808
        %v4958 = vunpack.c.h.b16 %v4808
        %v4959 = vunpack.c.l.b16 %v4809
        %v4960 = vunpack.c.h.b16 %v4809
        %v4961 = vunpack.c.l.b16 %v4810
        %v4962 = vunpack.c.h.b16 %v4810
        %v4963 = vunpack.c.l.b16 %v4811
        %v4964 = vunpack.c.h.b16 %v4811
        %v4965 = vunpack.c.l.b16 %v4812
        %v4966 = vunpack.c.h.b16 %v4812
        %v4967 = vunpack.c.l.b16 %v4813
        %v4968 = vunpack.c.h.b16 %v4813
        %v4969 = vunpack.c.l.b16 %v4814
        %v4970 = vunpack.c.h.b16 %v4814
        %v4971 = vunpack.c.l.b16 %v4815
        %v4972 = vunpack.c.h.b16 %v4815
        %v4973 = vunpack.c.l.b16 %v4816
        %v4974 = vunpack.c.h.b16 %v4816
        %v4975 = vunpack.c.l.b16 %v4817
        %v4976 = vunpack.c.h.b16 %v4817
        %v4977 = vunpack.c.l.b16 %v4818
        %v4978 = vunpack.c.h.b16 %v4818
        %v4979 = vunpack.c.l.b16 %v4819
        %v4980 = vunpack.c.h.b16 %v4819
        %v4981 = vunpack.c.l.b16 %v4820
        %v4982 = vunpack.c.h.b16 %v4820
        %v4983 = vunpack.c.l.b16 %v4821
        %v4984 = vunpack.c.h.b16 %v4821
        %v4985 = vunpack.c.l.b16 %v4822
        %v4986 = vunpack.c.h.b16 %v4822
        %v4987 = vunpack.c.l.b16 %v4823
        %v4988 = vunpack.c.h.b16 %v4823
        %v4989 = vunpack.c.l.b16 %v4824
        %v4990 = vunpack.c.h.b16 %v4824
        %v4991 = vunpack.c.l.b16 %v4825
        %v4992 = vunpack.c.h.b16 %v4825
        %v4993 = vunpack.c.l.b16 %v4826
        %v4994 = vunpack.c.h.b16 %v4826
        %v4995 = vunpack.c.l.b16 %v4827
        %v4996 = vunpack.c.h.b16 %v4827
        %v4997 = vunpack.c.l.b16 %v4828
        %v4998 = vunpack.c.h.b16 %v4828
        %v4999 = vunpack.c.l.b16 %v4829
        %v5000 = vunpack.c.h.b16 %v4829
        %v5001 = vunpack.c.l.b16 %v4830
        %v5002 = vunpack.c.h.b16 %v4830
        %v5003 = vunpack.c.l.b16 %v4831
        %v5004 = vunpack.c.h.b16 %v4831
        %v5005 = vunpack.c.l.b16 %v4832
        %v5006 = vunpack.c.h.b16 %v4832
        %v5007 = vunpack.c.l.b16 %v4833
        %v5008 = vunpack.c.h.b16 %v4833
        %v5009 = vunpack.c.l.b16 %v4834
        %v5010 = vunpack.c.h.b16 %v4834
        %v5011 = vunpack.c.l.b16 %v4835
        %v5012 = vunpack.c.h.b16 %v4835
        %v5013 = vunpack.c.l.b16 %v4836
        %v5014 = vunpack.c.h.b16 %v4836
        %v5015 = vunpack.c.l.b16 %v4837
        %v5016 = vunpack.c.h.b16 %v4837
        %v5017 = vunpack.c.l.b16 %v4838
        %v5018 = vunpack.c.h.b16 %v4838
        %v5019 = vunpack.c.l.b16 %v4839
        %v5020 = vunpack.c.h.b16 %v4839
        %v5021 = vunpack.c.l.b16 %v4840
        %v5022 = vunpack.c.h.b16 %v4840
        %v5023 = vunpack.c.l.b16 %v4841
        %v5024 = vunpack.c.h.b16 %v4841
        %v5025 = vunpack.c.l.b16 %v4842
        %v5026 = vunpack.c.h.b16 %v4842
        %v5027 = vunpack.c.l.b16 %v4843
        %v5028 = vunpack.c.h.b16 %v4843
        %v5029 = vunpack.c.l.b16 %v4844
        %v5030 = vunpack.c.h.b16 %v4844
        %v5031 = vunpack.c.l.b16 %v4845
        %v5032 = vunpack.c.h.b16 %v4845
        %v5033 = vunpack.c.l.b16 %v4846
        %v5034 = vunpack.c.h.b16 %v4846
        %v5035 = vunpack.c.l.b16 %v4847
        %v5036 = vunpack.c.h.b16 %v4847
        %v5037 = vunpack.c.l.b16 %v4848
        %v5038 = vunpack.c.h.b16 %v4848
        %v5039 = vunpack.c.l.b16 %v4849
        %v5040 = vunpack.c.h.b16 %v4849
        %v5041 = vunpack.c.l.b16 %v4850
        %v5042 = vunpack.c.h.b16 %v4850
        %v5043 = vunpack.c.l.b16 %v4851
        %v5044 = vunpack.c.h.b16 %v4851
        %v5045 = vunpack.c.l.b16 %v4852
        %v5046 = vunpack.c.h.b16 %v4852
        %v5047 = vunpack.c.l.b16 %v4853
        %v5048 = vunpack.c.h.b16 %v4853
        %v5049 = vunpack.c.l.b16 %v4854
        %v5050 = vunpack.c.h.b16 %v4854
        %v5051 = vunpack.c.l.b16 %v4855
        %v5052 = vunpack.c.h.b16 %v4855
        %v5053 = vunpack.c.l.b16 %v4856
        %v5054 = vunpack.c.h.b16 %v4856
        %v5055 = vunpack.c.l.b16 %v4857
        %v5056 = vunpack.c.h.b16 %v4857
        %v5057 = vunpack.c.l.b16 %v4858
        %v5058 = vunpack.c.h.b16 %v4858
        %v5059 = vunpack.c.l.b16 %v4859
        %v5060 = vunpack.c.h.b16 %v4859
        %v5061 = vunpack.c.l.b16 %v4860
        %v5062 = vunpack.c.h.b16 %v4860
        %v5063 = vunpack.c.l.b16 %v4861
        %v5064 = vunpack.c.h.b16 %v4861
        %v5065 = vunpack.c.l.b16 %v4862
        %v5066 = vunpack.c.h.b16 %v4862
        %v5067 = vpack.c.b16 %v4941, %v4939
        %v5068 = vpack.c.b16 %v4942, %v4940
        %v5069 = vpack.c.b16 %v4945, %v4943
        %v5070 = vpack.c.b16 %v4946, %v4944
        %v5071 = vpack.c.b16 %v4949, %v4947
        %v5072 = vpack.c.b16 %v4950, %v4948
        %v5073 = vpack.c.b16 %v4953, %v4951
        %v5074 = vpack.c.b16 %v4954, %v4952
        %v5075 = vpack.c.b16 %v4957, %v4955
        %v5076 = vpack.c.b16 %v4958, %v4956
        %v5077 = vpack.c.b16 %v4961, %v4959
        %v5078 = vpack.c.b16 %v4962, %v4960
        %v5079 = vpack.c.b16 %v4965, %v4963
        %v5080 = vpack.c.b16 %v4966, %v4964
        %v5081 = vpack.c.b16 %v4969, %v4967
        %v5082 = vpack.c.b16 %v4970, %v4968
        %v5083 = vpack.c.b16 %v4973, %v4971
        %v5084 = vpack.c.b16 %v4974, %v4972
        %v5085 = vpack.c.b16 %v4977, %v4975
        %v5086 = vpack.c.b16 %v4978, %v4976
        %v5087 = vpack.c.b16 %v4981, %v4979
        %v5088 = vpack.c.b16 %v4982, %v4980
        %v5089 = vpack.c.b16 %v4985, %v4983
        %v5090 = vpack.c.b16 %v4986, %v4984
        %v5091 = vpack.c.b16 %v4989, %v4987
        %v5092 = vpack.c.b16 %v4990, %v4988
        %v5093 = vpack.c.b16 %v4993, %v4991
        %v5094 = vpack.c.b16 %v4994, %v4992
        %v5095 = vpack.c.b16 %v4997, %v4995
        %v5096 = vpack.c.b16 %v4998, %v4996
        %v5097 = vpack.c.b16 %v5001, %v4999
        %v5098 = vpack.c.b16 %v5002, %v5000
        %v5099 = vpack.c.b16 %v5005, %v5003
        %v5100 = vpack.c.b16 %v5006, %v5004
        %v5101 = vpack.c.b16 %v5009, %v5007
        %v5102 = vpack.c.b16 %v5010, %v5008
        %v5103 = vpack.c.b16 %v5013, %v5011
        %v5104 = vpack.c.b16 %v5014, %v5012
        %v5105 = vpack.c.b16 %v5017, %v5015
        %v5106 = vpack.c.b16 %v5018, %v5016
        %v5107 = vpack.c.b16 %v5021, %v5019
        %v5108 = vpack.c.b16 %v5022, %v5020
        %v5109 = vpack.c.b16 %v5025, %v5023
        %v5110 = vpack.c.b16 %v5026, %v5024
        %v5111 = vpack.c.b16 %v5029, %v5027
        %v5112 = vpack.c.b16 %v5030, %v5028
        %v5113 = vpack.c.b16 %v5033, %v5031
        %v5114 = vpack.c.b16 %v5034, %v5032
        %v5115 = vpack.c.b16 %v5037, %v5035
        %v5116 = vpack.c.b16 %v5038, %v5036
        %v5117 = vpack.c.b16 %v5041, %v5039
        %v5118 = vpack.c.b16 %v5042, %v5040
        %v5119 = vpack.c.b16 %v5045, %v5043
        %v5120 = vpack.c.b16 %v5046, %v5044
        %v5121 = vpack.c.b16 %v5049, %v5047
        %v5122 = vpack.c.b16 %v5050, %v5048
        %v5123 = vpack.c.b16 %v5053, %v5051
        %v5124 = vpack.c.b16 %v5054, %v5052
        %v5125 = vpack.c.b16 %v5057, %v5055
        %v5126 = vpack.c.b16 %v5058, %v5056
        %v5127 = vpack.c.b16 %v5061, %v5059
        %v5128 = vpack.c.b16 %v5062, %v5060
        %v5129 = vpack.c.b16 %v5065, %v5063
        %v5130 = vpack.c.b16 %v5066, %v5064
        %5195 = vmatprep.subr.bf16.mxu0 %v5082
        %5196 = vmatpush1.bf16.msra.mxu0 %v5081
        %5197 = vmatprep.subr.bf16.mxu0 %v5080
        %5198 = vmatpush1.bf16.msra.mxu0 %v5079
        %5199 = vmatprep.subr.bf16.mxu0 %v5078
        %5200 = vmatpush1.bf16.msra.mxu0 %v5077
        %5201 = vmatprep.subr.bf16.mxu0 %v5076
        %5202 = vmatpush1.bf16.msra.mxu0 %v5075
        %5203 = vmatprep.subr.bf16.mxu0 %v5074
        %5204 = vmatpush1.bf16.msra.mxu0 %v5073
        %5205 = vmatprep.subr.bf16.mxu0 %v5072
        %5206 = vmatpush1.bf16.msra.mxu0 %v5071
        %5207 = vmatprep.subr.bf16.mxu0 %v5070
        %5208 = vmatpush1.bf16.msra.mxu0 %v5069
        %5209 = vmatprep.subr.bf16.mxu0 %v5068
        %5210 = vmatpush1.bf16.msra.mxu0 %v5067
        %5211 = vmatprep.subr.bf16.mxu0 %v5098
        %5212 = vmatpush2.bf16.msra.mxu0 %v5097
        %5213 = vmatprep.subr.bf16.mxu0 %v5096
        %5214 = vmatpush2.bf16.msra.mxu0 %v5095
        %5215 = vmatprep.subr.bf16.mxu0 %v5094
        %5216 = vmatpush2.bf16.msra.mxu0 %v5093
        %5217 = vmatprep.subr.bf16.mxu0 %v5092
        %5218 = vmatpush2.bf16.msra.mxu0 %v5091
        %5219 = vmatprep.subr.bf16.mxu0 %v5090
        %5220 = vmatpush2.bf16.msra.mxu0 %v5089
        %5221 = vmatprep.subr.bf16.mxu0 %v5088
        %5222 = vmatpush2.bf16.msra.mxu0 %v5087
        %5223 = vmatprep.subr.bf16.mxu0 %v5086
        %5224 = vmatpush2.bf16.msra.mxu0 %v5085
        %5225 = vmatprep.subr.bf16.mxu0 %v5084
        %5226 = vmatpush2.bf16.msra.mxu0 %v5083
        %5227 = vmatprep.mubr.bf16.mxu0 %v4796
        %5228 = vmatmul.mubr.bf16.gmra.mxu0 %v4795
        %v5229 = vpop.f32.mrf.mxu0
        %v5230 = vadd.f32 %v4868, %v5229
        %v5231 = vpop.f32.mrf.mxu0
        %v5232 = vadd.f32 %v4872, %v5231
        %v5233 = vpop.f32.mrf.mxu0
        %v5234 = vpop.f32.mrf.mxu0
        %5235 = vdwg.mxu0
        %5236 = vmatprep.subr.bf16.mxu0 %v5114
        %5237 = vmatpush1.bf16.msra.mxu0 %v5113
        %5238 = vmatprep.subr.bf16.mxu0 %v5112
        %5239 = vmatpush1.bf16.msra.mxu0 %v5111
        %5240 = vmatprep.subr.bf16.mxu0 %v5110
        %5241 = vmatpush1.bf16.msra.mxu0 %v5109
        %5242 = vmatprep.subr.bf16.mxu0 %v5108
        %5243 = vmatpush1.bf16.msra.mxu0 %v5107
        %5244 = vmatprep.subr.bf16.mxu0 %v5106
        %5245 = vmatpush1.bf16.msra.mxu0 %v5105
        %5246 = vmatprep.subr.bf16.mxu0 %v5104
        %5247 = vmatpush1.bf16.msra.mxu0 %v5103
        %5248 = vmatprep.subr.bf16.mxu0 %v5102
        %5249 = vmatpush1.bf16.msra.mxu0 %v5101
        %5250 = vmatprep.subr.bf16.mxu0 %v5100
        %5251 = vmatpush1.bf16.msra.mxu0 %v5099
        %5252 = vmatprep.subr.bf16.mxu0 %v5130
        %5253 = vmatpush2.bf16.msra.mxu0 %v5129
        %5254 = vmatprep.subr.bf16.mxu0 %v5128
        %5255 = vmatpush2.bf16.msra.mxu0 %v5127
        %5256 = vmatprep.subr.bf16.mxu0 %v5126
        %5257 = vmatpush2.bf16.msra.mxu0 %v5125
        %5258 = vmatprep.subr.bf16.mxu0 %v5124
        %5259 = vmatpush2.bf16.msra.mxu0 %v5123
        %5260 = vmatprep.subr.bf16.mxu0 %v5122
        %5261 = vmatpush2.bf16.msra.mxu0 %v5121
        %5262 = vmatprep.subr.bf16.mxu0 %v5120
        %5263 = vmatpush2.bf16.msra.mxu0 %v5119
        %5264 = vmatprep.subr.bf16.mxu0 %v5118
        %5265 = vmatpush2.bf16.msra.mxu0 %v5117
        %5266 = vmatprep.subr.bf16.mxu0 %v5116
        %5267 = vmatpush2.bf16.msra.mxu0 %v5115
        %5268 = vmatprep.mubr.bf16.mxu0 %v4798
        %5269 = vmatmul.mubr.bf16.gmra.mxu0 %v4797
        %v5270 = vpop.f32.mrf.mxu0
        %v5271 = vadd.f32 %v5230, %v5270
        %v5272 = vpop.f32.mrf.mxu0
        %v5273 = vadd.f32 %v5232, %v5272
        %v5274 = vpop.f32.mrf.mxu0
        %v5275 = vpop.f32.mrf.mxu0
        %5276 = vdwg.mxu0
        %vm5277 = vcmp.ge.f32.partialorder %v5271, 0.0
        %vm5278 = vcmp.ge.f32.partialorder %v5273, 0.0
        %v5279 = vmul.f32 %v5271, 0.2
        %v5280 = vmul.f32 %v5273, 0.2
        %v5281 = vsel %vm5277, %v5271, %v5279
        %v5282 = vsel %vm5278, %v5273, %v5280
        %v5283 = vld [vmem:[%s11] sm:$0xff]
        %v5284 = vld [vmem:[%s11 + $0x8] sm:$0xff]
        %v5285 = vld [vmem:[%s11 + $0x10] sm:$0xff]
        %v5286 = vld [vmem:[%s11 + $0x18] sm:$0xff]
        %v5287 = vld [vmem:[%s11 + $0x20] sm:$0xff]
        %v5288 = vld [vmem:[%s11 + $0x28] sm:$0xff]
        %v5289 = vld [vmem:[%s11 + $0x30] sm:$0xff]
        %v5290 = vld [vmem:[%s11 + $0x38] sm:$0xff]
        %v5291 = vld [vmem:[%s11 + $0x40] sm:$0xff]
        %v5292 = vld [vmem:[%s11 + $0x48] sm:$0xff]
        %v5293 = vld [vmem:[%s11 + $0x50] sm:$0xff]
        %v5294 = vld [vmem:[%s11 + $0x58] sm:$0xff]
        %v5295 = vld [vmem:[%s11 + $0x60] sm:$0xff]
        %v5296 = vld [vmem:[%s11 + $0x68] sm:$0xff]
        %v5297 = vld [vmem:[%s11 + $0x70] sm:$0xff]
        %v5298 = vld [vmem:[%s11 + $0x78] sm:$0xff]
        %v5299 = vld [vmem:[%s11 + $0x80] sm:$0xff]
        %v5300 = vld [vmem:[%s11 + $0x88] sm:$0xff]
        %v5301 = vld [vmem:[%s11 + $0x90] sm:$0xff]
        %v5302 = vld [vmem:[%s11 + $0x98] sm:$0xff]
        %v5303 = vld [vmem:[%s11 + $0xa0] sm:$0xff]
        %v5304 = vld [vmem:[%s11 + $0xa8] sm:$0xff]
        %v5305 = vld [vmem:[%s11 + $0xb0] sm:$0xff]
        %v5306 = vld [vmem:[%s11 + $0xb8] sm:$0xff]
        %v5307 = vld [vmem:[%s11 + $0xc0] sm:$0xff]
        %v5308 = vld [vmem:[%s11 + $0xc8] sm:$0xff]
        %v5309 = vld [vmem:[%s11 + $0xd0] sm:$0xff]
        %v5310 = vld [vmem:[%s11 + $0xd8] sm:$0xff]
        %v5311 = vld [vmem:[%s11 + $0xe0] sm:$0xff]
        %v5312 = vld [vmem:[%s11 + $0xe8] sm:$0xff]
        %v5313 = vld [vmem:[%s11 + $0xf0] sm:$0xff]
        %v5314 = vld [vmem:[%s11 + $0xf8] sm:$0xff]
        %v5315 = vld [vmem:[%s12] sm:$0x1]
        %v5317 = vlaneseq
        %v5318 = vshrl.u32 %v5317, 7
        %v5319 = vsub.s32 0, %v5318
        %v5320 = vrot.slane %v5315, %v5319
        %5322 = vmatprep.subr.mxu0 0.0
        %5323 = vmatpush1.msra.mxu0 %v5298
        %5324 = vmatprep.subr.mxu0 0.0
        %5325 = vmatpush1.msra.mxu0 %v5297
        %5326 = vmatprep.subr.mxu0 0.0
        %5327 = vmatpush1.msra.mxu0 %v5296
        %5328 = vmatprep.subr.mxu0 0.0
        %5329 = vmatpush1.msra.mxu0 %v5295
        %5330 = vmatprep.subr.mxu0 0.0
        %5331 = vmatpush1.msra.mxu0 %v5294
        %5332 = vmatprep.subr.mxu0 0.0
        %5333 = vmatpush1.msra.mxu0 %v5293
        %5334 = vmatprep.subr.mxu0 0.0
        %5335 = vmatpush1.msra.mxu0 %v5292
        %5336 = vmatprep.subr.mxu0 0.0
        %5337 = vmatpush1.msra.mxu0 %v5291
        %5338 = vmatprep.subr.mxu0 0.0
        %5339 = vmatpush1.msra.mxu0 %v5290
        %5340 = vmatprep.subr.mxu0 0.0
        %5341 = vmatpush1.msra.mxu0 %v5289
        %5342 = vmatprep.subr.mxu0 0.0
        %5343 = vmatpush1.msra.mxu0 %v5288
        %5344 = vmatprep.subr.mxu0 0.0
        %5345 = vmatpush1.msra.mxu0 %v5287
        %5346 = vmatprep.subr.mxu0 0.0
        %5347 = vmatpush1.msra.mxu0 %v5286
        %5348 = vmatprep.subr.mxu0 0.0
        %5349 = vmatpush1.msra.mxu0 %v5285
        %5350 = vmatprep.subr.mxu0 0.0
        %5351 = vmatpush1.msra.mxu0 %v5284
        %5352 = vmatprep.subr.mxu0 0.0
        %5353 = vmatpush1.msra.mxu0 %v5283
        %5354 = vmatprep.subr.mxu0 0.0
        %5355 = vmatpush2.msra.mxu0 %v5314
        %5356 = vmatprep.subr.mxu0 0.0
        %5357 = vmatpush2.msra.mxu0 %v5313
        %5358 = vmatprep.subr.mxu0 0.0
        %5359 = vmatpush2.msra.mxu0 %v5312
        %5360 = vmatprep.subr.mxu0 0.0
        %5361 = vmatpush2.msra.mxu0 %v5311
        %5362 = vmatprep.subr.mxu0 0.0
        %5363 = vmatpush2.msra.mxu0 %v5310
        %5364 = vmatprep.subr.mxu0 0.0
        %5365 = vmatpush2.msra.mxu0 %v5309
        %5366 = vmatprep.subr.mxu0 0.0
        %5367 = vmatpush2.msra.mxu0 %v5308
        %5368 = vmatprep.subr.mxu0 0.0
        %5369 = vmatpush2.msra.mxu0 %v5307
        %5370 = vmatprep.subr.mxu0 0.0
        %5371 = vmatpush2.msra.mxu0 %v5306
        %5372 = vmatprep.subr.mxu0 0.0
        %5373 = vmatpush2.msra.mxu0 %v5305
        %5374 = vmatprep.subr.mxu0 0.0
        %5375 = vmatpush2.msra.mxu0 %v5304
        %5376 = vmatprep.subr.mxu0 0.0
        %5377 = vmatpush2.msra.mxu0 %v5303
        %5378 = vmatprep.subr.mxu0 0.0
        %5379 = vmatpush2.msra.mxu0 %v5302
        %5380 = vmatprep.subr.mxu0 0.0
        %5381 = vmatpush2.msra.mxu0 %v5301
        %5382 = vmatprep.subr.mxu0 0.0
        %5383 = vmatpush2.msra.mxu0 %v5300
        %5384 = vmatprep.subr.mxu0 0.0
        %5385 = vmatpush2.msra.mxu0 %v5299
        %5386 = vmatprep.mubr.f32.mxu0 %v5282
        %5387 = vmatmul.mubr.f32.gmra.mxu0 %v5281
        %v5388 = vpop.f32.mrf.mxu0
        %v5389 = vadd.f32 %v5320, %v5388
        %v5390 = vpop.f32.mrf.mxu0
        %5391 = vdwg.mxu0
        %vm5392 = vcmask 130048
        %5393 = vst.msk [vmem:[%s730] sm:$0xff] %vm5392, %v5389
        %vm5394 = vcmask 64512
        %v5396 = vsel %vm5394, %v848, 0
        %v5399 = vsel %vm5394, %v849, 0
        %v5402 = vsel %vm5394, %v850, 0
        %v5405 = vsel %vm5394, %v851, 0
        %v5408 = vsel %vm5394, %v852, 0
        %v5411 = vsel %vm5394, %v853, 0
        %v5414 = vsel %vm5394, %v854, 0
        %v5417 = vsel %vm5394, %v855, 0
        %v5420 = vsel %vm5394, %v856, 0
        %v5423 = vsel %vm5394, %v857, 0
        %v5426 = vsel %vm5394, %v858, 0
        %v5429 = vsel %vm5394, %v859, 0
        %v5432 = vsel %vm5394, %v860, 0
        %v5435 = vsel %vm5394, %v861, 0
        %v5438 = vsel %vm5394, %v862, 0
        %v5441 = vsel %vm5394, %v863, 0
        %5443 = vmatprep.subr.mxu0 0.0
        %5444 = vmatpush1.msra.mxu0 0.0
        %5445 = vmatprep.subr.mxu0 0.0
        %5446 = vmatpush1.msra.mxu0 0.0
        %5447 = vmatprep.subr.mxu0 0.0
        %5448 = vmatpush1.msra.mxu0 0.0
        %5449 = vmatprep.subr.mxu0 0.0
        %5450 = vmatpush1.msra.mxu0 0.0
        %5451 = vmatprep.subr.mxu0 0.0
        %5452 = vmatpush1.msra.mxu0 0.0
        %5453 = vmatprep.subr.mxu0 0.0
        %5454 = vmatpush1.msra.mxu0 0.0
        %5455 = vmatprep.subr.mxu0 0.0
        %5456 = vmatpush1.msra.mxu0 0.0
        %5457 = vmatprep.subr.mxu0 0.0
        %5458 = vmatpush1.msra.mxu0 0.0
        %5459 = vmatprep.subr.mxu0 0.0
        %5460 = vmatpush1.msra.mxu0 0.0
        %5461 = vmatprep.subr.mxu0 0.0
        %5462 = vmatpush1.msra.mxu0 0.0
        %5463 = vmatprep.subr.mxu0 0.0
        %5464 = vmatpush1.msra.mxu0 0.0
        %5465 = vmatprep.subr.mxu0 0.0
        %5466 = vmatpush1.msra.mxu0 0.0
        %5467 = vmatprep.subr.mxu0 0.0
        %5468 = vmatpush1.msra.mxu0 0.0
        %5469 = vmatprep.subr.mxu0 0.0
        %5470 = vmatpush1.msra.mxu0 0.0
        %5471 = vmatprep.subr.mxu0 0.0
        %5472 = vmatpush1.msra.mxu0 0.0
        %5473 = vmatprep.subr.mxu0 0.0
        %5474 = vmatpush1.msra.mxu0 %v5389
        %5475 = vmatprep.subr.mxu0 0.0
        %5476 = vmatpush2.msra.mxu0 0.0
        %5477 = vmatprep.subr.mxu0 0.0
        %5478 = vmatpush2.msra.mxu0 0.0
        %5479 = vmatprep.subr.mxu0 0.0
        %5480 = vmatpush2.msra.mxu0 0.0
        %5481 = vmatprep.subr.mxu0 0.0
        %5482 = vmatpush2.msra.mxu0 0.0
        %5483 = vmatprep.subr.mxu0 0.0
        %5484 = vmatpush2.msra.mxu0 0.0
        %5485 = vmatprep.subr.mxu0 0.0
        %5486 = vmatpush2.msra.mxu0 0.0
        %5487 = vmatprep.subr.mxu0 0.0
        %5488 = vmatpush2.msra.mxu0 0.0
        %5489 = vmatprep.subr.mxu0 0.0
        %5490 = vmatpush2.msra.mxu0 0.0
        %5491 = vmatprep.subr.mxu0 0.0
        %5492 = vmatpush2.msra.mxu0 0.0
        %5493 = vmatprep.subr.mxu0 0.0
        %5494 = vmatpush2.msra.mxu0 0.0
        %5495 = vmatprep.subr.mxu0 0.0
        %5496 = vmatpush2.msra.mxu0 0.0
        %5497 = vmatprep.subr.mxu0 0.0
        %5498 = vmatpush2.msra.mxu0 0.0
        %5499 = vmatprep.subr.mxu0 0.0
        %5500 = vmatpush2.msra.mxu0 0.0
        %5501 = vmatprep.subr.mxu0 0.0
        %5502 = vmatpush2.msra.mxu0 0.0
        %5503 = vmatprep.subr.mxu0 0.0
        %5504 = vmatpush2.msra.mxu0 0.0
        %5505 = vmatprep.subr.mxu0 0.0
        %5506 = vmatpush2.msra.mxu0 0.0
        %5507 = vmatprep.mubr.f32.mxu0 0.0
        %5508 = vmatmul.mubr.f32.gmra.mxu0 %v5396
        %v5509 = vpop.f32.mrf.mxu0
        %v5510 = vadd.f32 0.0, %v5509
        %v5511 = vpop.f32.mrf.mxu0
        %5512 = vmatprep.mubr.f32.mxu0 0.0
        %5513 = vmatmul.mubr.f32.gmra.mxu0 %v5399
        %v5514 = vpop.f32.mrf.mxu0
        %v5515 = vadd.f32 0.0, %v5514
        %v5516 = vpop.f32.mrf.mxu0
        %5517 = vmatprep.mubr.f32.mxu0 0.0
        %5518 = vmatmul.mubr.f32.gmra.mxu0 %v5402
        %v5519 = vpop.f32.mrf.mxu0
        %v5520 = vadd.f32 0.0, %v5519
        %v5521 = vpop.f32.mrf.mxu0
        %5522 = vmatprep.mubr.f32.mxu0 0.0
        %5523 = vmatmul.mubr.f32.gmra.mxu0 %v5405
        %v5524 = vpop.f32.mrf.mxu0
        %v5525 = vadd.f32 0.0, %v5524
        %v5526 = vpop.f32.mrf.mxu0
        %5527 = vmatprep.mubr.f32.mxu0 0.0
        %5528 = vmatmul.mubr.f32.gmra.mxu0 %v5408
        %v5529 = vpop.f32.mrf.mxu0
        %v5530 = vadd.f32 0.0, %v5529
        %v5531 = vpop.f32.mrf.mxu0
        %5532 = vmatprep.mubr.f32.mxu0 0.0
        %5533 = vmatmul.mubr.f32.gmra.mxu0 %v5411
        %v5534 = vpop.f32.mrf.mxu0
        %v5535 = vadd.f32 0.0, %v5534
        %v5536 = vpop.f32.mrf.mxu0
        %5537 = vmatprep.mubr.f32.mxu0 0.0
        %5538 = vmatmul.mubr.f32.gmra.mxu0 %v5414
        %v5539 = vpop.f32.mrf.mxu0
        %v5540 = vadd.f32 0.0, %v5539
        %v5541 = vpop.f32.mrf.mxu0
        %5542 = vmatprep.mubr.f32.mxu0 0.0
        %5543 = vmatmul.mubr.f32.gmra.mxu0 %v5417
        %v5544 = vpop.f32.mrf.mxu0
        %v5545 = vadd.f32 0.0, %v5544
        %v5546 = vpop.f32.mrf.mxu0
        %5547 = vmatprep.mubr.f32.mxu0 0.0
        %5548 = vmatmul.mubr.f32.gmra.mxu0 %v5420
        %v5549 = vpop.f32.mrf.mxu0
        %v5550 = vadd.f32 0.0, %v5549
        %v5551 = vpop.f32.mrf.mxu0
        %5552 = vmatprep.mubr.f32.mxu0 0.0
        %5553 = vmatmul.mubr.f32.gmra.mxu0 %v5423
        %v5554 = vpop.f32.mrf.mxu0
        %v5555 = vadd.f32 0.0, %v5554
        %v5556 = vpop.f32.mrf.mxu0
        %5557 = vmatprep.mubr.f32.mxu0 0.0
        %5558 = vmatmul.mubr.f32.gmra.mxu0 %v5426
        %v5559 = vpop.f32.mrf.mxu0
        %v5560 = vadd.f32 0.0, %v5559
        %v5561 = vpop.f32.mrf.mxu0
        %5562 = vmatprep.mubr.f32.mxu0 0.0
        %5563 = vmatmul.mubr.f32.gmra.mxu0 %v5429
        %v5564 = vpop.f32.mrf.mxu0
        %v5565 = vadd.f32 0.0, %v5564
        %v5566 = vpop.f32.mrf.mxu0
        %5567 = vmatprep.mubr.f32.mxu0 0.0
        %5568 = vmatmul.mubr.f32.gmra.mxu0 %v5432
        %v5569 = vpop.f32.mrf.mxu0
        %v5570 = vadd.f32 0.0, %v5569
        %v5571 = vpop.f32.mrf.mxu0
        %5572 = vmatprep.mubr.f32.mxu0 0.0
        %5573 = vmatmul.mubr.f32.gmra.mxu0 %v5435
        %v5574 = vpop.f32.mrf.mxu0
        %v5575 = vadd.f32 0.0, %v5574
        %v5576 = vpop.f32.mrf.mxu0
        %5577 = vmatprep.mubr.f32.mxu0 0.0
        %5578 = vmatmul.mubr.f32.gmra.mxu0 %v5438
        %v5579 = vpop.f32.mrf.mxu0
        %v5580 = vadd.f32 0.0, %v5579
        %v5581 = vpop.f32.mrf.mxu0
        %5582 = vmatprep.mubr.f32.mxu0 0.0
        %5583 = vmatmul.mubr.f32.gmra.mxu0 %v5441
        %v5584 = vpop.f32.mrf.mxu0
        %v5585 = vadd.f32 0.0, %v5584
        %v5586 = vpop.f32.mrf.mxu0
        %5587 = vdwg.mxu0
        %5588 = vset.pattern.permute.xlu0 0
        %5589 = vperm.xlu0 %5588, %v738
        %v5590 = vpop.permute.xlu0 %5589
        %5592 = vset.pattern.permute.xlu0 0
        %5593 = vperm.xlu0 %5592, %v739
        %v5594 = vpop.permute.xlu0 %5593
        %5596 = vset.pattern.permute.xlu0 0
        %5597 = vperm.xlu0 %5596, %v740
        %v5598 = vpop.permute.xlu0 %5597
        %5600 = vset.pattern.permute.xlu0 0
        %5601 = vperm.xlu0 %5600, %v741
        %v5602 = vpop.permute.xlu0 %5601
        %5604 = vset.pattern.permute.xlu0 0
        %5605 = vperm.xlu0 %5604, %v742
        %v5606 = vpop.permute.xlu0 %5605
        %5608 = vset.pattern.permute.xlu0 0
        %5609 = vperm.xlu0 %5608, %v743
        %v5610 = vpop.permute.xlu0 %5609
        %5612 = vset.pattern.permute.xlu0 0
        %5613 = vperm.xlu0 %5612, %v744
        %v5614 = vpop.permute.xlu0 %5613
        %5616 = vset.pattern.permute.xlu0 0
        %5617 = vperm.xlu0 %5616, %v745
        %v5618 = vpop.permute.xlu0 %5617
        %5620 = vset.pattern.permute.xlu0 0
        %5621 = vperm.xlu0 %5620, %v746
        %v5622 = vpop.permute.xlu0 %5621
        %5624 = vset.pattern.permute.xlu0 0
        %5625 = vperm.xlu0 %5624, %v747
        %v5626 = vpop.permute.xlu0 %5625
        %5628 = vset.pattern.permute.xlu0 0
        %5629 = vperm.xlu0 %5628, %v748
        %v5630 = vpop.permute.xlu0 %5629
        %5632 = vset.pattern.permute.xlu0 0
        %5633 = vperm.xlu0 %5632, %v749
        %v5634 = vpop.permute.xlu0 %5633
        %5636 = vset.pattern.permute.xlu0 0
        %5637 = vperm.xlu0 %5636, %v750
        %v5638 = vpop.permute.xlu0 %5637
        %5640 = vset.pattern.permute.xlu0 0
        %5641 = vperm.xlu0 %5640, %v751
        %v5642 = vpop.permute.xlu0 %5641
        %5644 = vset.pattern.permute.xlu0 0
        %5645 = vperm.xlu0 %5644, %v752
        %v5646 = vpop.permute.xlu0 %5645
        %5648 = vset.pattern.permute.xlu0 0
        %5649 = vperm.xlu0 %5648, %v753
        %v5650 = vpop.permute.xlu0 %5649
        %v5652 = vmul.f32 %v5590, %v5510
        %v5653 = vmul.f32 %v5594, %v5515
        %v5654 = vmul.f32 %v5598, %v5520
        %v5655 = vmul.f32 %v5602, %v5525
        %v5656 = vmul.f32 %v5606, %v5530
        %v5657 = vmul.f32 %v5610, %v5535
        %v5658 = vmul.f32 %v5614, %v5540
        %v5659 = vmul.f32 %v5618, %v5545
        %v5660 = vmul.f32 %v5622, %v5550
        %v5661 = vmul.f32 %v5626, %v5555
        %v5662 = vmul.f32 %v5630, %v5560
        %v5663 = vmul.f32 %v5634, %v5565
        %v5664 = vmul.f32 %v5638, %v5570
        %v5665 = vmul.f32 %v5642, %v5575
        %v5666 = vmul.f32 %v5646, %v5580
        %v5667 = vmul.f32 %v5650, %v5585
        %5668 = vset.pattern.permute.xlu0 1
        %5669 = vperm.xlu0 %5668, %v738
        %v5670 = vpop.permute.xlu0 %5669
        %5672 = vset.pattern.permute.xlu0 1
        %5673 = vperm.xlu0 %5672, %v739
        %v5674 = vpop.permute.xlu0 %5673
        %5676 = vset.pattern.permute.xlu0 1
        %5677 = vperm.xlu0 %5676, %v740
        %v5678 = vpop.permute.xlu0 %5677
        %5680 = vset.pattern.permute.xlu0 1
        %5681 = vperm.xlu0 %5680, %v741
        %v5682 = vpop.permute.xlu0 %5681
        %5684 = vset.pattern.permute.xlu0 1
        %5685 = vperm.xlu0 %5684, %v742
        %v5686 = vpop.permute.xlu0 %5685
        %5688 = vset.pattern.permute.xlu0 1
        %5689 = vperm.xlu0 %5688, %v743
        %v5690 = vpop.permute.xlu0 %5689
        %5692 = vset.pattern.permute.xlu0 1
        %5693 = vperm.xlu0 %5692, %v744
        %v5694 = vpop.permute.xlu0 %5693
        %5696 = vset.pattern.permute.xlu0 1
        %5697 = vperm.xlu0 %5696, %v745
        %v5698 = vpop.permute.xlu0 %5697
        %5700 = vset.pattern.permute.xlu0 1
        %5701 = vperm.xlu0 %5700, %v746
        %v5702 = vpop.permute.xlu0 %5701
        %5704 = vset.pattern.permute.xlu0 1
        %5705 = vperm.xlu0 %5704, %v747
        %v5706 = vpop.permute.xlu0 %5705
        %5708 = vset.pattern.permute.xlu0 1
        %5709 = vperm.xlu0 %5708, %v748
        %v5710 = vpop.permute.xlu0 %5709
        %5712 = vset.pattern.permute.xlu0 1
        %5713 = vperm.xlu0 %5712, %v749
        %v5714 = vpop.permute.xlu0 %5713
        %5716 = vset.pattern.permute.xlu0 1
        %5717 = vperm.xlu0 %5716, %v750
        %v5718 = vpop.permute.xlu0 %5717
        %5720 = vset.pattern.permute.xlu0 1
        %5721 = vperm.xlu0 %5720, %v751
        %v5722 = vpop.permute.xlu0 %5721
        %5724 = vset.pattern.permute.xlu0 1
        %5725 = vperm.xlu0 %5724, %v752
        %v5726 = vpop.permute.xlu0 %5725
        %5728 = vset.pattern.permute.xlu0 1
        %5729 = vperm.xlu0 %5728, %v753
        %v5730 = vpop.permute.xlu0 %5729
        %v5732 = vmul.f32 %v5670, %v5510
        %v5733 = vmul.f32 %v5674, %v5515
        %v5734 = vmul.f32 %v5678, %v5520
        %v5735 = vmul.f32 %v5682, %v5525
        %v5736 = vmul.f32 %v5686, %v5530
        %v5737 = vmul.f32 %v5690, %v5535
        %v5738 = vmul.f32 %v5694, %v5540
        %v5739 = vmul.f32 %v5698, %v5545
        %v5740 = vmul.f32 %v5702, %v5550
        %v5741 = vmul.f32 %v5706, %v5555
        %v5742 = vmul.f32 %v5710, %v5560
        %v5743 = vmul.f32 %v5714, %v5565
        %v5744 = vmul.f32 %v5718, %v5570
        %v5745 = vmul.f32 %v5722, %v5575
        %v5746 = vmul.f32 %v5726, %v5580
        %v5747 = vmul.f32 %v5730, %v5585
        %5764 = vrot.lane.b32.xlu0 %v5732, 124
        %v5765 = vpop.permute.xlu0 %5764
        %5766 = vrot.lane.b32.xlu0 %v5733, 124
        %v5767 = vpop.permute.xlu0 %5766
        %5768 = vrot.lane.b32.xlu0 %v5734, 124
        %v5769 = vpop.permute.xlu0 %5768
        %5770 = vrot.lane.b32.xlu0 %v5735, 124
        %v5771 = vpop.permute.xlu0 %5770
        %5772 = vrot.lane.b32.xlu0 %v5736, 124
        %v5773 = vpop.permute.xlu0 %5772
        %5774 = vrot.lane.b32.xlu0 %v5737, 124
        %v5775 = vpop.permute.xlu0 %5774
        %5776 = vrot.lane.b32.xlu0 %v5738, 124
        %v5777 = vpop.permute.xlu0 %5776
        %5778 = vrot.lane.b32.xlu0 %v5739, 124
        %v5779 = vpop.permute.xlu0 %5778
        %5780 = vrot.lane.b32.xlu0 %v5740, 124
        %v5781 = vpop.permute.xlu0 %5780
        %5782 = vrot.lane.b32.xlu0 %v5741, 124
        %v5783 = vpop.permute.xlu0 %5782
        %5784 = vrot.lane.b32.xlu0 %v5742, 124
        %v5785 = vpop.permute.xlu0 %5784
        %5786 = vrot.lane.b32.xlu0 %v5743, 124
        %v5787 = vpop.permute.xlu0 %5786
        %5788 = vrot.lane.b32.xlu0 %v5744, 124
        %v5789 = vpop.permute.xlu0 %5788
        %5790 = vrot.lane.b32.xlu0 %v5745, 124
        %v5791 = vpop.permute.xlu0 %5790
        %5792 = vrot.lane.b32.xlu0 %v5746, 124
        %v5793 = vpop.permute.xlu0 %5792
        %5794 = vrot.lane.b32.xlu0 %v5747, 124
        %v5795 = vpop.permute.xlu0 %5794
        %v5812 = vadd.f32 %v5652, %v5765
        %v5813 = vadd.f32 %v5653, %v5767
        %v5814 = vadd.f32 %v5654, %v5769
        %v5815 = vadd.f32 %v5655, %v5771
        %v5816 = vadd.f32 %v5656, %v5773
        %v5817 = vadd.f32 %v5657, %v5775
        %v5818 = vadd.f32 %v5658, %v5777
        %v5819 = vadd.f32 %v5659, %v5779
        %v5820 = vadd.f32 %v5660, %v5781
        %v5821 = vadd.f32 %v5661, %v5783
        %v5822 = vadd.f32 %v5662, %v5785
        %v5823 = vadd.f32 %v5663, %v5787
        %v5824 = vadd.f32 %v5664, %v5789
        %v5825 = vadd.f32 %v5665, %v5791
        %v5826 = vadd.f32 %v5666, %v5793
        %v5827 = vadd.f32 %v5667, %v5795
        %5828 = vset.pattern.permute.xlu0 2
        %5829 = vperm.xlu0 %5828, %v738
        %v5830 = vpop.permute.xlu0 %5829
        %5832 = vset.pattern.permute.xlu0 2
        %5833 = vperm.xlu0 %5832, %v739
        %v5834 = vpop.permute.xlu0 %5833
        %5836 = vset.pattern.permute.xlu0 2
        %5837 = vperm.xlu0 %5836, %v740
        %v5838 = vpop.permute.xlu0 %5837
        %5840 = vset.pattern.permute.xlu0 2
        %5841 = vperm.xlu0 %5840, %v741
        %v5842 = vpop.permute.xlu0 %5841
        %5844 = vset.pattern.permute.xlu0 2
        %5845 = vperm.xlu0 %5844, %v742
        %v5846 = vpop.permute.xlu0 %5845
        %5848 = vset.pattern.permute.xlu0 2
        %5849 = vperm.xlu0 %5848, %v743
        %v5850 = vpop.permute.xlu0 %5849
        %5852 = vset.pattern.permute.xlu0 2
        %5853 = vperm.xlu0 %5852, %v744
        %v5854 = vpop.permute.xlu0 %5853
        %5856 = vset.pattern.permute.xlu0 2
        %5857 = vperm.xlu0 %5856, %v745
        %v5858 = vpop.permute.xlu0 %5857
        %5860 = vset.pattern.permute.xlu0 2
        %5861 = vperm.xlu0 %5860, %v746
        %v5862 = vpop.permute.xlu0 %5861
        %5864 = vset.pattern.permute.xlu0 2
        %5865 = vperm.xlu0 %5864, %v747
        %v5866 = vpop.permute.xlu0 %5865
        %5868 = vset.pattern.permute.xlu0 2
        %5869 = vperm.xlu0 %5868, %v748
        %v5870 = vpop.permute.xlu0 %5869
        %5872 = vset.pattern.permute.xlu0 2
        %5873 = vperm.xlu0 %5872, %v749
        %v5874 = vpop.permute.xlu0 %5873
        %5876 = vset.pattern.permute.xlu0 2
        %5877 = vperm.xlu0 %5876, %v750
        %v5878 = vpop.permute.xlu0 %5877
        %5880 = vset.pattern.permute.xlu0 2
        %5881 = vperm.xlu0 %5880, %v751
        %v5882 = vpop.permute.xlu0 %5881
        %5884 = vset.pattern.permute.xlu0 2
        %5885 = vperm.xlu0 %5884, %v752
        %v5886 = vpop.permute.xlu0 %5885
        %5888 = vset.pattern.permute.xlu0 2
        %5889 = vperm.xlu0 %5888, %v753
        %v5890 = vpop.permute.xlu0 %5889
        %v5892 = vmul.f32 %v5830, %v5510
        %v5893 = vmul.f32 %v5834, %v5515
        %v5894 = vmul.f32 %v5838, %v5520
        %v5895 = vmul.f32 %v5842, %v5525
        %v5896 = vmul.f32 %v5846, %v5530
        %v5897 = vmul.f32 %v5850, %v5535
        %v5898 = vmul.f32 %v5854, %v5540
        %v5899 = vmul.f32 %v5858, %v5545
        %v5900 = vmul.f32 %v5862, %v5550
        %v5901 = vmul.f32 %v5866, %v5555
        %v5902 = vmul.f32 %v5870, %v5560
        %v5903 = vmul.f32 %v5874, %v5565
        %v5904 = vmul.f32 %v5878, %v5570
        %v5905 = vmul.f32 %v5882, %v5575
        %v5906 = vmul.f32 %v5886, %v5580
        %v5907 = vmul.f32 %v5890, %v5585
        %5924 = vrot.lane.b32.xlu0 %v5892, 120
        %v5925 = vpop.permute.xlu0 %5924
        %5926 = vrot.lane.b32.xlu0 %v5893, 120
        %v5927 = vpop.permute.xlu0 %5926
        %5928 = vrot.lane.b32.xlu0 %v5894, 120
        %v5929 = vpop.permute.xlu0 %5928
        %5930 = vrot.lane.b32.xlu0 %v5895, 120
        %v5931 = vpop.permute.xlu0 %5930
        %5932 = vrot.lane.b32.xlu0 %v5896, 120
        %v5933 = vpop.permute.xlu0 %5932
        %5934 = vrot.lane.b32.xlu0 %v5897, 120
        %v5935 = vpop.permute.xlu0 %5934
        %5936 = vrot.lane.b32.xlu0 %v5898, 120
        %v5937 = vpop.permute.xlu0 %5936
        %5938 = vrot.lane.b32.xlu0 %v5899, 120
        %v5939 = vpop.permute.xlu0 %5938
        %5940 = vrot.lane.b32.xlu0 %v5900, 120
        %v5941 = vpop.permute.xlu0 %5940
        %5942 = vrot.lane.b32.xlu0 %v5901, 120
        %v5943 = vpop.permute.xlu0 %5942
        %5944 = vrot.lane.b32.xlu0 %v5902, 120
        %v5945 = vpop.permute.xlu0 %5944
        %5946 = vrot.lane.b32.xlu0 %v5903, 120
        %v5947 = vpop.permute.xlu0 %5946
        %5948 = vrot.lane.b32.xlu0 %v5904, 120
        %v5949 = vpop.permute.xlu0 %5948
        %5950 = vrot.lane.b32.xlu0 %v5905, 120
        %v5951 = vpop.permute.xlu0 %5950
        %5952 = vrot.lane.b32.xlu0 %v5906, 120
        %v5953 = vpop.permute.xlu0 %5952
        %5954 = vrot.lane.b32.xlu0 %v5907, 120
        %v5955 = vpop.permute.xlu0 %5954
        %v5972 = vadd.f32 %v5812, %v5925
        %v5973 = vadd.f32 %v5813, %v5927
        %v5974 = vadd.f32 %v5814, %v5929
        %v5975 = vadd.f32 %v5815, %v5931
        %v5976 = vadd.f32 %v5816, %v5933
        %v5977 = vadd.f32 %v5817, %v5935
        %v5978 = vadd.f32 %v5818, %v5937
        %v5979 = vadd.f32 %v5819, %v5939
        %v5980 = vadd.f32 %v5820, %v5941
        %v5981 = vadd.f32 %v5821, %v5943
        %v5982 = vadd.f32 %v5822, %v5945
        %v5983 = vadd.f32 %v5823, %v5947
        %v5984 = vadd.f32 %v5824, %v5949
        %v5985 = vadd.f32 %v5825, %v5951
        %v5986 = vadd.f32 %v5826, %v5953
        %v5987 = vadd.f32 %v5827, %v5955
        %5988 = vset.pattern.permute.xlu0 3
        %5989 = vperm.xlu0 %5988, %v738
        %v5990 = vpop.permute.xlu0 %5989
        %5992 = vset.pattern.permute.xlu0 3
        %5993 = vperm.xlu0 %5992, %v739
        %v5994 = vpop.permute.xlu0 %5993
        %5996 = vset.pattern.permute.xlu0 3
        %5997 = vperm.xlu0 %5996, %v740
        %v5998 = vpop.permute.xlu0 %5997
        %6000 = vset.pattern.permute.xlu0 3
        %6001 = vperm.xlu0 %6000, %v741
        %v6002 = vpop.permute.xlu0 %6001
        %6004 = vset.pattern.permute.xlu0 3
        %6005 = vperm.xlu0 %6004, %v742
        %v6006 = vpop.permute.xlu0 %6005
        %6008 = vset.pattern.permute.xlu0 3
        %6009 = vperm.xlu0 %6008, %v743
        %v6010 = vpop.permute.xlu0 %6009
        %6012 = vset.pattern.permute.xlu0 3
        %6013 = vperm.xlu0 %6012, %v744
        %v6014 = vpop.permute.xlu0 %6013
        %6016 = vset.pattern.permute.xlu0 3
        %6017 = vperm.xlu0 %6016, %v745
        %v6018 = vpop.permute.xlu0 %6017
        %6020 = vset.pattern.permute.xlu0 3
        %6021 = vperm.xlu0 %6020, %v746
        %v6022 = vpop.permute.xlu0 %6021
        %6024 = vset.pattern.permute.xlu0 3
        %6025 = vperm.xlu0 %6024, %v747
        %v6026 = vpop.permute.xlu0 %6025
        %6028 = vset.pattern.permute.xlu0 3
        %6029 = vperm.xlu0 %6028, %v748
        %v6030 = vpop.permute.xlu0 %6029
        %6032 = vset.pattern.permute.xlu0 3
        %6033 = vperm.xlu0 %6032, %v749
        %v6034 = vpop.permute.xlu0 %6033
        %6036 = vset.pattern.permute.xlu0 3
        %6037 = vperm.xlu0 %6036, %v750
        %v6038 = vpop.permute.xlu0 %6037
        %6040 = vset.pattern.permute.xlu0 3
        %6041 = vperm.xlu0 %6040, %v751
        %v6042 = vpop.permute.xlu0 %6041
        %6044 = vset.pattern.permute.xlu0 3
        %6045 = vperm.xlu0 %6044, %v752
        %v6046 = vpop.permute.xlu0 %6045
        %6048 = vset.pattern.permute.xlu0 3
        %6049 = vperm.xlu0 %6048, %v753
        %v6050 = vpop.permute.xlu0 %6049
        %v6052 = vmul.f32 %v5990, %v5510
        %v6053 = vmul.f32 %v5994, %v5515
        %v6054 = vmul.f32 %v5998, %v5520
        %v6055 = vmul.f32 %v6002, %v5525
        %v6056 = vmul.f32 %v6006, %v5530
        %v6057 = vmul.f32 %v6010, %v5535
        %v6058 = vmul.f32 %v6014, %v5540
        %v6059 = vmul.f32 %v6018, %v5545
        %v6060 = vmul.f32 %v6022, %v5550
        %v6061 = vmul.f32 %v6026, %v5555
        %v6062 = vmul.f32 %v6030, %v5560
        %v6063 = vmul.f32 %v6034, %v5565
        %v6064 = vmul.f32 %v6038, %v5570
        %v6065 = vmul.f32 %v6042, %v5575
        %v6066 = vmul.f32 %v6046, %v5580
        %v6067 = vmul.f32 %v6050, %v5585
        %6084 = vrot.lane.b32.xlu0 %v6052, 116
        %v6085 = vpop.permute.xlu0 %6084
        %6086 = vrot.lane.b32.xlu0 %v6053, 116
        %v6087 = vpop.permute.xlu0 %6086
        %6088 = vrot.lane.b32.xlu0 %v6054, 116
        %v6089 = vpop.permute.xlu0 %6088
        %6090 = vrot.lane.b32.xlu0 %v6055, 116
        %v6091 = vpop.permute.xlu0 %6090
        %6092 = vrot.lane.b32.xlu0 %v6056, 116
        %v6093 = vpop.permute.xlu0 %6092
        %6094 = vrot.lane.b32.xlu0 %v6057, 116
        %v6095 = vpop.permute.xlu0 %6094
        %6096 = vrot.lane.b32.xlu0 %v6058, 116
        %v6097 = vpop.permute.xlu0 %6096
        %6098 = vrot.lane.b32.xlu0 %v6059, 116
        %v6099 = vpop.permute.xlu0 %6098
        %6100 = vrot.lane.b32.xlu0 %v6060, 116
        %v6101 = vpop.permute.xlu0 %6100
        %6102 = vrot.lane.b32.xlu0 %v6061, 116
        %v6103 = vpop.permute.xlu0 %6102
        %6104 = vrot.lane.b32.xlu0 %v6062, 116
        %v6105 = vpop.permute.xlu0 %6104
        %6106 = vrot.lane.b32.xlu0 %v6063, 116
        %v6107 = vpop.permute.xlu0 %6106
        %6108 = vrot.lane.b32.xlu0 %v6064, 116
        %v6109 = vpop.permute.xlu0 %6108
        %6110 = vrot.lane.b32.xlu0 %v6065, 116
        %v6111 = vpop.permute.xlu0 %6110
        %6112 = vrot.lane.b32.xlu0 %v6066, 116
        %v6113 = vpop.permute.xlu0 %6112
        %6114 = vrot.lane.b32.xlu0 %v6067, 116
        %v6115 = vpop.permute.xlu0 %6114
        %v6132 = vadd.f32 %v5972, %v6085
        %v6133 = vadd.f32 %v5973, %v6087
        %v6134 = vadd.f32 %v5974, %v6089
        %v6135 = vadd.f32 %v5975, %v6091
        %v6136 = vadd.f32 %v5976, %v6093
        %v6137 = vadd.f32 %v5977, %v6095
        %v6138 = vadd.f32 %v5978, %v6097
        %v6139 = vadd.f32 %v5979, %v6099
        %v6140 = vadd.f32 %v5980, %v6101
        %v6141 = vadd.f32 %v5981, %v6103
        %v6142 = vadd.f32 %v5982, %v6105
        %v6143 = vadd.f32 %v5983, %v6107
        %v6144 = vadd.f32 %v5984, %v6109
        %v6145 = vadd.f32 %v5985, %v6111
        %v6146 = vadd.f32 %v5986, %v6113
        %v6147 = vadd.f32 %v5987, %v6115
        %v6148 = vld [vmem:[%s13] sm:$0xf]
        %v6149 = vld [vmem:[%s14] sm:$0x1]
        %v6151 = vlaneseq
        %v6152 = vshrl.u32 %v6151, 7
        %v6153 = vsub.s32 0, %v6152
        %v6154 = vrot.slane %v6149, %v6153
        %v6157 = vsel %vm872, %v6132, 0
        %v6160 = vsel %vm872, %v6133, 0
        %v6163 = vsel %vm872, %v6134, 0
        %v6166 = vsel %vm872, %v6135, 0
        %v6169 = vsel %vm872, %v6136, 0
        %v6172 = vsel %vm872, %v6137, 0
        %v6175 = vsel %vm872, %v6138, 0
        %v6178 = vsel %vm872, %v6139, 0
        %v6181 = vsel %vm872, %v6140, 0
        %v6184 = vsel %vm872, %v6141, 0
        %v6187 = vsel %vm872, %v6142, 0
        %v6190 = vsel %vm872, %v6143, 0
        %v6193 = vsel %vm872, %v6144, 0
        %v6196 = vsel %vm872, %v6145, 0
        %v6199 = vsel %vm872, %v6146, 0
        %v6202 = vsel %vm872, %v6147, 0
        %v6205 = vsel %vm921, %v6148, 0
        %6207 = vmatprep.subr.mxu0 0.0
        %6208 = vmatpush1.msra.mxu0 0.0
        %6209 = vmatprep.subr.mxu0 0.0
        %6210 = vmatpush1.msra.mxu0 0.0
        %6211 = vmatprep.subr.mxu0 0.0
        %6212 = vmatpush1.msra.mxu0 0.0
        %6213 = vmatprep.subr.mxu0 0.0
        %6214 = vmatpush1.msra.mxu0 0.0
        %6215 = vmatprep.subr.mxu0 0.0
        %6216 = vmatpush1.msra.mxu0 0.0
        %6217 = vmatprep.subr.mxu0 0.0
        %6218 = vmatpush1.msra.mxu0 0.0
        %6219 = vmatprep.subr.mxu0 0.0
        %6220 = vmatpush1.msra.mxu0 0.0
        %6221 = vmatprep.subr.mxu0 0.0
        %6222 = vmatpush1.msra.mxu0 0.0
        %6223 = vmatprep.subr.mxu0 0.0
        %6224 = vmatpush1.msra.mxu0 0.0
        %6225 = vmatprep.subr.mxu0 0.0
        %6226 = vmatpush1.msra.mxu0 0.0
        %6227 = vmatprep.subr.mxu0 0.0
        %6228 = vmatpush1.msra.mxu0 0.0
        %6229 = vmatprep.subr.mxu0 0.0
        %6230 = vmatpush1.msra.mxu0 0.0
        %6231 = vmatprep.subr.mxu0 0.0
        %6232 = vmatpush1.msra.mxu0 0.0
        %6233 = vmatprep.subr.mxu0 0.0
        %6234 = vmatpush1.msra.mxu0 0.0
        %6235 = vmatprep.subr.mxu0 0.0
        %6236 = vmatpush1.msra.mxu0 0.0
        %6237 = vmatprep.subr.mxu0 0.0
        %6238 = vmatpush1.msra.mxu0 %v6205
        %6239 = vmatprep.subr.mxu0 0.0
        %6240 = vmatpush2.msra.mxu0 0.0
        %6241 = vmatprep.subr.mxu0 0.0
        %6242 = vmatpush2.msra.mxu0 0.0
        %6243 = vmatprep.subr.mxu0 0.0
        %6244 = vmatpush2.msra.mxu0 0.0
        %6245 = vmatprep.subr.mxu0 0.0
        %6246 = vmatpush2.msra.mxu0 0.0
        %6247 = vmatprep.subr.mxu0 0.0
        %6248 = vmatpush2.msra.mxu0 0.0
        %6249 = vmatprep.subr.mxu0 0.0
        %6250 = vmatpush2.msra.mxu0 0.0
        %6251 = vmatprep.subr.mxu0 0.0
        %6252 = vmatpush2.msra.mxu0 0.0
        %6253 = vmatprep.subr.mxu0 0.0
        %6254 = vmatpush2.msra.mxu0 0.0
        %6255 = vmatprep.subr.mxu0 0.0
        %6256 = vmatpush2.msra.mxu0 0.0
        %6257 = vmatprep.subr.mxu0 0.0
        %6258 = vmatpush2.msra.mxu0 0.0
        %6259 = vmatprep.subr.mxu0 0.0
        %6260 = vmatpush2.msra.mxu0 0.0
        %6261 = vmatprep.subr.mxu0 0.0
        %6262 = vmatpush2.msra.mxu0 0.0
        %6263 = vmatprep.subr.mxu0 0.0
        %6264 = vmatpush2.msra.mxu0 0.0
        %6265 = vmatprep.subr.mxu0 0.0
        %6266 = vmatpush2.msra.mxu0 0.0
        %6267 = vmatprep.subr.mxu0 0.0
        %6268 = vmatpush2.msra.mxu0 0.0
        %6269 = vmatprep.subr.mxu0 0.0
        %6270 = vmatpush2.msra.mxu0 0.0
        %6271 = vmatprep.mubr.f32.mxu0 0.0
        %6272 = vmatmul.mubr.f32.gmra.mxu0 %v6157
        %v6273 = vpop.f32.mrf.mxu0
        %v6274 = vadd.f32 %v6154, %v6273
        %v6275 = vpop.f32.mrf.mxu0
        %6276 = vmatprep.mubr.f32.mxu0 0.0
        %6277 = vmatmul.mubr.f32.gmra.mxu0 %v6160
        %v6278 = vpop.f32.mrf.mxu0
        %v6279 = vadd.f32 %v6154, %v6278
        %v6280 = vpop.f32.mrf.mxu0
        %6281 = vmatprep.mubr.f32.mxu0 0.0
        %6282 = vmatmul.mubr.f32.gmra.mxu0 %v6163
        %v6283 = vpop.f32.mrf.mxu0
        %v6284 = vadd.f32 %v6154, %v6283
        %v6285 = vpop.f32.mrf.mxu0
        %6286 = vmatprep.mubr.f32.mxu0 0.0
        %6287 = vmatmul.mubr.f32.gmra.mxu0 %v6166
        %v6288 = vpop.f32.mrf.mxu0
        %v6289 = vadd.f32 %v6154, %v6288
        %v6290 = vpop.f32.mrf.mxu0
        %6291 = vmatprep.mubr.f32.mxu0 0.0
        %6292 = vmatmul.mubr.f32.gmra.mxu0 %v6169
        %v6293 = vpop.f32.mrf.mxu0
        %v6294 = vadd.f32 %v6154, %v6293
        %v6295 = vpop.f32.mrf.mxu0
        %6296 = vmatprep.mubr.f32.mxu0 0.0
        %6297 = vmatmul.mubr.f32.gmra.mxu0 %v6172
        %v6298 = vpop.f32.mrf.mxu0
        %v6299 = vadd.f32 %v6154, %v6298
        %v6300 = vpop.f32.mrf.mxu0
        %6301 = vmatprep.mubr.f32.mxu0 0.0
        %6302 = vmatmul.mubr.f32.gmra.mxu0 %v6175
        %v6303 = vpop.f32.mrf.mxu0
        %v6304 = vadd.f32 %v6154, %v6303
        %v6305 = vpop.f32.mrf.mxu0
        %6306 = vmatprep.mubr.f32.mxu0 0.0
        %6307 = vmatmul.mubr.f32.gmra.mxu0 %v6178
        %v6308 = vpop.f32.mrf.mxu0
        %v6309 = vadd.f32 %v6154, %v6308
        %v6310 = vpop.f32.mrf.mxu0
        %6311 = vmatprep.mubr.f32.mxu0 0.0
        %6312 = vmatmul.mubr.f32.gmra.mxu0 %v6181
        %v6313 = vpop.f32.mrf.mxu0
        %v6314 = vadd.f32 %v6154, %v6313
        %v6315 = vpop.f32.mrf.mxu0
        %6316 = vmatprep.mubr.f32.mxu0 0.0
        %6317 = vmatmul.mubr.f32.gmra.mxu0 %v6184
        %v6318 = vpop.f32.mrf.mxu0
        %v6319 = vadd.f32 %v6154, %v6318
        %v6320 = vpop.f32.mrf.mxu0
        %6321 = vmatprep.mubr.f32.mxu0 0.0
        %6322 = vmatmul.mubr.f32.gmra.mxu0 %v6187
        %v6323 = vpop.f32.mrf.mxu0
        %v6324 = vadd.f32 %v6154, %v6323
        %v6325 = vpop.f32.mrf.mxu0
        %6326 = vmatprep.mubr.f32.mxu0 0.0
        %6327 = vmatmul.mubr.f32.gmra.mxu0 %v6190
        %v6328 = vpop.f32.mrf.mxu0
        %v6329 = vadd.f32 %v6154, %v6328
        %v6330 = vpop.f32.mrf.mxu0
        %6331 = vmatprep.mubr.f32.mxu0 0.0
        %6332 = vmatmul.mubr.f32.gmra.mxu0 %v6193
        %v6333 = vpop.f32.mrf.mxu0
        %v6334 = vadd.f32 %v6154, %v6333
        %v6335 = vpop.f32.mrf.mxu0
        %6336 = vmatprep.mubr.f32.mxu0 0.0
        %6337 = vmatmul.mubr.f32.gmra.mxu0 %v6196
        %v6338 = vpop.f32.mrf.mxu0
        %v6339 = vadd.f32 %v6154, %v6338
        %v6340 = vpop.f32.mrf.mxu0
        %6341 = vmatprep.mubr.f32.mxu0 0.0
        %6342 = vmatmul.mubr.f32.gmra.mxu0 %v6199
        %v6343 = vpop.f32.mrf.mxu0
        %v6344 = vadd.f32 %v6154, %v6343
        %v6345 = vpop.f32.mrf.mxu0
        %6346 = vmatprep.mubr.f32.mxu0 0.0
        %6347 = vmatmul.mubr.f32.gmra.mxu0 %v6202
        %v6348 = vpop.f32.mrf.mxu0
        %v6349 = vadd.f32 %v6154, %v6348
        %v6350 = vpop.f32.mrf.mxu0
        %6351 = vdwg.mxu0
        %vm6352 = vcmp.ge.f32.partialorder %v6274, 0.0
        %vm6353 = vcmp.ge.f32.partialorder %v6279, 0.0
        %vm6354 = vcmp.ge.f32.partialorder %v6284, 0.0
        %vm6355 = vcmp.ge.f32.partialorder %v6289, 0.0
        %vm6356 = vcmp.ge.f32.partialorder %v6294, 0.0
        %vm6357 = vcmp.ge.f32.partialorder %v6299, 0.0
        %vm6358 = vcmp.ge.f32.partialorder %v6304, 0.0
        %vm6359 = vcmp.ge.f32.partialorder %v6309, 0.0
        %vm6360 = vcmp.ge.f32.partialorder %v6314, 0.0
        %vm6361 = vcmp.ge.f32.partialorder %v6319, 0.0
        %vm6362 = vcmp.ge.f32.partialorder %v6324, 0.0
        %vm6363 = vcmp.ge.f32.partialorder %v6329, 0.0
        %vm6364 = vcmp.ge.f32.partialorder %v6334, 0.0
        %vm6365 = vcmp.ge.f32.partialorder %v6339, 0.0
        %vm6366 = vcmp.ge.f32.partialorder %v6344, 0.0
        %vm6367 = vcmp.ge.f32.partialorder %v6349, 0.0
        %v6368 = vmul.f32 %v6274, 0.2
        %v6369 = vmul.f32 %v6279, 0.2
        %v6370 = vmul.f32 %v6284, 0.2
        %v6371 = vmul.f32 %v6289, 0.2
        %v6372 = vmul.f32 %v6294, 0.2
        %v6373 = vmul.f32 %v6299, 0.2
        %v6374 = vmul.f32 %v6304, 0.2
        %v6375 = vmul.f32 %v6309, 0.2
        %v6376 = vmul.f32 %v6314, 0.2
        %v6377 = vmul.f32 %v6319, 0.2
        %v6378 = vmul.f32 %v6324, 0.2
        %v6379 = vmul.f32 %v6329, 0.2
        %v6380 = vmul.f32 %v6334, 0.2
        %v6381 = vmul.f32 %v6339, 0.2
        %v6382 = vmul.f32 %v6344, 0.2
        %v6383 = vmul.f32 %v6349, 0.2
        %v6384 = vsel %vm6352, %v6274, %v6368
        %v6385 = vsel %vm6353, %v6279, %v6369
        %v6386 = vsel %vm6354, %v6284, %v6370
        %v6387 = vsel %vm6355, %v6289, %v6371
        %v6388 = vsel %vm6356, %v6294, %v6372
        %v6389 = vsel %vm6357, %v6299, %v6373
        %v6390 = vsel %vm6358, %v6304, %v6374
        %v6391 = vsel %vm6359, %v6309, %v6375
        %v6392 = vsel %vm6360, %v6314, %v6376
        %v6393 = vsel %vm6361, %v6319, %v6377
        %v6394 = vsel %vm6362, %v6324, %v6378
        %v6395 = vsel %vm6363, %v6329, %v6379
        %v6396 = vsel %vm6364, %v6334, %v6380
        %v6397 = vsel %vm6365, %v6339, %v6381
        %v6398 = vsel %vm6366, %v6344, %v6382
        %v6399 = vsel %vm6367, %v6349, %v6383
        %v6400 = vpack.c.bf16 %v6385, %v6384
        %v6401 = vpack.c.bf16 %v6387, %v6386
        %v6402 = vpack.c.bf16 %v6389, %v6388
        %v6403 = vpack.c.bf16 %v6391, %v6390
        %v6404 = vpack.c.bf16 %v6393, %v6392
        %v6405 = vpack.c.bf16 %v6395, %v6394
        %v6406 = vpack.c.bf16 %v6397, %v6396
        %v6407 = vpack.c.bf16 %v6399, %v6398
        %v6408 = vld [vmem:[#allocation11] sm:$0xf]
        %v6409 = vld [vmem:[#allocation11 + $0x4] sm:$0xf]
        %v6410 = vld [vmem:[#allocation11 + $0x8] sm:$0xf]
        %v6411 = vld [vmem:[#allocation11 + $0xc] sm:$0xf]
        %v6412 = vld [vmem:[#allocation11 + $0x10] sm:$0xf]
        %v6413 = vld [vmem:[#allocation11 + $0x14] sm:$0xf]
        %v6414 = vld [vmem:[#allocation11 + $0x18] sm:$0xf]
        %v6415 = vld [vmem:[#allocation11 + $0x1c] sm:$0xf]
        %v6416 = vld [vmem:[%s16] sm:$0x1]
        %v6418 = vlaneseq
        %v6419 = vshrl.u32 %v6418, 7
        %v6420 = vsub.s32 0, %v6419
        %v6421 = vrot.slane %v6416, %v6420
        %v6431 = vunpack.c.l.b16 %v6408
        %v6432 = vunpack.c.l.b16 %v6409
        %v6433 = vunpack.c.l.b16 %v6410
        %v6434 = vunpack.c.l.b16 %v6411
        %v6435 = vunpack.c.l.b16 %v6412
        %v6436 = vunpack.c.l.b16 %v6413
        %v6437 = vunpack.c.l.b16 %v6414
        %v6438 = vunpack.c.l.b16 %v6415
        %v6439 = vpack.c.b16 %v6432, %v6431
        %v6440 = vpack.c.b16 %v6434, %v6433
        %v6441 = vpack.c.b16 %v6436, %v6435
        %v6442 = vpack.c.b16 %v6438, %v6437
        %v6448 = vsel %vm1165, %v6400, 0
        %v6451 = vsel %vm1165, %v6401, 0
        %v6454 = vsel %vm1165, %v6402, 0
        %v6457 = vsel %vm1165, %v6403, 0
        %v6460 = vsel %vm1165, %v6404, 0
        %v6463 = vsel %vm1165, %v6405, 0
        %v6466 = vsel %vm1165, %v6406, 0
        %v6469 = vsel %vm1165, %v6407, 0
        %6471 = vmatprep.subr.bf16.mxu0 0
        %6472 = vmatpush1.bf16.msra.mxu0 0
        %6473 = vmatprep.subr.bf16.mxu0 0
        %6474 = vmatpush1.bf16.msra.mxu0 0
        %6475 = vmatprep.subr.bf16.mxu0 0
        %6476 = vmatpush1.bf16.msra.mxu0 0
        %6477 = vmatprep.subr.bf16.mxu0 0
        %6478 = vmatpush1.bf16.msra.mxu0 0
        %6479 = vmatprep.subr.bf16.mxu0 0
        %6480 = vmatpush1.bf16.msra.mxu0 %v6442
        %6481 = vmatprep.subr.bf16.mxu0 0
        %6482 = vmatpush1.bf16.msra.mxu0 %v6441
        %6483 = vmatprep.subr.bf16.mxu0 0
        %6484 = vmatpush1.bf16.msra.mxu0 %v6440
        %6485 = vmatprep.subr.bf16.mxu0 0
        %6486 = vmatpush1.bf16.msra.mxu0 %v6439
        %6487 = vmatprep.subr.bf16.mxu0 0
        %6488 = vmatpush2.bf16.msra.mxu0 0
        %6489 = vmatprep.subr.bf16.mxu0 0
        %6490 = vmatpush2.bf16.msra.mxu0 0
        %6491 = vmatprep.subr.bf16.mxu0 0
        %6492 = vmatpush2.bf16.msra.mxu0 0
        %6493 = vmatprep.subr.bf16.mxu0 0
        %6494 = vmatpush2.bf16.msra.mxu0 0
        %6495 = vmatprep.subr.bf16.mxu0 0
        %6496 = vmatpush2.bf16.msra.mxu0 0
        %6497 = vmatprep.subr.bf16.mxu0 0
        %6498 = vmatpush2.bf16.msra.mxu0 0
        %6499 = vmatprep.subr.bf16.mxu0 0
        %6500 = vmatpush2.bf16.msra.mxu0 0
        %6501 = vmatprep.subr.bf16.mxu0 0
        %6502 = vmatpush2.bf16.msra.mxu0 0
        %6503 = vmatprep.mubr.bf16.mxu0 0
        %6504 = vmatmul.mubr.bf16.gmra.mxu0 %v6448
        %v6505 = vpop.f32.mrf.mxu0
        %v6506 = vadd.f32 %v6421, %v6505
        %v6507 = vpop.f32.mrf.mxu0
        %v6508 = vpop.f32.mrf.mxu0
        %v6509 = vadd.f32 %v6421, %v6508
        %v6510 = vpop.f32.mrf.mxu0
        %6511 = vmatprep.mubr.bf16.mxu0 0
        %6512 = vmatmul.mubr.bf16.gmra.mxu0 %v6451
        %v6513 = vpop.f32.mrf.mxu0
        %v6514 = vadd.f32 %v6421, %v6513
        %v6515 = vpop.f32.mrf.mxu0
        %v6516 = vpop.f32.mrf.mxu0
        %v6517 = vadd.f32 %v6421, %v6516
        %v6518 = vpop.f32.mrf.mxu0
        %6519 = vmatprep.mubr.bf16.mxu0 0
        %6520 = vmatmul.mubr.bf16.gmra.mxu0 %v6454
        %v6521 = vpop.f32.mrf.mxu0
        %v6522 = vadd.f32 %v6421, %v6521
        %v6523 = vpop.f32.mrf.mxu0
        %v6524 = vpop.f32.mrf.mxu0
        %v6525 = vadd.f32 %v6421, %v6524
        %v6526 = vpop.f32.mrf.mxu0
        %6527 = vmatprep.mubr.bf16.mxu0 0
        %6528 = vmatmul.mubr.bf16.gmra.mxu0 %v6457
        %v6529 = vpop.f32.mrf.mxu0
        %v6530 = vadd.f32 %v6421, %v6529
        %v6531 = vpop.f32.mrf.mxu0
        %v6532 = vpop.f32.mrf.mxu0
        %v6533 = vadd.f32 %v6421, %v6532
        %v6534 = vpop.f32.mrf.mxu0
        %6535 = vmatprep.mubr.bf16.mxu0 0
        %6536 = vmatmul.mubr.bf16.gmra.mxu0 %v6460
        %v6537 = vpop.f32.mrf.mxu0
        %v6538 = vadd.f32 %v6421, %v6537
        %v6539 = vpop.f32.mrf.mxu0
        %v6540 = vpop.f32.mrf.mxu0
        %v6541 = vadd.f32 %v6421, %v6540
        %v6542 = vpop.f32.mrf.mxu0
        %6543 = vmatprep.mubr.bf16.mxu0 0
        %6544 = vmatmul.mubr.bf16.gmra.mxu0 %v6463
        %v6545 = vpop.f32.mrf.mxu0
        %v6546 = vadd.f32 %v6421, %v6545
        %v6547 = vpop.f32.mrf.mxu0
        %v6548 = vpop.f32.mrf.mxu0
        %v6549 = vadd.f32 %v6421, %v6548
        %v6550 = vpop.f32.mrf.mxu0
        %6551 = vmatprep.mubr.bf16.mxu0 0
        %6552 = vmatmul.mubr.bf16.gmra.mxu0 %v6466
        %v6553 = vpop.f32.mrf.mxu0
        %v6554 = vadd.f32 %v6421, %v6553
        %v6555 = vpop.f32.mrf.mxu0
        %v6556 = vpop.f32.mrf.mxu0
        %v6557 = vadd.f32 %v6421, %v6556
        %v6558 = vpop.f32.mrf.mxu0
        %6559 = vmatprep.mubr.bf16.mxu0 0
        %6560 = vmatmul.mubr.bf16.gmra.mxu0 %v6469
        %v6561 = vpop.f32.mrf.mxu0
        %v6562 = vadd.f32 %v6421, %v6561
        %v6563 = vpop.f32.mrf.mxu0
        %v6564 = vpop.f32.mrf.mxu0
        %v6565 = vadd.f32 %v6421, %v6564
        %v6566 = vpop.f32.mrf.mxu0
        %6567 = vdwg.mxu0
        %vm6568 = vcmp.ge.f32.partialorder %v6506, 0.0
        %vm6569 = vcmp.ge.f32.partialorder %v6509, 0.0
        %vm6570 = vcmp.ge.f32.partialorder %v6514, 0.0
        %vm6571 = vcmp.ge.f32.partialorder %v6517, 0.0
        %vm6572 = vcmp.ge.f32.partialorder %v6522, 0.0
        %vm6573 = vcmp.ge.f32.partialorder %v6525, 0.0
        %vm6574 = vcmp.ge.f32.partialorder %v6530, 0.0
        %vm6575 = vcmp.ge.f32.partialorder %v6533, 0.0
        %vm6576 = vcmp.ge.f32.partialorder %v6538, 0.0
        %vm6577 = vcmp.ge.f32.partialorder %v6541, 0.0
        %vm6578 = vcmp.ge.f32.partialorder %v6546, 0.0
        %vm6579 = vcmp.ge.f32.partialorder %v6549, 0.0
        %vm6580 = vcmp.ge.f32.partialorder %v6554, 0.0
        %vm6581 = vcmp.ge.f32.partialorder %v6557, 0.0
        %vm6582 = vcmp.ge.f32.partialorder %v6562, 0.0
        %vm6583 = vcmp.ge.f32.partialorder %v6565, 0.0
        %v6584 = vmul.f32 %v6506, 0.2
        %v6585 = vmul.f32 %v6509, 0.2
        %v6586 = vmul.f32 %v6514, 0.2
        %v6587 = vmul.f32 %v6517, 0.2
        %v6588 = vmul.f32 %v6522, 0.2
        %v6589 = vmul.f32 %v6525, 0.2
        %v6590 = vmul.f32 %v6530, 0.2
        %v6591 = vmul.f32 %v6533, 0.2
        %v6592 = vmul.f32 %v6538, 0.2
        %v6593 = vmul.f32 %v6541, 0.2
        %v6594 = vmul.f32 %v6546, 0.2
        %v6595 = vmul.f32 %v6549, 0.2
        %v6596 = vmul.f32 %v6554, 0.2
        %v6597 = vmul.f32 %v6557, 0.2
        %v6598 = vmul.f32 %v6562, 0.2
        %v6599 = vmul.f32 %v6565, 0.2
        %v6600 = vsel %vm6568, %v6506, %v6584
        %v6601 = vsel %vm6569, %v6509, %v6585
        %v6602 = vsel %vm6570, %v6514, %v6586
        %v6603 = vsel %vm6571, %v6517, %v6587
        %v6604 = vsel %vm6572, %v6522, %v6588
        %v6605 = vsel %vm6573, %v6525, %v6589
        %v6606 = vsel %vm6574, %v6530, %v6590
        %v6607 = vsel %vm6575, %v6533, %v6591
        %v6608 = vsel %vm6576, %v6538, %v6592
        %v6609 = vsel %vm6577, %v6541, %v6593
        %v6610 = vsel %vm6578, %v6546, %v6594
        %v6611 = vsel %vm6579, %v6549, %v6595
        %v6612 = vsel %vm6580, %v6554, %v6596
        %v6613 = vsel %vm6581, %v6557, %v6597
        %v6614 = vsel %vm6582, %v6562, %v6598
        %v6615 = vsel %vm6583, %v6565, %v6599
        %6616 = vmatprep.subr.mxu0 0.0
        %6617 = vmatpush1.msra.mxu0 %v6615
        %6618 = vmatprep.subr.mxu0 0.0
        %6619 = vmatpush1.msra.mxu0 %v6614
        %6620 = vmatprep.subr.mxu0 0.0
        %6621 = vmatpush1.msra.mxu0 %v6613
        %6622 = vmatprep.subr.mxu0 0.0
        %6623 = vmatpush1.msra.mxu0 %v6612
        %6624 = vmatprep.subr.mxu0 0.0
        %6625 = vmatpush1.msra.mxu0 %v6611
        %6626 = vmatprep.subr.mxu0 0.0
        %6627 = vmatpush1.msra.mxu0 %v6610
        %6628 = vmatprep.subr.mxu0 0.0
        %6629 = vmatpush1.msra.mxu0 %v6609
        %6630 = vmatprep.subr.mxu0 0.0
        %6631 = vmatpush1.msra.mxu0 %v6608
        %6632 = vmatprep.subr.mxu0 0.0
        %6633 = vmatpush1.msra.mxu0 %v6607
        %6634 = vmatprep.subr.mxu0 0.0
        %6635 = vmatpush1.msra.mxu0 %v6606
        %6636 = vmatprep.subr.mxu0 0.0
        %6637 = vmatpush1.msra.mxu0 %v6605
        %6638 = vmatprep.subr.mxu0 0.0
        %6639 = vmatpush1.msra.mxu0 %v6604
        %6640 = vmatprep.subr.mxu0 0.0
        %6641 = vmatpush1.msra.mxu0 %v6603
        %6642 = vmatprep.subr.mxu0 0.0
        %6643 = vmatpush1.msra.mxu0 %v6602
        %6644 = vmatprep.subr.mxu0 0.0
        %6645 = vmatpush1.msra.mxu0 %v6601
        %6646 = vmatprep.subr.mxu0 0.0
        %6647 = vmatpush1.msra.mxu0 %v6600
        %6648 = vmatprep.subr.mxu0 0.0
        %6649 = vmatpush2.msra.mxu0 0.0
        %6650 = vmatprep.subr.mxu0 0.0
        %6651 = vmatpush2.msra.mxu0 0.0
        %6652 = vmatprep.subr.mxu0 0.0
        %6653 = vmatpush2.msra.mxu0 0.0
        %6654 = vmatprep.subr.mxu0 0.0
        %6655 = vmatpush2.msra.mxu0 0.0
        %6656 = vmatprep.subr.mxu0 0.0
        %6657 = vmatpush2.msra.mxu0 0.0
        %6658 = vmatprep.subr.mxu0 0.0
        %6659 = vmatpush2.msra.mxu0 0.0
        %6660 = vmatprep.subr.mxu0 0.0
        %6661 = vmatpush2.msra.mxu0 0.0
        %6662 = vmatprep.subr.mxu0 0.0
        %6663 = vmatpush2.msra.mxu0 0.0
        %6664 = vmatprep.subr.mxu0 0.0
        %6665 = vmatpush2.msra.mxu0 0.0
        %6666 = vmatprep.subr.mxu0 0.0
        %6667 = vmatpush2.msra.mxu0 0.0
        %6668 = vmatprep.subr.mxu0 0.0
        %6669 = vmatpush2.msra.mxu0 0.0
        %6670 = vmatprep.subr.mxu0 0.0
        %6671 = vmatpush2.msra.mxu0 0.0
        %6672 = vmatprep.subr.mxu0 0.0
        %6673 = vmatpush2.msra.mxu0 0.0
        %6674 = vmatprep.subr.mxu0 0.0
        %6675 = vmatpush2.msra.mxu0 0.0
        %6676 = vmatprep.subr.mxu0 0.0
        %6677 = vmatpush2.msra.mxu0 0.0
        %6678 = vmatprep.subr.mxu0 0.0
        %6679 = vmatpush2.msra.mxu0 0.0
        %6680 = vmatprep.mubr.f32.mxu0 0.0
        %6681 = vmatmul.mubr.f32.gmra.mxu0 %v765
        %v6682 = vpop.f32.mrf.mxu0
        %v6683 = vadd.f32 0.0, %v6682
        %v6684 = vpop.f32.mrf.mxu0
        %6685 = vdwg.mxu0
        %v6686 = vld [vmem:[#allocation13] sm:$0xff]
        %v6687 = vld [vmem:[#allocation13 + $0x8] sm:$0xff]
        %v6688 = vld [vmem:[#allocation13 + $0x10] sm:$0xff]
        %v6689 = vld [vmem:[#allocation13 + $0x18] sm:$0xff]
        %v6690 = vld [vmem:[#allocation13 + $0x20] sm:$0xff]
        %v6691 = vld [vmem:[#allocation13 + $0x28] sm:$0xff]
        %v6692 = vld [vmem:[#allocation13 + $0x30] sm:$0xff]
        %v6693 = vld [vmem:[#allocation13 + $0x38] sm:$0xff]
        %v6694 = vld [vmem:[#allocation13 + $0x40] sm:$0xff]
        %v6695 = vld [vmem:[#allocation13 + $0x48] sm:$0xff]
        %v6696 = vld [vmem:[#allocation13 + $0x50] sm:$0xff]
        %v6697 = vld [vmem:[#allocation13 + $0x58] sm:$0xff]
        %v6698 = vld [vmem:[#allocation13 + $0x60] sm:$0xff]
        %v6699 = vld [vmem:[#allocation13 + $0x68] sm:$0xff]
        %v6700 = vld [vmem:[#allocation13 + $0x70] sm:$0xff]
        %v6701 = vld [vmem:[#allocation13 + $0x78] sm:$0xff]
        %v6702 = vld [vmem:[#allocation13 + $0x80] sm:$0xff]
        %v6703 = vld [vmem:[#allocation13 + $0x88] sm:$0xff]
        %v6704 = vld [vmem:[#allocation13 + $0x90] sm:$0xff]
        %v6705 = vld [vmem:[#allocation13 + $0x98] sm:$0xff]
        %v6706 = vld [vmem:[#allocation13 + $0xa0] sm:$0xff]
        %v6707 = vld [vmem:[#allocation13 + $0xa8] sm:$0xff]
        %v6708 = vld [vmem:[#allocation13 + $0xb0] sm:$0xff]
        %v6709 = vld [vmem:[#allocation13 + $0xb8] sm:$0xff]
        %v6710 = vld [vmem:[#allocation13 + $0xc0] sm:$0xff]
        %v6711 = vld [vmem:[#allocation13 + $0xc8] sm:$0xff]
        %v6712 = vld [vmem:[#allocation13 + $0xd0] sm:$0xff]
        %v6713 = vld [vmem:[#allocation13 + $0xd8] sm:$0xff]
        %v6714 = vld [vmem:[#allocation13 + $0xe0] sm:$0xff]
        %v6715 = vld [vmem:[#allocation13 + $0xe8] sm:$0xff]
        %v6716 = vld [vmem:[#allocation13 + $0xf0] sm:$0xff]
        %v6717 = vld [vmem:[#allocation13 + $0xf8] sm:$0xff]
        %v6718 = vld [vmem:[#allocation13 + $0x100] sm:$0xff]
        %v6719 = vld [vmem:[#allocation13 + $0x108] sm:$0xff]
        %v6720 = vld [vmem:[#allocation13 + $0x110] sm:$0xff]
        %v6721 = vld [vmem:[#allocation13 + $0x118] sm:$0xff]
        %v6722 = vld [vmem:[#allocation13 + $0x120] sm:$0xff]
        %v6723 = vld [vmem:[#allocation13 + $0x128] sm:$0xff]
        %v6724 = vld [vmem:[#allocation13 + $0x130] sm:$0xff]
        %v6725 = vld [vmem:[#allocation13 + $0x138] sm:$0xff]
        %v6726 = vld [vmem:[#allocation13 + $0x140] sm:$0xff]
        %v6727 = vld [vmem:[#allocation13 + $0x148] sm:$0xff]
        %v6728 = vld [vmem:[#allocation13 + $0x150] sm:$0xff]
        %v6729 = vld [vmem:[#allocation13 + $0x158] sm:$0xff]
        %v6730 = vld [vmem:[#allocation13 + $0x160] sm:$0xff]
        %v6731 = vld [vmem:[#allocation13 + $0x168] sm:$0xff]
        %v6732 = vld [vmem:[#allocation13 + $0x170] sm:$0xff]
        %v6733 = vld [vmem:[#allocation13 + $0x178] sm:$0xff]
        %v6734 = vld [vmem:[#allocation13 + $0x180] sm:$0xff]
        %v6735 = vld [vmem:[#allocation13 + $0x188] sm:$0xff]
        %v6736 = vld [vmem:[#allocation13 + $0x190] sm:$0xff]
        %v6737 = vld [vmem:[#allocation13 + $0x198] sm:$0xff]
        %v6738 = vld [vmem:[#allocation13 + $0x1a0] sm:$0xff]
        %v6739 = vld [vmem:[#allocation13 + $0x1a8] sm:$0xff]
        %v6740 = vld [vmem:[#allocation13 + $0x1b0] sm:$0xff]
        %v6741 = vld [vmem:[#allocation13 + $0x1b8] sm:$0xff]
        %v6742 = vld [vmem:[#allocation13 + $0x1c0] sm:$0xff]
        %v6743 = vld [vmem:[#allocation13 + $0x1c8] sm:$0xff]
        %v6744 = vld [vmem:[#allocation13 + $0x1d0] sm:$0xff]
        %v6745 = vld [vmem:[#allocation13 + $0x1d8] sm:$0xff]
        %v6746 = vld [vmem:[#allocation13 + $0x1e0] sm:$0xff]
        %v6747 = vld [vmem:[#allocation13 + $0x1e8] sm:$0xff]
        %v6748 = vld [vmem:[#allocation13 + $0x1f0] sm:$0xff]
        %v6749 = vld [vmem:[#allocation13 + $0x1f8] sm:$0xff]
        %v6750 = vld [vmem:[#allocation13 + $0x200] sm:$0xff]
        %v6751 = vld [vmem:[#allocation13 + $0x208] sm:$0xff]
        %v6752 = vld [vmem:[#allocation13 + $0x210] sm:$0xff]
        %v6753 = vld [vmem:[#allocation13 + $0x218] sm:$0xff]
        %v6754 = vld [vmem:[#allocation13 + $0x220] sm:$0xff]
        %v6755 = vld [vmem:[#allocation13 + $0x228] sm:$0xff]
        %v6756 = vld [vmem:[#allocation13 + $0x230] sm:$0xff]
        %v6757 = vld [vmem:[#allocation13 + $0x238] sm:$0xff]
        %v6758 = vld [vmem:[#allocation13 + $0x240] sm:$0xff]
        %v6759 = vld [vmem:[#allocation13 + $0x248] sm:$0xff]
        %v6760 = vld [vmem:[#allocation13 + $0x250] sm:$0xff]
        %v6761 = vld [vmem:[#allocation13 + $0x258] sm:$0xff]
        %v6762 = vld [vmem:[#allocation13 + $0x260] sm:$0xff]
        %v6763 = vld [vmem:[#allocation13 + $0x268] sm:$0xff]
        %v6764 = vld [vmem:[#allocation13 + $0x270] sm:$0xff]
        %v6765 = vld [vmem:[#allocation13 + $0x278] sm:$0xff]
        %v6766 = vld [vmem:[#allocation13 + $0x280] sm:$0xff]
        %v6767 = vld [vmem:[#allocation13 + $0x288] sm:$0xff]
        %v6768 = vld [vmem:[#allocation13 + $0x290] sm:$0xff]
        %v6769 = vld [vmem:[#allocation13 + $0x298] sm:$0xff]
        %v6770 = vld [vmem:[#allocation13 + $0x2a0] sm:$0xff]
        %v6771 = vld [vmem:[#allocation13 + $0x2a8] sm:$0xff]
        %v6772 = vld [vmem:[#allocation13 + $0x2b0] sm:$0xff]
        %v6773 = vld [vmem:[#allocation13 + $0x2b8] sm:$0xff]
        %v6774 = vld [vmem:[#allocation13 + $0x2c0] sm:$0xff]
        %v6775 = vld [vmem:[#allocation13 + $0x2c8] sm:$0xff]
        %v6776 = vld [vmem:[#allocation13 + $0x2d0] sm:$0xff]
        %v6777 = vld [vmem:[#allocation13 + $0x2d8] sm:$0xff]
        %v6778 = vld [vmem:[#allocation13 + $0x2e0] sm:$0xff]
        %v6779 = vld [vmem:[#allocation13 + $0x2e8] sm:$0xff]
        %v6780 = vld [vmem:[#allocation13 + $0x2f0] sm:$0xff]
        %v6781 = vld [vmem:[#allocation13 + $0x2f8] sm:$0xff]
        %v6782 = vld [vmem:[#allocation13 + $0x300] sm:$0xff]
        %v6783 = vld [vmem:[#allocation13 + $0x308] sm:$0xff]
        %v6784 = vld [vmem:[#allocation13 + $0x310] sm:$0xff]
        %v6785 = vld [vmem:[#allocation13 + $0x318] sm:$0xff]
        %v6786 = vld [vmem:[#allocation13 + $0x320] sm:$0xff]
        %v6787 = vld [vmem:[#allocation13 + $0x328] sm:$0xff]
        %v6788 = vld [vmem:[#allocation13 + $0x330] sm:$0xff]
        %v6789 = vld [vmem:[#allocation13 + $0x338] sm:$0xff]
        %v6790 = vld [vmem:[#allocation13 + $0x340] sm:$0xff]
        %v6791 = vld [vmem:[#allocation13 + $0x348] sm:$0xff]
        %v6792 = vld [vmem:[#allocation13 + $0x350] sm:$0xff]
        %v6793 = vld [vmem:[#allocation13 + $0x358] sm:$0xff]
        %v6794 = vld [vmem:[#allocation13 + $0x360] sm:$0xff]
        %v6795 = vld [vmem:[#allocation13 + $0x368] sm:$0xff]
        %v6796 = vld [vmem:[#allocation13 + $0x370] sm:$0xff]
        %v6797 = vld [vmem:[#allocation13 + $0x378] sm:$0xff]
        %v6798 = vld [vmem:[#allocation13 + $0x380] sm:$0xff]
        %v6799 = vld [vmem:[#allocation13 + $0x388] sm:$0xff]
        %v6800 = vld [vmem:[#allocation13 + $0x390] sm:$0xff]
        %v6801 = vld [vmem:[#allocation13 + $0x398] sm:$0xff]
        %v6802 = vld [vmem:[#allocation13 + $0x3a0] sm:$0xff]
        %v6803 = vld [vmem:[#allocation13 + $0x3a8] sm:$0xff]
        %v6804 = vld [vmem:[#allocation13 + $0x3b0] sm:$0xff]
        %v6805 = vld [vmem:[#allocation13 + $0x3b8] sm:$0xff]
        %v6806 = vld [vmem:[#allocation13 + $0x3c0] sm:$0xff]
        %v6807 = vld [vmem:[#allocation13 + $0x3c8] sm:$0xff]
        %v6808 = vld [vmem:[#allocation13 + $0x3d0] sm:$0xff]
        %v6809 = vld [vmem:[#allocation13 + $0x3d8] sm:$0xff]
        %v6810 = vld [vmem:[#allocation13 + $0x3e0] sm:$0xff]
        %v6811 = vld [vmem:[#allocation13 + $0x3e8] sm:$0xff]
        %v6812 = vld [vmem:[#allocation13 + $0x3f0] sm:$0xff]
        %v6813 = vld [vmem:[#allocation13 + $0x3f8] sm:$0xff]
        %v6814 = vld [vmem:[%s18] sm:$0xff]
        %v6815 = vmul.f32 %v6814, 16.0
        %v6817 = vlaneseq
        %v6818 = vshrl.u32 %v6817, 7
        %v6819 = vsub.s32 0, %v6818
        %v6820 = vrot.slane %v6815, %v6819
        %v6821 = vlaneseq
        %v6822 = vshrl.u32 %v6821, 7
        %v6823 = vsub.s32 1, %v6822
        %v6824 = vrot.slane %v6815, %v6823
        %v6825 = vlaneseq
        %v6826 = vshrl.u32 %v6825, 7
        %v6827 = vsub.s32 2, %v6826
        %v6828 = vrot.slane %v6815, %v6827
        %v6829 = vlaneseq
        %v6830 = vshrl.u32 %v6829, 7
        %v6831 = vsub.s32 3, %v6830
        %v6832 = vrot.slane %v6815, %v6831
        %v6833 = vlaneseq
        %v6834 = vshrl.u32 %v6833, 7
        %v6835 = vsub.s32 4, %v6834
        %v6836 = vrot.slane %v6815, %v6835
        %v6837 = vlaneseq
        %v6838 = vshrl.u32 %v6837, 7
        %v6839 = vsub.s32 5, %v6838
        %v6840 = vrot.slane %v6815, %v6839
        %v6841 = vlaneseq
        %v6842 = vshrl.u32 %v6841, 7
        %v6843 = vsub.s32 6, %v6842
        %v6844 = vrot.slane %v6815, %v6843
        %v6845 = vlaneseq
        %v6846 = vshrl.u32 %v6845, 7
        %v6847 = vsub.s32 7, %v6846
        %v6848 = vrot.slane %v6815, %v6847
        %6857 = vmatprep.subr.mxu0 %v6807
        %6858 = vmatpush1.msra.mxu0 %v6806
        %6859 = vmatprep.subr.mxu0 %v6799
        %6860 = vmatpush1.msra.mxu0 %v6798
        %6861 = vmatprep.subr.mxu0 %v6791
        %6862 = vmatpush1.msra.mxu0 %v6790
        %6863 = vmatprep.subr.mxu0 %v6783
        %6864 = vmatpush1.msra.mxu0 %v6782
        %6865 = vmatprep.subr.mxu0 %v6775
        %6866 = vmatpush1.msra.mxu0 %v6774
        %6867 = vmatprep.subr.mxu0 %v6767
        %6868 = vmatpush1.msra.mxu0 %v6766
        %6869 = vmatprep.subr.mxu0 %v6759
        %6870 = vmatpush1.msra.mxu0 %v6758
        %6871 = vmatprep.subr.mxu0 %v6751
        %6872 = vmatpush1.msra.mxu0 %v6750
        %6873 = vmatprep.subr.mxu0 %v6743
        %6874 = vmatpush1.msra.mxu0 %v6742
        %6875 = vmatprep.subr.mxu0 %v6735
        %6876 = vmatpush1.msra.mxu0 %v6734
        %6877 = vmatprep.subr.mxu0 %v6727
        %6878 = vmatpush1.msra.mxu0 %v6726
        %6879 = vmatprep.subr.mxu0 %v6719
        %6880 = vmatpush1.msra.mxu0 %v6718
        %6881 = vmatprep.subr.mxu0 %v6711
        %6882 = vmatpush1.msra.mxu0 %v6710
        %6883 = vmatprep.subr.mxu0 %v6703
        %6884 = vmatpush1.msra.mxu0 %v6702
        %6885 = vmatprep.subr.mxu0 %v6695
        %6886 = vmatpush1.msra.mxu0 %v6694
        %6887 = vmatprep.subr.mxu0 %v6687
        %6888 = vmatpush1.msra.mxu0 %v6686
        %6889 = vmatprep.subr.mxu0 0.0
        %6890 = vmatpush2.msra.mxu0 0.0
        %6891 = vmatprep.subr.mxu0 0.0
        %6892 = vmatpush2.msra.mxu0 0.0
        %6893 = vmatprep.subr.mxu0 0.0
        %6894 = vmatpush2.msra.mxu0 0.0
        %6895 = vmatprep.subr.mxu0 0.0
        %6896 = vmatpush2.msra.mxu0 0.0
        %6897 = vmatprep.subr.mxu0 0.0
        %6898 = vmatpush2.msra.mxu0 0.0
        %6899 = vmatprep.subr.mxu0 0.0
        %6900 = vmatpush2.msra.mxu0 0.0
        %6901 = vmatprep.subr.mxu0 0.0
        %6902 = vmatpush2.msra.mxu0 0.0
        %6903 = vmatprep.subr.mxu0 0.0
        %6904 = vmatpush2.msra.mxu0 0.0
        %6905 = vmatprep.subr.mxu0 0.0
        %6906 = vmatpush2.msra.mxu0 0.0
        %6907 = vmatprep.subr.mxu0 0.0
        %6908 = vmatpush2.msra.mxu0 0.0
        %6909 = vmatprep.subr.mxu0 0.0
        %6910 = vmatpush2.msra.mxu0 0.0
        %6911 = vmatprep.subr.mxu0 0.0
        %6912 = vmatpush2.msra.mxu0 0.0
        %6913 = vmatprep.subr.mxu0 0.0
        %6914 = vmatpush2.msra.mxu0 0.0
        %6915 = vmatprep.subr.mxu0 0.0
        %6916 = vmatpush2.msra.mxu0 0.0
        %6917 = vmatprep.subr.mxu0 0.0
        %6918 = vmatpush2.msra.mxu0 0.0
        %6919 = vmatprep.subr.mxu0 0.0
        %6920 = vmatpush2.msra.mxu0 0.0
        %6921 = vmatprep.mubr.f32.mxu0 0.0
        %6922 = vmatmul.mubr.f32.gmra.mxu0 %v6683
        %v6923 = vpop.f32.mrf.mxu0
        %v6924 = vadd.f32 %v6820, %v6923
        %v6925 = vpop.f32.mrf.mxu0
        %v6926 = vadd.f32 %v6824, %v6925
        %6927 = vdwg.mxu0
        %6928 = vmatprep.subr.mxu0 %v6809
        %6929 = vmatpush1.msra.mxu0 %v6808
        %6930 = vmatprep.subr.mxu0 %v6801
        %6931 = vmatpush1.msra.mxu0 %v6800
        %6932 = vmatprep.subr.mxu0 %v6793
        %6933 = vmatpush1.msra.mxu0 %v6792
        %6934 = vmatprep.subr.mxu0 %v6785
        %6935 = vmatpush1.msra.mxu0 %v6784
        %6936 = vmatprep.subr.mxu0 %v6777
        %6937 = vmatpush1.msra.mxu0 %v6776
        %6938 = vmatprep.subr.mxu0 %v6769
        %6939 = vmatpush1.msra.mxu0 %v6768
        %6940 = vmatprep.subr.mxu0 %v6761
        %6941 = vmatpush1.msra.mxu0 %v6760
        %6942 = vmatprep.subr.mxu0 %v6753
        %6943 = vmatpush1.msra.mxu0 %v6752
        %6944 = vmatprep.subr.mxu0 %v6745
        %6945 = vmatpush1.msra.mxu0 %v6744
        %6946 = vmatprep.subr.mxu0 %v6737
        %6947 = vmatpush1.msra.mxu0 %v6736
        %6948 = vmatprep.subr.mxu0 %v6729
        %6949 = vmatpush1.msra.mxu0 %v6728
        %6950 = vmatprep.subr.mxu0 %v6721
        %6951 = vmatpush1.msra.mxu0 %v6720
        %6952 = vmatprep.subr.mxu0 %v6713
        %6953 = vmatpush1.msra.mxu0 %v6712
        %6954 = vmatprep.subr.mxu0 %v6705
        %6955 = vmatpush1.msra.mxu0 %v6704
        %6956 = vmatprep.subr.mxu0 %v6697
        %6957 = vmatpush1.msra.mxu0 %v6696
        %6958 = vmatprep.subr.mxu0 %v6689
        %6959 = vmatpush1.msra.mxu0 %v6688
        %6960 = vmatprep.subr.mxu0 0.0
        %6961 = vmatpush2.msra.mxu0 0.0
        %6962 = vmatprep.subr.mxu0 0.0
        %6963 = vmatpush2.msra.mxu0 0.0
        %6964 = vmatprep.subr.mxu0 0.0
        %6965 = vmatpush2.msra.mxu0 0.0
        %6966 = vmatprep.subr.mxu0 0.0
        %6967 = vmatpush2.msra.mxu0 0.0
        %6968 = vmatprep.subr.mxu0 0.0
        %6969 = vmatpush2.msra.mxu0 0.0
        %6970 = vmatprep.subr.mxu0 0.0
        %6971 = vmatpush2.msra.mxu0 0.0
        %6972 = vmatprep.subr.mxu0 0.0
        %6973 = vmatpush2.msra.mxu0 0.0
        %6974 = vmatprep.subr.mxu0 0.0
        %6975 = vmatpush2.msra.mxu0 0.0
        %6976 = vmatprep.subr.mxu0 0.0
        %6977 = vmatpush2.msra.mxu0 0.0
        %6978 = vmatprep.subr.mxu0 0.0
        %6979 = vmatpush2.msra.mxu0 0.0
        %6980 = vmatprep.subr.mxu0 0.0
        %6981 = vmatpush2.msra.mxu0 0.0
        %6982 = vmatprep.subr.mxu0 0.0
        %6983 = vmatpush2.msra.mxu0 0.0
        %6984 = vmatprep.subr.mxu0 0.0
        %6985 = vmatpush2.msra.mxu0 0.0
        %6986 = vmatprep.subr.mxu0 0.0
        %6987 = vmatpush2.msra.mxu0 0.0
        %6988 = vmatprep.subr.mxu0 0.0
        %6989 = vmatpush2.msra.mxu0 0.0
        %6990 = vmatprep.subr.mxu0 0.0
        %6991 = vmatpush2.msra.mxu0 0.0
        %6992 = vmatprep.mubr.f32.mxu0 0.0
        %6993 = vmatmul.mubr.f32.gmra.mxu0 %v6683
        %v6994 = vpop.f32.mrf.mxu0
        %v6995 = vadd.f32 %v6828, %v6994
        %v6996 = vpop.f32.mrf.mxu0
        %v6997 = vadd.f32 %v6832, %v6996
        %6998 = vdwg.mxu0
        %6999 = vmatprep.subr.mxu0 %v6811
        %7000 = vmatpush1.msra.mxu0 %v6810
        %7001 = vmatprep.subr.mxu0 %v6803
        %7002 = vmatpush1.msra.mxu0 %v6802
        %7003 = vmatprep.subr.mxu0 %v6795
        %7004 = vmatpush1.msra.mxu0 %v6794
        %7005 = vmatprep.subr.mxu0 %v6787
        %7006 = vmatpush1.msra.mxu0 %v6786
        %7007 = vmatprep.subr.mxu0 %v6779
        %7008 = vmatpush1.msra.mxu0 %v6778
        %7009 = vmatprep.subr.mxu0 %v6771
        %7010 = vmatpush1.msra.mxu0 %v6770
        %7011 = vmatprep.subr.mxu0 %v6763
        %7012 = vmatpush1.msra.mxu0 %v6762
        %7013 = vmatprep.subr.mxu0 %v6755
        %7014 = vmatpush1.msra.mxu0 %v6754
        %7015 = vmatprep.subr.mxu0 %v6747
        %7016 = vmatpush1.msra.mxu0 %v6746
        %7017 = vmatprep.subr.mxu0 %v6739
        %7018 = vmatpush1.msra.mxu0 %v6738
        %7019 = vmatprep.subr.mxu0 %v6731
        %7020 = vmatpush1.msra.mxu0 %v6730
        %7021 = vmatprep.subr.mxu0 %v6723
        %7022 = vmatpush1.msra.mxu0 %v6722
        %7023 = vmatprep.subr.mxu0 %v6715
        %7024 = vmatpush1.msra.mxu0 %v6714
        %7025 = vmatprep.subr.mxu0 %v6707
        %7026 = vmatpush1.msra.mxu0 %v6706
        %7027 = vmatprep.subr.mxu0 %v6699
        %7028 = vmatpush1.msra.mxu0 %v6698
        %7029 = vmatprep.subr.mxu0 %v6691
        %7030 = vmatpush1.msra.mxu0 %v6690
        %7031 = vmatprep.subr.mxu0 0.0
        %7032 = vmatpush2.msra.mxu0 0.0
        %7033 = vmatprep.subr.mxu0 0.0
        %7034 = vmatpush2.msra.mxu0 0.0
        %7035 = vmatprep.subr.mxu0 0.0
        %7036 = vmatpush2.msra.mxu0 0.0
        %7037 = vmatprep.subr.mxu0 0.0
        %7038 = vmatpush2.msra.mxu0 0.0
        %7039 = vmatprep.subr.mxu0 0.0
        %7040 = vmatpush2.msra.mxu0 0.0
        %7041 = vmatprep.subr.mxu0 0.0
        %7042 = vmatpush2.msra.mxu0 0.0
        %7043 = vmatprep.subr.mxu0 0.0
        %7044 = vmatpush2.msra.mxu0 0.0
        %7045 = vmatprep.subr.mxu0 0.0
        %7046 = vmatpush2.msra.mxu0 0.0
        %7047 = vmatprep.subr.mxu0 0.0
        %7048 = vmatpush2.msra.mxu0 0.0
        %7049 = vmatprep.subr.mxu0 0.0
        %7050 = vmatpush2.msra.mxu0 0.0
        %7051 = vmatprep.subr.mxu0 0.0
        %7052 = vmatpush2.msra.mxu0 0.0
        %7053 = vmatprep.subr.mxu0 0.0
        %7054 = vmatpush2.msra.mxu0 0.0
        %7055 = vmatprep.subr.mxu0 0.0
        %7056 = vmatpush2.msra.mxu0 0.0
        %7057 = vmatprep.subr.mxu0 0.0
        %7058 = vmatpush2.msra.mxu0 0.0
        %7059 = vmatprep.subr.mxu0 0.0
        %7060 = vmatpush2.msra.mxu0 0.0
        %7061 = vmatprep.subr.mxu0 0.0
        %7062 = vmatpush2.msra.mxu0 0.0
        %7063 = vmatprep.mubr.f32.mxu0 0.0
        %7064 = vmatmul.mubr.f32.gmra.mxu0 %v6683
        %v7065 = vpop.f32.mrf.mxu0
        %v7066 = vadd.f32 %v6836, %v7065
        %v7067 = vpop.f32.mrf.mxu0
        %v7068 = vadd.f32 %v6840, %v7067
        %7069 = vdwg.mxu0
        %7070 = vmatprep.subr.mxu0 %v6813
        %7071 = vmatpush1.msra.mxu0 %v6812
        %7072 = vmatprep.subr.mxu0 %v6805
        %7073 = vmatpush1.msra.mxu0 %v6804
        %7074 = vmatprep.subr.mxu0 %v6797
        %7075 = vmatpush1.msra.mxu0 %v6796
        %7076 = vmatprep.subr.mxu0 %v6789
        %7077 = vmatpush1.msra.mxu0 %v6788
        %7078 = vmatprep.subr.mxu0 %v6781
        %7079 = vmatpush1.msra.mxu0 %v6780
        %7080 = vmatprep.subr.mxu0 %v6773
        %7081 = vmatpush1.msra.mxu0 %v6772
        %7082 = vmatprep.subr.mxu0 %v6765
        %7083 = vmatpush1.msra.mxu0 %v6764
        %7084 = vmatprep.subr.mxu0 %v6757
        %7085 = vmatpush1.msra.mxu0 %v6756
        %7086 = vmatprep.subr.mxu0 %v6749
        %7087 = vmatpush1.msra.mxu0 %v6748
        %7088 = vmatprep.subr.mxu0 %v6741
        %7089 = vmatpush1.msra.mxu0 %v6740
        %7090 = vmatprep.subr.mxu0 %v6733
        %7091 = vmatpush1.msra.mxu0 %v6732
        %7092 = vmatprep.subr.mxu0 %v6725
        %7093 = vmatpush1.msra.mxu0 %v6724
        %7094 = vmatprep.subr.mxu0 %v6717
        %7095 = vmatpush1.msra.mxu0 %v6716
        %7096 = vmatprep.subr.mxu0 %v6709
        %7097 = vmatpush1.msra.mxu0 %v6708
        %7098 = vmatprep.subr.mxu0 %v6701
        %7099 = vmatpush1.msra.mxu0 %v6700
        %7100 = vmatprep.subr.mxu0 %v6693
        %7101 = vmatpush1.msra.mxu0 %v6692
        %7102 = vmatprep.subr.mxu0 0.0
        %7103 = vmatpush2.msra.mxu0 0.0
        %7104 = vmatprep.subr.mxu0 0.0
        %7105 = vmatpush2.msra.mxu0 0.0
        %7106 = vmatprep.subr.mxu0 0.0
        %7107 = vmatpush2.msra.mxu0 0.0
        %7108 = vmatprep.subr.mxu0 0.0
        %7109 = vmatpush2.msra.mxu0 0.0
        %7110 = vmatprep.subr.mxu0 0.0
        %7111 = vmatpush2.msra.mxu0 0.0
        %7112 = vmatprep.subr.mxu0 0.0
        %7113 = vmatpush2.msra.mxu0 0.0
        %7114 = vmatprep.subr.mxu0 0.0
        %7115 = vmatpush2.msra.mxu0 0.0
        %7116 = vmatprep.subr.mxu0 0.0
        %7117 = vmatpush2.msra.mxu0 0.0
        %7118 = vmatprep.subr.mxu0 0.0
        %7119 = vmatpush2.msra.mxu0 0.0
        %7120 = vmatprep.subr.mxu0 0.0
        %7121 = vmatpush2.msra.mxu0 0.0
        %7122 = vmatprep.subr.mxu0 0.0
        %7123 = vmatpush2.msra.mxu0 0.0
        %7124 = vmatprep.subr.mxu0 0.0
        %7125 = vmatpush2.msra.mxu0 0.0
        %7126 = vmatprep.subr.mxu0 0.0
        %7127 = vmatpush2.msra.mxu0 0.0
        %7128 = vmatprep.subr.mxu0 0.0
        %7129 = vmatpush2.msra.mxu0 0.0
        %7130 = vmatprep.subr.mxu0 0.0
        %7131 = vmatpush2.msra.mxu0 0.0
        %7132 = vmatprep.subr.mxu0 0.0
        %7133 = vmatpush2.msra.mxu0 0.0
        %7134 = vmatprep.mubr.f32.mxu0 0.0
        %7135 = vmatmul.mubr.f32.gmra.mxu0 %v6683
        %v7136 = vpop.f32.mrf.mxu0
        %v7137 = vadd.f32 %v6844, %v7136
        %v7138 = vpop.f32.mrf.mxu0
        %v7139 = vadd.f32 %v6848, %v7138
        %7140 = vdwg.mxu0
        %7141 = vst [vmem:[%s723] sm:$0xff] %v6924
        %7142 = vst [vmem:[%s723 + $0x8] sm:$0xff] %v6926
        %7143 = vst [vmem:[%s723 + $0x10] sm:$0xff] %v6995
        %7144 = vst [vmem:[%s723 + $0x18] sm:$0xff] %v6997
        %7145 = vst [vmem:[%s723 + $0x20] sm:$0xff] %v7066
        %7146 = vst [vmem:[%s723 + $0x28] sm:$0xff] %v7068
        %7147 = vst [vmem:[%s723 + $0x30] sm:$0xff] %v7137
        %7148 = vst [vmem:[%s723 + $0x38] sm:$0xff] %v7139
        %s7149 = sand.u32 %s454, 1
        %s7150 = scalar_lea.sflag [#allocation4], %s7149
        %s7151 = sand.u32 %s454, 1
        %s7152 = smul.addr %s7151, 64
        %s7153 = scalar_lea.vmem [#allocation14], %s7152
        %s7154 = sand.u32 %s480, 1
        %s7155 = scalar_lea.sflag [#allocation16], %s7154
        %s7156 = sand.u32 %s480, 1
        %s7157 = smul.addr %s7156, 8
        %s7158 = scalar_lea.vmem [#allocation15], %s7157
        // Predicated region
        $region125: #{tpu_custom_call.1} parent=95 // pred_check
          %p7159 = pneg %p464
        $region126: #{tpu_custom_call.1} parent=95 // pred_check_branch
          %7161 = sbr.rel (%p7159) target = $region128
        $region127: #{tpu_custom_call.1} parent=95 // pred_region
          %s7163 = ssub.s32 1024, 1024
          %7164 = vsyncadd %s7150, %s7163
          %s7165 = smul.addr %s42, 8
          %s7166 = smul.addr %s7165, 128
          %s7167 = scalar_lea.hbm %s19, %s7166
          %s7169 = sshll.u32 %s7153, 4
          %s7170 = int_to_ptr.vmem [resolvable:$true] %s7169
          %7172 = dma.vmem_to_hbm [thread:$0]  %s7170, 1024, %s7167, %s7150
        $region128: #{tpu_custom_call.1} parent=95 // pred_fallthru
          _
        // Predicated region
        $region129: #{tpu_custom_call.1} parent=95 // pred_check
          %p7173 = pneg %p490
        $region130: #{tpu_custom_call.1} parent=95 // pred_check_branch
          %7175 = sbr.rel (%p7173) target = $region132
        $region131: #{tpu_custom_call.1} parent=95 // pred_region
          %s7177 = ssub.s32 128, 128
          %7178 = vsyncadd %s7155, %s7177
          %s7179 = smul.addr %s42, 128
          %s7180 = scalar_lea.hbm %s20, %s7179
          %s7182 = sshll.u32 %s7158, 4
          %s7183 = int_to_ptr.vmem [resolvable:$true] %s7182
          %7185 = dma.vmem_to_hbm [thread:$0]  %s7183, 128, %s7180, %s7155
        $region132: #{tpu_custom_call.1} parent=95 // pred_fallthru
          _
      $region96: #{tpu_custom_call.1} parent=5 // pred_fallthru
        _
      %p7186 = scmp.le.s32.totalorder 2, %s37
      // Predicated region
      $region133: #{tpu_custom_call.1} parent=5 // pred_check
        %p7187 = pneg %p7186
      $region134: #{tpu_custom_call.1} parent=5 // pred_check_branch
        %7189 = sbr.rel (%p7187) target = $region136
      $region135: #{tpu_custom_call.1} parent=5 // pred_region
        %s7190 = ssub.s32 %s37, 2
        // Predicated region
        $region137: #{tpu_custom_call.1} parent=135 // pred_check
          %p7191 = pneg %p470
        $region138: #{tpu_custom_call.1} parent=135 // pred_check_branch
          %7193 = sbr.rel (%p7191) target = $region140
        $region139: #{tpu_custom_call.1} parent=135 // pred_region
          %s7194 = sand.u32 %s455, 1
          %s7195 = scalar_lea.sflag [#allocation4], %s7194
          %s7196 = sand.u32 %s455, 1
          %s7197 = smul.addr %s7196, 64
          %s7198 = scalar_lea.vmem [#allocation14], %s7197
          %7199 = dma.done %s7195, 1024
        $region140: #{tpu_custom_call.1} parent=135 // pred_fallthru
          _
        // Predicated region
        $region141: #{tpu_custom_call.1} parent=135 // pred_check
          %p7200 = pneg %p496
        $region142: #{tpu_custom_call.1} parent=135 // pred_check_branch
          %7202 = sbr.rel (%p7200) target = $region144
        $region143: #{tpu_custom_call.1} parent=135 // pred_region
          %s7203 = sand.u32 %s481, 1
          %s7204 = scalar_lea.sflag [#allocation16], %s7203
          %s7205 = sand.u32 %s481, 1
          %s7206 = smul.addr %s7205, 8
          %s7207 = scalar_lea.vmem [#allocation15], %s7206
          %7208 = dma.done %s7204, 128
        $region144: #{tpu_custom_call.1} parent=135 // pred_fallthru
          _
      $region136: #{tpu_custom_call.1} parent=5 // pred_fallthru
        _
    $region6: #{tpu_custom_call.1} parent=1 // loop_footer
      %s41 = sadd.s32 1, %s37
    $region7: #{tpu_custom_call.1} parent=1 // loop_footer_branch
      %36 = sbr.rel target = $region3
    $region8: #{tpu_custom_call.1} parent=1 // loop_exit
      _
    %7209 = vsyncpa [#allocation3], 1
    %s7210 = scalar_lea.sflag [#allocation3], 1
    %7211 = vsyncpa %s7210, 1
    %7212 = vsyncpa [#allocation6], 1
    %7213 = vsyncpa [#allocation9], 1
    %7214 = vsyncpa [#allocation12], 1
    %7215 = vsyncpa [#allocation4], 1
    %s7216 = scalar_lea.sflag [#allocation4], 1
    %7217 = vsyncpa %s7216, 1
    %7218 = vsyncpa [#allocation16], 1
    %s7219 = scalar_lea.sflag [#allocation16], 1
    %7220 = vsyncpa %s7219, 1

</llo_original>
